<compile_context>
chip_gen: v7x
topology: tpu7x:2x2x1
jax: 0.10.0
libtpu: 0.0.40
codegen_flags: <defaults>
</compile_context>

<pallas_src>
import functools

import jax
import jax.numpy as jnp
from jax import lax
from jax.experimental import pallas as pl
from jax.experimental.pallas import tpu as pltpu

MAX_NUM_STEPS = 1000  # as in the PyTorch module

# ---------------------------------------------------------------------------
# Dormand-Prince (dopri5) Butcher tableau
# ---------------------------------------------------------------------------
_A = (
    (1 / 5,),
    (3 / 40, 9 / 40),
    (44 / 45, -56 / 15, 32 / 9),
    (19372 / 6561, -25360 / 2187, 64448 / 6561, -212 / 729),
    (9017 / 3168, -355 / 33, 46732 / 5247, 49 / 176, -5103 / 18656),
    (35 / 384, 0.0, 500 / 1113, 125 / 192, -2187 / 6784, 11 / 84),
)
_C = (1 / 5, 3 / 10, 4 / 5, 8 / 9, 1.0, 1.0)
_B5 = (35 / 384, 0.0, 500 / 1113, 125 / 192, -2187 / 6784, 11 / 84, 0.0)
_B4 = (5179 / 57600, 0.0, 7571 / 16695, 393 / 640, -92097 / 339200,
       187 / 2100, 1 / 40)
_E = tuple(b5 - b4 for b5, b4 in zip(_B5, _B4))


# ---------------------------------------------------------------------------
# Fully fused kernel: the whole dopri5 integration in one pallas_call
# ---------------------------------------------------------------------------
def _make_fused_ode_kernel(B, H, W, C, F, tol, dt0):
    BHW = B * H * W
    rtol = atol = float(tol)

    def kernel(x_ref, w1x_ref, w1t_ref, b1_ref, w2c_ref, b2_ref, tmap2_ref,
               w3x_ref, w3t_ref, b3_ref,
               mtop_ref, mbot_ref, mleft_ref, mright_ref, out_ref):

        # ---- one evaluation of f(t, y): all three Conv2dTime layers ---------
        def odefunc(t, y):
            # conv1: 1x1 Conv2dTime -> (F, C) @ (C, BHW) on the MXU (bf16
            # operands, f32 accumulate) + t-channel term + bias.
            h1 = jnp.dot(w1x_ref[...], y.astype(jnp.bfloat16),
                         preferred_element_type=jnp.float32)
            h1 = jnp.maximum(h1 + t * w1t_ref[...] + b1_ref[...], 0.0)

            # conv2: 3x3 Conv2dTime (pad 1), scratch-free:
            #   dh taps on the input side  (lane rolls by +-W, masked at the
            #   image top/bottom rows), stacked to (3F, BHW);
            #   ONE (3F, 3F) @ (3F, BHW) matmul (dw-concatenated weights);
            #   dw taps on the output side (lane rolls by +-1, masked at the
            #   image left/right columns).
            top = pltpu.roll(h1, W, axis=1) * mtop_ref[...]          # h-1 row
            bot = pltpu.roll(h1, BHW - W, axis=1) * mbot_ref[...]    # h+1 row
            stack = jnp.concatenate([top, h1, bot],
                                    axis=0).astype(jnp.bfloat16)
            m = jnp.dot(w2c_ref[...], stack,
                        preferred_element_type=jnp.float32)
            acc = (pltpu.roll(m[0:F, :], 1, axis=1) * mleft_ref[...]  # w-1 col
                   + m[F:2 * F, :]
                   + pltpu.roll(m[2 * F:3 * F, :], BHW - 1, axis=1)
                   * mright_ref[...])                                 # w+1 col
            # conv2 time channel: precomputed per-pixel map (accounts for the
            # zero padding of the constant-t image) scaled by t, plus bias.
            h2 = jnp.maximum(acc + t * tmap2_ref[...] + b2_ref[...], 0.0)

            # conv3: 1x1 Conv2dTime
            out = jnp.dot(w3x_ref[...], h2.astype(jnp.bfloat16),
                          preferred_element_type=jnp.float32)
            return out + t * w3t_ref[...] + b3_ref[...]

        y0 = x_ref[...]
        k1_0 = odefunc(jnp.float32(0.0), y0)          # FSAL first stage

        # ---- adaptive dopri5 loop, entirely inside the kernel ---------------
        def loop_cond(carry):
            t, _, n, _, _ = carry
            return jnp.logical_and(t < 1.0, n < MAX_NUM_STEPS)

        def loop_body(carry):
            t, dt, n, y, k1 = carry
            # TODO(synk): torchdiffeq never clips the step; it integrates past
            # the endpoint and evaluates t=1 with 4th-order dense output.
            # Clipping keeps the same order/tolerance with a slightly
            # different step sequence.
            dt = jnp.minimum(dt, 1.0 - t)

            k2 = odefunc(t + _C[0] * dt, y + dt * (_A[0][0] * k1))
            k3 = odefunc(t + _C[1] * dt,
                         y + dt * (_A[1][0] * k1 + _A[1][1] * k2))
            k4 = odefunc(t + _C[2] * dt,
                         y + dt * (_A[2][0] * k1 + _A[2][1] * k2
                                   + _A[2][2] * k3))
            k5 = odefunc(t + _C[3] * dt,
                         y + dt * (_A[3][0] * k1 + _A[3][1] * k2
                                   + _A[3][2] * k3 + _A[3][3] * k4))
            k6 = odefunc(t + _C[4] * dt,
                         y + dt * (_A[4][0] * k1 + _A[4][1] * k2
                                   + _A[4][2] * k3 + _A[4][3] * k4
                                   + _A[4][4] * k5))
            y_new = y + dt * (_A[5][0] * k1 + _A[5][2] * k3 + _A[5][3] * k4
                              + _A[5][4] * k5 + _A[5][5] * k6)
            k7 = odefunc(t + dt, y_new)               # FSAL last stage

            err = dt * (_E[0] * k1 + _E[2] * k3 + _E[3] * k4 + _E[4] * k5
                        + _E[5] * k6 + _E[6] * k7)
            scale = atol + rtol * jnp.maximum(jnp.abs(y), jnp.abs(y_new))
            ratio = err / scale
            r = jnp.maximum(jnp.mean(ratio * ratio), 1e-20)   # = rms_norm**2
            accept = r <= 1.0
            # TODO(synk): if the state diverges (r = NaN) the loop rejects
            # until MAX_NUM_STEPS instead of raising like torchdiffeq.

            # step factor 0.9 * rms**-(1/5) = 0.9 * r**-0.1; transcendentals on
            # a single vreg (EUP slot), one reduce back to a scalar.
            rv = jnp.full((1, 128), r, jnp.float32)
            fv = jnp.clip(0.9 * jnp.exp(-0.1 * jnp.log(rv)), 0.2, 10.0)
            factor = jnp.max(fv)
            # torchdiffeq clamps the factor at >= 1 after an accepted step.
            factor = jnp.where(accept, jnp.maximum(factor, 1.0), factor)

            y_next = jnp.where(accept, y_new, y)
            k1_next = jnp.where(accept, k7, k1)
            t_next = jnp.where(accept, t + dt, t)
            return (t_next, dt * factor, n + 1, y_next, k1_next)

        # TODO(synk): torchdiffeq selects the initial step adaptively and
        # raises if MAX_NUM_STEPS is exceeded; here dt0 is fixed and the loop
        # simply stops (count includes rejected steps, as before).
        carry0 = (jnp.float32(0.0), jnp.float32(dt0), jnp.int32(0), y0, k1_0)
        carry = lax.while_loop(loop_cond, loop_body, carry0)
        out_ref[...] = carry[3]

    vmem = pl.BlockSpec(memory_space=pltpu.MemorySpace.VMEM)
    # TODO(synk): gridless single-TensorCore design; for much larger B/H/W add
    # a 'parallel' grid over batch / row bands (to use v7x's second core) and
    # budget VMEM explicitly (v7x has only 64 MiB).  At B=2, 16x16 the whole
    # problem is ~0.2 MB and the split would not amortize.
    return pl.pallas_call(
        kernel,
        out_shape=jax.ShapeDtypeStruct((C, BHW), jnp.float32),
        in_specs=[vmem] * 14,
        out_specs=vmem,
    )


# ---------------------------------------------------------------------------
# ODEBlock.forward wrapper (eval_times=None -> returns y(t=1), NCHW)
# ---------------------------------------------------------------------------
@functools.partial(jax.jit, static_argnames=("tol",))
def ode_block_forward(params, x_nchw, tol=1e-3):
    B, C, H, W = x_nchw.shape
    F = params["w1x"].shape[0]
    BHW = B * H * W

    # channels-on-sublanes / pixels-on-lanes layout
    y0 = jnp.transpose(x_nchw, (1, 0, 2, 3)).reshape(C, BHW)
    y0 = y0.astype(jnp.float32)
    tmap2 = jnp.tile(params["tmap2"], (1, B))                 # (F, B*H*W)

    # image-boundary masks for the conv2 lane rolls (flattened pixel index,
    # b-major): zero the rows/columns that a +-W / +-1 roll would wrap.
    p = jnp.arange(BHW)
    hh = (p // W) % H
    ww = p % W
    mtop = (hh >= 1).astype(jnp.float32)[None, :]             # h-1 valid
    mbot = (hh <= H - 2).astype(jnp.float32)[None, :]         # h+1 valid
    mleft = (ww >= 1).astype(jnp.float32)[None, :]            # w-1 valid
    mright = (ww <= W - 2).astype(jnp.float32)[None, :]       # w+1 valid

    call = _make_fused_ode_kernel(B, H, W, C, F, tol, dt0=0.05)
    y1 = call(y0,
              params["w1x"], params["w1t"], params["b1"],
              params["w2c"], params["b2"], tmap2,
              params["w3x"], params["w3t"], params["b3"],
              mtop, mbot, mleft, mright)

    return jnp.transpose(y1.reshape(C, B, H, W), (1, 0, 2, 3))  # -> NCHW


# ---------------------------------------------------------------------------
# Deterministic parameter construction (PyTorch Conv2d default-style init)
# ---------------------------------------------------------------------------
def make_params(key, C, F, H, W):
    ks = jax.random.split(key, 6)

    def uinit(k, shape, fan_in):
        bound = fan_in ** -0.5
        return jax.random.uniform(k, shape, jnp.float32, -bound, bound)

    # PyTorch weights: conv_i.weight (Cout, Cin+1, kh, kw) -- in-channel 0 = t.
    w1 = uinit(ks[0], (F, C + 1, 1, 1), (C + 1) * 1)
    b1 = uinit(ks[1], (F,), (C + 1) * 1)
    w2 = uinit(ks[2], (F, F + 1, 3, 3), (F + 1) * 9)
    b2 = uinit(ks[3], (F,), (F + 1) * 9)
    w3 = uinit(ks[4], (C, F + 1, 1, 1), (F + 1) * 1)
    b3 = uinit(ks[5], (C,), (F + 1) * 1)

    # Repack for the transposed (channels-leading) kernel layout.
    w1x = w1[:, 1:, 0, 0]                           # (F, C)
    w1t = w1[:, 0, 0, 0][:, None]                   # (F, 1)
    w3x = w3[:, 1:, 0, 0]                           # (C, F)
    w3t = w3[:, 0, 0, 0][:, None]                   # (C, 1)

    # conv2 spatial weights, dw-concatenated rows / dh-concatenated cols:
    #   w2c[dw*F + cout, dh*F + cin] = w2[cout, 1 + cin, dh, dw]
    w2c = jnp.transpose(w2[:, 1:, :, :], (3, 0, 2, 1)).reshape(3 * F, 3 * F)

    # conv2 time-channel map: 3x3 conv of a constant-1 (zero-padded) image with
    # the t-channel weights -> per-pixel, per-channel coefficient of t.
    w2t = w2[:, 0, :, :]                            # (F, 3, 3)
    ones_pad = jnp.pad(jnp.ones((H, W), jnp.float32), 1)
    tmap2 = jnp.zeros((F, H, W), jnp.float32)
    for dh in range(3):
        for dw in range(3):
            tmap2 = tmap2 + (w2t[:, dh, dw][:, None, None]
                             * ones_pad[dh:dh + H, dw:dw + W][None, :, :])

    return {
        "w1x": w1x.astype(jnp.bfloat16), "w1t": w1t, "b1": b1[:, None],
        "w2c": w2c.astype(jnp.bfloat16), "b2": b2[:, None],
        "tmap2": tmap2.reshape(F, H * W),
        "w3x": w3x.astype(jnp.bfloat16), "w3t": w3t, "b3": b3[:, None],
    }


if __name__ == "__main__":
    B, C, H, W = 2, 4, 16, 16     # input: NCHW, like the PyTorch module
    F = 32                        # num_filters of the conv ODE function

    key = jax.random.PRNGKey(0)
    kx, kp = jax.random.split(key)
    x = jax.random.normal(kx, (B, C, H, W), jnp.float32)
    params = make_params(kp, C, F, H, W)

    out = ode_block_forward(params, x)
    out = jax.block_until_ready(out)

    assert out.shape == (B, C, H, W)
    assert bool(jnp.all(jnp.isfinite(out)))
    print("KERNEL_OK")
</pallas_src>

<mosaic_0001>
module attributes {stable_mosaic.version = 11 : i64} {
  func.func @kernel(%arg0: memref<4x512xf32, #tpu.memory_space<vmem>>, %arg1: memref<32x4xbf16, #tpu.memory_space<vmem>>, %arg2: memref<32x1xf32, #tpu.memory_space<vmem>>, %arg3: memref<32x1xf32, #tpu.memory_space<vmem>>, %arg4: memref<96x96xbf16, #tpu.memory_space<vmem>>, %arg5: memref<32x1xf32, #tpu.memory_space<vmem>>, %arg6: memref<32x512xf32, #tpu.memory_space<vmem>>, %arg7: memref<4x32xbf16, #tpu.memory_space<vmem>>, %arg8: memref<4x1xf32, #tpu.memory_space<vmem>>, %arg9: memref<4x1xf32, #tpu.memory_space<vmem>>, %arg10: memref<1x512xf32, #tpu.memory_space<vmem>>, %arg11: memref<1x512xf32, #tpu.memory_space<vmem>>, %arg12: memref<1x512xf32, #tpu.memory_space<vmem>>, %arg13: memref<1x512xf32, #tpu.memory_space<vmem>>, %arg14: memref<4x512xf32, #tpu.memory_space<vmem>>) attributes {dimension_semantics = [], scalar_prefetch = 0 : i64, scratch_operands = 0 : i64, tpu.core_type = #tpu.core_type<tc>} {
    %c0 = arith.constant 0 : index
    %c0_0 = arith.constant 0 : index
    %0 = vector.load %arg0[%c0, %c0_0] : memref<4x512xf32, #tpu.memory_space<vmem>>, vector<4x512xf32>
    %c0_1 = arith.constant 0 : index
    %c0_2 = arith.constant 0 : index
    %1 = vector.load %arg1[%c0_1, %c0_2] : memref<32x4xbf16, #tpu.memory_space<vmem>>, vector<32x4xbf16>
    %2 = arith.truncf %0 : vector<4x512xf32> to vector<4x512xbf16>
    %cst = arith.constant dense<0.000000e+00> : vector<32x512xf32>
    %3 = tpu.matmul %1, %2, %cst {dimension_numbers = #tpu.dot_dimension_numbers<[1], [0], [0], [1], [0, 0, 1, 1], [], []>} : vector<32x4xbf16>, vector<4x512xbf16>, vector<32x512xf32> -> vector<32x512xf32>
    %c0_3 = arith.constant 0 : index
    %c0_4 = arith.constant 0 : index
    %4 = vector.load %arg2[%c0_3, %c0_4] : memref<32x1xf32, #tpu.memory_space<vmem>>, vector<32x1xf32>
    %cst_5 = arith.constant 0.000000e+00 : f32
    %5 = vector.broadcast %cst_5 : f32 to vector<32x1xf32>
    %6 = arith.mulf %5, %4 : vector<32x1xf32>
    %7 = vector.broadcast %6 : vector<32x1xf32> to vector<32x512xf32>
    %8 = arith.addf %3, %7 : vector<32x512xf32>
    %c0_6 = arith.constant 0 : index
    %c0_7 = arith.constant 0 : index
    %9 = vector.load %arg3[%c0_6, %c0_7] : memref<32x1xf32, #tpu.memory_space<vmem>>, vector<32x1xf32>
    %10 = vector.broadcast %9 : vector<32x1xf32> to vector<32x512xf32>
    %11 = arith.addf %8, %10 : vector<32x512xf32>
    %cst_8 = arith.constant 0.000000e+00 : f32
    %12 = vector.broadcast %cst_8 : f32 to vector<32x512xf32>
    %13 = arith.maximumf %11, %12 : vector<32x512xf32>
    %c16_i32 = arith.constant 16 : i32
    %14 = tpu.dynamic_rotate %13 by %c16_i32 dim 1 : vector<32x512xf32>, i32 -> vector<32x512xf32>
    %c0_9 = arith.constant 0 : index
    %c0_10 = arith.constant 0 : index
    %15 = vector.load %arg10[%c0_9, %c0_10] : memref<1x512xf32, #tpu.memory_space<vmem>>, vector<1x512xf32>
    %16 = vector.broadcast %15 : vector<1x512xf32> to vector<32x512xf32>
    %17 = arith.mulf %14, %16 : vector<32x512xf32>
    %c496_i32 = arith.constant 496 : i32
    %18 = tpu.dynamic_rotate %13 by %c496_i32 dim 1 : vector<32x512xf32>, i32 -> vector<32x512xf32>
    %c0_11 = arith.constant 0 : index
    %c0_12 = arith.constant 0 : index
    %19 = vector.load %arg11[%c0_11, %c0_12] : memref<1x512xf32, #tpu.memory_space<vmem>>, vector<1x512xf32>
    %20 = vector.broadcast %19 : vector<1x512xf32> to vector<32x512xf32>
    %21 = arith.mulf %18, %20 : vector<32x512xf32>
    %22 = tpu.concatenate %17, %13, %21 in 0 : vector<32x512xf32>, vector<32x512xf32>, vector<32x512xf32> -> vector<96x512xf32>
    %23 = arith.truncf %22 : vector<96x512xf32> to vector<96x512xbf16>
    %c0_13 = arith.constant 0 : index
    %c0_14 = arith.constant 0 : index
    %24 = vector.load %arg4[%c0_13, %c0_14] : memref<96x96xbf16, #tpu.memory_space<vmem>>, vector<96x96xbf16>
    %cst_15 = arith.constant dense<0.000000e+00> : vector<96x512xf32>
    %25 = tpu.matmul %24, %23, %cst_15 {dimension_numbers = #tpu.dot_dimension_numbers<[1], [0], [0], [1], [0, 0, 1, 1], [], []>} : vector<96x96xbf16>, vector<96x512xbf16>, vector<96x512xf32> -> vector<96x512xf32>
    %26 = vector.extract_strided_slice %25 {offsets = [0, 0], sizes = [32, 512], strides = [1, 1]} : vector<96x512xf32> to vector<32x512xf32>
    %c1_i32 = arith.constant 1 : i32
    %27 = tpu.dynamic_rotate %26 by %c1_i32 dim 1 : vector<32x512xf32>, i32 -> vector<32x512xf32>
    %c0_16 = arith.constant 0 : index
    %c0_17 = arith.constant 0 : index
    %28 = vector.load %arg12[%c0_16, %c0_17] : memref<1x512xf32, #tpu.memory_space<vmem>>, vector<1x512xf32>
    %29 = vector.broadcast %28 : vector<1x512xf32> to vector<32x512xf32>
    %30 = arith.mulf %27, %29 : vector<32x512xf32>
    %31 = vector.extract_strided_slice %25 {offsets = [32, 0], sizes = [32, 512], strides = [1, 1]} : vector<96x512xf32> to vector<32x512xf32>
    %32 = arith.addf %30, %31 : vector<32x512xf32>
    %33 = vector.extract_strided_slice %25 {offsets = [64, 0], sizes = [32, 512], strides = [1, 1]} : vector<96x512xf32> to vector<32x512xf32>
    %c511_i32 = arith.constant 511 : i32
    %34 = tpu.dynamic_rotate %33 by %c511_i32 dim 1 : vector<32x512xf32>, i32 -> vector<32x512xf32>
    %c0_18 = arith.constant 0 : index
    %c0_19 = arith.constant 0 : index
    %35 = vector.load %arg13[%c0_18, %c0_19] : memref<1x512xf32, #tpu.memory_space<vmem>>, vector<1x512xf32>
    %36 = vector.broadcast %35 : vector<1x512xf32> to vector<32x512xf32>
    %37 = arith.mulf %34, %36 : vector<32x512xf32>
    %38 = arith.addf %32, %37 : vector<32x512xf32>
    %c0_20 = arith.constant 0 : index
    %c0_21 = arith.constant 0 : index
    %39 = vector.load %arg6[%c0_20, %c0_21] : memref<32x512xf32, #tpu.memory_space<vmem>>, vector<32x512xf32>
    %cst_22 = arith.constant 0.000000e+00 : f32
    %40 = vector.broadcast %cst_22 : f32 to vector<32x512xf32>
    %41 = arith.mulf %40, %39 : vector<32x512xf32>
    %42 = arith.addf %38, %41 : vector<32x512xf32>
    %c0_23 = arith.constant 0 : index
    %c0_24 = arith.constant 0 : index
    %43 = vector.load %arg5[%c0_23, %c0_24] : memref<32x1xf32, #tpu.memory_space<vmem>>, vector<32x1xf32>
    %44 = vector.broadcast %43 : vector<32x1xf32> to vector<32x512xf32>
    %45 = arith.addf %42, %44 : vector<32x512xf32>
    %cst_25 = arith.constant 0.000000e+00 : f32
    %46 = vector.broadcast %cst_25 : f32 to vector<32x512xf32>
    %47 = arith.maximumf %45, %46 : vector<32x512xf32>
    %c0_26 = arith.constant 0 : index
    %c0_27 = arith.constant 0 : index
    %48 = vector.load %arg7[%c0_26, %c0_27] : memref<4x32xbf16, #tpu.memory_space<vmem>>, vector<4x32xbf16>
    %49 = arith.truncf %47 : vector<32x512xf32> to vector<32x512xbf16>
    %cst_28 = arith.constant dense<0.000000e+00> : vector<4x512xf32>
    %50 = tpu.matmul %48, %49, %cst_28 {dimension_numbers = #tpu.dot_dimension_numbers<[1], [0], [0], [1], [0, 0, 1, 1], [], []>} : vector<4x32xbf16>, vector<32x512xbf16>, vector<4x512xf32> -> vector<4x512xf32>
    %c0_29 = arith.constant 0 : index
    %c0_30 = arith.constant 0 : index
    %51 = vector.load %arg8[%c0_29, %c0_30] : memref<4x1xf32, #tpu.memory_space<vmem>>, vector<4x1xf32>
    %cst_31 = arith.constant 0.000000e+00 : f32
    %52 = vector.broadcast %cst_31 : f32 to vector<4x1xf32>
    %53 = arith.mulf %52, %51 : vector<4x1xf32>
    %54 = vector.broadcast %53 : vector<4x1xf32> to vector<4x512xf32>
    %55 = arith.addf %50, %54 : vector<4x512xf32>
    %c0_32 = arith.constant 0 : index
    %c0_33 = arith.constant 0 : index
    %56 = vector.load %arg9[%c0_32, %c0_33] : memref<4x1xf32, #tpu.memory_space<vmem>>, vector<4x1xf32>
    %57 = vector.broadcast %56 : vector<4x1xf32> to vector<4x512xf32>
    %58 = arith.addf %55, %57 : vector<4x512xf32>
    %cst_34 = arith.constant 0.000000e+00 : f32
    %cst_35 = arith.constant 5.000000e-02 : f32
    %c0_i32 = arith.constant 0 : i32
    %59:5 = scf.while (%arg15 = %cst_34, %arg16 = %cst_35, %arg17 = %c0_i32, %arg18 = %0, %arg19 = %58) : (f32, f32, i32, vector<4x512xf32>, vector<4x512xf32>) -> (f32, f32, i32, vector<4x512xf32>, vector<4x512xf32>) {
      %cst_38 = arith.constant 1.000000e+00 : f32
      %61 = arith.cmpf olt, %arg15, %cst_38 : f32
      %c1000_i32 = arith.constant 1000 : i32
      %62 = arith.cmpi slt, %arg17, %c1000_i32 : i32
      %63 = arith.andi %61, %62 : i1
      scf.condition(%63) %arg15, %arg16, %arg17, %arg18, %arg19 : f32, f32, i32, vector<4x512xf32>, vector<4x512xf32>
    } do {
    ^bb0(%arg15: f32, %arg16: f32, %arg17: i32, %arg18: vector<4x512xf32>, %arg19: vector<4x512xf32>):
      %cst_38 = arith.constant 1.000000e+00 : f32
      %61 = arith.subf %cst_38, %arg15 : f32
      %62 = arith.minimumf %arg16, %61 : f32
      %cst_39 = arith.constant 2.000000e-01 : f32
      %63 = arith.mulf %cst_39, %62 : f32
      %64 = arith.addf %arg15, %63 : f32
      %cst_40 = arith.constant 2.000000e-01 : f32
      %65 = vector.broadcast %cst_40 : f32 to vector<4x512xf32>
      %66 = arith.mulf %65, %arg19 : vector<4x512xf32>
      %67 = vector.broadcast %62 : f32 to vector<4x512xf32>
      %68 = arith.mulf %67, %66 : vector<4x512xf32>
      %69 = arith.addf %arg18, %68 : vector<4x512xf32>
      %c0_41 = arith.constant 0 : index
      %c0_42 = arith.constant 0 : index
      %70 = vector.load %arg1[%c0_41, %c0_42] : memref<32x4xbf16, #tpu.memory_space<vmem>>, vector<32x4xbf16>
      %71 = arith.truncf %69 : vector<4x512xf32> to vector<4x512xbf16>
      %cst_43 = arith.constant dense<0.000000e+00> : vector<32x512xf32>
      %72 = tpu.matmul %70, %71, %cst_43 {dimension_numbers = #tpu.dot_dimension_numbers<[1], [0], [0], [1], [0, 0, 1, 1], [], []>} : vector<32x4xbf16>, vector<4x512xbf16>, vector<32x512xf32> -> vector<32x512xf32>
      %c0_44 = arith.constant 0 : index
      %c0_45 = arith.constant 0 : index
      %73 = vector.load %arg2[%c0_44, %c0_45] : memref<32x1xf32, #tpu.memory_space<vmem>>, vector<32x1xf32>
      %74 = vector.broadcast %64 : f32 to vector<32x1xf32>
      %75 = arith.mulf %74, %73 : vector<32x1xf32>
      %76 = vector.broadcast %75 : vector<32x1xf32> to vector<32x512xf32>
      %77 = arith.addf %72, %76 : vector<32x512xf32>
      %c0_46 = arith.constant 0 : index
      %c0_47 = arith.constant 0 : index
      %78 = vector.load %arg3[%c0_46, %c0_47] : memref<32x1xf32, #tpu.memory_space<vmem>>, vector<32x1xf32>
      %79 = vector.broadcast %78 : vector<32x1xf32> to vector<32x512xf32>
      %80 = arith.addf %77, %79 : vector<32x512xf32>
      %cst_48 = arith.constant 0.000000e+00 : f32
      %81 = vector.broadcast %cst_48 : f32 to vector<32x512xf32>
      %82 = arith.maximumf %80, %81 : vector<32x512xf32>
      %c16_i32_49 = arith.constant 16 : i32
      %83 = tpu.dynamic_rotate %82 by %c16_i32_49 dim 1 : vector<32x512xf32>, i32 -> vector<32x512xf32>
      %c0_50 = arith.constant 0 : index
      %c0_51 = arith.constant 0 : index
      %84 = vector.load %arg10[%c0_50, %c0_51] : memref<1x512xf32, #tpu.memory_space<vmem>>, vector<1x512xf32>
      %85 = vector.broadcast %84 : vector<1x512xf32> to vector<32x512xf32>
      %86 = arith.mulf %83, %85 : vector<32x512xf32>
      %c496_i32_52 = arith.constant 496 : i32
      %87 = tpu.dynamic_rotate %82 by %c496_i32_52 dim 1 : vector<32x512xf32>, i32 -> vector<32x512xf32>
      %c0_53 = arith.constant 0 : index
      %c0_54 = arith.constant 0 : index
      %88 = vector.load %arg11[%c0_53, %c0_54] : memref<1x512xf32, #tpu.memory_space<vmem>>, vector<1x512xf32>
      %89 = vector.broadcast %88 : vector<1x512xf32> to vector<32x512xf32>
      %90 = arith.mulf %87, %89 : vector<32x512xf32>
      %91 = tpu.concatenate %86, %82, %90 in 0 : vector<32x512xf32>, vector<32x512xf32>, vector<32x512xf32> -> vector<96x512xf32>
      %92 = arith.truncf %91 : vector<96x512xf32> to vector<96x512xbf16>
      %c0_55 = arith.constant 0 : index
      %c0_56 = arith.constant 0 : index
      %93 = vector.load %arg4[%c0_55, %c0_56] : memref<96x96xbf16, #tpu.memory_space<vmem>>, vector<96x96xbf16>
      %cst_57 = arith.constant dense<0.000000e+00> : vector<96x512xf32>
      %94 = tpu.matmul %93, %92, %cst_57 {dimension_numbers = #tpu.dot_dimension_numbers<[1], [0], [0], [1], [0, 0, 1, 1], [], []>} : vector<96x96xbf16>, vector<96x512xbf16>, vector<96x512xf32> -> vector<96x512xf32>
      %95 = vector.extract_strided_slice %94 {offsets = [0, 0], sizes = [32, 512], strides = [1, 1]} : vector<96x512xf32> to vector<32x512xf32>
      %c1_i32_58 = arith.constant 1 : i32
      %96 = tpu.dynamic_rotate %95 by %c1_i32_58 dim 1 : vector<32x512xf32>, i32 -> vector<32x512xf32>
      %c0_59 = arith.constant 0 : index
      %c0_60 = arith.constant 0 : index
      %97 = vector.load %arg12[%c0_59, %c0_60] : memref<1x512xf32, #tpu.memory_space<vmem>>, vector<1x512xf32>
      %98 = vector.broadcast %97 : vector<1x512xf32> to vector<32x512xf32>
      %99 = arith.mulf %96, %98 : vector<32x512xf32>
      %100 = vector.extract_strided_slice %94 {offsets = [32, 0], sizes = [32, 512], strides = [1, 1]} : vector<96x512xf32> to vector<32x512xf32>
      %101 = arith.addf %99, %100 : vector<32x512xf32>
      %102 = vector.extract_strided_slice %94 {offsets = [64, 0], sizes = [32, 512], strides = [1, 1]} : vector<96x512xf32> to vector<32x512xf32>
      %c511_i32_61 = arith.constant 511 : i32
      %103 = tpu.dynamic_rotate %102 by %c511_i32_61 dim 1 : vector<32x512xf32>, i32 -> vector<32x512xf32>
      %c0_62 = arith.constant 0 : index
      %c0_63 = arith.constant 0 : index
      %104 = vector.load %arg13[%c0_62, %c0_63] : memref<1x512xf32, #tpu.memory_space<vmem>>, vector<1x512xf32>
      %105 = vector.broadcast %104 : vector<1x512xf32> to vector<32x512xf32>
      %106 = arith.mulf %103, %105 : vector<32x512xf32>
      %107 = arith.addf %101, %106 : vector<32x512xf32>
      %c0_64 = arith.constant 0 : index
      %c0_65 = arith.constant 0 : index
      %108 = vector.load %arg6[%c0_64, %c0_65] : memref<32x512xf32, #tpu.memory_space<vmem>>, vector<32x512xf32>
      %109 = vector.broadcast %64 : f32 to vector<32x512xf32>
      %110 = arith.mulf %109, %108 : vector<32x512xf32>
      %111 = arith.addf %107, %110 : vector<32x512xf32>
      %c0_66 = arith.constant 0 : index
      %c0_67 = arith.constant 0 : index
      %112 = vector.load %arg5[%c0_66, %c0_67] : memref<32x1xf32, #tpu.memory_space<vmem>>, vector<32x1xf32>
      %113 = vector.broadcast %112 : vector<32x1xf32> to vector<32x512xf32>
      %114 = arith.addf %111, %113 : vector<32x512xf32>
      %cst_68 = arith.constant 0.000000e+00 : f32
      %115 = vector.broadcast %cst_68 : f32 to vector<32x512xf32>
      %116 = arith.maximumf %114, %115 : vector<32x512xf32>
      %c0_69 = arith.constant 0 : index
      %c0_70 = arith.constant 0 : index
      %117 = vector.load %arg7[%c0_69, %c0_70] : memref<4x32xbf16, #tpu.memory_space<vmem>>, vector<4x32xbf16>
      %118 = arith.truncf %116 : vector<32x512xf32> to vector<32x512xbf16>
      %cst_71 = arith.constant dense<0.000000e+00> : vector<4x512xf32>
      %119 = tpu.matmul %117, %118, %cst_71 {dimension_numbers = #tpu.dot_dimension_numbers<[1], [0], [0], [1], [0, 0, 1, 1], [], []>} : vector<4x32xbf16>, vector<32x512xbf16>, vector<4x512xf32> -> vector<4x512xf32>
      %c0_72 = arith.constant 0 : index
      %c0_73 = arith.constant 0 : index
      %120 = vector.load %arg8[%c0_72, %c0_73] : memref<4x1xf32, #tpu.memory_space<vmem>>, vector<4x1xf32>
      %121 = vector.broadcast %64 : f32 to vector<4x1xf32>
      %122 = arith.mulf %121, %120 : vector<4x1xf32>
      %123 = vector.broadcast %122 : vector<4x1xf32> to vector<4x512xf32>
      %124 = arith.addf %119, %123 : vector<4x512xf32>
      %c0_74 = arith.constant 0 : index
      %c0_75 = arith.constant 0 : index
      %125 = vector.load %arg9[%c0_74, %c0_75] : memref<4x1xf32, #tpu.memory_space<vmem>>, vector<4x1xf32>
      %126 = vector.broadcast %125 : vector<4x1xf32> to vector<4x512xf32>
      %127 = arith.addf %124, %126 : vector<4x512xf32>
      %cst_76 = arith.constant 3.000000e-01 : f32
      %128 = arith.mulf %cst_76, %62 : f32
      %129 = arith.addf %arg15, %128 : f32
      %cst_77 = arith.constant 7.500000e-02 : f32
      %130 = vector.broadcast %cst_77 : f32 to vector<4x512xf32>
      %131 = arith.mulf %130, %arg19 : vector<4x512xf32>
      %cst_78 = arith.constant 2.250000e-01 : f32
      %132 = vector.broadcast %cst_78 : f32 to vector<4x512xf32>
      %133 = arith.mulf %132, %127 : vector<4x512xf32>
      %134 = arith.addf %131, %133 : vector<4x512xf32>
      %135 = vector.broadcast %62 : f32 to vector<4x512xf32>
      %136 = arith.mulf %135, %134 : vector<4x512xf32>
      %137 = arith.addf %arg18, %136 : vector<4x512xf32>
      %c0_79 = arith.constant 0 : index
      %c0_80 = arith.constant 0 : index
      %138 = vector.load %arg1[%c0_79, %c0_80] : memref<32x4xbf16, #tpu.memory_space<vmem>>, vector<32x4xbf16>
      %139 = arith.truncf %137 : vector<4x512xf32> to vector<4x512xbf16>
      %cst_81 = arith.constant dense<0.000000e+00> : vector<32x512xf32>
      %140 = tpu.matmul %138, %139, %cst_81 {dimension_numbers = #tpu.dot_dimension_numbers<[1], [0], [0], [1], [0, 0, 1, 1], [], []>} : vector<32x4xbf16>, vector<4x512xbf16>, vector<32x512xf32> -> vector<32x512xf32>
      %c0_82 = arith.constant 0 : index
      %c0_83 = arith.constant 0 : index
      %141 = vector.load %arg2[%c0_82, %c0_83] : memref<32x1xf32, #tpu.memory_space<vmem>>, vector<32x1xf32>
      %142 = vector.broadcast %129 : f32 to vector<32x1xf32>
      %143 = arith.mulf %142, %141 : vector<32x1xf32>
      %144 = vector.broadcast %143 : vector<32x1xf32> to vector<32x512xf32>
      %145 = arith.addf %140, %144 : vector<32x512xf32>
      %c0_84 = arith.constant 0 : index
      %c0_85 = arith.constant 0 : index
      %146 = vector.load %arg3[%c0_84, %c0_85] : memref<32x1xf32, #tpu.memory_space<vmem>>, vector<32x1xf32>
      %147 = vector.broadcast %146 : vector<32x1xf32> to vector<32x512xf32>
      %148 = arith.addf %145, %147 : vector<32x512xf32>
      %cst_86 = arith.constant 0.000000e+00 : f32
      %149 = vector.broadcast %cst_86 : f32 to vector<32x512xf32>
      %150 = arith.maximumf %148, %149 : vector<32x512xf32>
      %c16_i32_87 = arith.constant 16 : i32
      %151 = tpu.dynamic_rotate %150 by %c16_i32_87 dim 1 : vector<32x512xf32>, i32 -> vector<32x512xf32>
      %c0_88 = arith.constant 0 : index
      %c0_89 = arith.constant 0 : index
      %152 = vector.load %arg10[%c0_88, %c0_89] : memref<1x512xf32, #tpu.memory_space<vmem>>, vector<1x512xf32>
      %153 = vector.broadcast %152 : vector<1x512xf32> to vector<32x512xf32>
      %154 = arith.mulf %151, %153 : vector<32x512xf32>
      %c496_i32_90 = arith.constant 496 : i32
      %155 = tpu.dynamic_rotate %150 by %c496_i32_90 dim 1 : vector<32x512xf32>, i32 -> vector<32x512xf32>
      %c0_91 = arith.constant 0 : index
      %c0_92 = arith.constant 0 : index
      %156 = vector.load %arg11[%c0_91, %c0_92] : memref<1x512xf32, #tpu.memory_space<vmem>>, vector<1x512xf32>
      %157 = vector.broadcast %156 : vector<1x512xf32> to vector<32x512xf32>
      %158 = arith.mulf %155, %157 : vector<32x512xf32>
      %159 = tpu.concatenate %154, %150, %158 in 0 : vector<32x512xf32>, vector<32x512xf32>, vector<32x512xf32> -> vector<96x512xf32>
      %160 = arith.truncf %159 : vector<96x512xf32> to vector<96x512xbf16>
      %c0_93 = arith.constant 0 : index
      %c0_94 = arith.constant 0 : index
      %161 = vector.load %arg4[%c0_93, %c0_94] : memref<96x96xbf16, #tpu.memory_space<vmem>>, vector<96x96xbf16>
      %cst_95 = arith.constant dense<0.000000e+00> : vector<96x512xf32>
      %162 = tpu.matmul %161, %160, %cst_95 {dimension_numbers = #tpu.dot_dimension_numbers<[1], [0], [0], [1], [0, 0, 1, 1], [], []>} : vector<96x96xbf16>, vector<96x512xbf16>, vector<96x512xf32> -> vector<96x512xf32>
      %163 = vector.extract_strided_slice %162 {offsets = [0, 0], sizes = [32, 512], strides = [1, 1]} : vector<96x512xf32> to vector<32x512xf32>
      %c1_i32_96 = arith.constant 1 : i32
      %164 = tpu.dynamic_rotate %163 by %c1_i32_96 dim 1 : vector<32x512xf32>, i32 -> vector<32x512xf32>
      %c0_97 = arith.constant 0 : index
      %c0_98 = arith.constant 0 : index
      %165 = vector.load %arg12[%c0_97, %c0_98] : memref<1x512xf32, #tpu.memory_space<vmem>>, vector<1x512xf32>
      %166 = vector.broadcast %165 : vector<1x512xf32> to vector<32x512xf32>
      %167 = arith.mulf %164, %166 : vector<32x512xf32>
      %168 = vector.extract_strided_slice %162 {offsets = [32, 0], sizes = [32, 512], strides = [1, 1]} : vector<96x512xf32> to vector<32x512xf32>
      %169 = arith.addf %167, %168 : vector<32x512xf32>
      %170 = vector.extract_strided_slice %162 {offsets = [64, 0], sizes = [32, 512], strides = [1, 1]} : vector<96x512xf32> to vector<32x512xf32>
      %c511_i32_99 = arith.constant 511 : i32
      %171 = tpu.dynamic_rotate %170 by %c511_i32_99 dim 1 : vector<32x512xf32>, i32 -> vector<32x512xf32>
      %c0_100 = arith.constant 0 : index
      %c0_101 = arith.constant 0 : index
      %172 = vector.load %arg13[%c0_100, %c0_101] : memref<1x512xf32, #tpu.memory_space<vmem>>, vector<1x512xf32>
      %173 = vector.broadcast %172 : vector<1x512xf32> to vector<32x512xf32>
      %174 = arith.mulf %171, %173 : vector<32x512xf32>
      %175 = arith.addf %169, %174 : vector<32x512xf32>
      %c0_102 = arith.constant 0 : index
      %c0_103 = arith.constant 0 : index
      %176 = vector.load %arg6[%c0_102, %c0_103] : memref<32x512xf32, #tpu.memory_space<vmem>>, vector<32x512xf32>
      %177 = vector.broadcast %129 : f32 to vector<32x512xf32>
      %178 = arith.mulf %177, %176 : vector<32x512xf32>
      %179 = arith.addf %175, %178 : vector<32x512xf32>
      %c0_104 = arith.constant 0 : index
      %c0_105 = arith.constant 0 : index
      %180 = vector.load %arg5[%c0_104, %c0_105] : memref<32x1xf32, #tpu.memory_space<vmem>>, vector<32x1xf32>
      %181 = vector.broadcast %180 : vector<32x1xf32> to vector<32x512xf32>
      %182 = arith.addf %179, %181 : vector<32x512xf32>
      %cst_106 = arith.constant 0.000000e+00 : f32
      %183 = vector.broadcast %cst_106 : f32 to vector<32x512xf32>
      %184 = arith.maximumf %182, %183 : vector<32x512xf32>
      %c0_107 = arith.constant 0 : index
      %c0_108 = arith.constant 0 : index
      %185 = vector.load %arg7[%c0_107, %c0_108] : memref<4x32xbf16, #tpu.memory_space<vmem>>, vector<4x32xbf16>
      %186 = arith.truncf %184 : vector<32x512xf32> to vector<32x512xbf16>
      %cst_109 = arith.constant dense<0.000000e+00> : vector<4x512xf32>
      %187 = tpu.matmul %185, %186, %cst_109 {dimension_numbers = #tpu.dot_dimension_numbers<[1], [0], [0], [1], [0, 0, 1, 1], [], []>} : vector<4x32xbf16>, vector<32x512xbf16>, vector<4x512xf32> -> vector<4x512xf32>
      %c0_110 = arith.constant 0 : index
      %c0_111 = arith.constant 0 : index
      %188 = vector.load %arg8[%c0_110, %c0_111] : memref<4x1xf32, #tpu.memory_space<vmem>>, vector<4x1xf32>
      %189 = vector.broadcast %129 : f32 to vector<4x1xf32>
      %190 = arith.mulf %189, %188 : vector<4x1xf32>
      %191 = vector.broadcast %190 : vector<4x1xf32> to vector<4x512xf32>
      %192 = arith.addf %187, %191 : vector<4x512xf32>
      %c0_112 = arith.constant 0 : index
      %c0_113 = arith.constant 0 : index
      %193 = vector.load %arg9[%c0_112, %c0_113] : memref<4x1xf32, #tpu.memory_space<vmem>>, vector<4x1xf32>
      %194 = vector.broadcast %193 : vector<4x1xf32> to vector<4x512xf32>
      %195 = arith.addf %192, %194 : vector<4x512xf32>
      %cst_114 = arith.constant 8.000000e-01 : f32
      %196 = arith.mulf %cst_114, %62 : f32
      %197 = arith.addf %arg15, %196 : f32
      %cst_115 = arith.constant 0.977777779 : f32
      %198 = vector.broadcast %cst_115 : f32 to vector<4x512xf32>
      %199 = arith.mulf %198, %arg19 : vector<4x512xf32>
      %cst_116 = arith.constant -3.73333335 : f32
      %200 = vector.broadcast %cst_116 : f32 to vector<4x512xf32>
      %201 = arith.mulf %200, %127 : vector<4x512xf32>
      %202 = arith.addf %199, %201 : vector<4x512xf32>
      %cst_117 = arith.constant 3.55555558 : f32
      %203 = vector.broadcast %cst_117 : f32 to vector<4x512xf32>
      %204 = arith.mulf %203, %195 : vector<4x512xf32>
      %205 = arith.addf %202, %204 : vector<4x512xf32>
      %206 = vector.broadcast %62 : f32 to vector<4x512xf32>
      %207 = arith.mulf %206, %205 : vector<4x512xf32>
      %208 = arith.addf %arg18, %207 : vector<4x512xf32>
      %c0_118 = arith.constant 0 : index
      %c0_119 = arith.constant 0 : index
      %209 = vector.load %arg1[%c0_118, %c0_119] : memref<32x4xbf16, #tpu.memory_space<vmem>>, vector<32x4xbf16>
      %210 = arith.truncf %208 : vector<4x512xf32> to vector<4x512xbf16>
      %cst_120 = arith.constant dense<0.000000e+00> : vector<32x512xf32>
      %211 = tpu.matmul %209, %210, %cst_120 {dimension_numbers = #tpu.dot_dimension_numbers<[1], [0], [0], [1], [0, 0, 1, 1], [], []>} : vector<32x4xbf16>, vector<4x512xbf16>, vector<32x512xf32> -> vector<32x512xf32>
      %c0_121 = arith.constant 0 : index
      %c0_122 = arith.constant 0 : index
      %212 = vector.load %arg2[%c0_121, %c0_122] : memref<32x1xf32, #tpu.memory_space<vmem>>, vector<32x1xf32>
      %213 = vector.broadcast %197 : f32 to vector<32x1xf32>
      %214 = arith.mulf %213, %212 : vector<32x1xf32>
      %215 = vector.broadcast %214 : vector<32x1xf32> to vector<32x512xf32>
      %216 = arith.addf %211, %215 : vector<32x512xf32>
      %c0_123 = arith.constant 0 : index
      %c0_124 = arith.constant 0 : index
      %217 = vector.load %arg3[%c0_123, %c0_124] : memref<32x1xf32, #tpu.memory_space<vmem>>, vector<32x1xf32>
      %218 = vector.broadcast %217 : vector<32x1xf32> to vector<32x512xf32>
      %219 = arith.addf %216, %218 : vector<32x512xf32>
      %cst_125 = arith.constant 0.000000e+00 : f32
      %220 = vector.broadcast %cst_125 : f32 to vector<32x512xf32>
      %221 = arith.maximumf %219, %220 : vector<32x512xf32>
      %c16_i32_126 = arith.constant 16 : i32
      %222 = tpu.dynamic_rotate %221 by %c16_i32_126 dim 1 : vector<32x512xf32>, i32 -> vector<32x512xf32>
      %c0_127 = arith.constant 0 : index
      %c0_128 = arith.constant 0 : index
      %223 = vector.load %arg10[%c0_127, %c0_128] : memref<1x512xf32, #tpu.memory_space<vmem>>, vector<1x512xf32>
      %224 = vector.broadcast %223 : vector<1x512xf32> to vector<32x512xf32>
      %225 = arith.mulf %222, %224 : vector<32x512xf32>
      %c496_i32_129 = arith.constant 496 : i32
      %226 = tpu.dynamic_rotate %221 by %c496_i32_129 dim 1 : vector<32x512xf32>, i32 -> vector<32x512xf32>
      %c0_130 = arith.constant 0 : index
      %c0_131 = arith.constant 0 : index
      %227 = vector.load %arg11[%c0_130, %c0_131] : memref<1x512xf32, #tpu.memory_space<vmem>>, vector<1x512xf32>
      %228 = vector.broadcast %227 : vector<1x512xf32> to vector<32x512xf32>
      %229 = arith.mulf %226, %228 : vector<32x512xf32>
      %230 = tpu.concatenate %225, %221, %229 in 0 : vector<32x512xf32>, vector<32x512xf32>, vector<32x512xf32> -> vector<96x512xf32>
      %231 = arith.truncf %230 : vector<96x512xf32> to vector<96x512xbf16>
      %c0_132 = arith.constant 0 : index
      %c0_133 = arith.constant 0 : index
      %232 = vector.load %arg4[%c0_132, %c0_133] : memref<96x96xbf16, #tpu.memory_space<vmem>>, vector<96x96xbf16>
      %cst_134 = arith.constant dense<0.000000e+00> : vector<96x512xf32>
      %233 = tpu.matmul %232, %231, %cst_134 {dimension_numbers = #tpu.dot_dimension_numbers<[1], [0], [0], [1], [0, 0, 1, 1], [], []>} : vector<96x96xbf16>, vector<96x512xbf16>, vector<96x512xf32> -> vector<96x512xf32>
      %234 = vector.extract_strided_slice %233 {offsets = [0, 0], sizes = [32, 512], strides = [1, 1]} : vector<96x512xf32> to vector<32x512xf32>
      %c1_i32_135 = arith.constant 1 : i32
      %235 = tpu.dynamic_rotate %234 by %c1_i32_135 dim 1 : vector<32x512xf32>, i32 -> vector<32x512xf32>
      %c0_136 = arith.constant 0 : index
      %c0_137 = arith.constant 0 : index
      %236 = vector.load %arg12[%c0_136, %c0_137] : memref<1x512xf32, #tpu.memory_space<vmem>>, vector<1x512xf32>
      %237 = vector.broadcast %236 : vector<1x512xf32> to vector<32x512xf32>
      %238 = arith.mulf %235, %237 : vector<32x512xf32>
      %239 = vector.extract_strided_slice %233 {offsets = [32, 0], sizes = [32, 512], strides = [1, 1]} : vector<96x512xf32> to vector<32x512xf32>
      %240 = arith.addf %238, %239 : vector<32x512xf32>
      %241 = vector.extract_strided_slice %233 {offsets = [64, 0], sizes = [32, 512], strides = [1, 1]} : vector<96x512xf32> to vector<32x512xf32>
      %c511_i32_138 = arith.constant 511 : i32
      %242 = tpu.dynamic_rotate %241 by %c511_i32_138 dim 1 : vector<32x512xf32>, i32 -> vector<32x512xf32>
      %c0_139 = arith.constant 0 : index
      %c0_140 = arith.constant 0 : index
      %243 = vector.load %arg13[%c0_139, %c0_140] : memref<1x512xf32, #tpu.memory_space<vmem>>, vector<1x512xf32>
      %244 = vector.broadcast %243 : vector<1x512xf32> to vector<32x512xf32>
      %245 = arith.mulf %242, %244 : vector<32x512xf32>
      %246 = arith.addf %240, %245 : vector<32x512xf32>
      %c0_141 = arith.constant 0 : index
      %c0_142 = arith.constant 0 : index
      %247 = vector.load %arg6[%c0_141, %c0_142] : memref<32x512xf32, #tpu.memory_space<vmem>>, vector<32x512xf32>
      %248 = vector.broadcast %197 : f32 to vector<32x512xf32>
      %249 = arith.mulf %248, %247 : vector<32x512xf32>
      %250 = arith.addf %246, %249 : vector<32x512xf32>
      %c0_143 = arith.constant 0 : index
      %c0_144 = arith.constant 0 : index
      %251 = vector.load %arg5[%c0_143, %c0_144] : memref<32x1xf32, #tpu.memory_space<vmem>>, vector<32x1xf32>
      %252 = vector.broadcast %251 : vector<32x1xf32> to vector<32x512xf32>
      %253 = arith.addf %250, %252 : vector<32x512xf32>
      %cst_145 = arith.constant 0.000000e+00 : f32
      %254 = vector.broadcast %cst_145 : f32 to vector<32x512xf32>
      %255 = arith.maximumf %253, %254 : vector<32x512xf32>
      %c0_146 = arith.constant 0 : index
      %c0_147 = arith.constant 0 : index
      %256 = vector.load %arg7[%c0_146, %c0_147] : memref<4x32xbf16, #tpu.memory_space<vmem>>, vector<4x32xbf16>
      %257 = arith.truncf %255 : vector<32x512xf32> to vector<32x512xbf16>
      %cst_148 = arith.constant dense<0.000000e+00> : vector<4x512xf32>
      %258 = tpu.matmul %256, %257, %cst_148 {dimension_numbers = #tpu.dot_dimension_numbers<[1], [0], [0], [1], [0, 0, 1, 1], [], []>} : vector<4x32xbf16>, vector<32x512xbf16>, vector<4x512xf32> -> vector<4x512xf32>
      %c0_149 = arith.constant 0 : index
      %c0_150 = arith.constant 0 : index
      %259 = vector.load %arg8[%c0_149, %c0_150] : memref<4x1xf32, #tpu.memory_space<vmem>>, vector<4x1xf32>
      %260 = vector.broadcast %197 : f32 to vector<4x1xf32>
      %261 = arith.mulf %260, %259 : vector<4x1xf32>
      %262 = vector.broadcast %261 : vector<4x1xf32> to vector<4x512xf32>
      %263 = arith.addf %258, %262 : vector<4x512xf32>
      %c0_151 = arith.constant 0 : index
      %c0_152 = arith.constant 0 : index
      %264 = vector.load %arg9[%c0_151, %c0_152] : memref<4x1xf32, #tpu.memory_space<vmem>>, vector<4x1xf32>
      %265 = vector.broadcast %264 : vector<4x1xf32> to vector<4x512xf32>
      %266 = arith.addf %263, %265 : vector<4x512xf32>
      %cst_153 = arith.constant 0.888888895 : f32
      %267 = arith.mulf %cst_153, %62 : f32
      %268 = arith.addf %arg15, %267 : f32
      %cst_154 = arith.constant 2.95259857 : f32
      %269 = vector.broadcast %cst_154 : f32 to vector<4x512xf32>
      %270 = arith.mulf %269, %arg19 : vector<4x512xf32>
      %cst_155 = arith.constant -11.5957937 : f32
      %271 = vector.broadcast %cst_155 : f32 to vector<4x512xf32>
      %272 = arith.mulf %271, %127 : vector<4x512xf32>
      %273 = arith.addf %270, %272 : vector<4x512xf32>
      %cst_156 = arith.constant 9.82289314 : f32
      %274 = vector.broadcast %cst_156 : f32 to vector<4x512xf32>
      %275 = arith.mulf %274, %195 : vector<4x512xf32>
      %276 = arith.addf %273, %275 : vector<4x512xf32>
      %cst_157 = arith.constant -0.290809333 : f32
      %277 = vector.broadcast %cst_157 : f32 to vector<4x512xf32>
      %278 = arith.mulf %277, %266 : vector<4x512xf32>
      %279 = arith.addf %276, %278 : vector<4x512xf32>
      %280 = vector.broadcast %62 : f32 to vector<4x512xf32>
      %281 = arith.mulf %280, %279 : vector<4x512xf32>
      %282 = arith.addf %arg18, %281 : vector<4x512xf32>
      %c0_158 = arith.constant 0 : index
      %c0_159 = arith.constant 0 : index
      %283 = vector.load %arg1[%c0_158, %c0_159] : memref<32x4xbf16, #tpu.memory_space<vmem>>, vector<32x4xbf16>
      %284 = arith.truncf %282 : vector<4x512xf32> to vector<4x512xbf16>
      %cst_160 = arith.constant dense<0.000000e+00> : vector<32x512xf32>
      %285 = tpu.matmul %283, %284, %cst_160 {dimension_numbers = #tpu.dot_dimension_numbers<[1], [0], [0], [1], [0, 0, 1, 1], [], []>} : vector<32x4xbf16>, vector<4x512xbf16>, vector<32x512xf32> -> vector<32x512xf32>
      %c0_161 = arith.constant 0 : index
      %c0_162 = arith.constant 0 : index
      %286 = vector.load %arg2[%c0_161, %c0_162] : memref<32x1xf32, #tpu.memory_space<vmem>>, vector<32x1xf32>
      %287 = vector.broadcast %268 : f32 to vector<32x1xf32>
      %288 = arith.mulf %287, %286 : vector<32x1xf32>
      %289 = vector.broadcast %288 : vector<32x1xf32> to vector<32x512xf32>
      %290 = arith.addf %285, %289 : vector<32x512xf32>
      %c0_163 = arith.constant 0 : index
      %c0_164 = arith.constant 0 : index
      %291 = vector.load %arg3[%c0_163, %c0_164] : memref<32x1xf32, #tpu.memory_space<vmem>>, vector<32x1xf32>
      %292 = vector.broadcast %291 : vector<32x1xf32> to vector<32x512xf32>
      %293 = arith.addf %290, %292 : vector<32x512xf32>
      %cst_165 = arith.constant 0.000000e+00 : f32
      %294 = vector.broadcast %cst_165 : f32 to vector<32x512xf32>
      %295 = arith.maximumf %293, %294 : vector<32x512xf32>
      %c16_i32_166 = arith.constant 16 : i32
      %296 = tpu.dynamic_rotate %295 by %c16_i32_166 dim 1 : vector<32x512xf32>, i32 -> vector<32x512xf32>
      %c0_167 = arith.constant 0 : index
      %c0_168 = arith.constant 0 : index
      %297 = vector.load %arg10[%c0_167, %c0_168] : memref<1x512xf32, #tpu.memory_space<vmem>>, vector<1x512xf32>
      %298 = vector.broadcast %297 : vector<1x512xf32> to vector<32x512xf32>
      %299 = arith.mulf %296, %298 : vector<32x512xf32>
      %c496_i32_169 = arith.constant 496 : i32
      %300 = tpu.dynamic_rotate %295 by %c496_i32_169 dim 1 : vector<32x512xf32>, i32 -> vector<32x512xf32>
      %c0_170 = arith.constant 0 : index
      %c0_171 = arith.constant 0 : index
      %301 = vector.load %arg11[%c0_170, %c0_171] : memref<1x512xf32, #tpu.memory_space<vmem>>, vector<1x512xf32>
      %302 = vector.broadcast %301 : vector<1x512xf32> to vector<32x512xf32>
      %303 = arith.mulf %300, %302 : vector<32x512xf32>
      %304 = tpu.concatenate %299, %295, %303 in 0 : vector<32x512xf32>, vector<32x512xf32>, vector<32x512xf32> -> vector<96x512xf32>
      %305 = arith.truncf %304 : vector<96x512xf32> to vector<96x512xbf16>
      %c0_172 = arith.constant 0 : index
      %c0_173 = arith.constant 0 : index
      %306 = vector.load %arg4[%c0_172, %c0_173] : memref<96x96xbf16, #tpu.memory_space<vmem>>, vector<96x96xbf16>
      %cst_174 = arith.constant dense<0.000000e+00> : vector<96x512xf32>
      %307 = tpu.matmul %306, %305, %cst_174 {dimension_numbers = #tpu.dot_dimension_numbers<[1], [0], [0], [1], [0, 0, 1, 1], [], []>} : vector<96x96xbf16>, vector<96x512xbf16>, vector<96x512xf32> -> vector<96x512xf32>
      %308 = vector.extract_strided_slice %307 {offsets = [0, 0], sizes = [32, 512], strides = [1, 1]} : vector<96x512xf32> to vector<32x512xf32>
      %c1_i32_175 = arith.constant 1 : i32
      %309 = tpu.dynamic_rotate %308 by %c1_i32_175 dim 1 : vector<32x512xf32>, i32 -> vector<32x512xf32>
      %c0_176 = arith.constant 0 : index
      %c0_177 = arith.constant 0 : index
      %310 = vector.load %arg12[%c0_176, %c0_177] : memref<1x512xf32, #tpu.memory_space<vmem>>, vector<1x512xf32>
      %311 = vector.broadcast %310 : vector<1x512xf32> to vector<32x512xf32>
      %312 = arith.mulf %309, %311 : vector<32x512xf32>
      %313 = vector.extract_strided_slice %307 {offsets = [32, 0], sizes = [32, 512], strides = [1, 1]} : vector<96x512xf32> to vector<32x512xf32>
      %314 = arith.addf %312, %313 : vector<32x512xf32>
      %315 = vector.extract_strided_slice %307 {offsets = [64, 0], sizes = [32, 512], strides = [1, 1]} : vector<96x512xf32> to vector<32x512xf32>
      %c511_i32_178 = arith.constant 511 : i32
      %316 = tpu.dynamic_rotate %315 by %c511_i32_178 dim 1 : vector<32x512xf32>, i32 -> vector<32x512xf32>
      %c0_179 = arith.constant 0 : index
      %c0_180 = arith.constant 0 : index
      %317 = vector.load %arg13[%c0_179, %c0_180] : memref<1x512xf32, #tpu.memory_space<vmem>>, vector<1x512xf32>
      %318 = vector.broadcast %317 : vector<1x512xf32> to vector<32x512xf32>
      %319 = arith.mulf %316, %318 : vector<32x512xf32>
      %320 = arith.addf %314, %319 : vector<32x512xf32>
      %c0_181 = arith.constant 0 : index
      %c0_182 = arith.constant 0 : index
      %321 = vector.load %arg6[%c0_181, %c0_182] : memref<32x512xf32, #tpu.memory_space<vmem>>, vector<32x512xf32>
      %322 = vector.broadcast %268 : f32 to vector<32x512xf32>
      %323 = arith.mulf %322, %321 : vector<32x512xf32>
      %324 = arith.addf %320, %323 : vector<32x512xf32>
      %c0_183 = arith.constant 0 : index
      %c0_184 = arith.constant 0 : index
      %325 = vector.load %arg5[%c0_183, %c0_184] : memref<32x1xf32, #tpu.memory_space<vmem>>, vector<32x1xf32>
      %326 = vector.broadcast %325 : vector<32x1xf32> to vector<32x512xf32>
      %327 = arith.addf %324, %326 : vector<32x512xf32>
      %cst_185 = arith.constant 0.000000e+00 : f32
      %328 = vector.broadcast %cst_185 : f32 to vector<32x512xf32>
      %329 = arith.maximumf %327, %328 : vector<32x512xf32>
      %c0_186 = arith.constant 0 : index
      %c0_187 = arith.constant 0 : index
      %330 = vector.load %arg7[%c0_186, %c0_187] : memref<4x32xbf16, #tpu.memory_space<vmem>>, vector<4x32xbf16>
      %331 = arith.truncf %329 : vector<32x512xf32> to vector<32x512xbf16>
      %cst_188 = arith.constant dense<0.000000e+00> : vector<4x512xf32>
      %332 = tpu.matmul %330, %331, %cst_188 {dimension_numbers = #tpu.dot_dimension_numbers<[1], [0], [0], [1], [0, 0, 1, 1], [], []>} : vector<4x32xbf16>, vector<32x512xbf16>, vector<4x512xf32> -> vector<4x512xf32>
      %c0_189 = arith.constant 0 : index
      %c0_190 = arith.constant 0 : index
      %333 = vector.load %arg8[%c0_189, %c0_190] : memref<4x1xf32, #tpu.memory_space<vmem>>, vector<4x1xf32>
      %334 = vector.broadcast %268 : f32 to vector<4x1xf32>
      %335 = arith.mulf %334, %333 : vector<4x1xf32>
      %336 = vector.broadcast %335 : vector<4x1xf32> to vector<4x512xf32>
      %337 = arith.addf %332, %336 : vector<4x512xf32>
      %c0_191 = arith.constant 0 : index
      %c0_192 = arith.constant 0 : index
      %338 = vector.load %arg9[%c0_191, %c0_192] : memref<4x1xf32, #tpu.memory_space<vmem>>, vector<4x1xf32>
      %339 = vector.broadcast %338 : vector<4x1xf32> to vector<4x512xf32>
      %340 = arith.addf %337, %339 : vector<4x512xf32>
      %cst_193 = arith.constant 1.000000e+00 : f32
      %341 = arith.mulf %cst_193, %62 : f32
      %342 = arith.addf %arg15, %341 : f32
      %cst_194 = arith.constant 2.84627533 : f32
      %343 = vector.broadcast %cst_194 : f32 to vector<4x512xf32>
      %344 = arith.mulf %343, %arg19 : vector<4x512xf32>
      %cst_195 = arith.constant -10.757576 : f32
      %345 = vector.broadcast %cst_195 : f32 to vector<4x512xf32>
      %346 = arith.mulf %345, %127 : vector<4x512xf32>
      %347 = arith.addf %344, %346 : vector<4x512xf32>
      %cst_196 = arith.constant 8.90642261 : f32
      %348 = vector.broadcast %cst_196 : f32 to vector<4x512xf32>
      %349 = arith.mulf %348, %195 : vector<4x512xf32>
      %350 = arith.addf %347, %349 : vector<4x512xf32>
      %cst_197 = arith.constant 0.278409094 : f32
      %351 = vector.broadcast %cst_197 : f32 to vector<4x512xf32>
      %352 = arith.mulf %351, %266 : vector<4x512xf32>
      %353 = arith.addf %350, %352 : vector<4x512xf32>
      %cst_198 = arith.constant -0.273531318 : f32
      %354 = vector.broadcast %cst_198 : f32 to vector<4x512xf32>
      %355 = arith.mulf %354, %340 : vector<4x512xf32>
      %356 = arith.addf %353, %355 : vector<4x512xf32>
      %357 = vector.broadcast %62 : f32 to vector<4x512xf32>
      %358 = arith.mulf %357, %356 : vector<4x512xf32>
      %359 = arith.addf %arg18, %358 : vector<4x512xf32>
      %c0_199 = arith.constant 0 : index
      %c0_200 = arith.constant 0 : index
      %360 = vector.load %arg1[%c0_199, %c0_200] : memref<32x4xbf16, #tpu.memory_space<vmem>>, vector<32x4xbf16>
      %361 = arith.truncf %359 : vector<4x512xf32> to vector<4x512xbf16>
      %cst_201 = arith.constant dense<0.000000e+00> : vector<32x512xf32>
      %362 = tpu.matmul %360, %361, %cst_201 {dimension_numbers = #tpu.dot_dimension_numbers<[1], [0], [0], [1], [0, 0, 1, 1], [], []>} : vector<32x4xbf16>, vector<4x512xbf16>, vector<32x512xf32> -> vector<32x512xf32>
      %c0_202 = arith.constant 0 : index
      %c0_203 = arith.constant 0 : index
      %363 = vector.load %arg2[%c0_202, %c0_203] : memref<32x1xf32, #tpu.memory_space<vmem>>, vector<32x1xf32>
      %364 = vector.broadcast %342 : f32 to vector<32x1xf32>
      %365 = arith.mulf %364, %363 : vector<32x1xf32>
      %366 = vector.broadcast %365 : vector<32x1xf32> to vector<32x512xf32>
      %367 = arith.addf %362, %366 : vector<32x512xf32>
      %c0_204 = arith.constant 0 : index
      %c0_205 = arith.constant 0 : index
      %368 = vector.load %arg3[%c0_204, %c0_205] : memref<32x1xf32, #tpu.memory_space<vmem>>, vector<32x1xf32>
      %369 = vector.broadcast %368 : vector<32x1xf32> to vector<32x512xf32>
      %370 = arith.addf %367, %369 : vector<32x512xf32>
      %cst_206 = arith.constant 0.000000e+00 : f32
      %371 = vector.broadcast %cst_206 : f32 to vector<32x512xf32>
      %372 = arith.maximumf %370, %371 : vector<32x512xf32>
      %c16_i32_207 = arith.constant 16 : i32
      %373 = tpu.dynamic_rotate %372 by %c16_i32_207 dim 1 : vector<32x512xf32>, i32 -> vector<32x512xf32>
      %c0_208 = arith.constant 0 : index
      %c0_209 = arith.constant 0 : index
      %374 = vector.load %arg10[%c0_208, %c0_209] : memref<1x512xf32, #tpu.memory_space<vmem>>, vector<1x512xf32>
      %375 = vector.broadcast %374 : vector<1x512xf32> to vector<32x512xf32>
      %376 = arith.mulf %373, %375 : vector<32x512xf32>
      %c496_i32_210 = arith.constant 496 : i32
      %377 = tpu.dynamic_rotate %372 by %c496_i32_210 dim 1 : vector<32x512xf32>, i32 -> vector<32x512xf32>
      %c0_211 = arith.constant 0 : index
      %c0_212 = arith.constant 0 : index
      %378 = vector.load %arg11[%c0_211, %c0_212] : memref<1x512xf32, #tpu.memory_space<vmem>>, vector<1x512xf32>
      %379 = vector.broadcast %378 : vector<1x512xf32> to vector<32x512xf32>
      %380 = arith.mulf %377, %379 : vector<32x512xf32>
      %381 = tpu.concatenate %376, %372, %380 in 0 : vector<32x512xf32>, vector<32x512xf32>, vector<32x512xf32> -> vector<96x512xf32>
      %382 = arith.truncf %381 : vector<96x512xf32> to vector<96x512xbf16>
      %c0_213 = arith.constant 0 : index
      %c0_214 = arith.constant 0 : index
      %383 = vector.load %arg4[%c0_213, %c0_214] : memref<96x96xbf16, #tpu.memory_space<vmem>>, vector<96x96xbf16>
      %cst_215 = arith.constant dense<0.000000e+00> : vector<96x512xf32>
      %384 = tpu.matmul %383, %382, %cst_215 {dimension_numbers = #tpu.dot_dimension_numbers<[1], [0], [0], [1], [0, 0, 1, 1], [], []>} : vector<96x96xbf16>, vector<96x512xbf16>, vector<96x512xf32> -> vector<96x512xf32>
      %385 = vector.extract_strided_slice %384 {offsets = [0, 0], sizes = [32, 512], strides = [1, 1]} : vector<96x512xf32> to vector<32x512xf32>
      %c1_i32_216 = arith.constant 1 : i32
      %386 = tpu.dynamic_rotate %385 by %c1_i32_216 dim 1 : vector<32x512xf32>, i32 -> vector<32x512xf32>
      %c0_217 = arith.constant 0 : index
      %c0_218 = arith.constant 0 : index
      %387 = vector.load %arg12[%c0_217, %c0_218] : memref<1x512xf32, #tpu.memory_space<vmem>>, vector<1x512xf32>
      %388 = vector.broadcast %387 : vector<1x512xf32> to vector<32x512xf32>
      %389 = arith.mulf %386, %388 : vector<32x512xf32>
      %390 = vector.extract_strided_slice %384 {offsets = [32, 0], sizes = [32, 512], strides = [1, 1]} : vector<96x512xf32> to vector<32x512xf32>
      %391 = arith.addf %389, %390 : vector<32x512xf32>
      %392 = vector.extract_strided_slice %384 {offsets = [64, 0], sizes = [32, 512], strides = [1, 1]} : vector<96x512xf32> to vector<32x512xf32>
      %c511_i32_219 = arith.constant 511 : i32
      %393 = tpu.dynamic_rotate %392 by %c511_i32_219 dim 1 : vector<32x512xf32>, i32 -> vector<32x512xf32>
      %c0_220 = arith.constant 0 : index
      %c0_221 = arith.constant 0 : index
      %394 = vector.load %arg13[%c0_220, %c0_221] : memref<1x512xf32, #tpu.memory_space<vmem>>, vector<1x512xf32>
      %395 = vector.broadcast %394 : vector<1x512xf32> to vector<32x512xf32>
      %396 = arith.mulf %393, %395 : vector<32x512xf32>
      %397 = arith.addf %391, %396 : vector<32x512xf32>
      %c0_222 = arith.constant 0 : index
      %c0_223 = arith.constant 0 : index
      %398 = vector.load %arg6[%c0_222, %c0_223] : memref<32x512xf32, #tpu.memory_space<vmem>>, vector<32x512xf32>
      %399 = vector.broadcast %342 : f32 to vector<32x512xf32>
      %400 = arith.mulf %399, %398 : vector<32x512xf32>
      %401 = arith.addf %397, %400 : vector<32x512xf32>
      %c0_224 = arith.constant 0 : index
      %c0_225 = arith.constant 0 : index
      %402 = vector.load %arg5[%c0_224, %c0_225] : memref<32x1xf32, #tpu.memory_space<vmem>>, vector<32x1xf32>
      %403 = vector.broadcast %402 : vector<32x1xf32> to vector<32x512xf32>
      %404 = arith.addf %401, %403 : vector<32x512xf32>
      %cst_226 = arith.constant 0.000000e+00 : f32
      %405 = vector.broadcast %cst_226 : f32 to vector<32x512xf32>
      %406 = arith.maximumf %404, %405 : vector<32x512xf32>
      %c0_227 = arith.constant 0 : index
      %c0_228 = arith.constant 0 : index
      %407 = vector.load %arg7[%c0_227, %c0_228] : memref<4x32xbf16, #tpu.memory_space<vmem>>, vector<4x32xbf16>
      %408 = arith.truncf %406 : vector<32x512xf32> to vector<32x512xbf16>
      %cst_229 = arith.constant dense<0.000000e+00> : vector<4x512xf32>
      %409 = tpu.matmul %407, %408, %cst_229 {dimension_numbers = #tpu.dot_dimension_numbers<[1], [0], [0], [1], [0, 0, 1, 1], [], []>} : vector<4x32xbf16>, vector<32x512xbf16>, vector<4x512xf32> -> vector<4x512xf32>
      %c0_230 = arith.constant 0 : index
      %c0_231 = arith.constant 0 : index
      %410 = vector.load %arg8[%c0_230, %c0_231] : memref<4x1xf32, #tpu.memory_space<vmem>>, vector<4x1xf32>
      %411 = vector.broadcast %342 : f32 to vector<4x1xf32>
      %412 = arith.mulf %411, %410 : vector<4x1xf32>
      %413 = vector.broadcast %412 : vector<4x1xf32> to vector<4x512xf32>
      %414 = arith.addf %409, %413 : vector<4x512xf32>
      %c0_232 = arith.constant 0 : index
      %c0_233 = arith.constant 0 : index
      %415 = vector.load %arg9[%c0_232, %c0_233] : memref<4x1xf32, #tpu.memory_space<vmem>>, vector<4x1xf32>
      %416 = vector.broadcast %415 : vector<4x1xf32> to vector<4x512xf32>
      %417 = arith.addf %414, %416 : vector<4x512xf32>
      %cst_234 = arith.constant 0.0911458358 : f32
      %418 = vector.broadcast %cst_234 : f32 to vector<4x512xf32>
      %419 = arith.mulf %418, %arg19 : vector<4x512xf32>
      %cst_235 = arith.constant 0.449236304 : f32
      %420 = vector.broadcast %cst_235 : f32 to vector<4x512xf32>
      %421 = arith.mulf %420, %195 : vector<4x512xf32>
      %422 = arith.addf %419, %421 : vector<4x512xf32>
      %cst_236 = arith.constant 0.651041686 : f32
      %423 = vector.broadcast %cst_236 : f32 to vector<4x512xf32>
      %424 = arith.mulf %423, %266 : vector<4x512xf32>
      %425 = arith.addf %422, %424 : vector<4x512xf32>
      %cst_237 = arith.constant -0.322376192 : f32
      %426 = vector.broadcast %cst_237 : f32 to vector<4x512xf32>
      %427 = arith.mulf %426, %340 : vector<4x512xf32>
      %428 = arith.addf %425, %427 : vector<4x512xf32>
      %cst_238 = arith.constant 0.130952388 : f32
      %429 = vector.broadcast %cst_238 : f32 to vector<4x512xf32>
      %430 = arith.mulf %429, %417 : vector<4x512xf32>
      %431 = arith.addf %428, %430 : vector<4x512xf32>
      %432 = vector.broadcast %62 : f32 to vector<4x512xf32>
      %433 = arith.mulf %432, %431 : vector<4x512xf32>
      %434 = arith.addf %arg18, %433 : vector<4x512xf32>
      %435 = arith.addf %arg15, %62 : f32
      %c0_239 = arith.constant 0 : index
      %c0_240 = arith.constant 0 : index
      %436 = vector.load %arg1[%c0_239, %c0_240] : memref<32x4xbf16, #tpu.memory_space<vmem>>, vector<32x4xbf16>
      %437 = arith.truncf %434 : vector<4x512xf32> to vector<4x512xbf16>
      %cst_241 = arith.constant dense<0.000000e+00> : vector<32x512xf32>
      %438 = tpu.matmul %436, %437, %cst_241 {dimension_numbers = #tpu.dot_dimension_numbers<[1], [0], [0], [1], [0, 0, 1, 1], [], []>} : vector<32x4xbf16>, vector<4x512xbf16>, vector<32x512xf32> -> vector<32x512xf32>
      %c0_242 = arith.constant 0 : index
      %c0_243 = arith.constant 0 : index
      %439 = vector.load %arg2[%c0_242, %c0_243] : memref<32x1xf32, #tpu.memory_space<vmem>>, vector<32x1xf32>
      %440 = vector.broadcast %435 : f32 to vector<32x1xf32>
      %441 = arith.mulf %440, %439 : vector<32x1xf32>
      %442 = vector.broadcast %441 : vector<32x1xf32> to vector<32x512xf32>
      %443 = arith.addf %438, %442 : vector<32x512xf32>
      %c0_244 = arith.constant 0 : index
      %c0_245 = arith.constant 0 : index
      %444 = vector.load %arg3[%c0_244, %c0_245] : memref<32x1xf32, #tpu.memory_space<vmem>>, vector<32x1xf32>
      %445 = vector.broadcast %444 : vector<32x1xf32> to vector<32x512xf32>
      %446 = arith.addf %443, %445 : vector<32x512xf32>
      %cst_246 = arith.constant 0.000000e+00 : f32
      %447 = vector.broadcast %cst_246 : f32 to vector<32x512xf32>
      %448 = arith.maximumf %446, %447 : vector<32x512xf32>
      %c16_i32_247 = arith.constant 16 : i32
      %449 = tpu.dynamic_rotate %448 by %c16_i32_247 dim 1 : vector<32x512xf32>, i32 -> vector<32x512xf32>
      %c0_248 = arith.constant 0 : index
      %c0_249 = arith.constant 0 : index
      %450 = vector.load %arg10[%c0_248, %c0_249] : memref<1x512xf32, #tpu.memory_space<vmem>>, vector<1x512xf32>
      %451 = vector.broadcast %450 : vector<1x512xf32> to vector<32x512xf32>
      %452 = arith.mulf %449, %451 : vector<32x512xf32>
      %c496_i32_250 = arith.constant 496 : i32
      %453 = tpu.dynamic_rotate %448 by %c496_i32_250 dim 1 : vector<32x512xf32>, i32 -> vector<32x512xf32>
      %c0_251 = arith.constant 0 : index
      %c0_252 = arith.constant 0 : index
      %454 = vector.load %arg11[%c0_251, %c0_252] : memref<1x512xf32, #tpu.memory_space<vmem>>, vector<1x512xf32>
      %455 = vector.broadcast %454 : vector<1x512xf32> to vector<32x512xf32>
      %456 = arith.mulf %453, %455 : vector<32x512xf32>
      %457 = tpu.concatenate %452, %448, %456 in 0 : vector<32x512xf32>, vector<32x512xf32>, vector<32x512xf32> -> vector<96x512xf32>
      %458 = arith.truncf %457 : vector<96x512xf32> to vector<96x512xbf16>
      %c0_253 = arith.constant 0 : index
      %c0_254 = arith.constant 0 : index
      %459 = vector.load %arg4[%c0_253, %c0_254] : memref<96x96xbf16, #tpu.memory_space<vmem>>, vector<96x96xbf16>
      %cst_255 = arith.constant dense<0.000000e+00> : vector<96x512xf32>
      %460 = tpu.matmul %459, %458, %cst_255 {dimension_numbers = #tpu.dot_dimension_numbers<[1], [0], [0], [1], [0, 0, 1, 1], [], []>} : vector<96x96xbf16>, vector<96x512xbf16>, vector<96x512xf32> -> vector<96x512xf32>
      %461 = vector.extract_strided_slice %460 {offsets = [0, 0], sizes = [32, 512], strides = [1, 1]} : vector<96x512xf32> to vector<32x512xf32>
      %c1_i32_256 = arith.constant 1 : i32
      %462 = tpu.dynamic_rotate %461 by %c1_i32_256 dim 1 : vector<32x512xf32>, i32 -> vector<32x512xf32>
      %c0_257 = arith.constant 0 : index
      %c0_258 = arith.constant 0 : index
      %463 = vector.load %arg12[%c0_257, %c0_258] : memref<1x512xf32, #tpu.memory_space<vmem>>, vector<1x512xf32>
      %464 = vector.broadcast %463 : vector<1x512xf32> to vector<32x512xf32>
      %465 = arith.mulf %462, %464 : vector<32x512xf32>
      %466 = vector.extract_strided_slice %460 {offsets = [32, 0], sizes = [32, 512], strides = [1, 1]} : vector<96x512xf32> to vector<32x512xf32>
      %467 = arith.addf %465, %466 : vector<32x512xf32>
      %468 = vector.extract_strided_slice %460 {offsets = [64, 0], sizes = [32, 512], strides = [1, 1]} : vector<96x512xf32> to vector<32x512xf32>
      %c511_i32_259 = arith.constant 511 : i32
      %469 = tpu.dynamic_rotate %468 by %c511_i32_259 dim 1 : vector<32x512xf32>, i32 -> vector<32x512xf32>
      %c0_260 = arith.constant 0 : index
      %c0_261 = arith.constant 0 : index
      %470 = vector.load %arg13[%c0_260, %c0_261] : memref<1x512xf32, #tpu.memory_space<vmem>>, vector<1x512xf32>
      %471 = vector.broadcast %470 : vector<1x512xf32> to vector<32x512xf32>
      %472 = arith.mulf %469, %471 : vector<32x512xf32>
      %473 = arith.addf %467, %472 : vector<32x512xf32>
      %c0_262 = arith.constant 0 : index
      %c0_263 = arith.constant 0 : index
      %474 = vector.load %arg6[%c0_262, %c0_263] : memref<32x512xf32, #tpu.memory_space<vmem>>, vector<32x512xf32>
      %475 = vector.broadcast %435 : f32 to vector<32x512xf32>
      %476 = arith.mulf %475, %474 : vector<32x512xf32>
      %477 = arith.addf %473, %476 : vector<32x512xf32>
      %c0_264 = arith.constant 0 : index
      %c0_265 = arith.constant 0 : index
      %478 = vector.load %arg5[%c0_264, %c0_265] : memref<32x1xf32, #tpu.memory_space<vmem>>, vector<32x1xf32>
      %479 = vector.broadcast %478 : vector<32x1xf32> to vector<32x512xf32>
      %480 = arith.addf %477, %479 : vector<32x512xf32>
      %cst_266 = arith.constant 0.000000e+00 : f32
      %481 = vector.broadcast %cst_266 : f32 to vector<32x512xf32>
      %482 = arith.maximumf %480, %481 : vector<32x512xf32>
      %c0_267 = arith.constant 0 : index
      %c0_268 = arith.constant 0 : index
      %483 = vector.load %arg7[%c0_267, %c0_268] : memref<4x32xbf16, #tpu.memory_space<vmem>>, vector<4x32xbf16>
      %484 = arith.truncf %482 : vector<32x512xf32> to vector<32x512xbf16>
      %cst_269 = arith.constant dense<0.000000e+00> : vector<4x512xf32>
      %485 = tpu.matmul %483, %484, %cst_269 {dimension_numbers = #tpu.dot_dimension_numbers<[1], [0], [0], [1], [0, 0, 1, 1], [], []>} : vector<4x32xbf16>, vector<32x512xbf16>, vector<4x512xf32> -> vector<4x512xf32>
      %c0_270 = arith.constant 0 : index
      %c0_271 = arith.constant 0 : index
      %486 = vector.load %arg8[%c0_270, %c0_271] : memref<4x1xf32, #tpu.memory_space<vmem>>, vector<4x1xf32>
      %487 = vector.broadcast %435 : f32 to vector<4x1xf32>
      %488 = arith.mulf %487, %486 : vector<4x1xf32>
      %489 = vector.broadcast %488 : vector<4x1xf32> to vector<4x512xf32>
      %490 = arith.addf %485, %489 : vector<4x512xf32>
      %c0_272 = arith.constant 0 : index
      %c0_273 = arith.constant 0 : index
      %491 = vector.load %arg9[%c0_272, %c0_273] : memref<4x1xf32, #tpu.memory_space<vmem>>, vector<4x1xf32>
      %492 = vector.broadcast %491 : vector<4x1xf32> to vector<4x512xf32>
      %493 = arith.addf %490, %492 : vector<4x512xf32>
      %cst_274 = arith.constant 0.00123263884 : f32
      %494 = vector.broadcast %cst_274 : f32 to vector<4x512xf32>
      %495 = arith.mulf %494, %arg19 : vector<4x512xf32>
      %cst_275 = arith.constant -0.00425277045 : f32
      %496 = vector.broadcast %cst_275 : f32 to vector<4x512xf32>
      %497 = arith.mulf %496, %195 : vector<4x512xf32>
      %498 = arith.addf %495, %497 : vector<4x512xf32>
      %cst_276 = arith.constant 0.0369791649 : f32
      %499 = vector.broadcast %cst_276 : f32 to vector<4x512xf32>
      %500 = arith.mulf %499, %266 : vector<4x512xf32>
      %501 = arith.addf %498, %500 : vector<4x512xf32>
      %cst_277 = arith.constant -5.086380e-02 : f32
      %502 = vector.broadcast %cst_277 : f32 to vector<4x512xf32>
      %503 = arith.mulf %502, %340 : vector<4x512xf32>
      %504 = arith.addf %501, %503 : vector<4x512xf32>
      %cst_278 = arith.constant 0.0419047624 : f32
      %505 = vector.broadcast %cst_278 : f32 to vector<4x512xf32>
      %506 = arith.mulf %505, %417 : vector<4x512xf32>
      %507 = arith.addf %504, %506 : vector<4x512xf32>
      %cst_279 = arith.constant -2.500000e-02 : f32
      %508 = vector.broadcast %cst_279 : f32 to vector<4x512xf32>
      %509 = arith.mulf %508, %493 : vector<4x512xf32>
      %510 = arith.addf %507, %509 : vector<4x512xf32>
      %511 = vector.broadcast %62 : f32 to vector<4x512xf32>
      %512 = arith.mulf %511, %510 : vector<4x512xf32>
      %513 = math.absf %arg18 : vector<4x512xf32>
      %514 = math.absf %434 : vector<4x512xf32>
      %515 = arith.maximumf %513, %514 : vector<4x512xf32>
      %cst_280 = arith.constant 1.000000e-03 : f32
      %516 = vector.broadcast %cst_280 : f32 to vector<4x512xf32>
      %517 = arith.mulf %516, %515 : vector<4x512xf32>
      %cst_281 = arith.constant 1.000000e-03 : f32
      %518 = vector.broadcast %cst_281 : f32 to vector<4x512xf32>
      %519 = arith.addf %518, %517 : vector<4x512xf32>
      %520 = arith.divf %512, %519 : vector<4x512xf32>
      %521 = arith.mulf %520, %520 : vector<4x512xf32>
      %522 = vector.shape_cast %521 : vector<4x512xf32> to vector<1x4x512xf32>
      %cst_282 = arith.constant dense<0.000000e+00> : vector<1xf32>
      %523 = vector.multi_reduction <add>, %522, %cst_282 [1, 2] : vector<1x4x512xf32> to vector<1xf32>
      %524 = vector.shape_cast %523 : vector<1xf32> to vector<1x1x1xf32>
      %525 = vector.extract %524[0, 0, 0] : f32 from vector<1x1x1xf32>
      %cst_283 = arith.constant 2.048000e+03 : f32
      %526 = arith.divf %525, %cst_283 : f32
      %cst_284 = arith.constant 9.99999968E-21 : f32
      %527 = arith.maximumf %526, %cst_284 : f32
      %cst_285 = arith.constant 1.000000e+00 : f32
      %528 = arith.cmpf ole, %527, %cst_285 : f32
      %529 = vector.broadcast %527 : f32 to vector<1x128xf32>
      %530 = math.log %529 : vector<1x128xf32>
      %cst_286 = arith.constant -1.000000e-01 : f32
      %531 = vector.broadcast %cst_286 : f32 to vector<1x128xf32>
      %532 = arith.mulf %531, %530 : vector<1x128xf32>
      %533 = math.exp %532 : vector<1x128xf32>
      %cst_287 = arith.constant 0.899999976 : f32
      %534 = vector.broadcast %cst_287 : f32 to vector<1x128xf32>
      %535 = arith.mulf %534, %533 : vector<1x128xf32>
      %cst_288 = arith.constant 2.000000e-01 : f32
      %cst_289 = arith.constant 1.000000e+01 : f32
      %536 = vector.broadcast %cst_288 : f32 to vector<1x128xf32>
      %537 = arith.maximumf %536, %535 : vector<1x128xf32>
      %538 = vector.broadcast %cst_289 : f32 to vector<1x128xf32>
      %539 = arith.minimumf %538, %537 : vector<1x128xf32>
      %540 = vector.shape_cast %539 : vector<1x128xf32> to vector<1x1x128xf32>
      %cst_290 = arith.constant dense<0xFF800000> : vector<1xf32>
      %541 = vector.multi_reduction <maximumf>, %540, %cst_290 [1, 2] : vector<1x1x128xf32> to vector<1xf32>
      %542 = vector.shape_cast %541 : vector<1xf32> to vector<1x1x1xf32>
      %543 = vector.extract %542[0, 0, 0] : f32 from vector<1x1x1xf32>
      %cst_291 = arith.constant 1.000000e+00 : f32
      %544 = arith.maximumf %543, %cst_291 : f32
      %545 = arith.select %528, %544, %543 : f32
      %546 = arith.select %528, %434, %arg18 : vector<4x512xf32>
      %547 = arith.select %528, %493, %arg19 : vector<4x512xf32>
      %548 = arith.addf %arg15, %62 : f32
      %549 = arith.select %528, %548, %arg15 : f32
      %550 = arith.mulf %62, %545 : f32
      %c1_i32_292 = arith.constant 1 : i32
      %551 = arith.addi %arg17, %c1_i32_292 : i32
      scf.yield %549, %550, %551, %546, %547 : f32, f32, i32, vector<4x512xf32>, vector<4x512xf32>
    }
    %c0_36 = arith.constant 0 : index
    %c0_37 = arith.constant 0 : index
    %60 = vector.load %arg14[%c0_36, %c0_37] : memref<4x512xf32, #tpu.memory_space<vmem>>, vector<4x512xf32>
    tpu.vector_store %arg14[%c0_36, %c0_37], %59#3 {strides = array<i32>} : memref<4x512xf32, #tpu.memory_space<vmem>>, vector<4x512xf32>,
    return
  }
}

</mosaic_0001>

<llo_original>
// kernel: ode_block_forward.1
$region0: #{ode_block_forward.1}
  #allocation0 [shape = 'u32[]', space=smem, size = 0x4, offset = 0x4, fixed_abs, tag = 'smem constant byte address 0x4 - core index']
  #allocation1 [shape = 'u32[144,128]{1,0:T(1,128)}', space=vmem, size = 0x12000, scoped, tag = 'internal scratch']
  %s0 = inlined_call_operand.vmem [shape: f32[4,512], index: 0, kind: input, shape index: {}]
  %s1 = inlined_call_operand.vmem [shape: bf16[32,4], index: 1, kind: input, shape index: {}]
  %s2 = inlined_call_operand.vmem [shape: f32[32,1], index: 2, kind: input, shape index: {}]
  %s3 = inlined_call_operand.vmem [shape: f32[32,1], index: 3, kind: input, shape index: {}]
  %s4 = inlined_call_operand.vmem [shape: bf16[96,96], index: 4, kind: input, shape index: {}]
  %s5 = inlined_call_operand.vmem [shape: f32[32,1], index: 5, kind: input, shape index: {}]
  %s6 = inlined_call_operand.vmem [shape: f32[32,512], index: 6, kind: input, shape index: {}]
  %s7 = inlined_call_operand.vmem [shape: bf16[4,32], index: 7, kind: input, shape index: {}]
  %s8 = inlined_call_operand.vmem [shape: f32[4,1], index: 8, kind: input, shape index: {}]
  %s9 = inlined_call_operand.vmem [shape: f32[4,1], index: 9, kind: input, shape index: {}]
  %s10 = inlined_call_operand.vmem [shape: f32[1,512], index: 10, kind: input, shape index: {}]
  %s11 = inlined_call_operand.vmem [shape: f32[1,512], index: 11, kind: input, shape index: {}]
  %s12 = inlined_call_operand.vmem [shape: f32[1,512], index: 12, kind: input, shape index: {}]
  %s13 = inlined_call_operand.vmem [shape: f32[1,512], index: 13, kind: input, shape index: {}]
  %s14 = inlined_call_operand.vmem [shape: f32[4,512], index: 14, kind: output, shape index: {}]
  %s15 = sld [smem:[#allocation0]]
  $region73: #{ode_block_forward.1} parent=0
    _
  %s17 = ssub.s32 1, %s15
  %s18 = scalar_select 0, %s17, %s15
  // Predicated region
  $region2: #{ode_block_forward.1} parent=0 // pred_check
    _
  $region3: #{ode_block_forward.1} parent=0 // pred_check_branch
    %20 = sbr.rel (0) target = $region5
  $region4: #{ode_block_forward.1} parent=0 // pred_region
    _
  $region5: #{ode_block_forward.1} parent=0 // pred_fallthru
    _
  // Predicated region
  $region6: #{ode_block_forward.1} parent=0 // pred_check
    _
  $region7: #{ode_block_forward.1} parent=0 // pred_check_branch
    %22 = sbr.rel (0) target = $region9
  $region8: #{ode_block_forward.1} parent=0 // pred_region
    _
  $region9: #{ode_block_forward.1} parent=0 // pred_fallthru
    _
  // Predicated region
  $region10: #{ode_block_forward.1} parent=0 // pred_check
    _
  $region11: #{ode_block_forward.1} parent=0 // pred_check_branch
    %24 = sbr.rel (0) target = $region13
  $region12: #{ode_block_forward.1} parent=0 // pred_region
    _
  $region13: #{ode_block_forward.1} parent=0 // pred_fallthru
    _
  // Predicated region
  $region14: #{ode_block_forward.1} parent=0 // pred_check
    _
  $region15: #{ode_block_forward.1} parent=0 // pred_check_branch
    %26 = sbr.rel (0) target = $region17
  $region16: #{ode_block_forward.1} parent=0 // pred_region
    _
  $region17: #{ode_block_forward.1} parent=0 // pred_fallthru
    _
  // Predicated region
  $region18: #{ode_block_forward.1} parent=0 // pred_check
    _
  $region19: #{ode_block_forward.1} parent=0 // pred_check_branch
    %28 = sbr.rel (0) target = $region21
  $region20: #{ode_block_forward.1} parent=0 // pred_region
    _
  $region21: #{ode_block_forward.1} parent=0 // pred_fallthru
    _
  // Predicated region
  $region22: #{ode_block_forward.1} parent=0 // pred_check
    _
  $region23: #{ode_block_forward.1} parent=0 // pred_check_branch
    %30 = sbr.rel (0) target = $region25
  $region24: #{ode_block_forward.1} parent=0 // pred_region
    _
  $region25: #{ode_block_forward.1} parent=0 // pred_fallthru
    _
  // Predicated region
  $region26: #{ode_block_forward.1} parent=0 // pred_check
    _
  $region27: #{ode_block_forward.1} parent=0 // pred_check_branch
    %32 = sbr.rel (0) target = $region29
  $region28: #{ode_block_forward.1} parent=0 // pred_region
    _
  $region29: #{ode_block_forward.1} parent=0 // pred_fallthru
    _
  // Predicated region
  $region30: #{ode_block_forward.1} parent=0 // pred_check
    _
  $region31: #{ode_block_forward.1} parent=0 // pred_check_branch
    %34 = sbr.rel (0) target = $region33
  $region32: #{ode_block_forward.1} parent=0 // pred_region
    _
  $region33: #{ode_block_forward.1} parent=0 // pred_fallthru
    _
  // Predicated region
  $region34: #{ode_block_forward.1} parent=0 // pred_check
    _
  $region35: #{ode_block_forward.1} parent=0 // pred_check_branch
    %36 = sbr.rel (0) target = $region37
  $region36: #{ode_block_forward.1} parent=0 // pred_region
    _
  $region37: #{ode_block_forward.1} parent=0 // pred_fallthru
    _
  // Predicated region
  $region38: #{ode_block_forward.1} parent=0 // pred_check
    _
  $region39: #{ode_block_forward.1} parent=0 // pred_check_branch
    %38 = sbr.rel (0) target = $region41
  $region40: #{ode_block_forward.1} parent=0 // pred_region
    _
  $region41: #{ode_block_forward.1} parent=0 // pred_fallthru
    _
  // Predicated region
  $region42: #{ode_block_forward.1} parent=0 // pred_check
    _
  $region43: #{ode_block_forward.1} parent=0 // pred_check_branch
    %40 = sbr.rel (0) target = $region45
  $region44: #{ode_block_forward.1} parent=0 // pred_region
    _
  $region45: #{ode_block_forward.1} parent=0 // pred_fallthru
    _
  // Predicated region
  $region46: #{ode_block_forward.1} parent=0 // pred_check
    _
  $region47: #{ode_block_forward.1} parent=0 // pred_check_branch
    %42 = sbr.rel (0) target = $region49
  $region48: #{ode_block_forward.1} parent=0 // pred_region
    _
  $region49: #{ode_block_forward.1} parent=0 // pred_fallthru
    _
  // Predicated region
  $region50: #{ode_block_forward.1} parent=0 // pred_check
    _
  $region51: #{ode_block_forward.1} parent=0 // pred_check_branch
    %44 = sbr.rel (0) target = $region53
  $region52: #{ode_block_forward.1} parent=0 // pred_region
    _
  $region53: #{ode_block_forward.1} parent=0 // pred_fallthru
    _
  // Predicated region
  $region54: #{ode_block_forward.1} parent=0 // pred_check
    _
  $region55: #{ode_block_forward.1} parent=0 // pred_check_branch
    %46 = sbr.rel (0) target = $region57
  $region56: #{ode_block_forward.1} parent=0 // pred_region
    _
  $region57: #{ode_block_forward.1} parent=0 // pred_fallthru
    _
  %v48 = vld [vmem:[%s0] sm:$0xff]
  %v49 = vld [vmem:[%s0 + $0x8] sm:$0xff]
  %v50 = vld [vmem:[%s1] sm:$0xf]
  %v51 = vld [vmem:[%s1 + $0x4] sm:$0xf]
  %v52 = vld [vmem:[%s1 + $0x8] sm:$0xf]
  %v53 = vld [vmem:[%s1 + $0xc] sm:$0xf]
  %v56 = vcombine.high %v48, %v48
  %v57 = vcombine.high %v49, %v49
  %v60 = vpack.c.bf16 %v48, %v48
  %v61 = vpack.c.bf16 %v56, %v56
  %v62 = vpack.c.bf16 %v49, %v49
  %v63 = vpack.c.bf16 %v57, %v57
  %v64 = vld [vmem:[%s2] sm:$0xff]
  %v65 = vld [vmem:[%s2 + $0x8] sm:$0xff]
  %v66 = vld [vmem:[%s2 + $0x10] sm:$0xff]
  %v67 = vld [vmem:[%s2 + $0x18] sm:$0xff]
  %v68 = vmul.f32 %v64, 0.0
  %v69 = vmul.f32 %v65, 0.0
  %v70 = vmul.f32 %v66, 0.0
  %v71 = vmul.f32 %v67, 0.0
  %73 = vset.pattern.permute.xlu0 0
  %74 = vperm.xlu0 %73, %v68
  %v75 = vpop.permute.xlu0 %74
  %78 = vset.pattern.permute.xlu0 0
  %79 = vperm.xlu0 %78, %v69
  %v80 = vpop.permute.xlu0 %79
  %83 = vset.pattern.permute.xlu0 0
  %84 = vperm.xlu0 %83, %v70
  %v85 = vpop.permute.xlu0 %84
  %88 = vset.pattern.permute.xlu0 0
  %89 = vperm.xlu0 %88, %v71
  %v90 = vpop.permute.xlu0 %89
  %v96 = vunpack.c.l.b16 %v50
  %v97 = vunpack.c.l.b16 %v51
  %v98 = vunpack.c.l.b16 %v52
  %v99 = vunpack.c.l.b16 %v53
  %v100 = vpack.c.b16 %v97, %v96
  %v101 = vpack.c.b16 %v99, %v98
  %vm102 = vcmask 31744
  %v104 = vsel %vm102, %v100, 0
  %v107 = vsel %vm102, %v101, 0
  %vm109 = vcmask 1041408
  %v111 = vsel %vm109, %v60, 0
  %v114 = vsel %vm109, %v61, 0
  %v117 = vsel %vm109, %v62, 0
  %v120 = vsel %vm109, %v63, 0
  %122 = vmatprep.subr.bf16.mxu0 %v114
  %123 = vmatpush1.bf16.msra.mxu0 %v111
  %124 = vmatprep.subr.bf16.mxu0 0
  %125 = vmatpush1.bf16.msra.mxu0 0
  %126 = vmatprep.subr.bf16.mxu0 0
  %127 = vmatpush1.bf16.msra.mxu0 0
  %128 = vmatprep.subr.bf16.mxu0 0
  %129 = vmatpush1.bf16.msra.mxu0 0
  %130 = vmatprep.subr.bf16.mxu0 0
  %131 = vmatpush1.bf16.msra.mxu0 0
  %132 = vmatprep.subr.bf16.mxu0 0
  %133 = vmatpush1.bf16.msra.mxu0 0
  %134 = vmatprep.subr.bf16.mxu0 0
  %135 = vmatpush1.bf16.msra.mxu0 0
  %136 = vmatprep.subr.bf16.mxu0 0
  %137 = vmatpush1.bf16.msra.mxu0 0
  %138 = vmatprep.subr.bf16.mxu0 0
  %139 = vmatpush1.bf16.msra.mxu0 0
  %140 = vmatprep.subr.bf16.mxu0 0
  %141 = vmatpush1.bf16.msra.mxu0 0
  %142 = vmatprep.subr.bf16.mxu0 0
  %143 = vmatpush1.bf16.msra.mxu0 0
  %144 = vmatprep.subr.bf16.mxu0 0
  %145 = vmatpush1.bf16.msra.mxu0 0
  %146 = vmatprep.subr.bf16.mxu0 0
  %147 = vmatpush1.bf16.msra.mxu0 0
  %148 = vmatprep.subr.bf16.mxu0 0
  %149 = vmatpush1.bf16.msra.mxu0 0
  %150 = vmatprep.subr.bf16.mxu0 0
  %151 = vmatpush1.bf16.msra.mxu0 0
  %152 = vmatprep.subr.bf16.mxu0 0
  %153 = vmatpush1.bf16.msra.mxu0 0
  %154 = vmatprep.mubr.bf16.mxu0 0
  %155 = vmatmul.mubr.bf16.gmra.mrb[0].mxu0 %v104
  %v156 = vpop.f32.mrb[0].mxu0
  %v157 = vadd.f32 %v75, %v156
  %v158 = vpop.f32.mrb[0].mxu0
  %v159 = vadd.f32 %v75, %v158
  %v160 = vpop.f32.mrb[0].mxu0
  %v161 = vadd.f32 %v80, %v160
  %v162 = vpop.f32.mrb[0].mxu0
  %v163 = vadd.f32 %v80, %v162
  %164 = vmatprep.mubr.bf16.mxu0 0
  %165 = vmatmul.mubr.bf16.gmra.mrb[0].mxu0 %v107
  %v166 = vpop.f32.mrb[0].mxu0
  %v167 = vadd.f32 %v85, %v166
  %v168 = vpop.f32.mrb[0].mxu0
  %v169 = vadd.f32 %v85, %v168
  %v170 = vpop.f32.mrb[0].mxu0
  %v171 = vadd.f32 %v90, %v170
  %v172 = vpop.f32.mrb[0].mxu0
  %v173 = vadd.f32 %v90, %v172
  %174 = vdwg.mxu0
  %175 = vmatprep.subr.bf16.mxu0 %v120
  %176 = vmatpush1.bf16.msra.mxu0 %v117
  %177 = vmatprep.subr.bf16.mxu0 0
  %178 = vmatpush1.bf16.msra.mxu0 0
  %179 = vmatprep.subr.bf16.mxu0 0
  %180 = vmatpush1.bf16.msra.mxu0 0
  %181 = vmatprep.subr.bf16.mxu0 0
  %182 = vmatpush1.bf16.msra.mxu0 0
  %183 = vmatprep.subr.bf16.mxu0 0
  %184 = vmatpush1.bf16.msra.mxu0 0
  %185 = vmatprep.subr.bf16.mxu0 0
  %186 = vmatpush1.bf16.msra.mxu0 0
  %187 = vmatprep.subr.bf16.mxu0 0
  %188 = vmatpush1.bf16.msra.mxu0 0
  %189 = vmatprep.subr.bf16.mxu0 0
  %190 = vmatpush1.bf16.msra.mxu0 0
  %191 = vmatprep.subr.bf16.mxu0 0
  %192 = vmatpush1.bf16.msra.mxu0 0
  %193 = vmatprep.subr.bf16.mxu0 0
  %194 = vmatpush1.bf16.msra.mxu0 0
  %195 = vmatprep.subr.bf16.mxu0 0
  %196 = vmatpush1.bf16.msra.mxu0 0
  %197 = vmatprep.subr.bf16.mxu0 0
  %198 = vmatpush1.bf16.msra.mxu0 0
  %199 = vmatprep.subr.bf16.mxu0 0
  %200 = vmatpush1.bf16.msra.mxu0 0
  %201 = vmatprep.subr.bf16.mxu0 0
  %202 = vmatpush1.bf16.msra.mxu0 0
  %203 = vmatprep.subr.bf16.mxu0 0
  %204 = vmatpush1.bf16.msra.mxu0 0
  %205 = vmatprep.subr.bf16.mxu0 0
  %206 = vmatpush1.bf16.msra.mxu0 0
  %207 = vmatprep.mubr.bf16.mxu0 0
  %208 = vmatmul.mubr.bf16.gmra.mrb[0].mxu0 %v104
  %v209 = vpop.f32.mrb[0].mxu0
  %v210 = vadd.f32 %v75, %v209
  %v211 = vpop.f32.mrb[0].mxu0
  %v212 = vadd.f32 %v75, %v211
  %v213 = vpop.f32.mrb[0].mxu0
  %v214 = vadd.f32 %v80, %v213
  %v215 = vpop.f32.mrb[0].mxu0
  %v216 = vadd.f32 %v80, %v215
  %217 = vmatprep.mubr.bf16.mxu0 0
  %218 = vmatmul.mubr.bf16.gmra.mrb[0].mxu0 %v107
  %v219 = vpop.f32.mrb[0].mxu0
  %v220 = vadd.f32 %v85, %v219
  %v221 = vpop.f32.mrb[0].mxu0
  %v222 = vadd.f32 %v85, %v221
  %v223 = vpop.f32.mrb[0].mxu0
  %v224 = vadd.f32 %v90, %v223
  %v225 = vpop.f32.mrb[0].mxu0
  %v226 = vadd.f32 %v90, %v225
  %227 = vdwg.mxu0
  %v228 = vld [vmem:[%s3] sm:$0xff]
  %v229 = vld [vmem:[%s3 + $0x8] sm:$0xff]
  %v230 = vld [vmem:[%s3 + $0x10] sm:$0xff]
  %v231 = vld [vmem:[%s3 + $0x18] sm:$0xff]
  %233 = vset.pattern.permute.xlu0 0
  %234 = vperm.xlu0 %233, %v228
  %v235 = vpop.permute.xlu0 %234
  %238 = vset.pattern.permute.xlu0 0
  %239 = vperm.xlu0 %238, %v229
  %v240 = vpop.permute.xlu0 %239
  %243 = vset.pattern.permute.xlu0 0
  %244 = vperm.xlu0 %243, %v230
  %v245 = vpop.permute.xlu0 %244
  %248 = vset.pattern.permute.xlu0 0
  %249 = vperm.xlu0 %248, %v231
  %v250 = vpop.permute.xlu0 %249
  %v252 = vadd.f32 %v157, %v235
  %v253 = vadd.f32 %v159, %v235
  %v254 = vadd.f32 %v210, %v235
  %v255 = vadd.f32 %v212, %v235
  %v256 = vadd.f32 %v161, %v240
  %v257 = vadd.f32 %v163, %v240
  %v258 = vadd.f32 %v214, %v240
  %v259 = vadd.f32 %v216, %v240
  %v260 = vadd.f32 %v167, %v245
  %v261 = vadd.f32 %v169, %v245
  %v262 = vadd.f32 %v220, %v245
  %v263 = vadd.f32 %v222, %v245
  %v264 = vadd.f32 %v171, %v250
  %v265 = vadd.f32 %v173, %v250
  %v266 = vadd.f32 %v224, %v250
  %v267 = vadd.f32 %v226, %v250
  %v268 = vmax.f32 %v252, 0.0
  %v269 = vmax.f32 %v253, 0.0
  %v270 = vmax.f32 %v254, 0.0
  %v271 = vmax.f32 %v255, 0.0
  %v272 = vmax.f32 %v256, 0.0
  %v273 = vmax.f32 %v257, 0.0
  %v274 = vmax.f32 %v258, 0.0
  %v275 = vmax.f32 %v259, 0.0
  %v276 = vmax.f32 %v260, 0.0
  %v277 = vmax.f32 %v261, 0.0
  %v278 = vmax.f32 %v262, 0.0
  %v279 = vmax.f32 %v263, 0.0
  %v280 = vmax.f32 %v264, 0.0
  %v281 = vmax.f32 %v265, 0.0
  %v282 = vmax.f32 %v266, 0.0
  %v283 = vmax.f32 %v267, 0.0
  %284 = vrot.lane.b32.xlu0 %v268, 16
  %v285 = vpop.permute.xlu0 %284
  %286 = vrot.lane.b32.xlu0 %v272, 16
  %v287 = vpop.permute.xlu0 %286
  %288 = vrot.lane.b32.xlu0 %v276, 16
  %v289 = vpop.permute.xlu0 %288
  %290 = vrot.lane.b32.xlu0 %v280, 16
  %v291 = vpop.permute.xlu0 %290
  %292 = vrot.lane.b32.xlu0 %v269, 16
  %v293 = vpop.permute.xlu0 %292
  %294 = vrot.lane.b32.xlu0 %v273, 16
  %v295 = vpop.permute.xlu0 %294
  %296 = vrot.lane.b32.xlu0 %v277, 16
  %v297 = vpop.permute.xlu0 %296
  %298 = vrot.lane.b32.xlu0 %v281, 16
  %v299 = vpop.permute.xlu0 %298
  %300 = vrot.lane.b32.xlu0 %v270, 16
  %v301 = vpop.permute.xlu0 %300
  %302 = vrot.lane.b32.xlu0 %v274, 16
  %v303 = vpop.permute.xlu0 %302
  %304 = vrot.lane.b32.xlu0 %v278, 16
  %v305 = vpop.permute.xlu0 %304
  %306 = vrot.lane.b32.xlu0 %v282, 16
  %v307 = vpop.permute.xlu0 %306
  %308 = vrot.lane.b32.xlu0 %v271, 16
  %v309 = vpop.permute.xlu0 %308
  %310 = vrot.lane.b32.xlu0 %v275, 16
  %v311 = vpop.permute.xlu0 %310
  %312 = vrot.lane.b32.xlu0 %v279, 16
  %v313 = vpop.permute.xlu0 %312
  %314 = vrot.lane.b32.xlu0 %v283, 16
  %v315 = vpop.permute.xlu0 %314
  %v316 = vlaneseq
  %v317 = vand.u32 %v316, 127
  %vm318 = vcmp.lt.s32.totalorder %v317, 16
  %v319 = vsel %vm318, %v301, %v309
  %v320 = vsel %vm318, %v303, %v311
  %v321 = vsel %vm318, %v305, %v313
  %v322 = vsel %vm318, %v307, %v315
  %v323 = vsel %vm318, %v293, %v301
  %v324 = vsel %vm318, %v295, %v303
  %v325 = vsel %vm318, %v297, %v305
  %v326 = vsel %vm318, %v299, %v307
  %v327 = vsel %vm318, %v285, %v293
  %v328 = vsel %vm318, %v287, %v295
  %v329 = vsel %vm318, %v289, %v297
  %v330 = vsel %vm318, %v291, %v299
  %v331 = vsel %vm318, %v309, %v285
  %v332 = vsel %vm318, %v311, %v287
  %v333 = vsel %vm318, %v313, %v289
  %v334 = vsel %vm318, %v315, %v291
  %v335 = vld [vmem:[%s10] sm:$0xf]
  %v337 = vlaneseq
  %v338 = vshrl.u32 %v337, 7
  %v339 = vsub.s32 0, %v338
  %v340 = vrot.slane %v335, %v339
  %v341 = vlaneseq
  %v342 = vshrl.u32 %v341, 7
  %v343 = vsub.s32 1, %v342
  %v344 = vrot.slane %v335, %v343
  %v345 = vlaneseq
  %v346 = vshrl.u32 %v345, 7
  %v347 = vsub.s32 2, %v346
  %v348 = vrot.slane %v335, %v347
  %v349 = vlaneseq
  %v350 = vshrl.u32 %v349, 7
  %v351 = vsub.s32 3, %v350
  %v352 = vrot.slane %v335, %v351
  %v357 = vmul.f32 %v331, %v340
  %v358 = vmul.f32 %v327, %v344
  %v359 = vmul.f32 %v323, %v348
  %v360 = vmul.f32 %v319, %v352
  %v361 = vmul.f32 %v332, %v340
  %v362 = vmul.f32 %v328, %v344
  %v363 = vmul.f32 %v324, %v348
  %v364 = vmul.f32 %v320, %v352
  %v365 = vmul.f32 %v333, %v340
  %v366 = vmul.f32 %v329, %v344
  %v367 = vmul.f32 %v325, %v348
  %v368 = vmul.f32 %v321, %v352
  %v369 = vmul.f32 %v334, %v340
  %v370 = vmul.f32 %v330, %v344
  %v371 = vmul.f32 %v326, %v348
  %v372 = vmul.f32 %v322, %v352
  %373 = vrot.lane.b32.xlu0 %v268, 112
  %v374 = vpop.permute.xlu0 %373
  %375 = vrot.lane.b32.xlu0 %v272, 112
  %v376 = vpop.permute.xlu0 %375
  %377 = vrot.lane.b32.xlu0 %v276, 112
  %v378 = vpop.permute.xlu0 %377
  %379 = vrot.lane.b32.xlu0 %v280, 112
  %v380 = vpop.permute.xlu0 %379
  %381 = vrot.lane.b32.xlu0 %v269, 112
  %v382 = vpop.permute.xlu0 %381
  %383 = vrot.lane.b32.xlu0 %v273, 112
  %v384 = vpop.permute.xlu0 %383
  %385 = vrot.lane.b32.xlu0 %v277, 112
  %v386 = vpop.permute.xlu0 %385
  %387 = vrot.lane.b32.xlu0 %v281, 112
  %v388 = vpop.permute.xlu0 %387
  %389 = vrot.lane.b32.xlu0 %v270, 112
  %v390 = vpop.permute.xlu0 %389
  %391 = vrot.lane.b32.xlu0 %v274, 112
  %v392 = vpop.permute.xlu0 %391
  %393 = vrot.lane.b32.xlu0 %v278, 112
  %v394 = vpop.permute.xlu0 %393
  %395 = vrot.lane.b32.xlu0 %v282, 112
  %v396 = vpop.permute.xlu0 %395
  %397 = vrot.lane.b32.xlu0 %v271, 112
  %v398 = vpop.permute.xlu0 %397
  %399 = vrot.lane.b32.xlu0 %v275, 112
  %v400 = vpop.permute.xlu0 %399
  %401 = vrot.lane.b32.xlu0 %v279, 112
  %v402 = vpop.permute.xlu0 %401
  %403 = vrot.lane.b32.xlu0 %v283, 112
  %v404 = vpop.permute.xlu0 %403
  %vm405 = vcmp.lt.s32.totalorder %v317, 112
  %v406 = vsel %vm405, %v390, %v398
  %v407 = vsel %vm405, %v392, %v400
  %v408 = vsel %vm405, %v394, %v402
  %v409 = vsel %vm405, %v396, %v404
  %v410 = vsel %vm405, %v382, %v390
  %v411 = vsel %vm405, %v384, %v392
  %v412 = vsel %vm405, %v386, %v394
  %v413 = vsel %vm405, %v388, %v396
  %v414 = vsel %vm405, %v374, %v382
  %v415 = vsel %vm405, %v376, %v384
  %v416 = vsel %vm405, %v378, %v386
  %v417 = vsel %vm405, %v380, %v388
  %v418 = vsel %vm405, %v398, %v374
  %v419 = vsel %vm405, %v400, %v376
  %v420 = vsel %vm405, %v402, %v378
  %v421 = vsel %vm405, %v404, %v380
  %v422 = vld [vmem:[%s11] sm:$0xf]
  %v424 = vlaneseq
  %v425 = vshrl.u32 %v424, 7
  %v426 = vsub.s32 0, %v425
  %v427 = vrot.slane %v422, %v426
  %v428 = vlaneseq
  %v429 = vshrl.u32 %v428, 7
  %v430 = vsub.s32 1, %v429
  %v431 = vrot.slane %v422, %v430
  %v432 = vlaneseq
  %v433 = vshrl.u32 %v432, 7
  %v434 = vsub.s32 2, %v433
  %v435 = vrot.slane %v422, %v434
  %v436 = vlaneseq
  %v437 = vshrl.u32 %v436, 7
  %v438 = vsub.s32 3, %v437
  %v439 = vrot.slane %v422, %v438
  %v444 = vmul.f32 %v414, %v427
  %v445 = vmul.f32 %v410, %v431
  %v446 = vmul.f32 %v406, %v435
  %v447 = vmul.f32 %v418, %v439
  %v448 = vmul.f32 %v415, %v427
  %v449 = vmul.f32 %v411, %v431
  %v450 = vmul.f32 %v407, %v435
  %v451 = vmul.f32 %v419, %v439
  %v452 = vmul.f32 %v416, %v427
  %v453 = vmul.f32 %v412, %v431
  %v454 = vmul.f32 %v408, %v435
  %v455 = vmul.f32 %v420, %v439
  %v456 = vmul.f32 %v417, %v427
  %v457 = vmul.f32 %v413, %v431
  %v458 = vmul.f32 %v409, %v435
  %v459 = vmul.f32 %v421, %v439
  %v460 = vpack.c.bf16 %v361, %v357
  %v461 = vpack.c.bf16 %v362, %v358
  %v462 = vpack.c.bf16 %v363, %v359
  %v463 = vpack.c.bf16 %v364, %v360
  %v464 = vpack.c.bf16 %v369, %v365
  %v465 = vpack.c.bf16 %v370, %v366
  %v466 = vpack.c.bf16 %v371, %v367
  %v467 = vpack.c.bf16 %v372, %v368
  %v468 = vpack.c.bf16 %v272, %v268
  %v469 = vpack.c.bf16 %v273, %v269
  %v470 = vpack.c.bf16 %v274, %v270
  %v471 = vpack.c.bf16 %v275, %v271
  %v472 = vpack.c.bf16 %v280, %v276
  %v473 = vpack.c.bf16 %v281, %v277
  %v474 = vpack.c.bf16 %v282, %v278
  %v475 = vpack.c.bf16 %v283, %v279
  %v476 = vpack.c.bf16 %v448, %v444
  %v477 = vpack.c.bf16 %v449, %v445
  %v478 = vpack.c.bf16 %v450, %v446
  %v479 = vpack.c.bf16 %v451, %v447
  %v480 = vpack.c.bf16 %v456, %v452
  %v481 = vpack.c.bf16 %v457, %v453
  %v482 = vpack.c.bf16 %v458, %v454
  %v483 = vpack.c.bf16 %v459, %v455
  %v484 = vld [vmem:[%s4] sm:$0xf]
  %v485 = vld [vmem:[%s4 + $0x4] sm:$0xf]
  %v486 = vld [vmem:[%s4 + $0x8] sm:$0xf]
  %v487 = vld [vmem:[%s4 + $0xc] sm:$0xf]
  %v488 = vld [vmem:[%s4 + $0x10] sm:$0xf]
  %v489 = vld [vmem:[%s4 + $0x14] sm:$0xf]
  %v490 = vld [vmem:[%s4 + $0x18] sm:$0xf]
  %v491 = vld [vmem:[%s4 + $0x1c] sm:$0xf]
  %v492 = vld [vmem:[%s4 + $0x20] sm:$0xf]
  %v493 = vld [vmem:[%s4 + $0x24] sm:$0xf]
  %v494 = vld [vmem:[%s4 + $0x28] sm:$0xf]
  %v495 = vld [vmem:[%s4 + $0x2c] sm:$0xf]
  %v508 = vunpack.c.l.b16 %v484
  %v509 = vunpack.c.l.b16 %v485
  %v510 = vunpack.c.l.b16 %v486
  %v511 = vunpack.c.l.b16 %v487
  %v512 = vunpack.c.l.b16 %v488
  %v513 = vunpack.c.l.b16 %v489
  %v514 = vunpack.c.l.b16 %v490
  %v515 = vunpack.c.l.b16 %v491
  %v516 = vunpack.c.l.b16 %v492
  %v517 = vunpack.c.l.b16 %v493
  %v518 = vunpack.c.l.b16 %v494
  %v519 = vunpack.c.l.b16 %v495
  %v520 = vpack.c.b16 %v509, %v508
  %v521 = vpack.c.b16 %v511, %v510
  %v522 = vpack.c.b16 %v513, %v512
  %v523 = vpack.c.b16 %v515, %v514
  %v524 = vpack.c.b16 %v517, %v516
  %v525 = vpack.c.b16 %v519, %v518
  %vm526 = vcmask 785408
  %v528 = vsel %vm526, %v520, 0
  %v531 = vsel %vm526, %v521, 0
  %v534 = vsel %vm526, %v522, 0
  %v537 = vsel %vm526, %v523, 0
  %v540 = vsel %vm526, %v524, 0
  %v543 = vsel %vm526, %v525, 0
  %545 = vmatprep.subr.bf16.mxu0 %v461
  %546 = vmatpush1.bf16.msra.mxu0 %v460
  %547 = vmatprep.subr.bf16.mxu0 %v465
  %548 = vmatpush1.bf16.msra.mxu0 %v464
  %549 = vmatprep.subr.bf16.mxu0 %v469
  %550 = vmatpush1.bf16.msra.mxu0 %v468
  %551 = vmatprep.subr.bf16.mxu0 %v473
  %552 = vmatpush1.bf16.msra.mxu0 %v472
  %553 = vmatprep.subr.bf16.mxu0 %v477
  %554 = vmatpush1.bf16.msra.mxu0 %v476
  %555 = vmatprep.subr.bf16.mxu0 %v481
  %556 = vmatpush1.bf16.msra.mxu0 %v480
  %557 = vmatprep.subr.bf16.mxu0 0
  %558 = vmatpush1.bf16.msra.mxu0 0
  %559 = vmatprep.subr.bf16.mxu0 0
  %560 = vmatpush1.bf16.msra.mxu0 0
  %561 = vmatprep.subr.bf16.mxu0 0
  %562 = vmatpush1.bf16.msra.mxu0 0
  %563 = vmatprep.subr.bf16.mxu0 0
  %564 = vmatpush1.bf16.msra.mxu0 0
  %565 = vmatprep.subr.bf16.mxu0 0
  %566 = vmatpush1.bf16.msra.mxu0 0
  %567 = vmatprep.subr.bf16.mxu0 0
  %568 = vmatpush1.bf16.msra.mxu0 0
  %569 = vmatprep.subr.bf16.mxu0 0
  %570 = vmatpush1.bf16.msra.mxu0 0
  %571 = vmatprep.subr.bf16.mxu0 0
  %572 = vmatpush1.bf16.msra.mxu0 0
  %573 = vmatprep.subr.bf16.mxu0 0
  %574 = vmatpush1.bf16.msra.mxu0 0
  %575 = vmatprep.subr.bf16.mxu0 0
  %576 = vmatpush1.bf16.msra.mxu0 0
  %577 = vmatprep.mubr.bf16.mxu0 0
  %578 = vmatmul.mubr.bf16.gmra.mrb[0].mxu0 %v528
  %v579 = vpop.f32.mrb[0].mxu0
  %v580 = vadd.f32 0.0, %v579
  %v581 = vpop.f32.mrb[0].mxu0
  %v582 = vadd.f32 0.0, %v581
  %v583 = vpop.f32.mrb[0].mxu0
  %v584 = vadd.f32 0.0, %v583
  %v585 = vpop.f32.mrb[0].mxu0
  %v586 = vadd.f32 0.0, %v585
  %587 = vmatprep.mubr.bf16.mxu0 0
  %588 = vmatmul.mubr.bf16.gmra.mrb[0].mxu0 %v531
  %v589 = vpop.f32.mrb[0].mxu0
  %v590 = vadd.f32 0.0, %v589
  %v591 = vpop.f32.mrb[0].mxu0
  %v592 = vadd.f32 0.0, %v591
  %v593 = vpop.f32.mrb[0].mxu0
  %v594 = vadd.f32 0.0, %v593
  %v595 = vpop.f32.mrb[0].mxu0
  %v596 = vadd.f32 0.0, %v595
  %597 = vmatprep.mubr.bf16.mxu0 0
  %598 = vmatmul.mubr.bf16.gmra.mrb[0].mxu0 %v534
  %v599 = vpop.f32.mrb[0].mxu0
  %v600 = vadd.f32 0.0, %v599
  %v601 = vpop.f32.mrb[0].mxu0
  %v602 = vadd.f32 0.0, %v601
  %v603 = vpop.f32.mrb[0].mxu0
  %v604 = vadd.f32 0.0, %v603
  %v605 = vpop.f32.mrb[0].mxu0
  %v606 = vadd.f32 0.0, %v605
  %607 = vmatprep.mubr.bf16.mxu0 0
  %608 = vmatmul.mubr.bf16.gmra.mrb[0].mxu0 %v537
  %v609 = vpop.f32.mrb[0].mxu0
  %v610 = vadd.f32 0.0, %v609
  %v611 = vpop.f32.mrb[0].mxu0
  %v612 = vadd.f32 0.0, %v611
  %v613 = vpop.f32.mrb[0].mxu0
  %v614 = vadd.f32 0.0, %v613
  %v615 = vpop.f32.mrb[0].mxu0
  %v616 = vadd.f32 0.0, %v615
  %617 = vmatprep.mubr.bf16.mxu0 0
  %618 = vmatmul.mubr.bf16.gmra.mrb[0].mxu0 %v540
  %v619 = vpop.f32.mrb[0].mxu0
  %v620 = vadd.f32 0.0, %v619
  %v621 = vpop.f32.mrb[0].mxu0
  %v622 = vadd.f32 0.0, %v621
  %v623 = vpop.f32.mrb[0].mxu0
  %v624 = vadd.f32 0.0, %v623
  %v625 = vpop.f32.mrb[0].mxu0
  %v626 = vadd.f32 0.0, %v625
  %627 = vmatprep.mubr.bf16.mxu0 0
  %628 = vmatmul.mubr.bf16.gmra.mrb[0].mxu0 %v543
  %v629 = vpop.f32.mrb[0].mxu0
  %v630 = vadd.f32 0.0, %v629
  %v631 = vpop.f32.mrb[0].mxu0
  %v632 = vadd.f32 0.0, %v631
  %v633 = vpop.f32.mrb[0].mxu0
  %v634 = vadd.f32 0.0, %v633
  %v635 = vpop.f32.mrb[0].mxu0
  %v636 = vadd.f32 0.0, %v635
  %637 = vdwg.mxu0
  %638 = vmatprep.subr.bf16.mxu0 %v463
  %639 = vmatpush1.bf16.msra.mxu0 %v462
  %640 = vmatprep.subr.bf16.mxu0 %v467
  %641 = vmatpush1.bf16.msra.mxu0 %v466
  %642 = vmatprep.subr.bf16.mxu0 %v471
  %643 = vmatpush1.bf16.msra.mxu0 %v470
  %644 = vmatprep.subr.bf16.mxu0 %v475
  %645 = vmatpush1.bf16.msra.mxu0 %v474
  %646 = vmatprep.subr.bf16.mxu0 %v479
  %647 = vmatpush1.bf16.msra.mxu0 %v478
  %648 = vmatprep.subr.bf16.mxu0 %v483
  %649 = vmatpush1.bf16.msra.mxu0 %v482
  %650 = vmatprep.subr.bf16.mxu0 0
  %651 = vmatpush1.bf16.msra.mxu0 0
  %652 = vmatprep.subr.bf16.mxu0 0
  %653 = vmatpush1.bf16.msra.mxu0 0
  %654 = vmatprep.subr.bf16.mxu0 0
  %655 = vmatpush1.bf16.msra.mxu0 0
  %656 = vmatprep.subr.bf16.mxu0 0
  %657 = vmatpush1.bf16.msra.mxu0 0
  %658 = vmatprep.subr.bf16.mxu0 0
  %659 = vmatpush1.bf16.msra.mxu0 0
  %660 = vmatprep.subr.bf16.mxu0 0
  %661 = vmatpush1.bf16.msra.mxu0 0
  %662 = vmatprep.subr.bf16.mxu0 0
  %663 = vmatpush1.bf16.msra.mxu0 0
  %664 = vmatprep.subr.bf16.mxu0 0
  %665 = vmatpush1.bf16.msra.mxu0 0
  %666 = vmatprep.subr.bf16.mxu0 0
  %667 = vmatpush1.bf16.msra.mxu0 0
  %668 = vmatprep.subr.bf16.mxu0 0
  %669 = vmatpush1.bf16.msra.mxu0 0
  %670 = vmatprep.mubr.bf16.mxu0 0
  %671 = vmatmul.mubr.bf16.gmra.mrb[0].mxu0 %v528
  %v672 = vpop.f32.mrb[0].mxu0
  %v673 = vadd.f32 0.0, %v672
  %v674 = vpop.f32.mrb[0].mxu0
  %v675 = vadd.f32 0.0, %v674
  %v676 = vpop.f32.mrb[0].mxu0
  %v677 = vadd.f32 0.0, %v676
  %v678 = vpop.f32.mrb[0].mxu0
  %v679 = vadd.f32 0.0, %v678
  %680 = vmatprep.mubr.bf16.mxu0 0
  %681 = vmatmul.mubr.bf16.gmra.mrb[0].mxu0 %v531
  %v682 = vpop.f32.mrb[0].mxu0
  %v683 = vadd.f32 0.0, %v682
  %v684 = vpop.f32.mrb[0].mxu0
  %v685 = vadd.f32 0.0, %v684
  %v686 = vpop.f32.mrb[0].mxu0
  %v687 = vadd.f32 0.0, %v686
  %v688 = vpop.f32.mrb[0].mxu0
  %v689 = vadd.f32 0.0, %v688
  %690 = vmatprep.mubr.bf16.mxu0 0
  %691 = vmatmul.mubr.bf16.gmra.mrb[0].mxu0 %v534
  %v692 = vpop.f32.mrb[0].mxu0
  %v693 = vadd.f32 0.0, %v692
  %v694 = vpop.f32.mrb[0].mxu0
  %v695 = vadd.f32 0.0, %v694
  %v696 = vpop.f32.mrb[0].mxu0
  %v697 = vadd.f32 0.0, %v696
  %v698 = vpop.f32.mrb[0].mxu0
  %v699 = vadd.f32 0.0, %v698
  %700 = vmatprep.mubr.bf16.mxu0 0
  %701 = vmatmul.mubr.bf16.gmra.mrb[0].mxu0 %v537
  %v702 = vpop.f32.mrb[0].mxu0
  %v703 = vadd.f32 0.0, %v702
  %v704 = vpop.f32.mrb[0].mxu0
  %v705 = vadd.f32 0.0, %v704
  %v706 = vpop.f32.mrb[0].mxu0
  %v707 = vadd.f32 0.0, %v706
  %v708 = vpop.f32.mrb[0].mxu0
  %v709 = vadd.f32 0.0, %v708
  %710 = vmatprep.mubr.bf16.mxu0 0
  %711 = vmatmul.mubr.bf16.gmra.mrb[0].mxu0 %v540
  %v712 = vpop.f32.mrb[0].mxu0
  %v713 = vadd.f32 0.0, %v712
  %v714 = vpop.f32.mrb[0].mxu0
  %v715 = vadd.f32 0.0, %v714
  %v716 = vpop.f32.mrb[0].mxu0
  %v717 = vadd.f32 0.0, %v716
  %v718 = vpop.f32.mrb[0].mxu0
  %v719 = vadd.f32 0.0, %v718
  %720 = vmatprep.mubr.bf16.mxu0 0
  %721 = vmatmul.mubr.bf16.gmra.mrb[0].mxu0 %v543
  %v722 = vpop.f32.mrb[0].mxu0
  %v723 = vadd.f32 0.0, %v722
  %v724 = vpop.f32.mrb[0].mxu0
  %v725 = vadd.f32 0.0, %v724
  %v726 = vpop.f32.mrb[0].mxu0
  %v727 = vadd.f32 0.0, %v726
  %v728 = vpop.f32.mrb[0].mxu0
  %v729 = vadd.f32 0.0, %v728
  %730 = vdwg.mxu0
  %731 = vrot.lane.b32.xlu0 %v580, 1
  %v732 = vpop.permute.xlu0 %731
  %733 = vrot.lane.b32.xlu0 %v584, 1
  %v734 = vpop.permute.xlu0 %733
  %735 = vrot.lane.b32.xlu0 %v590, 1
  %v736 = vpop.permute.xlu0 %735
  %737 = vrot.lane.b32.xlu0 %v594, 1
  %v738 = vpop.permute.xlu0 %737
  %739 = vrot.lane.b32.xlu0 %v582, 1
  %v740 = vpop.permute.xlu0 %739
  %741 = vrot.lane.b32.xlu0 %v586, 1
  %v742 = vpop.permute.xlu0 %741
  %743 = vrot.lane.b32.xlu0 %v592, 1
  %v744 = vpop.permute.xlu0 %743
  %745 = vrot.lane.b32.xlu0 %v596, 1
  %v746 = vpop.permute.xlu0 %745
  %747 = vrot.lane.b32.xlu0 %v673, 1
  %v748 = vpop.permute.xlu0 %747
  %749 = vrot.lane.b32.xlu0 %v677, 1
  %v750 = vpop.permute.xlu0 %749
  %751 = vrot.lane.b32.xlu0 %v683, 1
  %v752 = vpop.permute.xlu0 %751
  %753 = vrot.lane.b32.xlu0 %v687, 1
  %v754 = vpop.permute.xlu0 %753
  %755 = vrot.lane.b32.xlu0 %v675, 1
  %v756 = vpop.permute.xlu0 %755
  %757 = vrot.lane.b32.xlu0 %v679, 1
  %v758 = vpop.permute.xlu0 %757
  %759 = vrot.lane.b32.xlu0 %v685, 1
  %v760 = vpop.permute.xlu0 %759
  %761 = vrot.lane.b32.xlu0 %v689, 1
  %v762 = vpop.permute.xlu0 %761
  %vm763 = vcmp.lt.s32.totalorder %v317, 1
  %v764 = vsel %vm763, %v748, %v756
  %v765 = vsel %vm763, %v750, %v758
  %v766 = vsel %vm763, %v752, %v760
  %v767 = vsel %vm763, %v754, %v762
  %v768 = vsel %vm763, %v740, %v748
  %v769 = vsel %vm763, %v742, %v750
  %v770 = vsel %vm763, %v744, %v752
  %v771 = vsel %vm763, %v746, %v754
  %v772 = vsel %vm763, %v732, %v740
  %v773 = vsel %vm763, %v734, %v742
  %v774 = vsel %vm763, %v736, %v744
  %v775 = vsel %vm763, %v738, %v746
  %v776 = vsel %vm763, %v756, %v732
  %v777 = vsel %vm763, %v758, %v734
  %v778 = vsel %vm763, %v760, %v736
  %v779 = vsel %vm763, %v762, %v738
  %v780 = vld [vmem:[%s12] sm:$0xf]
  %v782 = vlaneseq
  %v783 = vshrl.u32 %v782, 7
  %v784 = vsub.s32 0, %v783
  %v785 = vrot.slane %v780, %v784
  %v786 = vlaneseq
  %v787 = vshrl.u32 %v786, 7
  %v788 = vsub.s32 1, %v787
  %v789 = vrot.slane %v780, %v788
  %v790 = vlaneseq
  %v791 = vshrl.u32 %v790, 7
  %v792 = vsub.s32 2, %v791
  %v793 = vrot.slane %v780, %v792
  %v794 = vlaneseq
  %v795 = vshrl.u32 %v794, 7
  %v796 = vsub.s32 3, %v795
  %v797 = vrot.slane %v780, %v796
  %v802 = vmul.f32 %v776, %v785
  %v803 = vmul.f32 %v772, %v789
  %v804 = vmul.f32 %v768, %v793
  %v805 = vmul.f32 %v764, %v797
  %v806 = vmul.f32 %v777, %v785
  %v807 = vmul.f32 %v773, %v789
  %v808 = vmul.f32 %v769, %v793
  %v809 = vmul.f32 %v765, %v797
  %v810 = vmul.f32 %v778, %v785
  %v811 = vmul.f32 %v774, %v789
  %v812 = vmul.f32 %v770, %v793
  %v813 = vmul.f32 %v766, %v797
  %v814 = vmul.f32 %v779, %v785
  %v815 = vmul.f32 %v775, %v789
  %v816 = vmul.f32 %v771, %v793
  %v817 = vmul.f32 %v767, %v797
  %v818 = vadd.f32 %v802, %v600
  %v819 = vadd.f32 %v803, %v602
  %v820 = vadd.f32 %v804, %v693
  %v821 = vadd.f32 %v805, %v695
  %v822 = vadd.f32 %v806, %v604
  %v823 = vadd.f32 %v807, %v606
  %v824 = vadd.f32 %v808, %v697
  %v825 = vadd.f32 %v809, %v699
  %v826 = vadd.f32 %v810, %v610
  %v827 = vadd.f32 %v811, %v612
  %v828 = vadd.f32 %v812, %v703
  %v829 = vadd.f32 %v813, %v705
  %v830 = vadd.f32 %v814, %v614
  %v831 = vadd.f32 %v815, %v616
  %v832 = vadd.f32 %v816, %v707
  %v833 = vadd.f32 %v817, %v709
  %834 = vrot.lane.b32.xlu0 %v620, 127
  %v835 = vpop.permute.xlu0 %834
  %836 = vrot.lane.b32.xlu0 %v624, 127
  %v837 = vpop.permute.xlu0 %836
  %838 = vrot.lane.b32.xlu0 %v630, 127
  %v839 = vpop.permute.xlu0 %838
  %840 = vrot.lane.b32.xlu0 %v634, 127
  %v841 = vpop.permute.xlu0 %840
  %842 = vrot.lane.b32.xlu0 %v622, 127
  %v843 = vpop.permute.xlu0 %842
  %844 = vrot.lane.b32.xlu0 %v626, 127
  %v845 = vpop.permute.xlu0 %844
  %846 = vrot.lane.b32.xlu0 %v632, 127
  %v847 = vpop.permute.xlu0 %846
  %848 = vrot.lane.b32.xlu0 %v636, 127
  %v849 = vpop.permute.xlu0 %848
  %850 = vrot.lane.b32.xlu0 %v713, 127
  %v851 = vpop.permute.xlu0 %850
  %852 = vrot.lane.b32.xlu0 %v717, 127
  %v853 = vpop.permute.xlu0 %852
  %854 = vrot.lane.b32.xlu0 %v723, 127
  %v855 = vpop.permute.xlu0 %854
  %856 = vrot.lane.b32.xlu0 %v727, 127
  %v857 = vpop.permute.xlu0 %856
  %858 = vrot.lane.b32.xlu0 %v715, 127
  %v859 = vpop.permute.xlu0 %858
  %860 = vrot.lane.b32.xlu0 %v719, 127
  %v861 = vpop.permute.xlu0 %860
  %862 = vrot.lane.b32.xlu0 %v725, 127
  %v863 = vpop.permute.xlu0 %862
  %864 = vrot.lane.b32.xlu0 %v729, 127
  %v865 = vpop.permute.xlu0 %864
  %vm866 = vcmp.lt.s32.totalorder %v317, 127
  %v867 = vsel %vm866, %v851, %v859
  %v868 = vsel %vm866, %v853, %v861
  %v869 = vsel %vm866, %v855, %v863
  %v870 = vsel %vm866, %v857, %v865
  %v871 = vsel %vm866, %v843, %v851
  %v872 = vsel %vm866, %v845, %v853
  %v873 = vsel %vm866, %v847, %v855
  %v874 = vsel %vm866, %v849, %v857
  %v875 = vsel %vm866, %v835, %v843
  %v876 = vsel %vm866, %v837, %v845
  %v877 = vsel %vm866, %v839, %v847
  %v878 = vsel %vm866, %v841, %v849
  %v879 = vsel %vm866, %v859, %v835
  %v880 = vsel %vm866, %v861, %v837
  %v881 = vsel %vm866, %v863, %v839
  %v882 = vsel %vm866, %v865, %v841
  %v883 = vld [vmem:[%s13] sm:$0xf]
  %v885 = vlaneseq
  %v886 = vshrl.u32 %v885, 7
  %v887 = vsub.s32 0, %v886
  %v888 = vrot.slane %v883, %v887
  %v889 = vlaneseq
  %v890 = vshrl.u32 %v889, 7
  %v891 = vsub.s32 1, %v890
  %v892 = vrot.slane %v883, %v891
  %v893 = vlaneseq
  %v894 = vshrl.u32 %v893, 7
  %v895 = vsub.s32 2, %v894
  %v896 = vrot.slane %v883, %v895
  %v897 = vlaneseq
  %v898 = vshrl.u32 %v897, 7
  %v899 = vsub.s32 3, %v898
  %v900 = vrot.slane %v883, %v899
  %v905 = vmul.f32 %v875, %v888
  %v906 = vmul.f32 %v871, %v892
  %v907 = vmul.f32 %v867, %v896
  %v908 = vmul.f32 %v879, %v900
  %v909 = vmul.f32 %v876, %v888
  %v910 = vmul.f32 %v872, %v892
  %v911 = vmul.f32 %v868, %v896
  %v912 = vmul.f32 %v880, %v900
  %v913 = vmul.f32 %v877, %v888
  %v914 = vmul.f32 %v873, %v892
  %v915 = vmul.f32 %v869, %v896
  %v916 = vmul.f32 %v881, %v900
  %v917 = vmul.f32 %v878, %v888
  %v918 = vmul.f32 %v874, %v892
  %v919 = vmul.f32 %v870, %v896
  %v920 = vmul.f32 %v882, %v900
  %v921 = vadd.f32 %v818, %v905
  %v922 = vadd.f32 %v819, %v906
  %v923 = vadd.f32 %v820, %v907
  %v924 = vadd.f32 %v821, %v908
  %v925 = vadd.f32 %v822, %v909
  %v926 = vadd.f32 %v823, %v910
  %v927 = vadd.f32 %v824, %v911
  %v928 = vadd.f32 %v825, %v912
  %v929 = vadd.f32 %v826, %v913
  %v930 = vadd.f32 %v827, %v914
  %v931 = vadd.f32 %v828, %v915
  %v932 = vadd.f32 %v829, %v916
  %v933 = vadd.f32 %v830, %v917
  %v934 = vadd.f32 %v831, %v918
  %v935 = vadd.f32 %v832, %v919
  %v936 = vadd.f32 %v833, %v920
  %v937 = vld [vmem:[%s6] sm:$0xff]
  %v938 = vld [vmem:[%s6 + $0x8] sm:$0xff]
  %v939 = vld [vmem:[%s6 + $0x10] sm:$0xff]
  %v940 = vld [vmem:[%s6 + $0x18] sm:$0xff]
  %v941 = vld [vmem:[%s6 + $0x20] sm:$0xff]
  %v942 = vld [vmem:[%s6 + $0x28] sm:$0xff]
  %v943 = vld [vmem:[%s6 + $0x30] sm:$0xff]
  %v944 = vld [vmem:[%s6 + $0x38] sm:$0xff]
  %v945 = vld [vmem:[%s6 + $0x40] sm:$0xff]
  %v946 = vld [vmem:[%s6 + $0x48] sm:$0xff]
  %v947 = vld [vmem:[%s6 + $0x50] sm:$0xff]
  %v948 = vld [vmem:[%s6 + $0x58] sm:$0xff]
  %v949 = vld [vmem:[%s6 + $0x60] sm:$0xff]
  %v950 = vld [vmem:[%s6 + $0x68] sm:$0xff]
  %v951 = vld [vmem:[%s6 + $0x70] sm:$0xff]
  %v952 = vld [vmem:[%s6 + $0x78] sm:$0xff]
  %v953 = vmul.f32 %v937, 0.0
  %v954 = vmul.f32 %v938, 0.0
  %v955 = vmul.f32 %v939, 0.0
  %v956 = vmul.f32 %v940, 0.0
  %v957 = vmul.f32 %v941, 0.0
  %v958 = vmul.f32 %v942, 0.0
  %v959 = vmul.f32 %v943, 0.0
  %v960 = vmul.f32 %v944, 0.0
  %v961 = vmul.f32 %v945, 0.0
  %v962 = vmul.f32 %v946, 0.0
  %v963 = vmul.f32 %v947, 0.0
  %v964 = vmul.f32 %v948, 0.0
  %v965 = vmul.f32 %v949, 0.0
  %v966 = vmul.f32 %v950, 0.0
  %v967 = vmul.f32 %v951, 0.0
  %v968 = vmul.f32 %v952, 0.0
  %v969 = vadd.f32 %v921, %v953
  %v970 = vadd.f32 %v922, %v954
  %v971 = vadd.f32 %v923, %v955
  %v972 = vadd.f32 %v924, %v956
  %v973 = vadd.f32 %v925, %v957
  %v974 = vadd.f32 %v926, %v958
  %v975 = vadd.f32 %v927, %v959
  %v976 = vadd.f32 %v928, %v960
  %v977 = vadd.f32 %v929, %v961
  %v978 = vadd.f32 %v930, %v962
  %v979 = vadd.f32 %v931, %v963
  %v980 = vadd.f32 %v932, %v964
  %v981 = vadd.f32 %v933, %v965
  %v982 = vadd.f32 %v934, %v966
  %v983 = vadd.f32 %v935, %v967
  %v984 = vadd.f32 %v936, %v968
  %v985 = vld [vmem:[%s5] sm:$0xff]
  %v986 = vld [vmem:[%s5 + $0x8] sm:$0xff]
  %v987 = vld [vmem:[%s5 + $0x10] sm:$0xff]
  %v988 = vld [vmem:[%s5 + $0x18] sm:$0xff]
  %990 = vset.pattern.permute.xlu0 0
  %991 = vperm.xlu0 %990, %v985
  %v992 = vpop.permute.xlu0 %991
  %995 = vset.pattern.permute.xlu0 0
  %996 = vperm.xlu0 %995, %v986
  %v997 = vpop.permute.xlu0 %996
  %1000 = vset.pattern.permute.xlu0 0
  %1001 = vperm.xlu0 %1000, %v987
  %v1002 = vpop.permute.xlu0 %1001
  %1005 = vset.pattern.permute.xlu0 0
  %1006 = vperm.xlu0 %1005, %v988
  %v1007 = vpop.permute.xlu0 %1006
  %v1009 = vadd.f32 %v969, %v992
  %v1010 = vadd.f32 %v970, %v992
  %v1011 = vadd.f32 %v971, %v992
  %v1012 = vadd.f32 %v972, %v992
  %v1013 = vadd.f32 %v973, %v997
  %v1014 = vadd.f32 %v974, %v997
  %v1015 = vadd.f32 %v975, %v997
  %v1016 = vadd.f32 %v976, %v997
  %v1017 = vadd.f32 %v977, %v1002
  %v1018 = vadd.f32 %v978, %v1002
  %v1019 = vadd.f32 %v979, %v1002
  %v1020 = vadd.f32 %v980, %v1002
  %v1021 = vadd.f32 %v981, %v1007
  %v1022 = vadd.f32 %v982, %v1007
  %v1023 = vadd.f32 %v983, %v1007
  %v1024 = vadd.f32 %v984, %v1007
  %v1025 = vmax.f32 %v1009, 0.0
  %v1026 = vmax.f32 %v1010, 0.0
  %v1027 = vmax.f32 %v1011, 0.0
  %v1028 = vmax.f32 %v1012, 0.0
  %v1029 = vmax.f32 %v1013, 0.0
  %v1030 = vmax.f32 %v1014, 0.0
  %v1031 = vmax.f32 %v1015, 0.0
  %v1032 = vmax.f32 %v1016, 0.0
  %v1033 = vmax.f32 %v1017, 0.0
  %v1034 = vmax.f32 %v1018, 0.0
  %v1035 = vmax.f32 %v1019, 0.0
  %v1036 = vmax.f32 %v1020, 0.0
  %v1037 = vmax.f32 %v1021, 0.0
  %v1038 = vmax.f32 %v1022, 0.0
  %v1039 = vmax.f32 %v1023, 0.0
  %v1040 = vmax.f32 %v1024, 0.0
  %v1041 = vld [vmem:[%s7] sm:$0x3]
  %v1042 = vpack.c.bf16 %v1029, %v1025
  %v1043 = vpack.c.bf16 %v1030, %v1026
  %v1044 = vpack.c.bf16 %v1031, %v1027
  %v1045 = vpack.c.bf16 %v1032, %v1028
  %v1046 = vpack.c.bf16 %v1037, %v1033
  %v1047 = vpack.c.bf16 %v1038, %v1034
  %v1048 = vpack.c.bf16 %v1039, %v1035
  %v1049 = vpack.c.bf16 %v1040, %v1036
  %v1050 = vld [vmem:[%s8] sm:$0xf]
  %v1051 = vmul.f32 %v1050, 0.0
  %1053 = vset.pattern.permute.xlu0 0
  %1054 = vperm.xlu0 %1053, %v1051
  %v1055 = vpop.permute.xlu0 %1054
  %vm1057 = vcmask 261120
  %v1059 = vsel %vm1057, %v1041, 0
  %1061 = vmatprep.subr.bf16.mxu0 %v1043
  %1062 = vmatpush1.bf16.msra.mxu0 %v1042
  %1063 = vmatprep.subr.bf16.mxu0 %v1047
  %1064 = vmatpush1.bf16.msra.mxu0 %v1046
  %1065 = vmatprep.subr.bf16.mxu0 0
  %1066 = vmatpush1.bf16.msra.mxu0 0
  %1067 = vmatprep.subr.bf16.mxu0 0
  %1068 = vmatpush1.bf16.msra.mxu0 0
  %1069 = vmatprep.subr.bf16.mxu0 0
  %1070 = vmatpush1.bf16.msra.mxu0 0
  %1071 = vmatprep.subr.bf16.mxu0 0
  %1072 = vmatpush1.bf16.msra.mxu0 0
  %1073 = vmatprep.subr.bf16.mxu0 0
  %1074 = vmatpush1.bf16.msra.mxu0 0
  %1075 = vmatprep.subr.bf16.mxu0 0
  %1076 = vmatpush1.bf16.msra.mxu0 0
  %1077 = vmatprep.subr.bf16.mxu0 0
  %1078 = vmatpush1.bf16.msra.mxu0 0
  %1079 = vmatprep.subr.bf16.mxu0 0
  %1080 = vmatpush1.bf16.msra.mxu0 0
  %1081 = vmatprep.subr.bf16.mxu0 0
  %1082 = vmatpush1.bf16.msra.mxu0 0
  %1083 = vmatprep.subr.bf16.mxu0 0
  %1084 = vmatpush1.bf16.msra.mxu0 0
  %1085 = vmatprep.subr.bf16.mxu0 0
  %1086 = vmatpush1.bf16.msra.mxu0 0
  %1087 = vmatprep.subr.bf16.mxu0 0
  %1088 = vmatpush1.bf16.msra.mxu0 0
  %1089 = vmatprep.subr.bf16.mxu0 0
  %1090 = vmatpush1.bf16.msra.mxu0 0
  %1091 = vmatprep.subr.bf16.mxu0 0
  %1092 = vmatpush1.bf16.msra.mxu0 0
  %1093 = vmatprep.mubr.bf16.mxu0 0
  %1094 = vmatmul.mubr.bf16.gmra.mrb[0].mxu0 %v1059
  %v1095 = vpop.f32.mrb[0].mxu0
  %v1096 = vadd.f32 %v1055, %v1095
  %v1097 = vpop.f32.mrb[0].mxu0
  %v1098 = vadd.f32 %v1055, %v1097
  %v1099 = vpop.f32.mrb[0].mxu0
  %v1100 = vpop.f32.mrb[0].mxu0
  %1101 = vdwg.mxu0
  %1102 = vmatprep.subr.bf16.mxu0 %v1045
  %1103 = vmatpush1.bf16.msra.mxu0 %v1044
  %1104 = vmatprep.subr.bf16.mxu0 %v1049
  %1105 = vmatpush1.bf16.msra.mxu0 %v1048
  %1106 = vmatprep.subr.bf16.mxu0 0
  %1107 = vmatpush1.bf16.msra.mxu0 0
  %1108 = vmatprep.subr.bf16.mxu0 0
  %1109 = vmatpush1.bf16.msra.mxu0 0
  %1110 = vmatprep.subr.bf16.mxu0 0
  %1111 = vmatpush1.bf16.msra.mxu0 0
  %1112 = vmatprep.subr.bf16.mxu0 0
  %1113 = vmatpush1.bf16.msra.mxu0 0
  %1114 = vmatprep.subr.bf16.mxu0 0
  %1115 = vmatpush1.bf16.msra.mxu0 0
  %1116 = vmatprep.subr.bf16.mxu0 0
  %1117 = vmatpush1.bf16.msra.mxu0 0
  %1118 = vmatprep.subr.bf16.mxu0 0
  %1119 = vmatpush1.bf16.msra.mxu0 0
  %1120 = vmatprep.subr.bf16.mxu0 0
  %1121 = vmatpush1.bf16.msra.mxu0 0
  %1122 = vmatprep.subr.bf16.mxu0 0
  %1123 = vmatpush1.bf16.msra.mxu0 0
  %1124 = vmatprep.subr.bf16.mxu0 0
  %1125 = vmatpush1.bf16.msra.mxu0 0
  %1126 = vmatprep.subr.bf16.mxu0 0
  %1127 = vmatpush1.bf16.msra.mxu0 0
  %1128 = vmatprep.subr.bf16.mxu0 0
  %1129 = vmatpush1.bf16.msra.mxu0 0
  %1130 = vmatprep.subr.bf16.mxu0 0
  %1131 = vmatpush1.bf16.msra.mxu0 0
  %1132 = vmatprep.subr.bf16.mxu0 0
  %1133 = vmatpush1.bf16.msra.mxu0 0
  %1134 = vmatprep.mubr.bf16.mxu0 0
  %1135 = vmatmul.mubr.bf16.gmra.mrb[0].mxu0 %v1059
  %v1136 = vpop.f32.mrb[0].mxu0
  %v1137 = vadd.f32 %v1055, %v1136
  %v1138 = vpop.f32.mrb[0].mxu0
  %v1139 = vadd.f32 %v1055, %v1138
  %v1140 = vpop.f32.mrb[0].mxu0
  %v1141 = vpop.f32.mrb[0].mxu0
  %1142 = vdwg.mxu0
  %v1143 = vld [vmem:[%s9] sm:$0xf]
  %1145 = vset.pattern.permute.xlu0 0
  %1146 = vperm.xlu0 %1145, %v1143
  %v1147 = vpop.permute.xlu0 %1146
  %v1149 = vadd.f32 %v1096, %v1147
  %v1150 = vadd.f32 %v1098, %v1147
  %v1151 = vadd.f32 %v1137, %v1147
  %v1152 = vadd.f32 %v1139, %v1147
  // While loop
  $region58: #{ode_block_forward.1} parent=0 // loop_pre_header
    _
  $region59: #{ode_block_forward.1} parent=0 // loop_header
    %s1154 = sphi 0.0, %s6802
    %s1155 = sphi 0.05, %s6803
    %s1156 = sphi 0, %s6804
    %v1157 = vphi %v48, %v6796
    %v1158 = vphi %v49, %v6797
    %v1159 = vphi %v1149, %v6798
    %v1160 = vphi %v1150, %v6799
    %v1161 = vphi %v1151, %v6800
    %v1162 = vphi %v1152, %v6801
    %p1163 = scmp.lt.f32.partialorder %s1154, 1.0
    %p1164 = scmp.lt.s32.totalorder %s1156, 1000
    %p1165 = pnand %p1163, %p1164
    %p1166 = pneg %p1165
  $region60: #{ode_block_forward.1} parent=0 // loop_header_branch
    %1168 = sbr.rel (%p1165) target = $region64
  $region61: #{ode_block_forward.1} parent=0 // loop_body
    %s1169 = ssub.f32 1.0, %s1154
    %s1170 = smin.f32 %s1155, %s1169
    %s1171 = smul.f32 %s1170, 0.2
    %s1172 = sadd.f32 %s1154, %s1171
    %v1173 = vmul.f32 %v1159, 0.2
    %v1174 = vmul.f32 %v1160, 0.2
    %v1175 = vmul.f32 %v1161, 0.2
    %v1176 = vmul.f32 %v1162, 0.2
    %v1177 = vstv %s1170
    %v1178 = vmul.f32 %v1177, %v1173
    %v1179 = vmul.f32 %v1177, %v1174
    %v1180 = vmul.f32 %v1177, %v1175
    %v1181 = vmul.f32 %v1177, %v1176
    %v1186 = vcombine.low %v1178, %v1179
    %v1187 = vcombine.low %v1180, %v1181
    %v1190 = vadd.f32 %v1157, %v1186
    %v1191 = vadd.f32 %v1158, %v1187
    %v1192 = vld [vmem:[%s1] sm:$0xf]
    %v1193 = vld [vmem:[%s1 + $0x4] sm:$0xf]
    %v1194 = vld [vmem:[%s1 + $0x8] sm:$0xf]
    %v1195 = vld [vmem:[%s1 + $0xc] sm:$0xf]
    %v1198 = vcombine.high %v1190, %v1190
    %v1199 = vcombine.high %v1191, %v1191
    %v1202 = vpack.c.bf16 %v1190, %v1190
    %v1203 = vpack.c.bf16 %v1198, %v1198
    %v1204 = vpack.c.bf16 %v1191, %v1191
    %v1205 = vpack.c.bf16 %v1199, %v1199
    %v1206 = vld [vmem:[%s2] sm:$0xff]
    %v1207 = vld [vmem:[%s2 + $0x8] sm:$0xff]
    %v1208 = vld [vmem:[%s2 + $0x10] sm:$0xff]
    %v1209 = vld [vmem:[%s2 + $0x18] sm:$0xff]
    %v1210 = vstv %s1172
    %v1211 = vmul.f32 %v1210, %v1206
    %v1212 = vmul.f32 %v1210, %v1207
    %v1213 = vmul.f32 %v1210, %v1208
    %v1214 = vmul.f32 %v1210, %v1209
    %1216 = vset.pattern.permute.xlu0 0
    %1217 = vperm.xlu0 %1216, %v1211
    %v1218 = vpop.permute.xlu0 %1217
    %1221 = vset.pattern.permute.xlu0 0
    %1222 = vperm.xlu0 %1221, %v1212
    %v1223 = vpop.permute.xlu0 %1222
    %1226 = vset.pattern.permute.xlu0 0
    %1227 = vperm.xlu0 %1226, %v1213
    %v1228 = vpop.permute.xlu0 %1227
    %1231 = vset.pattern.permute.xlu0 0
    %1232 = vperm.xlu0 %1231, %v1214
    %v1233 = vpop.permute.xlu0 %1232
    %v1239 = vunpack.c.l.b16 %v1192
    %v1240 = vunpack.c.l.b16 %v1193
    %v1241 = vunpack.c.l.b16 %v1194
    %v1242 = vunpack.c.l.b16 %v1195
    %v1243 = vpack.c.b16 %v1240, %v1239
    %v1244 = vpack.c.b16 %v1242, %v1241
    %v1246 = vsel %vm102, %v1243, 0
    %v1249 = vsel %vm102, %v1244, 0
    %v1252 = vsel %vm109, %v1202, 0
    %v1255 = vsel %vm109, %v1203, 0
    %v1258 = vsel %vm109, %v1204, 0
    %v1261 = vsel %vm109, %v1205, 0
    %1263 = vmatprep.subr.bf16.mxu0 %v1255
    %1264 = vmatpush1.bf16.msra.mxu0 %v1252
    %1265 = vmatprep.subr.bf16.mxu0 0
    %1266 = vmatpush1.bf16.msra.mxu0 0
    %1267 = vmatprep.subr.bf16.mxu0 0
    %1268 = vmatpush1.bf16.msra.mxu0 0
    %1269 = vmatprep.subr.bf16.mxu0 0
    %1270 = vmatpush1.bf16.msra.mxu0 0
    %1271 = vmatprep.subr.bf16.mxu0 0
    %1272 = vmatpush1.bf16.msra.mxu0 0
    %1273 = vmatprep.subr.bf16.mxu0 0
    %1274 = vmatpush1.bf16.msra.mxu0 0
    %1275 = vmatprep.subr.bf16.mxu0 0
    %1276 = vmatpush1.bf16.msra.mxu0 0
    %1277 = vmatprep.subr.bf16.mxu0 0
    %1278 = vmatpush1.bf16.msra.mxu0 0
    %1279 = vmatprep.subr.bf16.mxu0 0
    %1280 = vmatpush1.bf16.msra.mxu0 0
    %1281 = vmatprep.subr.bf16.mxu0 0
    %1282 = vmatpush1.bf16.msra.mxu0 0
    %1283 = vmatprep.subr.bf16.mxu0 0
    %1284 = vmatpush1.bf16.msra.mxu0 0
    %1285 = vmatprep.subr.bf16.mxu0 0
    %1286 = vmatpush1.bf16.msra.mxu0 0
    %1287 = vmatprep.subr.bf16.mxu0 0
    %1288 = vmatpush1.bf16.msra.mxu0 0
    %1289 = vmatprep.subr.bf16.mxu0 0
    %1290 = vmatpush1.bf16.msra.mxu0 0
    %1291 = vmatprep.subr.bf16.mxu0 0
    %1292 = vmatpush1.bf16.msra.mxu0 0
    %1293 = vmatprep.subr.bf16.mxu0 0
    %1294 = vmatpush1.bf16.msra.mxu0 0
    %1295 = vmatprep.mubr.bf16.mxu0 0
    %1296 = vmatmul.mubr.bf16.gmra.mrb[0].mxu0 %v1246
    %v1297 = vpop.f32.mrb[0].mxu0
    %v1298 = vadd.f32 %v1218, %v1297
    %v1299 = vpop.f32.mrb[0].mxu0
    %v1300 = vadd.f32 %v1218, %v1299
    %v1301 = vpop.f32.mrb[0].mxu0
    %v1302 = vadd.f32 %v1223, %v1301
    %v1303 = vpop.f32.mrb[0].mxu0
    %v1304 = vadd.f32 %v1223, %v1303
    %1305 = vmatprep.mubr.bf16.mxu0 0
    %1306 = vmatmul.mubr.bf16.gmra.mrb[0].mxu0 %v1249
    %v1307 = vpop.f32.mrb[0].mxu0
    %v1308 = vadd.f32 %v1228, %v1307
    %v1309 = vpop.f32.mrb[0].mxu0
    %v1310 = vadd.f32 %v1228, %v1309
    %v1311 = vpop.f32.mrb[0].mxu0
    %v1312 = vadd.f32 %v1233, %v1311
    %v1313 = vpop.f32.mrb[0].mxu0
    %v1314 = vadd.f32 %v1233, %v1313
    %1315 = vdwg.mxu0
    %1316 = vmatprep.subr.bf16.mxu0 %v1261
    %1317 = vmatpush1.bf16.msra.mxu0 %v1258
    %1318 = vmatprep.subr.bf16.mxu0 0
    %1319 = vmatpush1.bf16.msra.mxu0 0
    %1320 = vmatprep.subr.bf16.mxu0 0
    %1321 = vmatpush1.bf16.msra.mxu0 0
    %1322 = vmatprep.subr.bf16.mxu0 0
    %1323 = vmatpush1.bf16.msra.mxu0 0
    %1324 = vmatprep.subr.bf16.mxu0 0
    %1325 = vmatpush1.bf16.msra.mxu0 0
    %1326 = vmatprep.subr.bf16.mxu0 0
    %1327 = vmatpush1.bf16.msra.mxu0 0
    %1328 = vmatprep.subr.bf16.mxu0 0
    %1329 = vmatpush1.bf16.msra.mxu0 0
    %1330 = vmatprep.subr.bf16.mxu0 0
    %1331 = vmatpush1.bf16.msra.mxu0 0
    %1332 = vmatprep.subr.bf16.mxu0 0
    %1333 = vmatpush1.bf16.msra.mxu0 0
    %1334 = vmatprep.subr.bf16.mxu0 0
    %1335 = vmatpush1.bf16.msra.mxu0 0
    %1336 = vmatprep.subr.bf16.mxu0 0
    %1337 = vmatpush1.bf16.msra.mxu0 0
    %1338 = vmatprep.subr.bf16.mxu0 0
    %1339 = vmatpush1.bf16.msra.mxu0 0
    %1340 = vmatprep.subr.bf16.mxu0 0
    %1341 = vmatpush1.bf16.msra.mxu0 0
    %1342 = vmatprep.subr.bf16.mxu0 0
    %1343 = vmatpush1.bf16.msra.mxu0 0
    %1344 = vmatprep.subr.bf16.mxu0 0
    %1345 = vmatpush1.bf16.msra.mxu0 0
    %1346 = vmatprep.subr.bf16.mxu0 0
    %1347 = vmatpush1.bf16.msra.mxu0 0
    %1348 = vmatprep.mubr.bf16.mxu0 0
    %1349 = vmatmul.mubr.bf16.gmra.mrb[0].mxu0 %v1246
    %v1350 = vpop.f32.mrb[0].mxu0
    %v1351 = vadd.f32 %v1218, %v1350
    %v1352 = vpop.f32.mrb[0].mxu0
    %v1353 = vadd.f32 %v1218, %v1352
    %v1354 = vpop.f32.mrb[0].mxu0
    %v1355 = vadd.f32 %v1223, %v1354
    %v1356 = vpop.f32.mrb[0].mxu0
    %v1357 = vadd.f32 %v1223, %v1356
    %1358 = vmatprep.mubr.bf16.mxu0 0
    %1359 = vmatmul.mubr.bf16.gmra.mrb[0].mxu0 %v1249
    %v1360 = vpop.f32.mrb[0].mxu0
    %v1361 = vadd.f32 %v1228, %v1360
    %v1362 = vpop.f32.mrb[0].mxu0
    %v1363 = vadd.f32 %v1228, %v1362
    %v1364 = vpop.f32.mrb[0].mxu0
    %v1365 = vadd.f32 %v1233, %v1364
    %v1366 = vpop.f32.mrb[0].mxu0
    %v1367 = vadd.f32 %v1233, %v1366
    %1368 = vdwg.mxu0
    %v1369 = vld [vmem:[%s3] sm:$0xff]
    %v1370 = vld [vmem:[%s3 + $0x8] sm:$0xff]
    %v1371 = vld [vmem:[%s3 + $0x10] sm:$0xff]
    %v1372 = vld [vmem:[%s3 + $0x18] sm:$0xff]
    %1374 = vset.pattern.permute.xlu0 0
    %1375 = vperm.xlu0 %1374, %v1369
    %v1376 = vpop.permute.xlu0 %1375
    %1379 = vset.pattern.permute.xlu0 0
    %1380 = vperm.xlu0 %1379, %v1370
    %v1381 = vpop.permute.xlu0 %1380
    %1384 = vset.pattern.permute.xlu0 0
    %1385 = vperm.xlu0 %1384, %v1371
    %v1386 = vpop.permute.xlu0 %1385
    %1389 = vset.pattern.permute.xlu0 0
    %1390 = vperm.xlu0 %1389, %v1372
    %v1391 = vpop.permute.xlu0 %1390
    %v1393 = vadd.f32 %v1298, %v1376
    %v1394 = vadd.f32 %v1300, %v1376
    %v1395 = vadd.f32 %v1351, %v1376
    %v1396 = vadd.f32 %v1353, %v1376
    %v1397 = vadd.f32 %v1302, %v1381
    %v1398 = vadd.f32 %v1304, %v1381
    %v1399 = vadd.f32 %v1355, %v1381
    %v1400 = vadd.f32 %v1357, %v1381
    %v1401 = vadd.f32 %v1308, %v1386
    %v1402 = vadd.f32 %v1310, %v1386
    %v1403 = vadd.f32 %v1361, %v1386
    %v1404 = vadd.f32 %v1363, %v1386
    %v1405 = vadd.f32 %v1312, %v1391
    %v1406 = vadd.f32 %v1314, %v1391
    %v1407 = vadd.f32 %v1365, %v1391
    %v1408 = vadd.f32 %v1367, %v1391
    %v1409 = vmax.f32 %v1393, 0.0
    %v1410 = vmax.f32 %v1394, 0.0
    %v1411 = vmax.f32 %v1395, 0.0
    %v1412 = vmax.f32 %v1396, 0.0
    %v1413 = vmax.f32 %v1397, 0.0
    %v1414 = vmax.f32 %v1398, 0.0
    %v1415 = vmax.f32 %v1399, 0.0
    %v1416 = vmax.f32 %v1400, 0.0
    %v1417 = vmax.f32 %v1401, 0.0
    %v1418 = vmax.f32 %v1402, 0.0
    %v1419 = vmax.f32 %v1403, 0.0
    %v1420 = vmax.f32 %v1404, 0.0
    %v1421 = vmax.f32 %v1405, 0.0
    %v1422 = vmax.f32 %v1406, 0.0
    %v1423 = vmax.f32 %v1407, 0.0
    %v1424 = vmax.f32 %v1408, 0.0
    %1425 = vrot.lane.b32.xlu0 %v1409, 16
    %v1426 = vpop.permute.xlu0 %1425
    %1427 = vrot.lane.b32.xlu0 %v1413, 16
    %v1428 = vpop.permute.xlu0 %1427
    %1429 = vrot.lane.b32.xlu0 %v1417, 16
    %v1430 = vpop.permute.xlu0 %1429
    %1431 = vrot.lane.b32.xlu0 %v1421, 16
    %v1432 = vpop.permute.xlu0 %1431
    %1433 = vrot.lane.b32.xlu0 %v1410, 16
    %v1434 = vpop.permute.xlu0 %1433
    %1435 = vrot.lane.b32.xlu0 %v1414, 16
    %v1436 = vpop.permute.xlu0 %1435
    %1437 = vrot.lane.b32.xlu0 %v1418, 16
    %v1438 = vpop.permute.xlu0 %1437
    %1439 = vrot.lane.b32.xlu0 %v1422, 16
    %v1440 = vpop.permute.xlu0 %1439
    %1441 = vrot.lane.b32.xlu0 %v1411, 16
    %v1442 = vpop.permute.xlu0 %1441
    %1443 = vrot.lane.b32.xlu0 %v1415, 16
    %v1444 = vpop.permute.xlu0 %1443
    %1445 = vrot.lane.b32.xlu0 %v1419, 16
    %v1446 = vpop.permute.xlu0 %1445
    %1447 = vrot.lane.b32.xlu0 %v1423, 16
    %v1448 = vpop.permute.xlu0 %1447
    %1449 = vrot.lane.b32.xlu0 %v1412, 16
    %v1450 = vpop.permute.xlu0 %1449
    %1451 = vrot.lane.b32.xlu0 %v1416, 16
    %v1452 = vpop.permute.xlu0 %1451
    %1453 = vrot.lane.b32.xlu0 %v1420, 16
    %v1454 = vpop.permute.xlu0 %1453
    %1455 = vrot.lane.b32.xlu0 %v1424, 16
    %v1456 = vpop.permute.xlu0 %1455
    %v1457 = vsel %vm318, %v1442, %v1450
    %v1458 = vsel %vm318, %v1444, %v1452
    %v1459 = vsel %vm318, %v1446, %v1454
    %v1460 = vsel %vm318, %v1448, %v1456
    %v1461 = vsel %vm318, %v1434, %v1442
    %v1462 = vsel %vm318, %v1436, %v1444
    %v1463 = vsel %vm318, %v1438, %v1446
    %v1464 = vsel %vm318, %v1440, %v1448
    %v1465 = vsel %vm318, %v1426, %v1434
    %v1466 = vsel %vm318, %v1428, %v1436
    %v1467 = vsel %vm318, %v1430, %v1438
    %v1468 = vsel %vm318, %v1432, %v1440
    %v1469 = vsel %vm318, %v1450, %v1426
    %v1470 = vsel %vm318, %v1452, %v1428
    %v1471 = vsel %vm318, %v1454, %v1430
    %v1472 = vsel %vm318, %v1456, %v1432
    %v1473 = vld [vmem:[%s10] sm:$0xf]
    %v1475 = vlaneseq
    %v1476 = vshrl.u32 %v1475, 7
    %v1477 = vsub.s32 0, %v1476
    %v1478 = vrot.slane %v1473, %v1477
    %v1479 = vlaneseq
    %v1480 = vshrl.u32 %v1479, 7
    %v1481 = vsub.s32 1, %v1480
    %v1482 = vrot.slane %v1473, %v1481
    %v1483 = vlaneseq
    %v1484 = vshrl.u32 %v1483, 7
    %v1485 = vsub.s32 2, %v1484
    %v1486 = vrot.slane %v1473, %v1485
    %v1487 = vlaneseq
    %v1488 = vshrl.u32 %v1487, 7
    %v1489 = vsub.s32 3, %v1488
    %v1490 = vrot.slane %v1473, %v1489
    %v1495 = vmul.f32 %v1469, %v1478
    %v1496 = vmul.f32 %v1465, %v1482
    %v1497 = vmul.f32 %v1461, %v1486
    %v1498 = vmul.f32 %v1457, %v1490
    %v1499 = vmul.f32 %v1470, %v1478
    %v1500 = vmul.f32 %v1466, %v1482
    %v1501 = vmul.f32 %v1462, %v1486
    %v1502 = vmul.f32 %v1458, %v1490
    %v1503 = vmul.f32 %v1471, %v1478
    %v1504 = vmul.f32 %v1467, %v1482
    %v1505 = vmul.f32 %v1463, %v1486
    %v1506 = vmul.f32 %v1459, %v1490
    %v1507 = vmul.f32 %v1472, %v1478
    %v1508 = vmul.f32 %v1468, %v1482
    %v1509 = vmul.f32 %v1464, %v1486
    %v1510 = vmul.f32 %v1460, %v1490
    %1511 = vrot.lane.b32.xlu0 %v1409, 112
    %v1512 = vpop.permute.xlu0 %1511
    %1513 = vrot.lane.b32.xlu0 %v1413, 112
    %v1514 = vpop.permute.xlu0 %1513
    %1515 = vrot.lane.b32.xlu0 %v1417, 112
    %v1516 = vpop.permute.xlu0 %1515
    %1517 = vrot.lane.b32.xlu0 %v1421, 112
    %v1518 = vpop.permute.xlu0 %1517
    %1519 = vrot.lane.b32.xlu0 %v1410, 112
    %v1520 = vpop.permute.xlu0 %1519
    %1521 = vrot.lane.b32.xlu0 %v1414, 112
    %v1522 = vpop.permute.xlu0 %1521
    %1523 = vrot.lane.b32.xlu0 %v1418, 112
    %v1524 = vpop.permute.xlu0 %1523
    %1525 = vrot.lane.b32.xlu0 %v1422, 112
    %v1526 = vpop.permute.xlu0 %1525
    %1527 = vrot.lane.b32.xlu0 %v1411, 112
    %v1528 = vpop.permute.xlu0 %1527
    %1529 = vrot.lane.b32.xlu0 %v1415, 112
    %v1530 = vpop.permute.xlu0 %1529
    %1531 = vrot.lane.b32.xlu0 %v1419, 112
    %v1532 = vpop.permute.xlu0 %1531
    %1533 = vrot.lane.b32.xlu0 %v1423, 112
    %v1534 = vpop.permute.xlu0 %1533
    %1535 = vrot.lane.b32.xlu0 %v1412, 112
    %v1536 = vpop.permute.xlu0 %1535
    %1537 = vrot.lane.b32.xlu0 %v1416, 112
    %v1538 = vpop.permute.xlu0 %1537
    %1539 = vrot.lane.b32.xlu0 %v1420, 112
    %v1540 = vpop.permute.xlu0 %1539
    %1541 = vrot.lane.b32.xlu0 %v1424, 112
    %v1542 = vpop.permute.xlu0 %1541
    %v1543 = vsel %vm405, %v1528, %v1536
    %v1544 = vsel %vm405, %v1530, %v1538
    %v1545 = vsel %vm405, %v1532, %v1540
    %v1546 = vsel %vm405, %v1534, %v1542
    %v1547 = vsel %vm405, %v1520, %v1528
    %v1548 = vsel %vm405, %v1522, %v1530
    %v1549 = vsel %vm405, %v1524, %v1532
    %v1550 = vsel %vm405, %v1526, %v1534
    %v1551 = vsel %vm405, %v1512, %v1520
    %v1552 = vsel %vm405, %v1514, %v1522
    %v1553 = vsel %vm405, %v1516, %v1524
    %v1554 = vsel %vm405, %v1518, %v1526
    %v1555 = vsel %vm405, %v1536, %v1512
    %v1556 = vsel %vm405, %v1538, %v1514
    %v1557 = vsel %vm405, %v1540, %v1516
    %v1558 = vsel %vm405, %v1542, %v1518
    %v1559 = vld [vmem:[%s11] sm:$0xf]
    %v1561 = vlaneseq
    %v1562 = vshrl.u32 %v1561, 7
    %v1563 = vsub.s32 0, %v1562
    %v1564 = vrot.slane %v1559, %v1563
    %v1565 = vlaneseq
    %v1566 = vshrl.u32 %v1565, 7
    %v1567 = vsub.s32 1, %v1566
    %v1568 = vrot.slane %v1559, %v1567
    %v1569 = vlaneseq
    %v1570 = vshrl.u32 %v1569, 7
    %v1571 = vsub.s32 2, %v1570
    %v1572 = vrot.slane %v1559, %v1571
    %v1573 = vlaneseq
    %v1574 = vshrl.u32 %v1573, 7
    %v1575 = vsub.s32 3, %v1574
    %v1576 = vrot.slane %v1559, %v1575
    %v1581 = vmul.f32 %v1551, %v1564
    %v1582 = vmul.f32 %v1547, %v1568
    %v1583 = vmul.f32 %v1543, %v1572
    %v1584 = vmul.f32 %v1555, %v1576
    %v1585 = vmul.f32 %v1552, %v1564
    %v1586 = vmul.f32 %v1548, %v1568
    %v1587 = vmul.f32 %v1544, %v1572
    %v1588 = vmul.f32 %v1556, %v1576
    %v1589 = vmul.f32 %v1553, %v1564
    %v1590 = vmul.f32 %v1549, %v1568
    %v1591 = vmul.f32 %v1545, %v1572
    %v1592 = vmul.f32 %v1557, %v1576
    %v1593 = vmul.f32 %v1554, %v1564
    %v1594 = vmul.f32 %v1550, %v1568
    %v1595 = vmul.f32 %v1546, %v1572
    %v1596 = vmul.f32 %v1558, %v1576
    %v1597 = vpack.c.bf16 %v1499, %v1495
    %v1598 = vpack.c.bf16 %v1500, %v1496
    %v1599 = vpack.c.bf16 %v1501, %v1497
    %v1600 = vpack.c.bf16 %v1502, %v1498
    %v1601 = vpack.c.bf16 %v1507, %v1503
    %v1602 = vpack.c.bf16 %v1508, %v1504
    %v1603 = vpack.c.bf16 %v1509, %v1505
    %v1604 = vpack.c.bf16 %v1510, %v1506
    %v1605 = vpack.c.bf16 %v1413, %v1409
    %v1606 = vpack.c.bf16 %v1414, %v1410
    %v1607 = vpack.c.bf16 %v1415, %v1411
    %v1608 = vpack.c.bf16 %v1416, %v1412
    %v1609 = vpack.c.bf16 %v1421, %v1417
    %v1610 = vpack.c.bf16 %v1422, %v1418
    %v1611 = vpack.c.bf16 %v1423, %v1419
    %v1612 = vpack.c.bf16 %v1424, %v1420
    %v1613 = vpack.c.bf16 %v1585, %v1581
    %v1614 = vpack.c.bf16 %v1586, %v1582
    %v1615 = vpack.c.bf16 %v1587, %v1583
    %v1616 = vpack.c.bf16 %v1588, %v1584
    %v1617 = vpack.c.bf16 %v1593, %v1589
    %v1618 = vpack.c.bf16 %v1594, %v1590
    %v1619 = vpack.c.bf16 %v1595, %v1591
    %v1620 = vpack.c.bf16 %v1596, %v1592
    %v1621 = vld [vmem:[%s4] sm:$0xf]
    %v1622 = vld [vmem:[%s4 + $0x4] sm:$0xf]
    %v1623 = vld [vmem:[%s4 + $0x8] sm:$0xf]
    %v1624 = vld [vmem:[%s4 + $0xc] sm:$0xf]
    %v1625 = vld [vmem:[%s4 + $0x10] sm:$0xf]
    %v1626 = vld [vmem:[%s4 + $0x14] sm:$0xf]
    %v1627 = vld [vmem:[%s4 + $0x18] sm:$0xf]
    %v1628 = vld [vmem:[%s4 + $0x1c] sm:$0xf]
    %v1629 = vld [vmem:[%s4 + $0x20] sm:$0xf]
    %v1630 = vld [vmem:[%s4 + $0x24] sm:$0xf]
    %v1631 = vld [vmem:[%s4 + $0x28] sm:$0xf]
    %v1632 = vld [vmem:[%s4 + $0x2c] sm:$0xf]
    %v1645 = vunpack.c.l.b16 %v1621
    %v1646 = vunpack.c.l.b16 %v1622
    %v1647 = vunpack.c.l.b16 %v1623
    %v1648 = vunpack.c.l.b16 %v1624
    %v1649 = vunpack.c.l.b16 %v1625
    %v1650 = vunpack.c.l.b16 %v1626
    %v1651 = vunpack.c.l.b16 %v1627
    %v1652 = vunpack.c.l.b16 %v1628
    %v1653 = vunpack.c.l.b16 %v1629
    %v1654 = vunpack.c.l.b16 %v1630
    %v1655 = vunpack.c.l.b16 %v1631
    %v1656 = vunpack.c.l.b16 %v1632
    %v1657 = vpack.c.b16 %v1646, %v1645
    %v1658 = vpack.c.b16 %v1648, %v1647
    %v1659 = vpack.c.b16 %v1650, %v1649
    %v1660 = vpack.c.b16 %v1652, %v1651
    %v1661 = vpack.c.b16 %v1654, %v1653
    %v1662 = vpack.c.b16 %v1656, %v1655
    %v1664 = vsel %vm526, %v1657, 0
    %v1667 = vsel %vm526, %v1658, 0
    %v1670 = vsel %vm526, %v1659, 0
    %v1673 = vsel %vm526, %v1660, 0
    %v1676 = vsel %vm526, %v1661, 0
    %v1679 = vsel %vm526, %v1662, 0
    %1681 = vmatprep.subr.bf16.mxu0 %v1598
    %1682 = vmatpush1.bf16.msra.mxu0 %v1597
    %1683 = vmatprep.subr.bf16.mxu0 %v1602
    %1684 = vmatpush1.bf16.msra.mxu0 %v1601
    %1685 = vmatprep.subr.bf16.mxu0 %v1606
    %1686 = vmatpush1.bf16.msra.mxu0 %v1605
    %1687 = vmatprep.subr.bf16.mxu0 %v1610
    %1688 = vmatpush1.bf16.msra.mxu0 %v1609
    %1689 = vmatprep.subr.bf16.mxu0 %v1614
    %1690 = vmatpush1.bf16.msra.mxu0 %v1613
    %1691 = vmatprep.subr.bf16.mxu0 %v1618
    %1692 = vmatpush1.bf16.msra.mxu0 %v1617
    %1693 = vmatprep.subr.bf16.mxu0 0
    %1694 = vmatpush1.bf16.msra.mxu0 0
    %1695 = vmatprep.subr.bf16.mxu0 0
    %1696 = vmatpush1.bf16.msra.mxu0 0
    %1697 = vmatprep.subr.bf16.mxu0 0
    %1698 = vmatpush1.bf16.msra.mxu0 0
    %1699 = vmatprep.subr.bf16.mxu0 0
    %1700 = vmatpush1.bf16.msra.mxu0 0
    %1701 = vmatprep.subr.bf16.mxu0 0
    %1702 = vmatpush1.bf16.msra.mxu0 0
    %1703 = vmatprep.subr.bf16.mxu0 0
    %1704 = vmatpush1.bf16.msra.mxu0 0
    %1705 = vmatprep.subr.bf16.mxu0 0
    %1706 = vmatpush1.bf16.msra.mxu0 0
    %1707 = vmatprep.subr.bf16.mxu0 0
    %1708 = vmatpush1.bf16.msra.mxu0 0
    %1709 = vmatprep.subr.bf16.mxu0 0
    %1710 = vmatpush1.bf16.msra.mxu0 0
    %1711 = vmatprep.subr.bf16.mxu0 0
    %1712 = vmatpush1.bf16.msra.mxu0 0
    %1713 = vmatprep.mubr.bf16.mxu0 0
    %1714 = vmatmul.mubr.bf16.gmra.mrb[0].mxu0 %v1664
    %v1715 = vpop.f32.mrb[0].mxu0
    %v1716 = vadd.f32 0.0, %v1715
    %v1717 = vpop.f32.mrb[0].mxu0
    %v1718 = vadd.f32 0.0, %v1717
    %v1719 = vpop.f32.mrb[0].mxu0
    %v1720 = vadd.f32 0.0, %v1719
    %v1721 = vpop.f32.mrb[0].mxu0
    %v1722 = vadd.f32 0.0, %v1721
    %1723 = vmatprep.mubr.bf16.mxu0 0
    %1724 = vmatmul.mubr.bf16.gmra.mrb[0].mxu0 %v1667
    %v1725 = vpop.f32.mrb[0].mxu0
    %v1726 = vadd.f32 0.0, %v1725
    %v1727 = vpop.f32.mrb[0].mxu0
    %v1728 = vadd.f32 0.0, %v1727
    %v1729 = vpop.f32.mrb[0].mxu0
    %v1730 = vadd.f32 0.0, %v1729
    %v1731 = vpop.f32.mrb[0].mxu0
    %v1732 = vadd.f32 0.0, %v1731
    %1733 = vmatprep.mubr.bf16.mxu0 0
    %1734 = vmatmul.mubr.bf16.gmra.mrb[0].mxu0 %v1670
    %v1735 = vpop.f32.mrb[0].mxu0
    %v1736 = vadd.f32 0.0, %v1735
    %v1737 = vpop.f32.mrb[0].mxu0
    %v1738 = vadd.f32 0.0, %v1737
    %v1739 = vpop.f32.mrb[0].mxu0
    %v1740 = vadd.f32 0.0, %v1739
    %v1741 = vpop.f32.mrb[0].mxu0
    %v1742 = vadd.f32 0.0, %v1741
    %1743 = vmatprep.mubr.bf16.mxu0 0
    %1744 = vmatmul.mubr.bf16.gmra.mrb[0].mxu0 %v1673
    %v1745 = vpop.f32.mrb[0].mxu0
    %v1746 = vadd.f32 0.0, %v1745
    %v1747 = vpop.f32.mrb[0].mxu0
    %v1748 = vadd.f32 0.0, %v1747
    %v1749 = vpop.f32.mrb[0].mxu0
    %v1750 = vadd.f32 0.0, %v1749
    %v1751 = vpop.f32.mrb[0].mxu0
    %v1752 = vadd.f32 0.0, %v1751
    %1753 = vmatprep.mubr.bf16.mxu0 0
    %1754 = vmatmul.mubr.bf16.gmra.mrb[0].mxu0 %v1676
    %v1755 = vpop.f32.mrb[0].mxu0
    %v1756 = vadd.f32 0.0, %v1755
    %v1757 = vpop.f32.mrb[0].mxu0
    %v1758 = vadd.f32 0.0, %v1757
    %v1759 = vpop.f32.mrb[0].mxu0
    %v1760 = vadd.f32 0.0, %v1759
    %v1761 = vpop.f32.mrb[0].mxu0
    %v1762 = vadd.f32 0.0, %v1761
    %1763 = vmatprep.mubr.bf16.mxu0 0
    %1764 = vmatmul.mubr.bf16.gmra.mrb[0].mxu0 %v1679
    %v1765 = vpop.f32.mrb[0].mxu0
    %v1766 = vadd.f32 0.0, %v1765
    %v1767 = vpop.f32.mrb[0].mxu0
    %v1768 = vadd.f32 0.0, %v1767
    %v1769 = vpop.f32.mrb[0].mxu0
    %v1770 = vadd.f32 0.0, %v1769
    %v1771 = vpop.f32.mrb[0].mxu0
    %v1772 = vadd.f32 0.0, %v1771
    %1773 = vdwg.mxu0
    %1774 = vmatprep.subr.bf16.mxu0 %v1600
    %1775 = vmatpush1.bf16.msra.mxu0 %v1599
    %1776 = vmatprep.subr.bf16.mxu0 %v1604
    %1777 = vmatpush1.bf16.msra.mxu0 %v1603
    %1778 = vmatprep.subr.bf16.mxu0 %v1608
    %1779 = vmatpush1.bf16.msra.mxu0 %v1607
    %1780 = vmatprep.subr.bf16.mxu0 %v1612
    %1781 = vmatpush1.bf16.msra.mxu0 %v1611
    %1782 = vmatprep.subr.bf16.mxu0 %v1616
    %1783 = vmatpush1.bf16.msra.mxu0 %v1615
    %1784 = vmatprep.subr.bf16.mxu0 %v1620
    %1785 = vmatpush1.bf16.msra.mxu0 %v1619
    %1786 = vmatprep.subr.bf16.mxu0 0
    %1787 = vmatpush1.bf16.msra.mxu0 0
    %1788 = vmatprep.subr.bf16.mxu0 0
    %1789 = vmatpush1.bf16.msra.mxu0 0
    %1790 = vmatprep.subr.bf16.mxu0 0
    %1791 = vmatpush1.bf16.msra.mxu0 0
    %1792 = vmatprep.subr.bf16.mxu0 0
    %1793 = vmatpush1.bf16.msra.mxu0 0
    %1794 = vmatprep.subr.bf16.mxu0 0
    %1795 = vmatpush1.bf16.msra.mxu0 0
    %1796 = vmatprep.subr.bf16.mxu0 0
    %1797 = vmatpush1.bf16.msra.mxu0 0
    %1798 = vmatprep.subr.bf16.mxu0 0
    %1799 = vmatpush1.bf16.msra.mxu0 0
    %1800 = vmatprep.subr.bf16.mxu0 0
    %1801 = vmatpush1.bf16.msra.mxu0 0
    %1802 = vmatprep.subr.bf16.mxu0 0
    %1803 = vmatpush1.bf16.msra.mxu0 0
    %1804 = vmatprep.subr.bf16.mxu0 0
    %1805 = vmatpush1.bf16.msra.mxu0 0
    %1806 = vmatprep.mubr.bf16.mxu0 0
    %1807 = vmatmul.mubr.bf16.gmra.mrb[0].mxu0 %v1664
    %v1808 = vpop.f32.mrb[0].mxu0
    %v1809 = vadd.f32 0.0, %v1808
    %v1810 = vpop.f32.mrb[0].mxu0
    %v1811 = vadd.f32 0.0, %v1810
    %v1812 = vpop.f32.mrb[0].mxu0
    %v1813 = vadd.f32 0.0, %v1812
    %v1814 = vpop.f32.mrb[0].mxu0
    %v1815 = vadd.f32 0.0, %v1814
    %1816 = vmatprep.mubr.bf16.mxu0 0
    %1817 = vmatmul.mubr.bf16.gmra.mrb[0].mxu0 %v1667
    %v1818 = vpop.f32.mrb[0].mxu0
    %v1819 = vadd.f32 0.0, %v1818
    %v1820 = vpop.f32.mrb[0].mxu0
    %v1821 = vadd.f32 0.0, %v1820
    %v1822 = vpop.f32.mrb[0].mxu0
    %v1823 = vadd.f32 0.0, %v1822
    %v1824 = vpop.f32.mrb[0].mxu0
    %v1825 = vadd.f32 0.0, %v1824
    %1826 = vmatprep.mubr.bf16.mxu0 0
    %1827 = vmatmul.mubr.bf16.gmra.mrb[0].mxu0 %v1670
    %v1828 = vpop.f32.mrb[0].mxu0
    %v1829 = vadd.f32 0.0, %v1828
    %v1830 = vpop.f32.mrb[0].mxu0
    %v1831 = vadd.f32 0.0, %v1830
    %v1832 = vpop.f32.mrb[0].mxu0
    %v1833 = vadd.f32 0.0, %v1832
    %v1834 = vpop.f32.mrb[0].mxu0
    %v1835 = vadd.f32 0.0, %v1834
    %1836 = vmatprep.mubr.bf16.mxu0 0
    %1837 = vmatmul.mubr.bf16.gmra.mrb[0].mxu0 %v1673
    %v1838 = vpop.f32.mrb[0].mxu0
    %v1839 = vadd.f32 0.0, %v1838
    %v1840 = vpop.f32.mrb[0].mxu0
    %v1841 = vadd.f32 0.0, %v1840
    %v1842 = vpop.f32.mrb[0].mxu0
    %v1843 = vadd.f32 0.0, %v1842
    %v1844 = vpop.f32.mrb[0].mxu0
    %v1845 = vadd.f32 0.0, %v1844
    %1846 = vmatprep.mubr.bf16.mxu0 0
    %1847 = vmatmul.mubr.bf16.gmra.mrb[0].mxu0 %v1676
    %v1848 = vpop.f32.mrb[0].mxu0
    %v1849 = vadd.f32 0.0, %v1848
    %v1850 = vpop.f32.mrb[0].mxu0
    %v1851 = vadd.f32 0.0, %v1850
    %v1852 = vpop.f32.mrb[0].mxu0
    %v1853 = vadd.f32 0.0, %v1852
    %v1854 = vpop.f32.mrb[0].mxu0
    %v1855 = vadd.f32 0.0, %v1854
    %1856 = vmatprep.mubr.bf16.mxu0 0
    %1857 = vmatmul.mubr.bf16.gmra.mrb[0].mxu0 %v1679
    %v1858 = vpop.f32.mrb[0].mxu0
    %v1859 = vadd.f32 0.0, %v1858
    %v1860 = vpop.f32.mrb[0].mxu0
    %v1861 = vadd.f32 0.0, %v1860
    %v1862 = vpop.f32.mrb[0].mxu0
    %v1863 = vadd.f32 0.0, %v1862
    %v1864 = vpop.f32.mrb[0].mxu0
    %v1865 = vadd.f32 0.0, %v1864
    %1866 = vdwg.mxu0
    %1867 = vrot.lane.b32.xlu0 %v1716, 1
    %v1868 = vpop.permute.xlu0 %1867
    %1869 = vrot.lane.b32.xlu0 %v1720, 1
    %v1870 = vpop.permute.xlu0 %1869
    %1871 = vrot.lane.b32.xlu0 %v1726, 1
    %v1872 = vpop.permute.xlu0 %1871
    %1873 = vrot.lane.b32.xlu0 %v1730, 1
    %v1874 = vpop.permute.xlu0 %1873
    %1875 = vrot.lane.b32.xlu0 %v1718, 1
    %v1876 = vpop.permute.xlu0 %1875
    %1877 = vrot.lane.b32.xlu0 %v1722, 1
    %v1878 = vpop.permute.xlu0 %1877
    %1879 = vrot.lane.b32.xlu0 %v1728, 1
    %v1880 = vpop.permute.xlu0 %1879
    %1881 = vrot.lane.b32.xlu0 %v1732, 1
    %v1882 = vpop.permute.xlu0 %1881
    %1883 = vrot.lane.b32.xlu0 %v1809, 1
    %v1884 = vpop.permute.xlu0 %1883
    %1885 = vrot.lane.b32.xlu0 %v1813, 1
    %v1886 = vpop.permute.xlu0 %1885
    %1887 = vrot.lane.b32.xlu0 %v1819, 1
    %v1888 = vpop.permute.xlu0 %1887
    %1889 = vrot.lane.b32.xlu0 %v1823, 1
    %v1890 = vpop.permute.xlu0 %1889
    %1891 = vrot.lane.b32.xlu0 %v1811, 1
    %v1892 = vpop.permute.xlu0 %1891
    %1893 = vrot.lane.b32.xlu0 %v1815, 1
    %v1894 = vpop.permute.xlu0 %1893
    %1895 = vrot.lane.b32.xlu0 %v1821, 1
    %v1896 = vpop.permute.xlu0 %1895
    %1897 = vrot.lane.b32.xlu0 %v1825, 1
    %v1898 = vpop.permute.xlu0 %1897
    %v1899 = vsel %vm763, %v1884, %v1892
    %v1900 = vsel %vm763, %v1886, %v1894
    %v1901 = vsel %vm763, %v1888, %v1896
    %v1902 = vsel %vm763, %v1890, %v1898
    %v1903 = vsel %vm763, %v1876, %v1884
    %v1904 = vsel %vm763, %v1878, %v1886
    %v1905 = vsel %vm763, %v1880, %v1888
    %v1906 = vsel %vm763, %v1882, %v1890
    %v1907 = vsel %vm763, %v1868, %v1876
    %v1908 = vsel %vm763, %v1870, %v1878
    %v1909 = vsel %vm763, %v1872, %v1880
    %v1910 = vsel %vm763, %v1874, %v1882
    %v1911 = vsel %vm763, %v1892, %v1868
    %v1912 = vsel %vm763, %v1894, %v1870
    %v1913 = vsel %vm763, %v1896, %v1872
    %v1914 = vsel %vm763, %v1898, %v1874
    %v1915 = vld [vmem:[%s12] sm:$0xf]
    %v1917 = vlaneseq
    %v1918 = vshrl.u32 %v1917, 7
    %v1919 = vsub.s32 0, %v1918
    %v1920 = vrot.slane %v1915, %v1919
    %v1921 = vlaneseq
    %v1922 = vshrl.u32 %v1921, 7
    %v1923 = vsub.s32 1, %v1922
    %v1924 = vrot.slane %v1915, %v1923
    %v1925 = vlaneseq
    %v1926 = vshrl.u32 %v1925, 7
    %v1927 = vsub.s32 2, %v1926
    %v1928 = vrot.slane %v1915, %v1927
    %v1929 = vlaneseq
    %v1930 = vshrl.u32 %v1929, 7
    %v1931 = vsub.s32 3, %v1930
    %v1932 = vrot.slane %v1915, %v1931
    %v1937 = vmul.f32 %v1911, %v1920
    %v1938 = vmul.f32 %v1907, %v1924
    %v1939 = vmul.f32 %v1903, %v1928
    %v1940 = vmul.f32 %v1899, %v1932
    %v1941 = vmul.f32 %v1912, %v1920
    %v1942 = vmul.f32 %v1908, %v1924
    %v1943 = vmul.f32 %v1904, %v1928
    %v1944 = vmul.f32 %v1900, %v1932
    %v1945 = vmul.f32 %v1913, %v1920
    %v1946 = vmul.f32 %v1909, %v1924
    %v1947 = vmul.f32 %v1905, %v1928
    %v1948 = vmul.f32 %v1901, %v1932
    %v1949 = vmul.f32 %v1914, %v1920
    %v1950 = vmul.f32 %v1910, %v1924
    %v1951 = vmul.f32 %v1906, %v1928
    %v1952 = vmul.f32 %v1902, %v1932
    %v1953 = vadd.f32 %v1937, %v1736
    %v1954 = vadd.f32 %v1938, %v1738
    %v1955 = vadd.f32 %v1939, %v1829
    %v1956 = vadd.f32 %v1940, %v1831
    %v1957 = vadd.f32 %v1941, %v1740
    %v1958 = vadd.f32 %v1942, %v1742
    %v1959 = vadd.f32 %v1943, %v1833
    %v1960 = vadd.f32 %v1944, %v1835
    %v1961 = vadd.f32 %v1945, %v1746
    %v1962 = vadd.f32 %v1946, %v1748
    %v1963 = vadd.f32 %v1947, %v1839
    %v1964 = vadd.f32 %v1948, %v1841
    %v1965 = vadd.f32 %v1949, %v1750
    %v1966 = vadd.f32 %v1950, %v1752
    %v1967 = vadd.f32 %v1951, %v1843
    %v1968 = vadd.f32 %v1952, %v1845
    %1969 = vrot.lane.b32.xlu0 %v1756, 127
    %v1970 = vpop.permute.xlu0 %1969
    %1971 = vrot.lane.b32.xlu0 %v1760, 127
    %v1972 = vpop.permute.xlu0 %1971
    %1973 = vrot.lane.b32.xlu0 %v1766, 127
    %v1974 = vpop.permute.xlu0 %1973
    %1975 = vrot.lane.b32.xlu0 %v1770, 127
    %v1976 = vpop.permute.xlu0 %1975
    %1977 = vrot.lane.b32.xlu0 %v1758, 127
    %v1978 = vpop.permute.xlu0 %1977
    %1979 = vrot.lane.b32.xlu0 %v1762, 127
    %v1980 = vpop.permute.xlu0 %1979
    %1981 = vrot.lane.b32.xlu0 %v1768, 127
    %v1982 = vpop.permute.xlu0 %1981
    %1983 = vrot.lane.b32.xlu0 %v1772, 127
    %v1984 = vpop.permute.xlu0 %1983
    %1985 = vrot.lane.b32.xlu0 %v1849, 127
    %v1986 = vpop.permute.xlu0 %1985
    %1987 = vrot.lane.b32.xlu0 %v1853, 127
    %v1988 = vpop.permute.xlu0 %1987
    %1989 = vrot.lane.b32.xlu0 %v1859, 127
    %v1990 = vpop.permute.xlu0 %1989
    %1991 = vrot.lane.b32.xlu0 %v1863, 127
    %v1992 = vpop.permute.xlu0 %1991
    %1993 = vrot.lane.b32.xlu0 %v1851, 127
    %v1994 = vpop.permute.xlu0 %1993
    %1995 = vrot.lane.b32.xlu0 %v1855, 127
    %v1996 = vpop.permute.xlu0 %1995
    %1997 = vrot.lane.b32.xlu0 %v1861, 127
    %v1998 = vpop.permute.xlu0 %1997
    %1999 = vrot.lane.b32.xlu0 %v1865, 127
    %v2000 = vpop.permute.xlu0 %1999
    %v2001 = vsel %vm866, %v1986, %v1994
    %v2002 = vsel %vm866, %v1988, %v1996
    %v2003 = vsel %vm866, %v1990, %v1998
    %v2004 = vsel %vm866, %v1992, %v2000
    %v2005 = vsel %vm866, %v1978, %v1986
    %v2006 = vsel %vm866, %v1980, %v1988
    %v2007 = vsel %vm866, %v1982, %v1990
    %v2008 = vsel %vm866, %v1984, %v1992
    %v2009 = vsel %vm866, %v1970, %v1978
    %v2010 = vsel %vm866, %v1972, %v1980
    %v2011 = vsel %vm866, %v1974, %v1982
    %v2012 = vsel %vm866, %v1976, %v1984
    %v2013 = vsel %vm866, %v1994, %v1970
    %v2014 = vsel %vm866, %v1996, %v1972
    %v2015 = vsel %vm866, %v1998, %v1974
    %v2016 = vsel %vm866, %v2000, %v1976
    %v2017 = vld [vmem:[%s13] sm:$0xf]
    %v2019 = vlaneseq
    %v2020 = vshrl.u32 %v2019, 7
    %v2021 = vsub.s32 0, %v2020
    %v2022 = vrot.slane %v2017, %v2021
    %v2023 = vlaneseq
    %v2024 = vshrl.u32 %v2023, 7
    %v2025 = vsub.s32 1, %v2024
    %v2026 = vrot.slane %v2017, %v2025
    %v2027 = vlaneseq
    %v2028 = vshrl.u32 %v2027, 7
    %v2029 = vsub.s32 2, %v2028
    %v2030 = vrot.slane %v2017, %v2029
    %v2031 = vlaneseq
    %v2032 = vshrl.u32 %v2031, 7
    %v2033 = vsub.s32 3, %v2032
    %v2034 = vrot.slane %v2017, %v2033
    %v2039 = vmul.f32 %v2009, %v2022
    %v2040 = vmul.f32 %v2005, %v2026
    %v2041 = vmul.f32 %v2001, %v2030
    %v2042 = vmul.f32 %v2013, %v2034
    %v2043 = vmul.f32 %v2010, %v2022
    %v2044 = vmul.f32 %v2006, %v2026
    %v2045 = vmul.f32 %v2002, %v2030
    %v2046 = vmul.f32 %v2014, %v2034
    %v2047 = vmul.f32 %v2011, %v2022
    %v2048 = vmul.f32 %v2007, %v2026
    %v2049 = vmul.f32 %v2003, %v2030
    %v2050 = vmul.f32 %v2015, %v2034
    %v2051 = vmul.f32 %v2012, %v2022
    %v2052 = vmul.f32 %v2008, %v2026
    %v2053 = vmul.f32 %v2004, %v2030
    %v2054 = vmul.f32 %v2016, %v2034
    %v2055 = vadd.f32 %v1953, %v2039
    %v2056 = vadd.f32 %v1954, %v2040
    %v2057 = vadd.f32 %v1955, %v2041
    %v2058 = vadd.f32 %v1956, %v2042
    %v2059 = vadd.f32 %v1957, %v2043
    %v2060 = vadd.f32 %v1958, %v2044
    %v2061 = vadd.f32 %v1959, %v2045
    %v2062 = vadd.f32 %v1960, %v2046
    %v2063 = vadd.f32 %v1961, %v2047
    %v2064 = vadd.f32 %v1962, %v2048
    %v2065 = vadd.f32 %v1963, %v2049
    %v2066 = vadd.f32 %v1964, %v2050
    %v2067 = vadd.f32 %v1965, %v2051
    %v2068 = vadd.f32 %v1966, %v2052
    %v2069 = vadd.f32 %v1967, %v2053
    %v2070 = vadd.f32 %v1968, %v2054
    %v2071 = vld [vmem:[%s6] sm:$0xff]
    %v2072 = vld [vmem:[%s6 + $0x8] sm:$0xff]
    %v2073 = vld [vmem:[%s6 + $0x10] sm:$0xff]
    %v2074 = vld [vmem:[%s6 + $0x18] sm:$0xff]
    %v2075 = vld [vmem:[%s6 + $0x20] sm:$0xff]
    %v2076 = vld [vmem:[%s6 + $0x28] sm:$0xff]
    %v2077 = vld [vmem:[%s6 + $0x30] sm:$0xff]
    %v2078 = vld [vmem:[%s6 + $0x38] sm:$0xff]
    %v2079 = vld [vmem:[%s6 + $0x40] sm:$0xff]
    %v2080 = vld [vmem:[%s6 + $0x48] sm:$0xff]
    %v2081 = vld [vmem:[%s6 + $0x50] sm:$0xff]
    %v2082 = vld [vmem:[%s6 + $0x58] sm:$0xff]
    %v2083 = vld [vmem:[%s6 + $0x60] sm:$0xff]
    %v2084 = vld [vmem:[%s6 + $0x68] sm:$0xff]
    %v2085 = vld [vmem:[%s6 + $0x70] sm:$0xff]
    %v2086 = vld [vmem:[%s6 + $0x78] sm:$0xff]
    %v2087 = vmul.f32 %v1210, %v2071
    %v2088 = vmul.f32 %v1210, %v2072
    %v2089 = vmul.f32 %v1210, %v2073
    %v2090 = vmul.f32 %v1210, %v2074
    %v2091 = vmul.f32 %v1210, %v2075
    %v2092 = vmul.f32 %v1210, %v2076
    %v2093 = vmul.f32 %v1210, %v2077
    %v2094 = vmul.f32 %v1210, %v2078
    %v2095 = vmul.f32 %v1210, %v2079
    %v2096 = vmul.f32 %v1210, %v2080
    %v2097 = vmul.f32 %v1210, %v2081
    %v2098 = vmul.f32 %v1210, %v2082
    %v2099 = vmul.f32 %v1210, %v2083
    %v2100 = vmul.f32 %v1210, %v2084
    %v2101 = vmul.f32 %v1210, %v2085
    %v2102 = vmul.f32 %v1210, %v2086
    %v2103 = vadd.f32 %v2055, %v2087
    %v2104 = vadd.f32 %v2056, %v2088
    %v2105 = vadd.f32 %v2057, %v2089
    %v2106 = vadd.f32 %v2058, %v2090
    %v2107 = vadd.f32 %v2059, %v2091
    %v2108 = vadd.f32 %v2060, %v2092
    %v2109 = vadd.f32 %v2061, %v2093
    %v2110 = vadd.f32 %v2062, %v2094
    %v2111 = vadd.f32 %v2063, %v2095
    %v2112 = vadd.f32 %v2064, %v2096
    %v2113 = vadd.f32 %v2065, %v2097
    %v2114 = vadd.f32 %v2066, %v2098
    %v2115 = vadd.f32 %v2067, %v2099
    %v2116 = vadd.f32 %v2068, %v2100
    %v2117 = vadd.f32 %v2069, %v2101
    %v2118 = vadd.f32 %v2070, %v2102
    %v2119 = vld [vmem:[%s5] sm:$0xff]
    %v2120 = vld [vmem:[%s5 + $0x8] sm:$0xff]
    %v2121 = vld [vmem:[%s5 + $0x10] sm:$0xff]
    %v2122 = vld [vmem:[%s5 + $0x18] sm:$0xff]
    %2124 = vset.pattern.permute.xlu0 0
    %2125 = vperm.xlu0 %2124, %v2119
    %v2126 = vpop.permute.xlu0 %2125
    %2129 = vset.pattern.permute.xlu0 0
    %2130 = vperm.xlu0 %2129, %v2120
    %v2131 = vpop.permute.xlu0 %2130
    %2134 = vset.pattern.permute.xlu0 0
    %2135 = vperm.xlu0 %2134, %v2121
    %v2136 = vpop.permute.xlu0 %2135
    %2139 = vset.pattern.permute.xlu0 0
    %2140 = vperm.xlu0 %2139, %v2122
    %v2141 = vpop.permute.xlu0 %2140
    %v2143 = vadd.f32 %v2103, %v2126
    %v2144 = vadd.f32 %v2104, %v2126
    %v2145 = vadd.f32 %v2105, %v2126
    %v2146 = vadd.f32 %v2106, %v2126
    %v2147 = vadd.f32 %v2107, %v2131
    %v2148 = vadd.f32 %v2108, %v2131
    %v2149 = vadd.f32 %v2109, %v2131
    %v2150 = vadd.f32 %v2110, %v2131
    %v2151 = vadd.f32 %v2111, %v2136
    %v2152 = vadd.f32 %v2112, %v2136
    %v2153 = vadd.f32 %v2113, %v2136
    %v2154 = vadd.f32 %v2114, %v2136
    %v2155 = vadd.f32 %v2115, %v2141
    %v2156 = vadd.f32 %v2116, %v2141
    %v2157 = vadd.f32 %v2117, %v2141
    %v2158 = vadd.f32 %v2118, %v2141
    %v2159 = vmax.f32 %v2143, 0.0
    %v2160 = vmax.f32 %v2144, 0.0
    %v2161 = vmax.f32 %v2145, 0.0
    %v2162 = vmax.f32 %v2146, 0.0
    %v2163 = vmax.f32 %v2147, 0.0
    %v2164 = vmax.f32 %v2148, 0.0
    %v2165 = vmax.f32 %v2149, 0.0
    %v2166 = vmax.f32 %v2150, 0.0
    %v2167 = vmax.f32 %v2151, 0.0
    %v2168 = vmax.f32 %v2152, 0.0
    %v2169 = vmax.f32 %v2153, 0.0
    %v2170 = vmax.f32 %v2154, 0.0
    %v2171 = vmax.f32 %v2155, 0.0
    %v2172 = vmax.f32 %v2156, 0.0
    %v2173 = vmax.f32 %v2157, 0.0
    %v2174 = vmax.f32 %v2158, 0.0
    %v2175 = vld [vmem:[%s7] sm:$0x3]
    %v2176 = vpack.c.bf16 %v2163, %v2159
    %v2177 = vpack.c.bf16 %v2164, %v2160
    %v2178 = vpack.c.bf16 %v2165, %v2161
    %v2179 = vpack.c.bf16 %v2166, %v2162
    %v2180 = vpack.c.bf16 %v2171, %v2167
    %v2181 = vpack.c.bf16 %v2172, %v2168
    %v2182 = vpack.c.bf16 %v2173, %v2169
    %v2183 = vpack.c.bf16 %v2174, %v2170
    %v2184 = vld [vmem:[%s8] sm:$0xf]
    %v2185 = vmul.f32 %v1210, %v2184
    %2187 = vset.pattern.permute.xlu0 0
    %2188 = vperm.xlu0 %2187, %v2185
    %v2189 = vpop.permute.xlu0 %2188
    %v2192 = vsel %vm1057, %v2175, 0
    %2194 = vmatprep.subr.bf16.mxu0 %v2177
    %2195 = vmatpush1.bf16.msra.mxu0 %v2176
    %2196 = vmatprep.subr.bf16.mxu0 %v2181
    %2197 = vmatpush1.bf16.msra.mxu0 %v2180
    %2198 = vmatprep.subr.bf16.mxu0 0
    %2199 = vmatpush1.bf16.msra.mxu0 0
    %2200 = vmatprep.subr.bf16.mxu0 0
    %2201 = vmatpush1.bf16.msra.mxu0 0
    %2202 = vmatprep.subr.bf16.mxu0 0
    %2203 = vmatpush1.bf16.msra.mxu0 0
    %2204 = vmatprep.subr.bf16.mxu0 0
    %2205 = vmatpush1.bf16.msra.mxu0 0
    %2206 = vmatprep.subr.bf16.mxu0 0
    %2207 = vmatpush1.bf16.msra.mxu0 0
    %2208 = vmatprep.subr.bf16.mxu0 0
    %2209 = vmatpush1.bf16.msra.mxu0 0
    %2210 = vmatprep.subr.bf16.mxu0 0
    %2211 = vmatpush1.bf16.msra.mxu0 0
    %2212 = vmatprep.subr.bf16.mxu0 0
    %2213 = vmatpush1.bf16.msra.mxu0 0
    %2214 = vmatprep.subr.bf16.mxu0 0
    %2215 = vmatpush1.bf16.msra.mxu0 0
    %2216 = vmatprep.subr.bf16.mxu0 0
    %2217 = vmatpush1.bf16.msra.mxu0 0
    %2218 = vmatprep.subr.bf16.mxu0 0
    %2219 = vmatpush1.bf16.msra.mxu0 0
    %2220 = vmatprep.subr.bf16.mxu0 0
    %2221 = vmatpush1.bf16.msra.mxu0 0
    %2222 = vmatprep.subr.bf16.mxu0 0
    %2223 = vmatpush1.bf16.msra.mxu0 0
    %2224 = vmatprep.subr.bf16.mxu0 0
    %2225 = vmatpush1.bf16.msra.mxu0 0
    %2226 = vmatprep.mubr.bf16.mxu0 0
    %2227 = vmatmul.mubr.bf16.gmra.mrb[0].mxu0 %v2192
    %v2228 = vpop.f32.mrb[0].mxu0
    %v2229 = vadd.f32 %v2189, %v2228
    %v2230 = vpop.f32.mrb[0].mxu0
    %v2231 = vadd.f32 %v2189, %v2230
    %v2232 = vpop.f32.mrb[0].mxu0
    %v2233 = vpop.f32.mrb[0].mxu0
    %2234 = vdwg.mxu0
    %2235 = vmatprep.subr.bf16.mxu0 %v2179
    %2236 = vmatpush1.bf16.msra.mxu0 %v2178
    %2237 = vmatprep.subr.bf16.mxu0 %v2183
    %2238 = vmatpush1.bf16.msra.mxu0 %v2182
    %2239 = vmatprep.subr.bf16.mxu0 0
    %2240 = vmatpush1.bf16.msra.mxu0 0
    %2241 = vmatprep.subr.bf16.mxu0 0
    %2242 = vmatpush1.bf16.msra.mxu0 0
    %2243 = vmatprep.subr.bf16.mxu0 0
    %2244 = vmatpush1.bf16.msra.mxu0 0
    %2245 = vmatprep.subr.bf16.mxu0 0
    %2246 = vmatpush1.bf16.msra.mxu0 0
    %2247 = vmatprep.subr.bf16.mxu0 0
    %2248 = vmatpush1.bf16.msra.mxu0 0
    %2249 = vmatprep.subr.bf16.mxu0 0
    %2250 = vmatpush1.bf16.msra.mxu0 0
    %2251 = vmatprep.subr.bf16.mxu0 0
    %2252 = vmatpush1.bf16.msra.mxu0 0
    %2253 = vmatprep.subr.bf16.mxu0 0
    %2254 = vmatpush1.bf16.msra.mxu0 0
    %2255 = vmatprep.subr.bf16.mxu0 0
    %2256 = vmatpush1.bf16.msra.mxu0 0
    %2257 = vmatprep.subr.bf16.mxu0 0
    %2258 = vmatpush1.bf16.msra.mxu0 0
    %2259 = vmatprep.subr.bf16.mxu0 0
    %2260 = vmatpush1.bf16.msra.mxu0 0
    %2261 = vmatprep.subr.bf16.mxu0 0
    %2262 = vmatpush1.bf16.msra.mxu0 0
    %2263 = vmatprep.subr.bf16.mxu0 0
    %2264 = vmatpush1.bf16.msra.mxu0 0
    %2265 = vmatprep.subr.bf16.mxu0 0
    %2266 = vmatpush1.bf16.msra.mxu0 0
    %2267 = vmatprep.mubr.bf16.mxu0 0
    %2268 = vmatmul.mubr.bf16.gmra.mrb[0].mxu0 %v2192
    %v2269 = vpop.f32.mrb[0].mxu0
    %v2270 = vadd.f32 %v2189, %v2269
    %v2271 = vpop.f32.mrb[0].mxu0
    %v2272 = vadd.f32 %v2189, %v2271
    %v2273 = vpop.f32.mrb[0].mxu0
    %v2274 = vpop.f32.mrb[0].mxu0
    %2275 = vdwg.mxu0
    %v2276 = vld [vmem:[%s9] sm:$0xf]
    %2278 = vset.pattern.permute.xlu0 0
    %2279 = vperm.xlu0 %2278, %v2276
    %v2280 = vpop.permute.xlu0 %2279
    %v2282 = vadd.f32 %v2229, %v2280
    %v2283 = vadd.f32 %v2231, %v2280
    %v2284 = vadd.f32 %v2270, %v2280
    %v2285 = vadd.f32 %v2272, %v2280
    %s2286 = smul.f32 %s1170, 0.3
    %s2287 = sadd.f32 %s1154, %s2286
    %v2288 = vmul.f32 %v1159, 0.075
    %v2289 = vmul.f32 %v1160, 0.075
    %v2290 = vmul.f32 %v1161, 0.075
    %v2291 = vmul.f32 %v1162, 0.075
    %v2292 = vmul.f32 %v2282, 0.225
    %v2293 = vmul.f32 %v2283, 0.225
    %v2294 = vmul.f32 %v2284, 0.225
    %v2295 = vmul.f32 %v2285, 0.225
    %v2296 = vadd.f32 %v2288, %v2292
    %v2297 = vadd.f32 %v2289, %v2293
    %v2298 = vadd.f32 %v2290, %v2294
    %v2299 = vadd.f32 %v2291, %v2295
    %v2300 = vmul.f32 %v1177, %v2296
    %v2301 = vmul.f32 %v1177, %v2297
    %v2302 = vmul.f32 %v1177, %v2298
    %v2303 = vmul.f32 %v1177, %v2299
    %v2308 = vcombine.low %v2300, %v2301
    %v2309 = vcombine.low %v2302, %v2303
    %v2312 = vadd.f32 %v1157, %v2308
    %v2313 = vadd.f32 %v1158, %v2309
    %v2316 = vcombine.high %v2312, %v2312
    %v2317 = vcombine.high %v2313, %v2313
    %v2320 = vpack.c.bf16 %v2312, %v2312
    %v2321 = vpack.c.bf16 %v2316, %v2316
    %v2322 = vpack.c.bf16 %v2313, %v2313
    %v2323 = vpack.c.bf16 %v2317, %v2317
    %v2324 = vstv %s2287
    %v2325 = vmul.f32 %v2324, %v1206
    %v2326 = vmul.f32 %v2324, %v1207
    %v2327 = vmul.f32 %v2324, %v1208
    %v2328 = vmul.f32 %v2324, %v1209
    %2330 = vset.pattern.permute.xlu0 0
    %2331 = vperm.xlu0 %2330, %v2325
    %v2332 = vpop.permute.xlu0 %2331
    %2335 = vset.pattern.permute.xlu0 0
    %2336 = vperm.xlu0 %2335, %v2326
    %v2337 = vpop.permute.xlu0 %2336
    %2340 = vset.pattern.permute.xlu0 0
    %2341 = vperm.xlu0 %2340, %v2327
    %v2342 = vpop.permute.xlu0 %2341
    %2345 = vset.pattern.permute.xlu0 0
    %2346 = vperm.xlu0 %2345, %v2328
    %v2347 = vpop.permute.xlu0 %2346
    %v2350 = vsel %vm109, %v2320, 0
    %v2353 = vsel %vm109, %v2321, 0
    %v2356 = vsel %vm109, %v2322, 0
    %v2359 = vsel %vm109, %v2323, 0
    %2361 = vmatprep.subr.bf16.mxu0 %v2353
    %2362 = vmatpush1.bf16.msra.mxu0 %v2350
    %2363 = vmatprep.subr.bf16.mxu0 0
    %2364 = vmatpush1.bf16.msra.mxu0 0
    %2365 = vmatprep.subr.bf16.mxu0 0
    %2366 = vmatpush1.bf16.msra.mxu0 0
    %2367 = vmatprep.subr.bf16.mxu0 0
    %2368 = vmatpush1.bf16.msra.mxu0 0
    %2369 = vmatprep.subr.bf16.mxu0 0
    %2370 = vmatpush1.bf16.msra.mxu0 0
    %2371 = vmatprep.subr.bf16.mxu0 0
    %2372 = vmatpush1.bf16.msra.mxu0 0
    %2373 = vmatprep.subr.bf16.mxu0 0
    %2374 = vmatpush1.bf16.msra.mxu0 0
    %2375 = vmatprep.subr.bf16.mxu0 0
    %2376 = vmatpush1.bf16.msra.mxu0 0
    %2377 = vmatprep.subr.bf16.mxu0 0
    %2378 = vmatpush1.bf16.msra.mxu0 0
    %2379 = vmatprep.subr.bf16.mxu0 0
    %2380 = vmatpush1.bf16.msra.mxu0 0
    %2381 = vmatprep.subr.bf16.mxu0 0
    %2382 = vmatpush1.bf16.msra.mxu0 0
    %2383 = vmatprep.subr.bf16.mxu0 0
    %2384 = vmatpush1.bf16.msra.mxu0 0
    %2385 = vmatprep.subr.bf16.mxu0 0
    %2386 = vmatpush1.bf16.msra.mxu0 0
    %2387 = vmatprep.subr.bf16.mxu0 0
    %2388 = vmatpush1.bf16.msra.mxu0 0
    %2389 = vmatprep.subr.bf16.mxu0 0
    %2390 = vmatpush1.bf16.msra.mxu0 0
    %2391 = vmatprep.subr.bf16.mxu0 0
    %2392 = vmatpush1.bf16.msra.mxu0 0
    %2393 = vmatprep.mubr.bf16.mxu0 0
    %2394 = vmatmul.mubr.bf16.gmra.mrb[0].mxu0 %v1246
    %v2395 = vpop.f32.mrb[0].mxu0
    %v2396 = vadd.f32 %v2332, %v2395
    %v2397 = vpop.f32.mrb[0].mxu0
    %v2398 = vadd.f32 %v2332, %v2397
    %v2399 = vpop.f32.mrb[0].mxu0
    %v2400 = vadd.f32 %v2337, %v2399
    %v2401 = vpop.f32.mrb[0].mxu0
    %v2402 = vadd.f32 %v2337, %v2401
    %2403 = vmatprep.mubr.bf16.mxu0 0
    %2404 = vmatmul.mubr.bf16.gmra.mrb[0].mxu0 %v1249
    %v2405 = vpop.f32.mrb[0].mxu0
    %v2406 = vadd.f32 %v2342, %v2405
    %v2407 = vpop.f32.mrb[0].mxu0
    %v2408 = vadd.f32 %v2342, %v2407
    %v2409 = vpop.f32.mrb[0].mxu0
    %v2410 = vadd.f32 %v2347, %v2409
    %v2411 = vpop.f32.mrb[0].mxu0
    %v2412 = vadd.f32 %v2347, %v2411
    %2413 = vdwg.mxu0
    %2414 = vmatprep.subr.bf16.mxu0 %v2359
    %2415 = vmatpush1.bf16.msra.mxu0 %v2356
    %2416 = vmatprep.subr.bf16.mxu0 0
    %2417 = vmatpush1.bf16.msra.mxu0 0
    %2418 = vmatprep.subr.bf16.mxu0 0
    %2419 = vmatpush1.bf16.msra.mxu0 0
    %2420 = vmatprep.subr.bf16.mxu0 0
    %2421 = vmatpush1.bf16.msra.mxu0 0
    %2422 = vmatprep.subr.bf16.mxu0 0
    %2423 = vmatpush1.bf16.msra.mxu0 0
    %2424 = vmatprep.subr.bf16.mxu0 0
    %2425 = vmatpush1.bf16.msra.mxu0 0
    %2426 = vmatprep.subr.bf16.mxu0 0
    %2427 = vmatpush1.bf16.msra.mxu0 0
    %2428 = vmatprep.subr.bf16.mxu0 0
    %2429 = vmatpush1.bf16.msra.mxu0 0
    %2430 = vmatprep.subr.bf16.mxu0 0
    %2431 = vmatpush1.bf16.msra.mxu0 0
    %2432 = vmatprep.subr.bf16.mxu0 0
    %2433 = vmatpush1.bf16.msra.mxu0 0
    %2434 = vmatprep.subr.bf16.mxu0 0
    %2435 = vmatpush1.bf16.msra.mxu0 0
    %2436 = vmatprep.subr.bf16.mxu0 0
    %2437 = vmatpush1.bf16.msra.mxu0 0
    %2438 = vmatprep.subr.bf16.mxu0 0
    %2439 = vmatpush1.bf16.msra.mxu0 0
    %2440 = vmatprep.subr.bf16.mxu0 0
    %2441 = vmatpush1.bf16.msra.mxu0 0
    %2442 = vmatprep.subr.bf16.mxu0 0
    %2443 = vmatpush1.bf16.msra.mxu0 0
    %2444 = vmatprep.subr.bf16.mxu0 0
    %2445 = vmatpush1.bf16.msra.mxu0 0
    %2446 = vmatprep.mubr.bf16.mxu0 0
    %2447 = vmatmul.mubr.bf16.gmra.mrb[0].mxu0 %v1246
    %v2448 = vpop.f32.mrb[0].mxu0
    %v2449 = vadd.f32 %v2332, %v2448
    %v2450 = vpop.f32.mrb[0].mxu0
    %v2451 = vadd.f32 %v2332, %v2450
    %v2452 = vpop.f32.mrb[0].mxu0
    %v2453 = vadd.f32 %v2337, %v2452
    %v2454 = vpop.f32.mrb[0].mxu0
    %v2455 = vadd.f32 %v2337, %v2454
    %2456 = vmatprep.mubr.bf16.mxu0 0
    %2457 = vmatmul.mubr.bf16.gmra.mrb[0].mxu0 %v1249
    %v2458 = vpop.f32.mrb[0].mxu0
    %v2459 = vadd.f32 %v2342, %v2458
    %v2460 = vpop.f32.mrb[0].mxu0
    %v2461 = vadd.f32 %v2342, %v2460
    %v2462 = vpop.f32.mrb[0].mxu0
    %v2463 = vadd.f32 %v2347, %v2462
    %v2464 = vpop.f32.mrb[0].mxu0
    %v2465 = vadd.f32 %v2347, %v2464
    %2466 = vdwg.mxu0
    %v2467 = vadd.f32 %v2396, %v1376
    %v2468 = vadd.f32 %v2398, %v1376
    %v2469 = vadd.f32 %v2449, %v1376
    %v2470 = vadd.f32 %v2451, %v1376
    %v2471 = vadd.f32 %v2400, %v1381
    %v2472 = vadd.f32 %v2402, %v1381
    %v2473 = vadd.f32 %v2453, %v1381
    %v2474 = vadd.f32 %v2455, %v1381
    %v2475 = vadd.f32 %v2406, %v1386
    %v2476 = vadd.f32 %v2408, %v1386
    %v2477 = vadd.f32 %v2459, %v1386
    %v2478 = vadd.f32 %v2461, %v1386
    %v2479 = vadd.f32 %v2410, %v1391
    %v2480 = vadd.f32 %v2412, %v1391
    %v2481 = vadd.f32 %v2463, %v1391
    %v2482 = vadd.f32 %v2465, %v1391
    %v2483 = vmax.f32 %v2467, 0.0
    %v2484 = vmax.f32 %v2468, 0.0
    %v2485 = vmax.f32 %v2469, 0.0
    %v2486 = vmax.f32 %v2470, 0.0
    %v2487 = vmax.f32 %v2471, 0.0
    %v2488 = vmax.f32 %v2472, 0.0
    %v2489 = vmax.f32 %v2473, 0.0
    %v2490 = vmax.f32 %v2474, 0.0
    %v2491 = vmax.f32 %v2475, 0.0
    %v2492 = vmax.f32 %v2476, 0.0
    %v2493 = vmax.f32 %v2477, 0.0
    %v2494 = vmax.f32 %v2478, 0.0
    %v2495 = vmax.f32 %v2479, 0.0
    %v2496 = vmax.f32 %v2480, 0.0
    %v2497 = vmax.f32 %v2481, 0.0
    %v2498 = vmax.f32 %v2482, 0.0
    %2499 = vrot.lane.b32.xlu0 %v2483, 16
    %v2500 = vpop.permute.xlu0 %2499
    %2501 = vrot.lane.b32.xlu0 %v2487, 16
    %v2502 = vpop.permute.xlu0 %2501
    %2503 = vrot.lane.b32.xlu0 %v2491, 16
    %v2504 = vpop.permute.xlu0 %2503
    %2505 = vrot.lane.b32.xlu0 %v2495, 16
    %v2506 = vpop.permute.xlu0 %2505
    %2507 = vrot.lane.b32.xlu0 %v2484, 16
    %v2508 = vpop.permute.xlu0 %2507
    %2509 = vrot.lane.b32.xlu0 %v2488, 16
    %v2510 = vpop.permute.xlu0 %2509
    %2511 = vrot.lane.b32.xlu0 %v2492, 16
    %v2512 = vpop.permute.xlu0 %2511
    %2513 = vrot.lane.b32.xlu0 %v2496, 16
    %v2514 = vpop.permute.xlu0 %2513
    %2515 = vrot.lane.b32.xlu0 %v2485, 16
    %v2516 = vpop.permute.xlu0 %2515
    %2517 = vrot.lane.b32.xlu0 %v2489, 16
    %v2518 = vpop.permute.xlu0 %2517
    %2519 = vrot.lane.b32.xlu0 %v2493, 16
    %v2520 = vpop.permute.xlu0 %2519
    %2521 = vrot.lane.b32.xlu0 %v2497, 16
    %v2522 = vpop.permute.xlu0 %2521
    %2523 = vrot.lane.b32.xlu0 %v2486, 16
    %v2524 = vpop.permute.xlu0 %2523
    %2525 = vrot.lane.b32.xlu0 %v2490, 16
    %v2526 = vpop.permute.xlu0 %2525
    %2527 = vrot.lane.b32.xlu0 %v2494, 16
    %v2528 = vpop.permute.xlu0 %2527
    %2529 = vrot.lane.b32.xlu0 %v2498, 16
    %v2530 = vpop.permute.xlu0 %2529
    %v2531 = vsel %vm318, %v2516, %v2524
    %v2532 = vsel %vm318, %v2518, %v2526
    %v2533 = vsel %vm318, %v2520, %v2528
    %v2534 = vsel %vm318, %v2522, %v2530
    %v2535 = vsel %vm318, %v2508, %v2516
    %v2536 = vsel %vm318, %v2510, %v2518
    %v2537 = vsel %vm318, %v2512, %v2520
    %v2538 = vsel %vm318, %v2514, %v2522
    %v2539 = vsel %vm318, %v2500, %v2508
    %v2540 = vsel %vm318, %v2502, %v2510
    %v2541 = vsel %vm318, %v2504, %v2512
    %v2542 = vsel %vm318, %v2506, %v2514
    %v2543 = vsel %vm318, %v2524, %v2500
    %v2544 = vsel %vm318, %v2526, %v2502
    %v2545 = vsel %vm318, %v2528, %v2504
    %v2546 = vsel %vm318, %v2530, %v2506
    %v2547 = vmul.f32 %v2543, %v1478
    %v2548 = vmul.f32 %v2539, %v1482
    %v2549 = vmul.f32 %v2535, %v1486
    %v2550 = vmul.f32 %v2531, %v1490
    %v2551 = vmul.f32 %v2544, %v1478
    %v2552 = vmul.f32 %v2540, %v1482
    %v2553 = vmul.f32 %v2536, %v1486
    %v2554 = vmul.f32 %v2532, %v1490
    %v2555 = vmul.f32 %v2545, %v1478
    %v2556 = vmul.f32 %v2541, %v1482
    %v2557 = vmul.f32 %v2537, %v1486
    %v2558 = vmul.f32 %v2533, %v1490
    %v2559 = vmul.f32 %v2546, %v1478
    %v2560 = vmul.f32 %v2542, %v1482
    %v2561 = vmul.f32 %v2538, %v1486
    %v2562 = vmul.f32 %v2534, %v1490
    %2563 = vrot.lane.b32.xlu0 %v2483, 112
    %v2564 = vpop.permute.xlu0 %2563
    %2565 = vrot.lane.b32.xlu0 %v2487, 112
    %v2566 = vpop.permute.xlu0 %2565
    %2567 = vrot.lane.b32.xlu0 %v2491, 112
    %v2568 = vpop.permute.xlu0 %2567
    %2569 = vrot.lane.b32.xlu0 %v2495, 112
    %v2570 = vpop.permute.xlu0 %2569
    %2571 = vrot.lane.b32.xlu0 %v2484, 112
    %v2572 = vpop.permute.xlu0 %2571
    %2573 = vrot.lane.b32.xlu0 %v2488, 112
    %v2574 = vpop.permute.xlu0 %2573
    %2575 = vrot.lane.b32.xlu0 %v2492, 112
    %v2576 = vpop.permute.xlu0 %2575
    %2577 = vrot.lane.b32.xlu0 %v2496, 112
    %v2578 = vpop.permute.xlu0 %2577
    %2579 = vrot.lane.b32.xlu0 %v2485, 112
    %v2580 = vpop.permute.xlu0 %2579
    %2581 = vrot.lane.b32.xlu0 %v2489, 112
    %v2582 = vpop.permute.xlu0 %2581
    %2583 = vrot.lane.b32.xlu0 %v2493, 112
    %v2584 = vpop.permute.xlu0 %2583
    %2585 = vrot.lane.b32.xlu0 %v2497, 112
    %v2586 = vpop.permute.xlu0 %2585
    %2587 = vrot.lane.b32.xlu0 %v2486, 112
    %v2588 = vpop.permute.xlu0 %2587
    %2589 = vrot.lane.b32.xlu0 %v2490, 112
    %v2590 = vpop.permute.xlu0 %2589
    %2591 = vrot.lane.b32.xlu0 %v2494, 112
    %v2592 = vpop.permute.xlu0 %2591
    %2593 = vrot.lane.b32.xlu0 %v2498, 112
    %v2594 = vpop.permute.xlu0 %2593
    %v2595 = vsel %vm405, %v2580, %v2588
    %v2596 = vsel %vm405, %v2582, %v2590
    %v2597 = vsel %vm405, %v2584, %v2592
    %v2598 = vsel %vm405, %v2586, %v2594
    %v2599 = vsel %vm405, %v2572, %v2580
    %v2600 = vsel %vm405, %v2574, %v2582
    %v2601 = vsel %vm405, %v2576, %v2584
    %v2602 = vsel %vm405, %v2578, %v2586
    %v2603 = vsel %vm405, %v2564, %v2572
    %v2604 = vsel %vm405, %v2566, %v2574
    %v2605 = vsel %vm405, %v2568, %v2576
    %v2606 = vsel %vm405, %v2570, %v2578
    %v2607 = vsel %vm405, %v2588, %v2564
    %v2608 = vsel %vm405, %v2590, %v2566
    %v2609 = vsel %vm405, %v2592, %v2568
    %v2610 = vsel %vm405, %v2594, %v2570
    %v2611 = vmul.f32 %v2603, %v1564
    %v2612 = vmul.f32 %v2599, %v1568
    %v2613 = vmul.f32 %v2595, %v1572
    %v2614 = vmul.f32 %v2607, %v1576
    %v2615 = vmul.f32 %v2604, %v1564
    %v2616 = vmul.f32 %v2600, %v1568
    %v2617 = vmul.f32 %v2596, %v1572
    %v2618 = vmul.f32 %v2608, %v1576
    %v2619 = vmul.f32 %v2605, %v1564
    %v2620 = vmul.f32 %v2601, %v1568
    %v2621 = vmul.f32 %v2597, %v1572
    %v2622 = vmul.f32 %v2609, %v1576
    %v2623 = vmul.f32 %v2606, %v1564
    %v2624 = vmul.f32 %v2602, %v1568
    %v2625 = vmul.f32 %v2598, %v1572
    %v2626 = vmul.f32 %v2610, %v1576
    %v2627 = vpack.c.bf16 %v2551, %v2547
    %v2628 = vpack.c.bf16 %v2552, %v2548
    %v2629 = vpack.c.bf16 %v2553, %v2549
    %v2630 = vpack.c.bf16 %v2554, %v2550
    %v2631 = vpack.c.bf16 %v2559, %v2555
    %v2632 = vpack.c.bf16 %v2560, %v2556
    %v2633 = vpack.c.bf16 %v2561, %v2557
    %v2634 = vpack.c.bf16 %v2562, %v2558
    %v2635 = vpack.c.bf16 %v2487, %v2483
    %v2636 = vpack.c.bf16 %v2488, %v2484
    %v2637 = vpack.c.bf16 %v2489, %v2485
    %v2638 = vpack.c.bf16 %v2490, %v2486
    %v2639 = vpack.c.bf16 %v2495, %v2491
    %v2640 = vpack.c.bf16 %v2496, %v2492
    %v2641 = vpack.c.bf16 %v2497, %v2493
    %v2642 = vpack.c.bf16 %v2498, %v2494
    %v2643 = vpack.c.bf16 %v2615, %v2611
    %v2644 = vpack.c.bf16 %v2616, %v2612
    %v2645 = vpack.c.bf16 %v2617, %v2613
    %v2646 = vpack.c.bf16 %v2618, %v2614
    %v2647 = vpack.c.bf16 %v2623, %v2619
    %v2648 = vpack.c.bf16 %v2624, %v2620
    %v2649 = vpack.c.bf16 %v2625, %v2621
    %v2650 = vpack.c.bf16 %v2626, %v2622
    %2651 = vmatprep.subr.bf16.mxu0 %v2628
    %2652 = vmatpush1.bf16.msra.mxu0 %v2627
    %2653 = vmatprep.subr.bf16.mxu0 %v2632
    %2654 = vmatpush1.bf16.msra.mxu0 %v2631
    %2655 = vmatprep.subr.bf16.mxu0 %v2636
    %2656 = vmatpush1.bf16.msra.mxu0 %v2635
    %2657 = vmatprep.subr.bf16.mxu0 %v2640
    %2658 = vmatpush1.bf16.msra.mxu0 %v2639
    %2659 = vmatprep.subr.bf16.mxu0 %v2644
    %2660 = vmatpush1.bf16.msra.mxu0 %v2643
    %2661 = vmatprep.subr.bf16.mxu0 %v2648
    %2662 = vmatpush1.bf16.msra.mxu0 %v2647
    %2663 = vmatprep.subr.bf16.mxu0 0
    %2664 = vmatpush1.bf16.msra.mxu0 0
    %2665 = vmatprep.subr.bf16.mxu0 0
    %2666 = vmatpush1.bf16.msra.mxu0 0
    %2667 = vmatprep.subr.bf16.mxu0 0
    %2668 = vmatpush1.bf16.msra.mxu0 0
    %2669 = vmatprep.subr.bf16.mxu0 0
    %2670 = vmatpush1.bf16.msra.mxu0 0
    %2671 = vmatprep.subr.bf16.mxu0 0
    %2672 = vmatpush1.bf16.msra.mxu0 0
    %2673 = vmatprep.subr.bf16.mxu0 0
    %2674 = vmatpush1.bf16.msra.mxu0 0
    %2675 = vmatprep.subr.bf16.mxu0 0
    %2676 = vmatpush1.bf16.msra.mxu0 0
    %2677 = vmatprep.subr.bf16.mxu0 0
    %2678 = vmatpush1.bf16.msra.mxu0 0
    %2679 = vmatprep.subr.bf16.mxu0 0
    %2680 = vmatpush1.bf16.msra.mxu0 0
    %2681 = vmatprep.subr.bf16.mxu0 0
    %2682 = vmatpush1.bf16.msra.mxu0 0
    %2683 = vmatprep.mubr.bf16.mxu0 0
    %2684 = vmatmul.mubr.bf16.gmra.mrb[0].mxu0 %v1664
    %v2685 = vpop.f32.mrb[0].mxu0
    %v2686 = vadd.f32 0.0, %v2685
    %v2687 = vpop.f32.mrb[0].mxu0
    %v2688 = vadd.f32 0.0, %v2687
    %v2689 = vpop.f32.mrb[0].mxu0
    %v2690 = vadd.f32 0.0, %v2689
    %v2691 = vpop.f32.mrb[0].mxu0
    %v2692 = vadd.f32 0.0, %v2691
    %2693 = vmatprep.mubr.bf16.mxu0 0
    %2694 = vmatmul.mubr.bf16.gmra.mrb[0].mxu0 %v1667
    %v2695 = vpop.f32.mrb[0].mxu0
    %v2696 = vadd.f32 0.0, %v2695
    %v2697 = vpop.f32.mrb[0].mxu0
    %v2698 = vadd.f32 0.0, %v2697
    %v2699 = vpop.f32.mrb[0].mxu0
    %v2700 = vadd.f32 0.0, %v2699
    %v2701 = vpop.f32.mrb[0].mxu0
    %v2702 = vadd.f32 0.0, %v2701
    %2703 = vmatprep.mubr.bf16.mxu0 0
    %2704 = vmatmul.mubr.bf16.gmra.mrb[0].mxu0 %v1670
    %v2705 = vpop.f32.mrb[0].mxu0
    %v2706 = vadd.f32 0.0, %v2705
    %v2707 = vpop.f32.mrb[0].mxu0
    %v2708 = vadd.f32 0.0, %v2707
    %v2709 = vpop.f32.mrb[0].mxu0
    %v2710 = vadd.f32 0.0, %v2709
    %v2711 = vpop.f32.mrb[0].mxu0
    %v2712 = vadd.f32 0.0, %v2711
    %2713 = vmatprep.mubr.bf16.mxu0 0
    %2714 = vmatmul.mubr.bf16.gmra.mrb[0].mxu0 %v1673
    %v2715 = vpop.f32.mrb[0].mxu0
    %v2716 = vadd.f32 0.0, %v2715
    %v2717 = vpop.f32.mrb[0].mxu0
    %v2718 = vadd.f32 0.0, %v2717
    %v2719 = vpop.f32.mrb[0].mxu0
    %v2720 = vadd.f32 0.0, %v2719
    %v2721 = vpop.f32.mrb[0].mxu0
    %v2722 = vadd.f32 0.0, %v2721
    %2723 = vmatprep.mubr.bf16.mxu0 0
    %2724 = vmatmul.mubr.bf16.gmra.mrb[0].mxu0 %v1676
    %v2725 = vpop.f32.mrb[0].mxu0
    %v2726 = vadd.f32 0.0, %v2725
    %v2727 = vpop.f32.mrb[0].mxu0
    %v2728 = vadd.f32 0.0, %v2727
    %v2729 = vpop.f32.mrb[0].mxu0
    %v2730 = vadd.f32 0.0, %v2729
    %v2731 = vpop.f32.mrb[0].mxu0
    %v2732 = vadd.f32 0.0, %v2731
    %2733 = vmatprep.mubr.bf16.mxu0 0
    %2734 = vmatmul.mubr.bf16.gmra.mrb[0].mxu0 %v1679
    %v2735 = vpop.f32.mrb[0].mxu0
    %v2736 = vadd.f32 0.0, %v2735
    %v2737 = vpop.f32.mrb[0].mxu0
    %v2738 = vadd.f32 0.0, %v2737
    %v2739 = vpop.f32.mrb[0].mxu0
    %v2740 = vadd.f32 0.0, %v2739
    %v2741 = vpop.f32.mrb[0].mxu0
    %v2742 = vadd.f32 0.0, %v2741
    %2743 = vdwg.mxu0
    %2744 = vmatprep.subr.bf16.mxu0 %v2630
    %2745 = vmatpush1.bf16.msra.mxu0 %v2629
    %2746 = vmatprep.subr.bf16.mxu0 %v2634
    %2747 = vmatpush1.bf16.msra.mxu0 %v2633
    %2748 = vmatprep.subr.bf16.mxu0 %v2638
    %2749 = vmatpush1.bf16.msra.mxu0 %v2637
    %2750 = vmatprep.subr.bf16.mxu0 %v2642
    %2751 = vmatpush1.bf16.msra.mxu0 %v2641
    %2752 = vmatprep.subr.bf16.mxu0 %v2646
    %2753 = vmatpush1.bf16.msra.mxu0 %v2645
    %2754 = vmatprep.subr.bf16.mxu0 %v2650
    %2755 = vmatpush1.bf16.msra.mxu0 %v2649
    %2756 = vmatprep.subr.bf16.mxu0 0
    %2757 = vmatpush1.bf16.msra.mxu0 0
    %2758 = vmatprep.subr.bf16.mxu0 0
    %2759 = vmatpush1.bf16.msra.mxu0 0
    %2760 = vmatprep.subr.bf16.mxu0 0
    %2761 = vmatpush1.bf16.msra.mxu0 0
    %2762 = vmatprep.subr.bf16.mxu0 0
    %2763 = vmatpush1.bf16.msra.mxu0 0
    %2764 = vmatprep.subr.bf16.mxu0 0
    %2765 = vmatpush1.bf16.msra.mxu0 0
    %2766 = vmatprep.subr.bf16.mxu0 0
    %2767 = vmatpush1.bf16.msra.mxu0 0
    %2768 = vmatprep.subr.bf16.mxu0 0
    %2769 = vmatpush1.bf16.msra.mxu0 0
    %2770 = vmatprep.subr.bf16.mxu0 0
    %2771 = vmatpush1.bf16.msra.mxu0 0
    %2772 = vmatprep.subr.bf16.mxu0 0
    %2773 = vmatpush1.bf16.msra.mxu0 0
    %2774 = vmatprep.subr.bf16.mxu0 0
    %2775 = vmatpush1.bf16.msra.mxu0 0
    %2776 = vmatprep.mubr.bf16.mxu0 0
    %2777 = vmatmul.mubr.bf16.gmra.mrb[0].mxu0 %v1664
    %v2778 = vpop.f32.mrb[0].mxu0
    %v2779 = vadd.f32 0.0, %v2778
    %v2780 = vpop.f32.mrb[0].mxu0
    %v2781 = vadd.f32 0.0, %v2780
    %v2782 = vpop.f32.mrb[0].mxu0
    %v2783 = vadd.f32 0.0, %v2782
    %v2784 = vpop.f32.mrb[0].mxu0
    %v2785 = vadd.f32 0.0, %v2784
    %2786 = vmatprep.mubr.bf16.mxu0 0
    %2787 = vmatmul.mubr.bf16.gmra.mrb[0].mxu0 %v1667
    %v2788 = vpop.f32.mrb[0].mxu0
    %v2789 = vadd.f32 0.0, %v2788
    %v2790 = vpop.f32.mrb[0].mxu0
    %v2791 = vadd.f32 0.0, %v2790
    %v2792 = vpop.f32.mrb[0].mxu0
    %v2793 = vadd.f32 0.0, %v2792
    %v2794 = vpop.f32.mrb[0].mxu0
    %v2795 = vadd.f32 0.0, %v2794
    %2796 = vmatprep.mubr.bf16.mxu0 0
    %2797 = vmatmul.mubr.bf16.gmra.mrb[0].mxu0 %v1670
    %v2798 = vpop.f32.mrb[0].mxu0
    %v2799 = vadd.f32 0.0, %v2798
    %v2800 = vpop.f32.mrb[0].mxu0
    %v2801 = vadd.f32 0.0, %v2800
    %v2802 = vpop.f32.mrb[0].mxu0
    %v2803 = vadd.f32 0.0, %v2802
    %v2804 = vpop.f32.mrb[0].mxu0
    %v2805 = vadd.f32 0.0, %v2804
    %2806 = vmatprep.mubr.bf16.mxu0 0
    %2807 = vmatmul.mubr.bf16.gmra.mrb[0].mxu0 %v1673
    %v2808 = vpop.f32.mrb[0].mxu0
    %v2809 = vadd.f32 0.0, %v2808
    %v2810 = vpop.f32.mrb[0].mxu0
    %v2811 = vadd.f32 0.0, %v2810
    %v2812 = vpop.f32.mrb[0].mxu0
    %v2813 = vadd.f32 0.0, %v2812
    %v2814 = vpop.f32.mrb[0].mxu0
    %v2815 = vadd.f32 0.0, %v2814
    %2816 = vmatprep.mubr.bf16.mxu0 0
    %2817 = vmatmul.mubr.bf16.gmra.mrb[0].mxu0 %v1676
    %v2818 = vpop.f32.mrb[0].mxu0
    %v2819 = vadd.f32 0.0, %v2818
    %v2820 = vpop.f32.mrb[0].mxu0
    %v2821 = vadd.f32 0.0, %v2820
    %v2822 = vpop.f32.mrb[0].mxu0
    %v2823 = vadd.f32 0.0, %v2822
    %v2824 = vpop.f32.mrb[0].mxu0
    %v2825 = vadd.f32 0.0, %v2824
    %2826 = vmatprep.mubr.bf16.mxu0 0
    %2827 = vmatmul.mubr.bf16.gmra.mrb[0].mxu0 %v1679
    %v2828 = vpop.f32.mrb[0].mxu0
    %v2829 = vadd.f32 0.0, %v2828
    %v2830 = vpop.f32.mrb[0].mxu0
    %v2831 = vadd.f32 0.0, %v2830
    %v2832 = vpop.f32.mrb[0].mxu0
    %v2833 = vadd.f32 0.0, %v2832
    %v2834 = vpop.f32.mrb[0].mxu0
    %v2835 = vadd.f32 0.0, %v2834
    %2836 = vdwg.mxu0
    %2837 = vrot.lane.b32.xlu0 %v2686, 1
    %v2838 = vpop.permute.xlu0 %2837
    %2839 = vrot.lane.b32.xlu0 %v2690, 1
    %v2840 = vpop.permute.xlu0 %2839
    %2841 = vrot.lane.b32.xlu0 %v2696, 1
    %v2842 = vpop.permute.xlu0 %2841
    %2843 = vrot.lane.b32.xlu0 %v2700, 1
    %v2844 = vpop.permute.xlu0 %2843
    %2845 = vrot.lane.b32.xlu0 %v2688, 1
    %v2846 = vpop.permute.xlu0 %2845
    %2847 = vrot.lane.b32.xlu0 %v2692, 1
    %v2848 = vpop.permute.xlu0 %2847
    %2849 = vrot.lane.b32.xlu0 %v2698, 1
    %v2850 = vpop.permute.xlu0 %2849
    %2851 = vrot.lane.b32.xlu0 %v2702, 1
    %v2852 = vpop.permute.xlu0 %2851
    %2853 = vrot.lane.b32.xlu0 %v2779, 1
    %v2854 = vpop.permute.xlu0 %2853
    %2855 = vrot.lane.b32.xlu0 %v2783, 1
    %v2856 = vpop.permute.xlu0 %2855
    %2857 = vrot.lane.b32.xlu0 %v2789, 1
    %v2858 = vpop.permute.xlu0 %2857
    %2859 = vrot.lane.b32.xlu0 %v2793, 1
    %v2860 = vpop.permute.xlu0 %2859
    %2861 = vrot.lane.b32.xlu0 %v2781, 1
    %v2862 = vpop.permute.xlu0 %2861
    %2863 = vrot.lane.b32.xlu0 %v2785, 1
    %v2864 = vpop.permute.xlu0 %2863
    %2865 = vrot.lane.b32.xlu0 %v2791, 1
    %v2866 = vpop.permute.xlu0 %2865
    %2867 = vrot.lane.b32.xlu0 %v2795, 1
    %v2868 = vpop.permute.xlu0 %2867
    %v2869 = vsel %vm763, %v2854, %v2862
    %v2870 = vsel %vm763, %v2856, %v2864
    %v2871 = vsel %vm763, %v2858, %v2866
    %v2872 = vsel %vm763, %v2860, %v2868
    %v2873 = vsel %vm763, %v2846, %v2854
    %v2874 = vsel %vm763, %v2848, %v2856
    %v2875 = vsel %vm763, %v2850, %v2858
    %v2876 = vsel %vm763, %v2852, %v2860
    %v2877 = vsel %vm763, %v2838, %v2846
    %v2878 = vsel %vm763, %v2840, %v2848
    %v2879 = vsel %vm763, %v2842, %v2850
    %v2880 = vsel %vm763, %v2844, %v2852
    %v2881 = vsel %vm763, %v2862, %v2838
    %v2882 = vsel %vm763, %v2864, %v2840
    %v2883 = vsel %vm763, %v2866, %v2842
    %v2884 = vsel %vm763, %v2868, %v2844
    %v2885 = vmul.f32 %v2881, %v1920
    %v2886 = vmul.f32 %v2877, %v1924
    %v2887 = vmul.f32 %v2873, %v1928
    %v2888 = vmul.f32 %v2869, %v1932
    %v2889 = vmul.f32 %v2882, %v1920
    %v2890 = vmul.f32 %v2878, %v1924
    %v2891 = vmul.f32 %v2874, %v1928
    %v2892 = vmul.f32 %v2870, %v1932
    %v2893 = vmul.f32 %v2883, %v1920
    %v2894 = vmul.f32 %v2879, %v1924
    %v2895 = vmul.f32 %v2875, %v1928
    %v2896 = vmul.f32 %v2871, %v1932
    %v2897 = vmul.f32 %v2884, %v1920
    %v2898 = vmul.f32 %v2880, %v1924
    %v2899 = vmul.f32 %v2876, %v1928
    %v2900 = vmul.f32 %v2872, %v1932
    %v2901 = vadd.f32 %v2885, %v2706
    %v2902 = vadd.f32 %v2886, %v2708
    %v2903 = vadd.f32 %v2887, %v2799
    %v2904 = vadd.f32 %v2888, %v2801
    %v2905 = vadd.f32 %v2889, %v2710
    %v2906 = vadd.f32 %v2890, %v2712
    %v2907 = vadd.f32 %v2891, %v2803
    %v2908 = vadd.f32 %v2892, %v2805
    %v2909 = vadd.f32 %v2893, %v2716
    %v2910 = vadd.f32 %v2894, %v2718
    %v2911 = vadd.f32 %v2895, %v2809
    %v2912 = vadd.f32 %v2896, %v2811
    %v2913 = vadd.f32 %v2897, %v2720
    %v2914 = vadd.f32 %v2898, %v2722
    %v2915 = vadd.f32 %v2899, %v2813
    %v2916 = vadd.f32 %v2900, %v2815
    %2917 = vrot.lane.b32.xlu0 %v2726, 127
    %v2918 = vpop.permute.xlu0 %2917
    %2919 = vrot.lane.b32.xlu0 %v2730, 127
    %v2920 = vpop.permute.xlu0 %2919
    %2921 = vrot.lane.b32.xlu0 %v2736, 127
    %v2922 = vpop.permute.xlu0 %2921
    %2923 = vrot.lane.b32.xlu0 %v2740, 127
    %v2924 = vpop.permute.xlu0 %2923
    %2925 = vrot.lane.b32.xlu0 %v2728, 127
    %v2926 = vpop.permute.xlu0 %2925
    %2927 = vrot.lane.b32.xlu0 %v2732, 127
    %v2928 = vpop.permute.xlu0 %2927
    %2929 = vrot.lane.b32.xlu0 %v2738, 127
    %v2930 = vpop.permute.xlu0 %2929
    %2931 = vrot.lane.b32.xlu0 %v2742, 127
    %v2932 = vpop.permute.xlu0 %2931
    %2933 = vrot.lane.b32.xlu0 %v2819, 127
    %v2934 = vpop.permute.xlu0 %2933
    %2935 = vrot.lane.b32.xlu0 %v2823, 127
    %v2936 = vpop.permute.xlu0 %2935
    %2937 = vrot.lane.b32.xlu0 %v2829, 127
    %v2938 = vpop.permute.xlu0 %2937
    %2939 = vrot.lane.b32.xlu0 %v2833, 127
    %v2940 = vpop.permute.xlu0 %2939
    %2941 = vrot.lane.b32.xlu0 %v2821, 127
    %v2942 = vpop.permute.xlu0 %2941
    %2943 = vrot.lane.b32.xlu0 %v2825, 127
    %v2944 = vpop.permute.xlu0 %2943
    %2945 = vrot.lane.b32.xlu0 %v2831, 127
    %v2946 = vpop.permute.xlu0 %2945
    %2947 = vrot.lane.b32.xlu0 %v2835, 127
    %v2948 = vpop.permute.xlu0 %2947
    %v2949 = vsel %vm866, %v2934, %v2942
    %v2950 = vsel %vm866, %v2936, %v2944
    %v2951 = vsel %vm866, %v2938, %v2946
    %v2952 = vsel %vm866, %v2940, %v2948
    %v2953 = vsel %vm866, %v2926, %v2934
    %v2954 = vsel %vm866, %v2928, %v2936
    %v2955 = vsel %vm866, %v2930, %v2938
    %v2956 = vsel %vm866, %v2932, %v2940
    %v2957 = vsel %vm866, %v2918, %v2926
    %v2958 = vsel %vm866, %v2920, %v2928
    %v2959 = vsel %vm866, %v2922, %v2930
    %v2960 = vsel %vm866, %v2924, %v2932
    %v2961 = vsel %vm866, %v2942, %v2918
    %v2962 = vsel %vm866, %v2944, %v2920
    %v2963 = vsel %vm866, %v2946, %v2922
    %v2964 = vsel %vm866, %v2948, %v2924
    %v2965 = vmul.f32 %v2957, %v2022
    %v2966 = vmul.f32 %v2953, %v2026
    %v2967 = vmul.f32 %v2949, %v2030
    %v2968 = vmul.f32 %v2961, %v2034
    %v2969 = vmul.f32 %v2958, %v2022
    %v2970 = vmul.f32 %v2954, %v2026
    %v2971 = vmul.f32 %v2950, %v2030
    %v2972 = vmul.f32 %v2962, %v2034
    %v2973 = vmul.f32 %v2959, %v2022
    %v2974 = vmul.f32 %v2955, %v2026
    %v2975 = vmul.f32 %v2951, %v2030
    %v2976 = vmul.f32 %v2963, %v2034
    %v2977 = vmul.f32 %v2960, %v2022
    %v2978 = vmul.f32 %v2956, %v2026
    %v2979 = vmul.f32 %v2952, %v2030
    %v2980 = vmul.f32 %v2964, %v2034
    %v2981 = vadd.f32 %v2901, %v2965
    %v2982 = vadd.f32 %v2902, %v2966
    %v2983 = vadd.f32 %v2903, %v2967
    %v2984 = vadd.f32 %v2904, %v2968
    %v2985 = vadd.f32 %v2905, %v2969
    %v2986 = vadd.f32 %v2906, %v2970
    %v2987 = vadd.f32 %v2907, %v2971
    %v2988 = vadd.f32 %v2908, %v2972
    %v2989 = vadd.f32 %v2909, %v2973
    %v2990 = vadd.f32 %v2910, %v2974
    %v2991 = vadd.f32 %v2911, %v2975
    %v2992 = vadd.f32 %v2912, %v2976
    %v2993 = vadd.f32 %v2913, %v2977
    %v2994 = vadd.f32 %v2914, %v2978
    %v2995 = vadd.f32 %v2915, %v2979
    %v2996 = vadd.f32 %v2916, %v2980
    %v2997 = vmul.f32 %v2324, %v2071
    %v2998 = vmul.f32 %v2324, %v2072
    %v2999 = vmul.f32 %v2324, %v2073
    %v3000 = vmul.f32 %v2324, %v2074
    %v3001 = vmul.f32 %v2324, %v2075
    %v3002 = vmul.f32 %v2324, %v2076
    %v3003 = vmul.f32 %v2324, %v2077
    %v3004 = vmul.f32 %v2324, %v2078
    %v3005 = vmul.f32 %v2324, %v2079
    %v3006 = vmul.f32 %v2324, %v2080
    %v3007 = vmul.f32 %v2324, %v2081
    %v3008 = vmul.f32 %v2324, %v2082
    %v3009 = vmul.f32 %v2324, %v2083
    %v3010 = vmul.f32 %v2324, %v2084
    %v3011 = vmul.f32 %v2324, %v2085
    %v3012 = vmul.f32 %v2324, %v2086
    %v3013 = vadd.f32 %v2981, %v2997
    %v3014 = vadd.f32 %v2982, %v2998
    %v3015 = vadd.f32 %v2983, %v2999
    %v3016 = vadd.f32 %v2984, %v3000
    %v3017 = vadd.f32 %v2985, %v3001
    %v3018 = vadd.f32 %v2986, %v3002
    %v3019 = vadd.f32 %v2987, %v3003
    %v3020 = vadd.f32 %v2988, %v3004
    %v3021 = vadd.f32 %v2989, %v3005
    %v3022 = vadd.f32 %v2990, %v3006
    %v3023 = vadd.f32 %v2991, %v3007
    %v3024 = vadd.f32 %v2992, %v3008
    %v3025 = vadd.f32 %v2993, %v3009
    %v3026 = vadd.f32 %v2994, %v3010
    %v3027 = vadd.f32 %v2995, %v3011
    %v3028 = vadd.f32 %v2996, %v3012
    %v3029 = vadd.f32 %v3013, %v2126
    %v3030 = vadd.f32 %v3014, %v2126
    %v3031 = vadd.f32 %v3015, %v2126
    %v3032 = vadd.f32 %v3016, %v2126
    %v3033 = vadd.f32 %v3017, %v2131
    %v3034 = vadd.f32 %v3018, %v2131
    %v3035 = vadd.f32 %v3019, %v2131
    %v3036 = vadd.f32 %v3020, %v2131
    %v3037 = vadd.f32 %v3021, %v2136
    %v3038 = vadd.f32 %v3022, %v2136
    %v3039 = vadd.f32 %v3023, %v2136
    %v3040 = vadd.f32 %v3024, %v2136
    %v3041 = vadd.f32 %v3025, %v2141
    %v3042 = vadd.f32 %v3026, %v2141
    %v3043 = vadd.f32 %v3027, %v2141
    %v3044 = vadd.f32 %v3028, %v2141
    %v3045 = vmax.f32 %v3029, 0.0
    %v3046 = vmax.f32 %v3030, 0.0
    %v3047 = vmax.f32 %v3031, 0.0
    %v3048 = vmax.f32 %v3032, 0.0
    %v3049 = vmax.f32 %v3033, 0.0
    %v3050 = vmax.f32 %v3034, 0.0
    %v3051 = vmax.f32 %v3035, 0.0
    %v3052 = vmax.f32 %v3036, 0.0
    %v3053 = vmax.f32 %v3037, 0.0
    %v3054 = vmax.f32 %v3038, 0.0
    %v3055 = vmax.f32 %v3039, 0.0
    %v3056 = vmax.f32 %v3040, 0.0
    %v3057 = vmax.f32 %v3041, 0.0
    %v3058 = vmax.f32 %v3042, 0.0
    %v3059 = vmax.f32 %v3043, 0.0
    %v3060 = vmax.f32 %v3044, 0.0
    %v3061 = vpack.c.bf16 %v3049, %v3045
    %v3062 = vpack.c.bf16 %v3050, %v3046
    %v3063 = vpack.c.bf16 %v3051, %v3047
    %v3064 = vpack.c.bf16 %v3052, %v3048
    %v3065 = vpack.c.bf16 %v3057, %v3053
    %v3066 = vpack.c.bf16 %v3058, %v3054
    %v3067 = vpack.c.bf16 %v3059, %v3055
    %v3068 = vpack.c.bf16 %v3060, %v3056
    %v3069 = vmul.f32 %v2324, %v2184
    %3071 = vset.pattern.permute.xlu0 0
    %3072 = vperm.xlu0 %3071, %v3069
    %v3073 = vpop.permute.xlu0 %3072
    %3075 = vmatprep.subr.bf16.mxu0 %v3062
    %3076 = vmatpush1.bf16.msra.mxu0 %v3061
    %3077 = vmatprep.subr.bf16.mxu0 %v3066
    %3078 = vmatpush1.bf16.msra.mxu0 %v3065
    %3079 = vmatprep.subr.bf16.mxu0 0
    %3080 = vmatpush1.bf16.msra.mxu0 0
    %3081 = vmatprep.subr.bf16.mxu0 0
    %3082 = vmatpush1.bf16.msra.mxu0 0
    %3083 = vmatprep.subr.bf16.mxu0 0
    %3084 = vmatpush1.bf16.msra.mxu0 0
    %3085 = vmatprep.subr.bf16.mxu0 0
    %3086 = vmatpush1.bf16.msra.mxu0 0
    %3087 = vmatprep.subr.bf16.mxu0 0
    %3088 = vmatpush1.bf16.msra.mxu0 0
    %3089 = vmatprep.subr.bf16.mxu0 0
    %3090 = vmatpush1.bf16.msra.mxu0 0
    %3091 = vmatprep.subr.bf16.mxu0 0
    %3092 = vmatpush1.bf16.msra.mxu0 0
    %3093 = vmatprep.subr.bf16.mxu0 0
    %3094 = vmatpush1.bf16.msra.mxu0 0
    %3095 = vmatprep.subr.bf16.mxu0 0
    %3096 = vmatpush1.bf16.msra.mxu0 0
    %3097 = vmatprep.subr.bf16.mxu0 0
    %3098 = vmatpush1.bf16.msra.mxu0 0
    %3099 = vmatprep.subr.bf16.mxu0 0
    %3100 = vmatpush1.bf16.msra.mxu0 0
    %3101 = vmatprep.subr.bf16.mxu0 0
    %3102 = vmatpush1.bf16.msra.mxu0 0
    %3103 = vmatprep.subr.bf16.mxu0 0
    %3104 = vmatpush1.bf16.msra.mxu0 0
    %3105 = vmatprep.subr.bf16.mxu0 0
    %3106 = vmatpush1.bf16.msra.mxu0 0
    %3107 = vmatprep.mubr.bf16.mxu0 0
    %3108 = vmatmul.mubr.bf16.gmra.mrb[0].mxu0 %v2192
    %v3109 = vpop.f32.mrb[0].mxu0
    %v3110 = vadd.f32 %v3073, %v3109
    %v3111 = vpop.f32.mrb[0].mxu0
    %v3112 = vadd.f32 %v3073, %v3111
    %v3113 = vpop.f32.mrb[0].mxu0
    %v3114 = vpop.f32.mrb[0].mxu0
    %3115 = vdwg.mxu0
    %3116 = vmatprep.subr.bf16.mxu0 %v3064
    %3117 = vmatpush1.bf16.msra.mxu0 %v3063
    %3118 = vmatprep.subr.bf16.mxu0 %v3068
    %3119 = vmatpush1.bf16.msra.mxu0 %v3067
    %3120 = vmatprep.subr.bf16.mxu0 0
    %3121 = vmatpush1.bf16.msra.mxu0 0
    %3122 = vmatprep.subr.bf16.mxu0 0
    %3123 = vmatpush1.bf16.msra.mxu0 0
    %3124 = vmatprep.subr.bf16.mxu0 0
    %3125 = vmatpush1.bf16.msra.mxu0 0
    %3126 = vmatprep.subr.bf16.mxu0 0
    %3127 = vmatpush1.bf16.msra.mxu0 0
    %3128 = vmatprep.subr.bf16.mxu0 0
    %3129 = vmatpush1.bf16.msra.mxu0 0
    %3130 = vmatprep.subr.bf16.mxu0 0
    %3131 = vmatpush1.bf16.msra.mxu0 0
    %3132 = vmatprep.subr.bf16.mxu0 0
    %3133 = vmatpush1.bf16.msra.mxu0 0
    %3134 = vmatprep.subr.bf16.mxu0 0
    %3135 = vmatpush1.bf16.msra.mxu0 0
    %3136 = vmatprep.subr.bf16.mxu0 0
    %3137 = vmatpush1.bf16.msra.mxu0 0
    %3138 = vmatprep.subr.bf16.mxu0 0
    %3139 = vmatpush1.bf16.msra.mxu0 0
    %3140 = vmatprep.subr.bf16.mxu0 0
    %3141 = vmatpush1.bf16.msra.mxu0 0
    %3142 = vmatprep.subr.bf16.mxu0 0
    %3143 = vmatpush1.bf16.msra.mxu0 0
    %3144 = vmatprep.subr.bf16.mxu0 0
    %3145 = vmatpush1.bf16.msra.mxu0 0
    %3146 = vmatprep.subr.bf16.mxu0 0
    %3147 = vmatpush1.bf16.msra.mxu0 0
    %3148 = vmatprep.mubr.bf16.mxu0 0
    %3149 = vmatmul.mubr.bf16.gmra.mrb[0].mxu0 %v2192
    %v3150 = vpop.f32.mrb[0].mxu0
    %v3151 = vadd.f32 %v3073, %v3150
    %v3152 = vpop.f32.mrb[0].mxu0
    %v3153 = vadd.f32 %v3073, %v3152
    %v3154 = vpop.f32.mrb[0].mxu0
    %v3155 = vpop.f32.mrb[0].mxu0
    %3156 = vdwg.mxu0
    %v3157 = vadd.f32 %v3110, %v2280
    %v3158 = vadd.f32 %v3112, %v2280
    %v3159 = vadd.f32 %v3151, %v2280
    %v3160 = vadd.f32 %v3153, %v2280
    %s3161 = smul.f32 %s1170, 0.8
    %s3162 = sadd.f32 %s1154, %s3161
    %v3163 = vmul.f32 %v1159, 0.9777778
    %v3164 = vmul.f32 %v1160, 0.9777778
    %v3165 = vmul.f32 %v1161, 0.9777778
    %v3166 = vmul.f32 %v1162, 0.9777778
    %v3167 = vmul.f32 %v2282, -3.7333333
    %v3168 = vmul.f32 %v2283, -3.7333333
    %v3169 = vmul.f32 %v2284, -3.7333333
    %v3170 = vmul.f32 %v2285, -3.7333333
    %v3171 = vadd.f32 %v3163, %v3167
    %v3172 = vadd.f32 %v3164, %v3168
    %v3173 = vadd.f32 %v3165, %v3169
    %v3174 = vadd.f32 %v3166, %v3170
    %v3175 = vmul.f32 %v3157, 3.5555556
    %v3176 = vmul.f32 %v3158, 3.5555556
    %v3177 = vmul.f32 %v3159, 3.5555556
    %v3178 = vmul.f32 %v3160, 3.5555556
    %v3179 = vadd.f32 %v3171, %v3175
    %v3180 = vadd.f32 %v3172, %v3176
    %v3181 = vadd.f32 %v3173, %v3177
    %v3182 = vadd.f32 %v3174, %v3178
    %v3183 = vmul.f32 %v1177, %v3179
    %v3184 = vmul.f32 %v1177, %v3180
    %v3185 = vmul.f32 %v1177, %v3181
    %v3186 = vmul.f32 %v1177, %v3182
    %v3191 = vcombine.low %v3183, %v3184
    %v3192 = vcombine.low %v3185, %v3186
    %v3195 = vadd.f32 %v1157, %v3191
    %v3196 = vadd.f32 %v1158, %v3192
    %v3199 = vcombine.high %v3195, %v3195
    %v3200 = vcombine.high %v3196, %v3196
    %v3203 = vpack.c.bf16 %v3195, %v3195
    %v3204 = vpack.c.bf16 %v3199, %v3199
    %v3205 = vpack.c.bf16 %v3196, %v3196
    %v3206 = vpack.c.bf16 %v3200, %v3200
    %v3207 = vstv %s3162
    %v3208 = vmul.f32 %v3207, %v1206
    %v3209 = vmul.f32 %v3207, %v1207
    %v3210 = vmul.f32 %v3207, %v1208
    %v3211 = vmul.f32 %v3207, %v1209
    %3213 = vset.pattern.permute.xlu0 0
    %3214 = vperm.xlu0 %3213, %v3208
    %v3215 = vpop.permute.xlu0 %3214
    %3218 = vset.pattern.permute.xlu0 0
    %3219 = vperm.xlu0 %3218, %v3209
    %v3220 = vpop.permute.xlu0 %3219
    %3223 = vset.pattern.permute.xlu0 0
    %3224 = vperm.xlu0 %3223, %v3210
    %v3225 = vpop.permute.xlu0 %3224
    %3228 = vset.pattern.permute.xlu0 0
    %3229 = vperm.xlu0 %3228, %v3211
    %v3230 = vpop.permute.xlu0 %3229
    %v3233 = vsel %vm109, %v3203, 0
    %v3236 = vsel %vm109, %v3204, 0
    %v3239 = vsel %vm109, %v3205, 0
    %v3242 = vsel %vm109, %v3206, 0
    %3244 = vmatprep.subr.bf16.mxu0 %v3236
    %3245 = vmatpush1.bf16.msra.mxu0 %v3233
    %3246 = vmatprep.subr.bf16.mxu0 0
    %3247 = vmatpush1.bf16.msra.mxu0 0
    %3248 = vmatprep.subr.bf16.mxu0 0
    %3249 = vmatpush1.bf16.msra.mxu0 0
    %3250 = vmatprep.subr.bf16.mxu0 0
    %3251 = vmatpush1.bf16.msra.mxu0 0
    %3252 = vmatprep.subr.bf16.mxu0 0
    %3253 = vmatpush1.bf16.msra.mxu0 0
    %3254 = vmatprep.subr.bf16.mxu0 0
    %3255 = vmatpush1.bf16.msra.mxu0 0
    %3256 = vmatprep.subr.bf16.mxu0 0
    %3257 = vmatpush1.bf16.msra.mxu0 0
    %3258 = vmatprep.subr.bf16.mxu0 0
    %3259 = vmatpush1.bf16.msra.mxu0 0
    %3260 = vmatprep.subr.bf16.mxu0 0
    %3261 = vmatpush1.bf16.msra.mxu0 0
    %3262 = vmatprep.subr.bf16.mxu0 0
    %3263 = vmatpush1.bf16.msra.mxu0 0
    %3264 = vmatprep.subr.bf16.mxu0 0
    %3265 = vmatpush1.bf16.msra.mxu0 0
    %3266 = vmatprep.subr.bf16.mxu0 0
    %3267 = vmatpush1.bf16.msra.mxu0 0
    %3268 = vmatprep.subr.bf16.mxu0 0
    %3269 = vmatpush1.bf16.msra.mxu0 0
    %3270 = vmatprep.subr.bf16.mxu0 0
    %3271 = vmatpush1.bf16.msra.mxu0 0
    %3272 = vmatprep.subr.bf16.mxu0 0
    %3273 = vmatpush1.bf16.msra.mxu0 0
    %3274 = vmatprep.subr.bf16.mxu0 0
    %3275 = vmatpush1.bf16.msra.mxu0 0
    %3276 = vmatprep.mubr.bf16.mxu0 0
    %3277 = vmatmul.mubr.bf16.gmra.mrb[0].mxu0 %v1246
    %v3278 = vpop.f32.mrb[0].mxu0
    %v3279 = vadd.f32 %v3215, %v3278
    %v3280 = vpop.f32.mrb[0].mxu0
    %v3281 = vadd.f32 %v3215, %v3280
    %v3282 = vpop.f32.mrb[0].mxu0
    %v3283 = vadd.f32 %v3220, %v3282
    %v3284 = vpop.f32.mrb[0].mxu0
    %v3285 = vadd.f32 %v3220, %v3284
    %3286 = vmatprep.mubr.bf16.mxu0 0
    %3287 = vmatmul.mubr.bf16.gmra.mrb[0].mxu0 %v1249
    %v3288 = vpop.f32.mrb[0].mxu0
    %v3289 = vadd.f32 %v3225, %v3288
    %v3290 = vpop.f32.mrb[0].mxu0
    %v3291 = vadd.f32 %v3225, %v3290
    %v3292 = vpop.f32.mrb[0].mxu0
    %v3293 = vadd.f32 %v3230, %v3292
    %v3294 = vpop.f32.mrb[0].mxu0
    %v3295 = vadd.f32 %v3230, %v3294
    %3296 = vdwg.mxu0
    %3297 = vmatprep.subr.bf16.mxu0 %v3242
    %3298 = vmatpush1.bf16.msra.mxu0 %v3239
    %3299 = vmatprep.subr.bf16.mxu0 0
    %3300 = vmatpush1.bf16.msra.mxu0 0
    %3301 = vmatprep.subr.bf16.mxu0 0
    %3302 = vmatpush1.bf16.msra.mxu0 0
    %3303 = vmatprep.subr.bf16.mxu0 0
    %3304 = vmatpush1.bf16.msra.mxu0 0
    %3305 = vmatprep.subr.bf16.mxu0 0
    %3306 = vmatpush1.bf16.msra.mxu0 0
    %3307 = vmatprep.subr.bf16.mxu0 0
    %3308 = vmatpush1.bf16.msra.mxu0 0
    %3309 = vmatprep.subr.bf16.mxu0 0
    %3310 = vmatpush1.bf16.msra.mxu0 0
    %3311 = vmatprep.subr.bf16.mxu0 0
    %3312 = vmatpush1.bf16.msra.mxu0 0
    %3313 = vmatprep.subr.bf16.mxu0 0
    %3314 = vmatpush1.bf16.msra.mxu0 0
    %3315 = vmatprep.subr.bf16.mxu0 0
    %3316 = vmatpush1.bf16.msra.mxu0 0
    %3317 = vmatprep.subr.bf16.mxu0 0
    %3318 = vmatpush1.bf16.msra.mxu0 0
    %3319 = vmatprep.subr.bf16.mxu0 0
    %3320 = vmatpush1.bf16.msra.mxu0 0
    %3321 = vmatprep.subr.bf16.mxu0 0
    %3322 = vmatpush1.bf16.msra.mxu0 0
    %3323 = vmatprep.subr.bf16.mxu0 0
    %3324 = vmatpush1.bf16.msra.mxu0 0
    %3325 = vmatprep.subr.bf16.mxu0 0
    %3326 = vmatpush1.bf16.msra.mxu0 0
    %3327 = vmatprep.subr.bf16.mxu0 0
    %3328 = vmatpush1.bf16.msra.mxu0 0
    %3329 = vmatprep.mubr.bf16.mxu0 0
    %3330 = vmatmul.mubr.bf16.gmra.mrb[0].mxu0 %v1246
    %v3331 = vpop.f32.mrb[0].mxu0
    %v3332 = vadd.f32 %v3215, %v3331
    %v3333 = vpop.f32.mrb[0].mxu0
    %v3334 = vadd.f32 %v3215, %v3333
    %v3335 = vpop.f32.mrb[0].mxu0
    %v3336 = vadd.f32 %v3220, %v3335
    %v3337 = vpop.f32.mrb[0].mxu0
    %v3338 = vadd.f32 %v3220, %v3337
    %3339 = vmatprep.mubr.bf16.mxu0 0
    %3340 = vmatmul.mubr.bf16.gmra.mrb[0].mxu0 %v1249
    %v3341 = vpop.f32.mrb[0].mxu0
    %v3342 = vadd.f32 %v3225, %v3341
    %v3343 = vpop.f32.mrb[0].mxu0
    %v3344 = vadd.f32 %v3225, %v3343
    %v3345 = vpop.f32.mrb[0].mxu0
    %v3346 = vadd.f32 %v3230, %v3345
    %v3347 = vpop.f32.mrb[0].mxu0
    %v3348 = vadd.f32 %v3230, %v3347
    %3349 = vdwg.mxu0
    %v3350 = vadd.f32 %v3279, %v1376
    %v3351 = vadd.f32 %v3281, %v1376
    %v3352 = vadd.f32 %v3332, %v1376
    %v3353 = vadd.f32 %v3334, %v1376
    %v3354 = vadd.f32 %v3283, %v1381
    %v3355 = vadd.f32 %v3285, %v1381
    %v3356 = vadd.f32 %v3336, %v1381
    %v3357 = vadd.f32 %v3338, %v1381
    %v3358 = vadd.f32 %v3289, %v1386
    %v3359 = vadd.f32 %v3291, %v1386
    %v3360 = vadd.f32 %v3342, %v1386
    %v3361 = vadd.f32 %v3344, %v1386
    %v3362 = vadd.f32 %v3293, %v1391
    %v3363 = vadd.f32 %v3295, %v1391
    %v3364 = vadd.f32 %v3346, %v1391
    %v3365 = vadd.f32 %v3348, %v1391
    %v3366 = vmax.f32 %v3350, 0.0
    %v3367 = vmax.f32 %v3351, 0.0
    %v3368 = vmax.f32 %v3352, 0.0
    %v3369 = vmax.f32 %v3353, 0.0
    %v3370 = vmax.f32 %v3354, 0.0
    %v3371 = vmax.f32 %v3355, 0.0
    %v3372 = vmax.f32 %v3356, 0.0
    %v3373 = vmax.f32 %v3357, 0.0
    %v3374 = vmax.f32 %v3358, 0.0
    %v3375 = vmax.f32 %v3359, 0.0
    %v3376 = vmax.f32 %v3360, 0.0
    %v3377 = vmax.f32 %v3361, 0.0
    %v3378 = vmax.f32 %v3362, 0.0
    %v3379 = vmax.f32 %v3363, 0.0
    %v3380 = vmax.f32 %v3364, 0.0
    %v3381 = vmax.f32 %v3365, 0.0
    %3382 = vrot.lane.b32.xlu0 %v3366, 16
    %v3383 = vpop.permute.xlu0 %3382
    %3384 = vrot.lane.b32.xlu0 %v3370, 16
    %v3385 = vpop.permute.xlu0 %3384
    %3386 = vrot.lane.b32.xlu0 %v3374, 16
    %v3387 = vpop.permute.xlu0 %3386
    %3388 = vrot.lane.b32.xlu0 %v3378, 16
    %v3389 = vpop.permute.xlu0 %3388
    %3390 = vrot.lane.b32.xlu0 %v3367, 16
    %v3391 = vpop.permute.xlu0 %3390
    %3392 = vrot.lane.b32.xlu0 %v3371, 16
    %v3393 = vpop.permute.xlu0 %3392
    %3394 = vrot.lane.b32.xlu0 %v3375, 16
    %v3395 = vpop.permute.xlu0 %3394
    %3396 = vrot.lane.b32.xlu0 %v3379, 16
    %v3397 = vpop.permute.xlu0 %3396
    %3398 = vrot.lane.b32.xlu0 %v3368, 16
    %v3399 = vpop.permute.xlu0 %3398
    %3400 = vrot.lane.b32.xlu0 %v3372, 16
    %v3401 = vpop.permute.xlu0 %3400
    %3402 = vrot.lane.b32.xlu0 %v3376, 16
    %v3403 = vpop.permute.xlu0 %3402
    %3404 = vrot.lane.b32.xlu0 %v3380, 16
    %v3405 = vpop.permute.xlu0 %3404
    %3406 = vrot.lane.b32.xlu0 %v3369, 16
    %v3407 = vpop.permute.xlu0 %3406
    %3408 = vrot.lane.b32.xlu0 %v3373, 16
    %v3409 = vpop.permute.xlu0 %3408
    %3410 = vrot.lane.b32.xlu0 %v3377, 16
    %v3411 = vpop.permute.xlu0 %3410
    %3412 = vrot.lane.b32.xlu0 %v3381, 16
    %v3413 = vpop.permute.xlu0 %3412
    %v3414 = vsel %vm318, %v3399, %v3407
    %v3415 = vsel %vm318, %v3401, %v3409
    %v3416 = vsel %vm318, %v3403, %v3411
    %v3417 = vsel %vm318, %v3405, %v3413
    %v3418 = vsel %vm318, %v3391, %v3399
    %v3419 = vsel %vm318, %v3393, %v3401
    %v3420 = vsel %vm318, %v3395, %v3403
    %v3421 = vsel %vm318, %v3397, %v3405
    %v3422 = vsel %vm318, %v3383, %v3391
    %v3423 = vsel %vm318, %v3385, %v3393
    %v3424 = vsel %vm318, %v3387, %v3395
    %v3425 = vsel %vm318, %v3389, %v3397
    %v3426 = vsel %vm318, %v3407, %v3383
    %v3427 = vsel %vm318, %v3409, %v3385
    %v3428 = vsel %vm318, %v3411, %v3387
    %v3429 = vsel %vm318, %v3413, %v3389
    %v3430 = vmul.f32 %v3426, %v1478
    %v3431 = vmul.f32 %v3422, %v1482
    %v3432 = vmul.f32 %v3418, %v1486
    %v3433 = vmul.f32 %v3414, %v1490
    %v3434 = vmul.f32 %v3427, %v1478
    %v3435 = vmul.f32 %v3423, %v1482
    %v3436 = vmul.f32 %v3419, %v1486
    %v3437 = vmul.f32 %v3415, %v1490
    %v3438 = vmul.f32 %v3428, %v1478
    %v3439 = vmul.f32 %v3424, %v1482
    %v3440 = vmul.f32 %v3420, %v1486
    %v3441 = vmul.f32 %v3416, %v1490
    %v3442 = vmul.f32 %v3429, %v1478
    %v3443 = vmul.f32 %v3425, %v1482
    %v3444 = vmul.f32 %v3421, %v1486
    %v3445 = vmul.f32 %v3417, %v1490
    %3446 = vrot.lane.b32.xlu0 %v3366, 112
    %v3447 = vpop.permute.xlu0 %3446
    %3448 = vrot.lane.b32.xlu0 %v3370, 112
    %v3449 = vpop.permute.xlu0 %3448
    %3450 = vrot.lane.b32.xlu0 %v3374, 112
    %v3451 = vpop.permute.xlu0 %3450
    %3452 = vrot.lane.b32.xlu0 %v3378, 112
    %v3453 = vpop.permute.xlu0 %3452
    %3454 = vrot.lane.b32.xlu0 %v3367, 112
    %v3455 = vpop.permute.xlu0 %3454
    %3456 = vrot.lane.b32.xlu0 %v3371, 112
    %v3457 = vpop.permute.xlu0 %3456
    %3458 = vrot.lane.b32.xlu0 %v3375, 112
    %v3459 = vpop.permute.xlu0 %3458
    %3460 = vrot.lane.b32.xlu0 %v3379, 112
    %v3461 = vpop.permute.xlu0 %3460
    %3462 = vrot.lane.b32.xlu0 %v3368, 112
    %v3463 = vpop.permute.xlu0 %3462
    %3464 = vrot.lane.b32.xlu0 %v3372, 112
    %v3465 = vpop.permute.xlu0 %3464
    %3466 = vrot.lane.b32.xlu0 %v3376, 112
    %v3467 = vpop.permute.xlu0 %3466
    %3468 = vrot.lane.b32.xlu0 %v3380, 112
    %v3469 = vpop.permute.xlu0 %3468
    %3470 = vrot.lane.b32.xlu0 %v3369, 112
    %v3471 = vpop.permute.xlu0 %3470
    %3472 = vrot.lane.b32.xlu0 %v3373, 112
    %v3473 = vpop.permute.xlu0 %3472
    %3474 = vrot.lane.b32.xlu0 %v3377, 112
    %v3475 = vpop.permute.xlu0 %3474
    %3476 = vrot.lane.b32.xlu0 %v3381, 112
    %v3477 = vpop.permute.xlu0 %3476
    %v3478 = vsel %vm405, %v3463, %v3471
    %v3479 = vsel %vm405, %v3465, %v3473
    %v3480 = vsel %vm405, %v3467, %v3475
    %v3481 = vsel %vm405, %v3469, %v3477
    %v3482 = vsel %vm405, %v3455, %v3463
    %v3483 = vsel %vm405, %v3457, %v3465
    %v3484 = vsel %vm405, %v3459, %v3467
    %v3485 = vsel %vm405, %v3461, %v3469
    %v3486 = vsel %vm405, %v3447, %v3455
    %v3487 = vsel %vm405, %v3449, %v3457
    %v3488 = vsel %vm405, %v3451, %v3459
    %v3489 = vsel %vm405, %v3453, %v3461
    %v3490 = vsel %vm405, %v3471, %v3447
    %v3491 = vsel %vm405, %v3473, %v3449
    %v3492 = vsel %vm405, %v3475, %v3451
    %v3493 = vsel %vm405, %v3477, %v3453
    %v3494 = vmul.f32 %v3486, %v1564
    %v3495 = vmul.f32 %v3482, %v1568
    %v3496 = vmul.f32 %v3478, %v1572
    %v3497 = vmul.f32 %v3490, %v1576
    %v3498 = vmul.f32 %v3487, %v1564
    %v3499 = vmul.f32 %v3483, %v1568
    %v3500 = vmul.f32 %v3479, %v1572
    %v3501 = vmul.f32 %v3491, %v1576
    %v3502 = vmul.f32 %v3488, %v1564
    %v3503 = vmul.f32 %v3484, %v1568
    %v3504 = vmul.f32 %v3480, %v1572
    %v3505 = vmul.f32 %v3492, %v1576
    %v3506 = vmul.f32 %v3489, %v1564
    %v3507 = vmul.f32 %v3485, %v1568
    %v3508 = vmul.f32 %v3481, %v1572
    %v3509 = vmul.f32 %v3493, %v1576
    %v3510 = vpack.c.bf16 %v3434, %v3430
    %v3511 = vpack.c.bf16 %v3435, %v3431
    %v3512 = vpack.c.bf16 %v3436, %v3432
    %v3513 = vpack.c.bf16 %v3437, %v3433
    %v3514 = vpack.c.bf16 %v3442, %v3438
    %v3515 = vpack.c.bf16 %v3443, %v3439
    %v3516 = vpack.c.bf16 %v3444, %v3440
    %v3517 = vpack.c.bf16 %v3445, %v3441
    %v3518 = vpack.c.bf16 %v3370, %v3366
    %v3519 = vpack.c.bf16 %v3371, %v3367
    %v3520 = vpack.c.bf16 %v3372, %v3368
    %v3521 = vpack.c.bf16 %v3373, %v3369
    %v3522 = vpack.c.bf16 %v3378, %v3374
    %v3523 = vpack.c.bf16 %v3379, %v3375
    %v3524 = vpack.c.bf16 %v3380, %v3376
    %v3525 = vpack.c.bf16 %v3381, %v3377
    %v3526 = vpack.c.bf16 %v3498, %v3494
    %v3527 = vpack.c.bf16 %v3499, %v3495
    %v3528 = vpack.c.bf16 %v3500, %v3496
    %v3529 = vpack.c.bf16 %v3501, %v3497
    %v3530 = vpack.c.bf16 %v3506, %v3502
    %v3531 = vpack.c.bf16 %v3507, %v3503
    %v3532 = vpack.c.bf16 %v3508, %v3504
    %v3533 = vpack.c.bf16 %v3509, %v3505
    %3534 = vmatprep.subr.bf16.mxu0 %v3511
    %3535 = vmatpush1.bf16.msra.mxu0 %v3510
    %3536 = vmatprep.subr.bf16.mxu0 %v3515
    %3537 = vmatpush1.bf16.msra.mxu0 %v3514
    %3538 = vmatprep.subr.bf16.mxu0 %v3519
    %3539 = vmatpush1.bf16.msra.mxu0 %v3518
    %3540 = vmatprep.subr.bf16.mxu0 %v3523
    %3541 = vmatpush1.bf16.msra.mxu0 %v3522
    %3542 = vmatprep.subr.bf16.mxu0 %v3527
    %3543 = vmatpush1.bf16.msra.mxu0 %v3526
    %3544 = vmatprep.subr.bf16.mxu0 %v3531
    %3545 = vmatpush1.bf16.msra.mxu0 %v3530
    %3546 = vmatprep.subr.bf16.mxu0 0
    %3547 = vmatpush1.bf16.msra.mxu0 0
    %3548 = vmatprep.subr.bf16.mxu0 0
    %3549 = vmatpush1.bf16.msra.mxu0 0
    %3550 = vmatprep.subr.bf16.mxu0 0
    %3551 = vmatpush1.bf16.msra.mxu0 0
    %3552 = vmatprep.subr.bf16.mxu0 0
    %3553 = vmatpush1.bf16.msra.mxu0 0
    %3554 = vmatprep.subr.bf16.mxu0 0
    %3555 = vmatpush1.bf16.msra.mxu0 0
    %3556 = vmatprep.subr.bf16.mxu0 0
    %3557 = vmatpush1.bf16.msra.mxu0 0
    %3558 = vmatprep.subr.bf16.mxu0 0
    %3559 = vmatpush1.bf16.msra.mxu0 0
    %3560 = vmatprep.subr.bf16.mxu0 0
    %3561 = vmatpush1.bf16.msra.mxu0 0
    %3562 = vmatprep.subr.bf16.mxu0 0
    %3563 = vmatpush1.bf16.msra.mxu0 0
    %3564 = vmatprep.subr.bf16.mxu0 0
    %3565 = vmatpush1.bf16.msra.mxu0 0
    %3566 = vmatprep.mubr.bf16.mxu0 0
    %3567 = vmatmul.mubr.bf16.gmra.mrb[0].mxu0 %v1664
    %v3568 = vpop.f32.mrb[0].mxu0
    %v3569 = vadd.f32 0.0, %v3568
    %v3570 = vpop.f32.mrb[0].mxu0
    %v3571 = vadd.f32 0.0, %v3570
    %v3572 = vpop.f32.mrb[0].mxu0
    %v3573 = vadd.f32 0.0, %v3572
    %v3574 = vpop.f32.mrb[0].mxu0
    %v3575 = vadd.f32 0.0, %v3574
    %3576 = vmatprep.mubr.bf16.mxu0 0
    %3577 = vmatmul.mubr.bf16.gmra.mrb[0].mxu0 %v1667
    %v3578 = vpop.f32.mrb[0].mxu0
    %v3579 = vadd.f32 0.0, %v3578
    %v3580 = vpop.f32.mrb[0].mxu0
    %v3581 = vadd.f32 0.0, %v3580
    %v3582 = vpop.f32.mrb[0].mxu0
    %v3583 = vadd.f32 0.0, %v3582
    %v3584 = vpop.f32.mrb[0].mxu0
    %v3585 = vadd.f32 0.0, %v3584
    %3586 = vmatprep.mubr.bf16.mxu0 0
    %3587 = vmatmul.mubr.bf16.gmra.mrb[0].mxu0 %v1670
    %v3588 = vpop.f32.mrb[0].mxu0
    %v3589 = vadd.f32 0.0, %v3588
    %v3590 = vpop.f32.mrb[0].mxu0
    %v3591 = vadd.f32 0.0, %v3590
    %v3592 = vpop.f32.mrb[0].mxu0
    %v3593 = vadd.f32 0.0, %v3592
    %v3594 = vpop.f32.mrb[0].mxu0
    %v3595 = vadd.f32 0.0, %v3594
    %3596 = vmatprep.mubr.bf16.mxu0 0
    %3597 = vmatmul.mubr.bf16.gmra.mrb[0].mxu0 %v1673
    %v3598 = vpop.f32.mrb[0].mxu0
    %v3599 = vadd.f32 0.0, %v3598
    %v3600 = vpop.f32.mrb[0].mxu0
    %v3601 = vadd.f32 0.0, %v3600
    %v3602 = vpop.f32.mrb[0].mxu0
    %v3603 = vadd.f32 0.0, %v3602
    %v3604 = vpop.f32.mrb[0].mxu0
    %v3605 = vadd.f32 0.0, %v3604
    %3606 = vmatprep.mubr.bf16.mxu0 0
    %3607 = vmatmul.mubr.bf16.gmra.mrb[0].mxu0 %v1676
    %v3608 = vpop.f32.mrb[0].mxu0
    %v3609 = vadd.f32 0.0, %v3608
    %v3610 = vpop.f32.mrb[0].mxu0
    %v3611 = vadd.f32 0.0, %v3610
    %v3612 = vpop.f32.mrb[0].mxu0
    %v3613 = vadd.f32 0.0, %v3612
    %v3614 = vpop.f32.mrb[0].mxu0
    %v3615 = vadd.f32 0.0, %v3614
    %3616 = vmatprep.mubr.bf16.mxu0 0
    %3617 = vmatmul.mubr.bf16.gmra.mrb[0].mxu0 %v1679
    %v3618 = vpop.f32.mrb[0].mxu0
    %v3619 = vadd.f32 0.0, %v3618
    %v3620 = vpop.f32.mrb[0].mxu0
    %v3621 = vadd.f32 0.0, %v3620
    %v3622 = vpop.f32.mrb[0].mxu0
    %v3623 = vadd.f32 0.0, %v3622
    %v3624 = vpop.f32.mrb[0].mxu0
    %v3625 = vadd.f32 0.0, %v3624
    %3626 = vdwg.mxu0
    %3627 = vmatprep.subr.bf16.mxu0 %v3513
    %3628 = vmatpush1.bf16.msra.mxu0 %v3512
    %3629 = vmatprep.subr.bf16.mxu0 %v3517
    %3630 = vmatpush1.bf16.msra.mxu0 %v3516
    %3631 = vmatprep.subr.bf16.mxu0 %v3521
    %3632 = vmatpush1.bf16.msra.mxu0 %v3520
    %3633 = vmatprep.subr.bf16.mxu0 %v3525
    %3634 = vmatpush1.bf16.msra.mxu0 %v3524
    %3635 = vmatprep.subr.bf16.mxu0 %v3529
    %3636 = vmatpush1.bf16.msra.mxu0 %v3528
    %3637 = vmatprep.subr.bf16.mxu0 %v3533
    %3638 = vmatpush1.bf16.msra.mxu0 %v3532
    %3639 = vmatprep.subr.bf16.mxu0 0
    %3640 = vmatpush1.bf16.msra.mxu0 0
    %3641 = vmatprep.subr.bf16.mxu0 0
    %3642 = vmatpush1.bf16.msra.mxu0 0
    %3643 = vmatprep.subr.bf16.mxu0 0
    %3644 = vmatpush1.bf16.msra.mxu0 0
    %3645 = vmatprep.subr.bf16.mxu0 0
    %3646 = vmatpush1.bf16.msra.mxu0 0
    %3647 = vmatprep.subr.bf16.mxu0 0
    %3648 = vmatpush1.bf16.msra.mxu0 0
    %3649 = vmatprep.subr.bf16.mxu0 0
    %3650 = vmatpush1.bf16.msra.mxu0 0
    %3651 = vmatprep.subr.bf16.mxu0 0
    %3652 = vmatpush1.bf16.msra.mxu0 0
    %3653 = vmatprep.subr.bf16.mxu0 0
    %3654 = vmatpush1.bf16.msra.mxu0 0
    %3655 = vmatprep.subr.bf16.mxu0 0
    %3656 = vmatpush1.bf16.msra.mxu0 0
    %3657 = vmatprep.subr.bf16.mxu0 0
    %3658 = vmatpush1.bf16.msra.mxu0 0
    %3659 = vmatprep.mubr.bf16.mxu0 0
    %3660 = vmatmul.mubr.bf16.gmra.mrb[0].mxu0 %v1664
    %v3661 = vpop.f32.mrb[0].mxu0
    %v3662 = vadd.f32 0.0, %v3661
    %v3663 = vpop.f32.mrb[0].mxu0
    %v3664 = vadd.f32 0.0, %v3663
    %v3665 = vpop.f32.mrb[0].mxu0
    %v3666 = vadd.f32 0.0, %v3665
    %v3667 = vpop.f32.mrb[0].mxu0
    %v3668 = vadd.f32 0.0, %v3667
    %3669 = vmatprep.mubr.bf16.mxu0 0
    %3670 = vmatmul.mubr.bf16.gmra.mrb[0].mxu0 %v1667
    %v3671 = vpop.f32.mrb[0].mxu0
    %v3672 = vadd.f32 0.0, %v3671
    %v3673 = vpop.f32.mrb[0].mxu0
    %v3674 = vadd.f32 0.0, %v3673
    %v3675 = vpop.f32.mrb[0].mxu0
    %v3676 = vadd.f32 0.0, %v3675
    %v3677 = vpop.f32.mrb[0].mxu0
    %v3678 = vadd.f32 0.0, %v3677
    %3679 = vmatprep.mubr.bf16.mxu0 0
    %3680 = vmatmul.mubr.bf16.gmra.mrb[0].mxu0 %v1670
    %v3681 = vpop.f32.mrb[0].mxu0
    %v3682 = vadd.f32 0.0, %v3681
    %v3683 = vpop.f32.mrb[0].mxu0
    %v3684 = vadd.f32 0.0, %v3683
    %v3685 = vpop.f32.mrb[0].mxu0
    %v3686 = vadd.f32 0.0, %v3685
    %v3687 = vpop.f32.mrb[0].mxu0
    %v3688 = vadd.f32 0.0, %v3687
    %3689 = vmatprep.mubr.bf16.mxu0 0
    %3690 = vmatmul.mubr.bf16.gmra.mrb[0].mxu0 %v1673
    %v3691 = vpop.f32.mrb[0].mxu0
    %v3692 = vadd.f32 0.0, %v3691
    %v3693 = vpop.f32.mrb[0].mxu0
    %v3694 = vadd.f32 0.0, %v3693
    %v3695 = vpop.f32.mrb[0].mxu0
    %v3696 = vadd.f32 0.0, %v3695
    %v3697 = vpop.f32.mrb[0].mxu0
    %v3698 = vadd.f32 0.0, %v3697
    %3699 = vmatprep.mubr.bf16.mxu0 0
    %3700 = vmatmul.mubr.bf16.gmra.mrb[0].mxu0 %v1676
    %v3701 = vpop.f32.mrb[0].mxu0
    %v3702 = vadd.f32 0.0, %v3701
    %v3703 = vpop.f32.mrb[0].mxu0
    %v3704 = vadd.f32 0.0, %v3703
    %v3705 = vpop.f32.mrb[0].mxu0
    %v3706 = vadd.f32 0.0, %v3705
    %v3707 = vpop.f32.mrb[0].mxu0
    %v3708 = vadd.f32 0.0, %v3707
    %3709 = vmatprep.mubr.bf16.mxu0 0
    %3710 = vmatmul.mubr.bf16.gmra.mrb[0].mxu0 %v1679
    %v3711 = vpop.f32.mrb[0].mxu0
    %v3712 = vadd.f32 0.0, %v3711
    %v3713 = vpop.f32.mrb[0].mxu0
    %v3714 = vadd.f32 0.0, %v3713
    %v3715 = vpop.f32.mrb[0].mxu0
    %v3716 = vadd.f32 0.0, %v3715
    %v3717 = vpop.f32.mrb[0].mxu0
    %v3718 = vadd.f32 0.0, %v3717
    %3719 = vdwg.mxu0
    %3720 = vrot.lane.b32.xlu0 %v3569, 1
    %v3721 = vpop.permute.xlu0 %3720
    %3722 = vrot.lane.b32.xlu0 %v3573, 1
    %v3723 = vpop.permute.xlu0 %3722
    %3724 = vrot.lane.b32.xlu0 %v3579, 1
    %v3725 = vpop.permute.xlu0 %3724
    %3726 = vrot.lane.b32.xlu0 %v3583, 1
    %v3727 = vpop.permute.xlu0 %3726
    %3728 = vrot.lane.b32.xlu0 %v3571, 1
    %v3729 = vpop.permute.xlu0 %3728
    %3730 = vrot.lane.b32.xlu0 %v3575, 1
    %v3731 = vpop.permute.xlu0 %3730
    %3732 = vrot.lane.b32.xlu0 %v3581, 1
    %v3733 = vpop.permute.xlu0 %3732
    %3734 = vrot.lane.b32.xlu0 %v3585, 1
    %v3735 = vpop.permute.xlu0 %3734
    %3736 = vrot.lane.b32.xlu0 %v3662, 1
    %v3737 = vpop.permute.xlu0 %3736
    %3738 = vrot.lane.b32.xlu0 %v3666, 1
    %v3739 = vpop.permute.xlu0 %3738
    %3740 = vrot.lane.b32.xlu0 %v3672, 1
    %v3741 = vpop.permute.xlu0 %3740
    %3742 = vrot.lane.b32.xlu0 %v3676, 1
    %v3743 = vpop.permute.xlu0 %3742
    %3744 = vrot.lane.b32.xlu0 %v3664, 1
    %v3745 = vpop.permute.xlu0 %3744
    %3746 = vrot.lane.b32.xlu0 %v3668, 1
    %v3747 = vpop.permute.xlu0 %3746
    %3748 = vrot.lane.b32.xlu0 %v3674, 1
    %v3749 = vpop.permute.xlu0 %3748
    %3750 = vrot.lane.b32.xlu0 %v3678, 1
    %v3751 = vpop.permute.xlu0 %3750
    %v3752 = vsel %vm763, %v3737, %v3745
    %v3753 = vsel %vm763, %v3739, %v3747
    %v3754 = vsel %vm763, %v3741, %v3749
    %v3755 = vsel %vm763, %v3743, %v3751
    %v3756 = vsel %vm763, %v3729, %v3737
    %v3757 = vsel %vm763, %v3731, %v3739
    %v3758 = vsel %vm763, %v3733, %v3741
    %v3759 = vsel %vm763, %v3735, %v3743
    %v3760 = vsel %vm763, %v3721, %v3729
    %v3761 = vsel %vm763, %v3723, %v3731
    %v3762 = vsel %vm763, %v3725, %v3733
    %v3763 = vsel %vm763, %v3727, %v3735
    %v3764 = vsel %vm763, %v3745, %v3721
    %v3765 = vsel %vm763, %v3747, %v3723
    %v3766 = vsel %vm763, %v3749, %v3725
    %v3767 = vsel %vm763, %v3751, %v3727
    %v3768 = vmul.f32 %v3764, %v1920
    %v3769 = vmul.f32 %v3760, %v1924
    %v3770 = vmul.f32 %v3756, %v1928
    %v3771 = vmul.f32 %v3752, %v1932
    %v3772 = vmul.f32 %v3765, %v1920
    %v3773 = vmul.f32 %v3761, %v1924
    %v3774 = vmul.f32 %v3757, %v1928
    %v3775 = vmul.f32 %v3753, %v1932
    %v3776 = vmul.f32 %v3766, %v1920
    %v3777 = vmul.f32 %v3762, %v1924
    %v3778 = vmul.f32 %v3758, %v1928
    %v3779 = vmul.f32 %v3754, %v1932
    %v3780 = vmul.f32 %v3767, %v1920
    %v3781 = vmul.f32 %v3763, %v1924
    %v3782 = vmul.f32 %v3759, %v1928
    %v3783 = vmul.f32 %v3755, %v1932
    %v3784 = vadd.f32 %v3768, %v3589
    %v3785 = vadd.f32 %v3769, %v3591
    %v3786 = vadd.f32 %v3770, %v3682
    %v3787 = vadd.f32 %v3771, %v3684
    %v3788 = vadd.f32 %v3772, %v3593
    %v3789 = vadd.f32 %v3773, %v3595
    %v3790 = vadd.f32 %v3774, %v3686
    %v3791 = vadd.f32 %v3775, %v3688
    %v3792 = vadd.f32 %v3776, %v3599
    %v3793 = vadd.f32 %v3777, %v3601
    %v3794 = vadd.f32 %v3778, %v3692
    %v3795 = vadd.f32 %v3779, %v3694
    %v3796 = vadd.f32 %v3780, %v3603
    %v3797 = vadd.f32 %v3781, %v3605
    %v3798 = vadd.f32 %v3782, %v3696
    %v3799 = vadd.f32 %v3783, %v3698
    %3800 = vrot.lane.b32.xlu0 %v3609, 127
    %v3801 = vpop.permute.xlu0 %3800
    %3802 = vrot.lane.b32.xlu0 %v3613, 127
    %v3803 = vpop.permute.xlu0 %3802
    %3804 = vrot.lane.b32.xlu0 %v3619, 127
    %v3805 = vpop.permute.xlu0 %3804
    %3806 = vrot.lane.b32.xlu0 %v3623, 127
    %v3807 = vpop.permute.xlu0 %3806
    %3808 = vrot.lane.b32.xlu0 %v3611, 127
    %v3809 = vpop.permute.xlu0 %3808
    %3810 = vrot.lane.b32.xlu0 %v3615, 127
    %v3811 = vpop.permute.xlu0 %3810
    %3812 = vrot.lane.b32.xlu0 %v3621, 127
    %v3813 = vpop.permute.xlu0 %3812
    %3814 = vrot.lane.b32.xlu0 %v3625, 127
    %v3815 = vpop.permute.xlu0 %3814
    %3816 = vrot.lane.b32.xlu0 %v3702, 127
    %v3817 = vpop.permute.xlu0 %3816
    %3818 = vrot.lane.b32.xlu0 %v3706, 127
    %v3819 = vpop.permute.xlu0 %3818
    %3820 = vrot.lane.b32.xlu0 %v3712, 127
    %v3821 = vpop.permute.xlu0 %3820
    %3822 = vrot.lane.b32.xlu0 %v3716, 127
    %v3823 = vpop.permute.xlu0 %3822
    %3824 = vrot.lane.b32.xlu0 %v3704, 127
    %v3825 = vpop.permute.xlu0 %3824
    %3826 = vrot.lane.b32.xlu0 %v3708, 127
    %v3827 = vpop.permute.xlu0 %3826
    %3828 = vrot.lane.b32.xlu0 %v3714, 127
    %v3829 = vpop.permute.xlu0 %3828
    %3830 = vrot.lane.b32.xlu0 %v3718, 127
    %v3831 = vpop.permute.xlu0 %3830
    %v3832 = vsel %vm866, %v3817, %v3825
    %v3833 = vsel %vm866, %v3819, %v3827
    %v3834 = vsel %vm866, %v3821, %v3829
    %v3835 = vsel %vm866, %v3823, %v3831
    %v3836 = vsel %vm866, %v3809, %v3817
    %v3837 = vsel %vm866, %v3811, %v3819
    %v3838 = vsel %vm866, %v3813, %v3821
    %v3839 = vsel %vm866, %v3815, %v3823
    %v3840 = vsel %vm866, %v3801, %v3809
    %v3841 = vsel %vm866, %v3803, %v3811
    %v3842 = vsel %vm866, %v3805, %v3813
    %v3843 = vsel %vm866, %v3807, %v3815
    %v3844 = vsel %vm866, %v3825, %v3801
    %v3845 = vsel %vm866, %v3827, %v3803
    %v3846 = vsel %vm866, %v3829, %v3805
    %v3847 = vsel %vm866, %v3831, %v3807
    %v3848 = vmul.f32 %v3840, %v2022
    %v3849 = vmul.f32 %v3836, %v2026
    %v3850 = vmul.f32 %v3832, %v2030
    %v3851 = vmul.f32 %v3844, %v2034
    %v3852 = vmul.f32 %v3841, %v2022
    %v3853 = vmul.f32 %v3837, %v2026
    %v3854 = vmul.f32 %v3833, %v2030
    %v3855 = vmul.f32 %v3845, %v2034
    %v3856 = vmul.f32 %v3842, %v2022
    %v3857 = vmul.f32 %v3838, %v2026
    %v3858 = vmul.f32 %v3834, %v2030
    %v3859 = vmul.f32 %v3846, %v2034
    %v3860 = vmul.f32 %v3843, %v2022
    %v3861 = vmul.f32 %v3839, %v2026
    %v3862 = vmul.f32 %v3835, %v2030
    %v3863 = vmul.f32 %v3847, %v2034
    %v3864 = vadd.f32 %v3784, %v3848
    %v3865 = vadd.f32 %v3785, %v3849
    %v3866 = vadd.f32 %v3786, %v3850
    %v3867 = vadd.f32 %v3787, %v3851
    %v3868 = vadd.f32 %v3788, %v3852
    %v3869 = vadd.f32 %v3789, %v3853
    %v3870 = vadd.f32 %v3790, %v3854
    %v3871 = vadd.f32 %v3791, %v3855
    %v3872 = vadd.f32 %v3792, %v3856
    %v3873 = vadd.f32 %v3793, %v3857
    %v3874 = vadd.f32 %v3794, %v3858
    %v3875 = vadd.f32 %v3795, %v3859
    %v3876 = vadd.f32 %v3796, %v3860
    %v3877 = vadd.f32 %v3797, %v3861
    %v3878 = vadd.f32 %v3798, %v3862
    %v3879 = vadd.f32 %v3799, %v3863
    %v3880 = vmul.f32 %v3207, %v2071
    %v3881 = vmul.f32 %v3207, %v2072
    %v3882 = vmul.f32 %v3207, %v2073
    %v3883 = vmul.f32 %v3207, %v2074
    %v3884 = vmul.f32 %v3207, %v2075
    %v3885 = vmul.f32 %v3207, %v2076
    %v3886 = vmul.f32 %v3207, %v2077
    %v3887 = vmul.f32 %v3207, %v2078
    %v3888 = vmul.f32 %v3207, %v2079
    %v3889 = vmul.f32 %v3207, %v2080
    %v3890 = vmul.f32 %v3207, %v2081
    %v3891 = vmul.f32 %v3207, %v2082
    %v3892 = vmul.f32 %v3207, %v2083
    %v3893 = vmul.f32 %v3207, %v2084
    %v3894 = vmul.f32 %v3207, %v2085
    %v3895 = vmul.f32 %v3207, %v2086
    %v3896 = vadd.f32 %v3864, %v3880
    %v3897 = vadd.f32 %v3865, %v3881
    %v3898 = vadd.f32 %v3866, %v3882
    %v3899 = vadd.f32 %v3867, %v3883
    %v3900 = vadd.f32 %v3868, %v3884
    %v3901 = vadd.f32 %v3869, %v3885
    %v3902 = vadd.f32 %v3870, %v3886
    %v3903 = vadd.f32 %v3871, %v3887
    %v3904 = vadd.f32 %v3872, %v3888
    %v3905 = vadd.f32 %v3873, %v3889
    %v3906 = vadd.f32 %v3874, %v3890
    %v3907 = vadd.f32 %v3875, %v3891
    %v3908 = vadd.f32 %v3876, %v3892
    %v3909 = vadd.f32 %v3877, %v3893
    %v3910 = vadd.f32 %v3878, %v3894
    %v3911 = vadd.f32 %v3879, %v3895
    %v3912 = vadd.f32 %v3896, %v2126
    %v3913 = vadd.f32 %v3897, %v2126
    %v3914 = vadd.f32 %v3898, %v2126
    %v3915 = vadd.f32 %v3899, %v2126
    %v3916 = vadd.f32 %v3900, %v2131
    %v3917 = vadd.f32 %v3901, %v2131
    %v3918 = vadd.f32 %v3902, %v2131
    %v3919 = vadd.f32 %v3903, %v2131
    %v3920 = vadd.f32 %v3904, %v2136
    %v3921 = vadd.f32 %v3905, %v2136
    %v3922 = vadd.f32 %v3906, %v2136
    %v3923 = vadd.f32 %v3907, %v2136
    %v3924 = vadd.f32 %v3908, %v2141
    %v3925 = vadd.f32 %v3909, %v2141
    %v3926 = vadd.f32 %v3910, %v2141
    %v3927 = vadd.f32 %v3911, %v2141
    %v3928 = vmax.f32 %v3912, 0.0
    %v3929 = vmax.f32 %v3913, 0.0
    %v3930 = vmax.f32 %v3914, 0.0
    %v3931 = vmax.f32 %v3915, 0.0
    %v3932 = vmax.f32 %v3916, 0.0
    %v3933 = vmax.f32 %v3917, 0.0
    %v3934 = vmax.f32 %v3918, 0.0
    %v3935 = vmax.f32 %v3919, 0.0
    %v3936 = vmax.f32 %v3920, 0.0
    %v3937 = vmax.f32 %v3921, 0.0
    %v3938 = vmax.f32 %v3922, 0.0
    %v3939 = vmax.f32 %v3923, 0.0
    %v3940 = vmax.f32 %v3924, 0.0
    %v3941 = vmax.f32 %v3925, 0.0
    %v3942 = vmax.f32 %v3926, 0.0
    %v3943 = vmax.f32 %v3927, 0.0
    %v3944 = vpack.c.bf16 %v3932, %v3928
    %v3945 = vpack.c.bf16 %v3933, %v3929
    %v3946 = vpack.c.bf16 %v3934, %v3930
    %v3947 = vpack.c.bf16 %v3935, %v3931
    %v3948 = vpack.c.bf16 %v3940, %v3936
    %v3949 = vpack.c.bf16 %v3941, %v3937
    %v3950 = vpack.c.bf16 %v3942, %v3938
    %v3951 = vpack.c.bf16 %v3943, %v3939
    %v3952 = vmul.f32 %v3207, %v2184
    %3954 = vset.pattern.permute.xlu0 0
    %3955 = vperm.xlu0 %3954, %v3952
    %v3956 = vpop.permute.xlu0 %3955
    %3958 = vmatprep.subr.bf16.mxu0 %v3945
    %3959 = vmatpush1.bf16.msra.mxu0 %v3944
    %3960 = vmatprep.subr.bf16.mxu0 %v3949
    %3961 = vmatpush1.bf16.msra.mxu0 %v3948
    %3962 = vmatprep.subr.bf16.mxu0 0
    %3963 = vmatpush1.bf16.msra.mxu0 0
    %3964 = vmatprep.subr.bf16.mxu0 0
    %3965 = vmatpush1.bf16.msra.mxu0 0
    %3966 = vmatprep.subr.bf16.mxu0 0
    %3967 = vmatpush1.bf16.msra.mxu0 0
    %3968 = vmatprep.subr.bf16.mxu0 0
    %3969 = vmatpush1.bf16.msra.mxu0 0
    %3970 = vmatprep.subr.bf16.mxu0 0
    %3971 = vmatpush1.bf16.msra.mxu0 0
    %3972 = vmatprep.subr.bf16.mxu0 0
    %3973 = vmatpush1.bf16.msra.mxu0 0
    %3974 = vmatprep.subr.bf16.mxu0 0
    %3975 = vmatpush1.bf16.msra.mxu0 0
    %3976 = vmatprep.subr.bf16.mxu0 0
    %3977 = vmatpush1.bf16.msra.mxu0 0
    %3978 = vmatprep.subr.bf16.mxu0 0
    %3979 = vmatpush1.bf16.msra.mxu0 0
    %3980 = vmatprep.subr.bf16.mxu0 0
    %3981 = vmatpush1.bf16.msra.mxu0 0
    %3982 = vmatprep.subr.bf16.mxu0 0
    %3983 = vmatpush1.bf16.msra.mxu0 0
    %3984 = vmatprep.subr.bf16.mxu0 0
    %3985 = vmatpush1.bf16.msra.mxu0 0
    %3986 = vmatprep.subr.bf16.mxu0 0
    %3987 = vmatpush1.bf16.msra.mxu0 0
    %3988 = vmatprep.subr.bf16.mxu0 0
    %3989 = vmatpush1.bf16.msra.mxu0 0
    %3990 = vmatprep.mubr.bf16.mxu0 0
    %3991 = vmatmul.mubr.bf16.gmra.mrb[0].mxu0 %v2192
    %v3992 = vpop.f32.mrb[0].mxu0
    %v3993 = vadd.f32 %v3956, %v3992
    %v3994 = vpop.f32.mrb[0].mxu0
    %v3995 = vadd.f32 %v3956, %v3994
    %v3996 = vpop.f32.mrb[0].mxu0
    %v3997 = vpop.f32.mrb[0].mxu0
    %3998 = vdwg.mxu0
    %3999 = vmatprep.subr.bf16.mxu0 %v3947
    %4000 = vmatpush1.bf16.msra.mxu0 %v3946
    %4001 = vmatprep.subr.bf16.mxu0 %v3951
    %4002 = vmatpush1.bf16.msra.mxu0 %v3950
    %4003 = vmatprep.subr.bf16.mxu0 0
    %4004 = vmatpush1.bf16.msra.mxu0 0
    %4005 = vmatprep.subr.bf16.mxu0 0
    %4006 = vmatpush1.bf16.msra.mxu0 0
    %4007 = vmatprep.subr.bf16.mxu0 0
    %4008 = vmatpush1.bf16.msra.mxu0 0
    %4009 = vmatprep.subr.bf16.mxu0 0
    %4010 = vmatpush1.bf16.msra.mxu0 0
    %4011 = vmatprep.subr.bf16.mxu0 0
    %4012 = vmatpush1.bf16.msra.mxu0 0
    %4013 = vmatprep.subr.bf16.mxu0 0
    %4014 = vmatpush1.bf16.msra.mxu0 0
    %4015 = vmatprep.subr.bf16.mxu0 0
    %4016 = vmatpush1.bf16.msra.mxu0 0
    %4017 = vmatprep.subr.bf16.mxu0 0
    %4018 = vmatpush1.bf16.msra.mxu0 0
    %4019 = vmatprep.subr.bf16.mxu0 0
    %4020 = vmatpush1.bf16.msra.mxu0 0
    %4021 = vmatprep.subr.bf16.mxu0 0
    %4022 = vmatpush1.bf16.msra.mxu0 0
    %4023 = vmatprep.subr.bf16.mxu0 0
    %4024 = vmatpush1.bf16.msra.mxu0 0
    %4025 = vmatprep.subr.bf16.mxu0 0
    %4026 = vmatpush1.bf16.msra.mxu0 0
    %4027 = vmatprep.subr.bf16.mxu0 0
    %4028 = vmatpush1.bf16.msra.mxu0 0
    %4029 = vmatprep.subr.bf16.mxu0 0
    %4030 = vmatpush1.bf16.msra.mxu0 0
    %4031 = vmatprep.mubr.bf16.mxu0 0
    %4032 = vmatmul.mubr.bf16.gmra.mrb[0].mxu0 %v2192
    %v4033 = vpop.f32.mrb[0].mxu0
    %v4034 = vadd.f32 %v3956, %v4033
    %v4035 = vpop.f32.mrb[0].mxu0
    %v4036 = vadd.f32 %v3956, %v4035
    %v4037 = vpop.f32.mrb[0].mxu0
    %v4038 = vpop.f32.mrb[0].mxu0
    %4039 = vdwg.mxu0
    %v4040 = vadd.f32 %v3993, %v2280
    %v4041 = vadd.f32 %v3995, %v2280
    %v4042 = vadd.f32 %v4034, %v2280
    %v4043 = vadd.f32 %v4036, %v2280
    %s4044 = smul.f32 %s1170, 0.8888889
    %s4045 = sadd.f32 %s1154, %s4044
    %v4046 = vmul.f32 %v1159, 2.9525986
    %v4047 = vmul.f32 %v1160, 2.9525986
    %v4048 = vmul.f32 %v1161, 2.9525986
    %v4049 = vmul.f32 %v1162, 2.9525986
    %v4050 = vmul.f32 %v2282, -11.595794
    %v4051 = vmul.f32 %v2283, -11.595794
    %v4052 = vmul.f32 %v2284, -11.595794
    %v4053 = vmul.f32 %v2285, -11.595794
    %v4054 = vadd.f32 %v4046, %v4050
    %v4055 = vadd.f32 %v4047, %v4051
    %v4056 = vadd.f32 %v4048, %v4052
    %v4057 = vadd.f32 %v4049, %v4053
    %v4058 = vmul.f32 %v3157, 9.822893
    %v4059 = vmul.f32 %v3158, 9.822893
    %v4060 = vmul.f32 %v3159, 9.822893
    %v4061 = vmul.f32 %v3160, 9.822893
    %v4062 = vadd.f32 %v4054, %v4058
    %v4063 = vadd.f32 %v4055, %v4059
    %v4064 = vadd.f32 %v4056, %v4060
    %v4065 = vadd.f32 %v4057, %v4061
    %v4066 = vmul.f32 %v4040, -0.29080933
    %v4067 = vmul.f32 %v4041, -0.29080933
    %v4068 = vmul.f32 %v4042, -0.29080933
    %v4069 = vmul.f32 %v4043, -0.29080933
    %v4070 = vadd.f32 %v4062, %v4066
    %v4071 = vadd.f32 %v4063, %v4067
    %v4072 = vadd.f32 %v4064, %v4068
    %v4073 = vadd.f32 %v4065, %v4069
    %v4074 = vmul.f32 %v1177, %v4070
    %v4075 = vmul.f32 %v1177, %v4071
    %v4076 = vmul.f32 %v1177, %v4072
    %v4077 = vmul.f32 %v1177, %v4073
    %v4082 = vcombine.low %v4074, %v4075
    %v4083 = vcombine.low %v4076, %v4077
    %v4086 = vadd.f32 %v1157, %v4082
    %v4087 = vadd.f32 %v1158, %v4083
    %v4090 = vcombine.high %v4086, %v4086
    %v4091 = vcombine.high %v4087, %v4087
    %v4094 = vpack.c.bf16 %v4086, %v4086
    %v4095 = vpack.c.bf16 %v4090, %v4090
    %v4096 = vpack.c.bf16 %v4087, %v4087
    %v4097 = vpack.c.bf16 %v4091, %v4091
    %v4098 = vstv %s4045
    %v4099 = vmul.f32 %v4098, %v1206
    %v4100 = vmul.f32 %v4098, %v1207
    %v4101 = vmul.f32 %v4098, %v1208
    %v4102 = vmul.f32 %v4098, %v1209
    %4104 = vset.pattern.permute.xlu0 0
    %4105 = vperm.xlu0 %4104, %v4099
    %v4106 = vpop.permute.xlu0 %4105
    %4109 = vset.pattern.permute.xlu0 0
    %4110 = vperm.xlu0 %4109, %v4100
    %v4111 = vpop.permute.xlu0 %4110
    %4114 = vset.pattern.permute.xlu0 0
    %4115 = vperm.xlu0 %4114, %v4101
    %v4116 = vpop.permute.xlu0 %4115
    %4119 = vset.pattern.permute.xlu0 0
    %4120 = vperm.xlu0 %4119, %v4102
    %v4121 = vpop.permute.xlu0 %4120
    %v4124 = vsel %vm109, %v4094, 0
    %v4127 = vsel %vm109, %v4095, 0
    %v4130 = vsel %vm109, %v4096, 0
    %v4133 = vsel %vm109, %v4097, 0
    %4135 = vmatprep.subr.bf16.mxu0 %v4127
    %4136 = vmatpush1.bf16.msra.mxu0 %v4124
    %4137 = vmatprep.subr.bf16.mxu0 0
    %4138 = vmatpush1.bf16.msra.mxu0 0
    %4139 = vmatprep.subr.bf16.mxu0 0
    %4140 = vmatpush1.bf16.msra.mxu0 0
    %4141 = vmatprep.subr.bf16.mxu0 0
    %4142 = vmatpush1.bf16.msra.mxu0 0
    %4143 = vmatprep.subr.bf16.mxu0 0
    %4144 = vmatpush1.bf16.msra.mxu0 0
    %4145 = vmatprep.subr.bf16.mxu0 0
    %4146 = vmatpush1.bf16.msra.mxu0 0
    %4147 = vmatprep.subr.bf16.mxu0 0
    %4148 = vmatpush1.bf16.msra.mxu0 0
    %4149 = vmatprep.subr.bf16.mxu0 0
    %4150 = vmatpush1.bf16.msra.mxu0 0
    %4151 = vmatprep.subr.bf16.mxu0 0
    %4152 = vmatpush1.bf16.msra.mxu0 0
    %4153 = vmatprep.subr.bf16.mxu0 0
    %4154 = vmatpush1.bf16.msra.mxu0 0
    %4155 = vmatprep.subr.bf16.mxu0 0
    %4156 = vmatpush1.bf16.msra.mxu0 0
    %4157 = vmatprep.subr.bf16.mxu0 0
    %4158 = vmatpush1.bf16.msra.mxu0 0
    %4159 = vmatprep.subr.bf16.mxu0 0
    %4160 = vmatpush1.bf16.msra.mxu0 0
    %4161 = vmatprep.subr.bf16.mxu0 0
    %4162 = vmatpush1.bf16.msra.mxu0 0
    %4163 = vmatprep.subr.bf16.mxu0 0
    %4164 = vmatpush1.bf16.msra.mxu0 0
    %4165 = vmatprep.subr.bf16.mxu0 0
    %4166 = vmatpush1.bf16.msra.mxu0 0
    %4167 = vmatprep.mubr.bf16.mxu0 0
    %4168 = vmatmul.mubr.bf16.gmra.mrb[0].mxu0 %v1246
    %v4169 = vpop.f32.mrb[0].mxu0
    %v4170 = vadd.f32 %v4106, %v4169
    %v4171 = vpop.f32.mrb[0].mxu0
    %v4172 = vadd.f32 %v4106, %v4171
    %v4173 = vpop.f32.mrb[0].mxu0
    %v4174 = vadd.f32 %v4111, %v4173
    %v4175 = vpop.f32.mrb[0].mxu0
    %v4176 = vadd.f32 %v4111, %v4175
    %4177 = vmatprep.mubr.bf16.mxu0 0
    %4178 = vmatmul.mubr.bf16.gmra.mrb[0].mxu0 %v1249
    %v4179 = vpop.f32.mrb[0].mxu0
    %v4180 = vadd.f32 %v4116, %v4179
    %v4181 = vpop.f32.mrb[0].mxu0
    %v4182 = vadd.f32 %v4116, %v4181
    %v4183 = vpop.f32.mrb[0].mxu0
    %v4184 = vadd.f32 %v4121, %v4183
    %v4185 = vpop.f32.mrb[0].mxu0
    %v4186 = vadd.f32 %v4121, %v4185
    %4187 = vdwg.mxu0
    %4188 = vmatprep.subr.bf16.mxu0 %v4133
    %4189 = vmatpush1.bf16.msra.mxu0 %v4130
    %4190 = vmatprep.subr.bf16.mxu0 0
    %4191 = vmatpush1.bf16.msra.mxu0 0
    %4192 = vmatprep.subr.bf16.mxu0 0
    %4193 = vmatpush1.bf16.msra.mxu0 0
    %4194 = vmatprep.subr.bf16.mxu0 0
    %4195 = vmatpush1.bf16.msra.mxu0 0
    %4196 = vmatprep.subr.bf16.mxu0 0
    %4197 = vmatpush1.bf16.msra.mxu0 0
    %4198 = vmatprep.subr.bf16.mxu0 0
    %4199 = vmatpush1.bf16.msra.mxu0 0
    %4200 = vmatprep.subr.bf16.mxu0 0
    %4201 = vmatpush1.bf16.msra.mxu0 0
    %4202 = vmatprep.subr.bf16.mxu0 0
    %4203 = vmatpush1.bf16.msra.mxu0 0
    %4204 = vmatprep.subr.bf16.mxu0 0
    %4205 = vmatpush1.bf16.msra.mxu0 0
    %4206 = vmatprep.subr.bf16.mxu0 0
    %4207 = vmatpush1.bf16.msra.mxu0 0
    %4208 = vmatprep.subr.bf16.mxu0 0
    %4209 = vmatpush1.bf16.msra.mxu0 0
    %4210 = vmatprep.subr.bf16.mxu0 0
    %4211 = vmatpush1.bf16.msra.mxu0 0
    %4212 = vmatprep.subr.bf16.mxu0 0
    %4213 = vmatpush1.bf16.msra.mxu0 0
    %4214 = vmatprep.subr.bf16.mxu0 0
    %4215 = vmatpush1.bf16.msra.mxu0 0
    %4216 = vmatprep.subr.bf16.mxu0 0
    %4217 = vmatpush1.bf16.msra.mxu0 0
    %4218 = vmatprep.subr.bf16.mxu0 0
    %4219 = vmatpush1.bf16.msra.mxu0 0
    %4220 = vmatprep.mubr.bf16.mxu0 0
    %4221 = vmatmul.mubr.bf16.gmra.mrb[0].mxu0 %v1246
    %v4222 = vpop.f32.mrb[0].mxu0
    %v4223 = vadd.f32 %v4106, %v4222
    %v4224 = vpop.f32.mrb[0].mxu0
    %v4225 = vadd.f32 %v4106, %v4224
    %v4226 = vpop.f32.mrb[0].mxu0
    %v4227 = vadd.f32 %v4111, %v4226
    %v4228 = vpop.f32.mrb[0].mxu0
    %v4229 = vadd.f32 %v4111, %v4228
    %4230 = vmatprep.mubr.bf16.mxu0 0
    %4231 = vmatmul.mubr.bf16.gmra.mrb[0].mxu0 %v1249
    %v4232 = vpop.f32.mrb[0].mxu0
    %v4233 = vadd.f32 %v4116, %v4232
    %v4234 = vpop.f32.mrb[0].mxu0
    %v4235 = vadd.f32 %v4116, %v4234
    %v4236 = vpop.f32.mrb[0].mxu0
    %v4237 = vadd.f32 %v4121, %v4236
    %v4238 = vpop.f32.mrb[0].mxu0
    %v4239 = vadd.f32 %v4121, %v4238
    %4240 = vdwg.mxu0
    %v4241 = vadd.f32 %v4170, %v1376
    %v4242 = vadd.f32 %v4172, %v1376
    %v4243 = vadd.f32 %v4223, %v1376
    %v4244 = vadd.f32 %v4225, %v1376
    %v4245 = vadd.f32 %v4174, %v1381
    %v4246 = vadd.f32 %v4176, %v1381
    %v4247 = vadd.f32 %v4227, %v1381
    %v4248 = vadd.f32 %v4229, %v1381
    %v4249 = vadd.f32 %v4180, %v1386
    %v4250 = vadd.f32 %v4182, %v1386
    %v4251 = vadd.f32 %v4233, %v1386
    %v4252 = vadd.f32 %v4235, %v1386
    %v4253 = vadd.f32 %v4184, %v1391
    %v4254 = vadd.f32 %v4186, %v1391
    %v4255 = vadd.f32 %v4237, %v1391
    %v4256 = vadd.f32 %v4239, %v1391
    %v4257 = vmax.f32 %v4241, 0.0
    %v4258 = vmax.f32 %v4242, 0.0
    %v4259 = vmax.f32 %v4243, 0.0
    %v4260 = vmax.f32 %v4244, 0.0
    %v4261 = vmax.f32 %v4245, 0.0
    %v4262 = vmax.f32 %v4246, 0.0
    %v4263 = vmax.f32 %v4247, 0.0
    %v4264 = vmax.f32 %v4248, 0.0
    %v4265 = vmax.f32 %v4249, 0.0
    %v4266 = vmax.f32 %v4250, 0.0
    %v4267 = vmax.f32 %v4251, 0.0
    %v4268 = vmax.f32 %v4252, 0.0
    %v4269 = vmax.f32 %v4253, 0.0
    %v4270 = vmax.f32 %v4254, 0.0
    %v4271 = vmax.f32 %v4255, 0.0
    %v4272 = vmax.f32 %v4256, 0.0
    %4273 = vrot.lane.b32.xlu0 %v4257, 16
    %v4274 = vpop.permute.xlu0 %4273
    %4275 = vrot.lane.b32.xlu0 %v4261, 16
    %v4276 = vpop.permute.xlu0 %4275
    %4277 = vrot.lane.b32.xlu0 %v4265, 16
    %v4278 = vpop.permute.xlu0 %4277
    %4279 = vrot.lane.b32.xlu0 %v4269, 16
    %v4280 = vpop.permute.xlu0 %4279
    %4281 = vrot.lane.b32.xlu0 %v4258, 16
    %v4282 = vpop.permute.xlu0 %4281
    %4283 = vrot.lane.b32.xlu0 %v4262, 16
    %v4284 = vpop.permute.xlu0 %4283
    %4285 = vrot.lane.b32.xlu0 %v4266, 16
    %v4286 = vpop.permute.xlu0 %4285
    %4287 = vrot.lane.b32.xlu0 %v4270, 16
    %v4288 = vpop.permute.xlu0 %4287
    %4289 = vrot.lane.b32.xlu0 %v4259, 16
    %v4290 = vpop.permute.xlu0 %4289
    %4291 = vrot.lane.b32.xlu0 %v4263, 16
    %v4292 = vpop.permute.xlu0 %4291
    %4293 = vrot.lane.b32.xlu0 %v4267, 16
    %v4294 = vpop.permute.xlu0 %4293
    %4295 = vrot.lane.b32.xlu0 %v4271, 16
    %v4296 = vpop.permute.xlu0 %4295
    %4297 = vrot.lane.b32.xlu0 %v4260, 16
    %v4298 = vpop.permute.xlu0 %4297
    %4299 = vrot.lane.b32.xlu0 %v4264, 16
    %v4300 = vpop.permute.xlu0 %4299
    %4301 = vrot.lane.b32.xlu0 %v4268, 16
    %v4302 = vpop.permute.xlu0 %4301
    %4303 = vrot.lane.b32.xlu0 %v4272, 16
    %v4304 = vpop.permute.xlu0 %4303
    %v4305 = vsel %vm318, %v4290, %v4298
    %v4306 = vsel %vm318, %v4292, %v4300
    %v4307 = vsel %vm318, %v4294, %v4302
    %v4308 = vsel %vm318, %v4296, %v4304
    %v4309 = vsel %vm318, %v4282, %v4290
    %v4310 = vsel %vm318, %v4284, %v4292
    %v4311 = vsel %vm318, %v4286, %v4294
    %v4312 = vsel %vm318, %v4288, %v4296
    %v4313 = vsel %vm318, %v4274, %v4282
    %v4314 = vsel %vm318, %v4276, %v4284
    %v4315 = vsel %vm318, %v4278, %v4286
    %v4316 = vsel %vm318, %v4280, %v4288
    %v4317 = vsel %vm318, %v4298, %v4274
    %v4318 = vsel %vm318, %v4300, %v4276
    %v4319 = vsel %vm318, %v4302, %v4278
    %v4320 = vsel %vm318, %v4304, %v4280
    %v4321 = vmul.f32 %v4317, %v1478
    %v4322 = vmul.f32 %v4313, %v1482
    %v4323 = vmul.f32 %v4309, %v1486
    %v4324 = vmul.f32 %v4305, %v1490
    %v4325 = vmul.f32 %v4318, %v1478
    %v4326 = vmul.f32 %v4314, %v1482
    %v4327 = vmul.f32 %v4310, %v1486
    %v4328 = vmul.f32 %v4306, %v1490
    %v4329 = vmul.f32 %v4319, %v1478
    %v4330 = vmul.f32 %v4315, %v1482
    %v4331 = vmul.f32 %v4311, %v1486
    %v4332 = vmul.f32 %v4307, %v1490
    %v4333 = vmul.f32 %v4320, %v1478
    %v4334 = vmul.f32 %v4316, %v1482
    %v4335 = vmul.f32 %v4312, %v1486
    %v4336 = vmul.f32 %v4308, %v1490
    %4337 = vrot.lane.b32.xlu0 %v4257, 112
    %v4338 = vpop.permute.xlu0 %4337
    %4339 = vrot.lane.b32.xlu0 %v4261, 112
    %v4340 = vpop.permute.xlu0 %4339
    %4341 = vrot.lane.b32.xlu0 %v4265, 112
    %v4342 = vpop.permute.xlu0 %4341
    %4343 = vrot.lane.b32.xlu0 %v4269, 112
    %v4344 = vpop.permute.xlu0 %4343
    %4345 = vrot.lane.b32.xlu0 %v4258, 112
    %v4346 = vpop.permute.xlu0 %4345
    %4347 = vrot.lane.b32.xlu0 %v4262, 112
    %v4348 = vpop.permute.xlu0 %4347
    %4349 = vrot.lane.b32.xlu0 %v4266, 112
    %v4350 = vpop.permute.xlu0 %4349
    %4351 = vrot.lane.b32.xlu0 %v4270, 112
    %v4352 = vpop.permute.xlu0 %4351
    %4353 = vrot.lane.b32.xlu0 %v4259, 112
    %v4354 = vpop.permute.xlu0 %4353
    %4355 = vrot.lane.b32.xlu0 %v4263, 112
    %v4356 = vpop.permute.xlu0 %4355
    %4357 = vrot.lane.b32.xlu0 %v4267, 112
    %v4358 = vpop.permute.xlu0 %4357
    %4359 = vrot.lane.b32.xlu0 %v4271, 112
    %v4360 = vpop.permute.xlu0 %4359
    %4361 = vrot.lane.b32.xlu0 %v4260, 112
    %v4362 = vpop.permute.xlu0 %4361
    %4363 = vrot.lane.b32.xlu0 %v4264, 112
    %v4364 = vpop.permute.xlu0 %4363
    %4365 = vrot.lane.b32.xlu0 %v4268, 112
    %v4366 = vpop.permute.xlu0 %4365
    %4367 = vrot.lane.b32.xlu0 %v4272, 112
    %v4368 = vpop.permute.xlu0 %4367
    %v4369 = vsel %vm405, %v4354, %v4362
    %v4370 = vsel %vm405, %v4356, %v4364
    %v4371 = vsel %vm405, %v4358, %v4366
    %v4372 = vsel %vm405, %v4360, %v4368
    %v4373 = vsel %vm405, %v4346, %v4354
    %v4374 = vsel %vm405, %v4348, %v4356
    %v4375 = vsel %vm405, %v4350, %v4358
    %v4376 = vsel %vm405, %v4352, %v4360
    %v4377 = vsel %vm405, %v4338, %v4346
    %v4378 = vsel %vm405, %v4340, %v4348
    %v4379 = vsel %vm405, %v4342, %v4350
    %v4380 = vsel %vm405, %v4344, %v4352
    %v4381 = vsel %vm405, %v4362, %v4338
    %v4382 = vsel %vm405, %v4364, %v4340
    %v4383 = vsel %vm405, %v4366, %v4342
    %v4384 = vsel %vm405, %v4368, %v4344
    %v4385 = vmul.f32 %v4377, %v1564
    %v4386 = vmul.f32 %v4373, %v1568
    %v4387 = vmul.f32 %v4369, %v1572
    %v4388 = vmul.f32 %v4381, %v1576
    %v4389 = vmul.f32 %v4378, %v1564
    %v4390 = vmul.f32 %v4374, %v1568
    %v4391 = vmul.f32 %v4370, %v1572
    %v4392 = vmul.f32 %v4382, %v1576
    %v4393 = vmul.f32 %v4379, %v1564
    %v4394 = vmul.f32 %v4375, %v1568
    %v4395 = vmul.f32 %v4371, %v1572
    %v4396 = vmul.f32 %v4383, %v1576
    %v4397 = vmul.f32 %v4380, %v1564
    %v4398 = vmul.f32 %v4376, %v1568
    %v4399 = vmul.f32 %v4372, %v1572
    %v4400 = vmul.f32 %v4384, %v1576
    %v4401 = vpack.c.bf16 %v4325, %v4321
    %v4402 = vpack.c.bf16 %v4326, %v4322
    %v4403 = vpack.c.bf16 %v4327, %v4323
    %v4404 = vpack.c.bf16 %v4328, %v4324
    %v4405 = vpack.c.bf16 %v4333, %v4329
    %v4406 = vpack.c.bf16 %v4334, %v4330
    %v4407 = vpack.c.bf16 %v4335, %v4331
    %v4408 = vpack.c.bf16 %v4336, %v4332
    %v4409 = vpack.c.bf16 %v4261, %v4257
    %v4410 = vpack.c.bf16 %v4262, %v4258
    %v4411 = vpack.c.bf16 %v4263, %v4259
    %v4412 = vpack.c.bf16 %v4264, %v4260
    %v4413 = vpack.c.bf16 %v4269, %v4265
    %v4414 = vpack.c.bf16 %v4270, %v4266
    %v4415 = vpack.c.bf16 %v4271, %v4267
    %v4416 = vpack.c.bf16 %v4272, %v4268
    %v4417 = vpack.c.bf16 %v4389, %v4385
    %v4418 = vpack.c.bf16 %v4390, %v4386
    %v4419 = vpack.c.bf16 %v4391, %v4387
    %v4420 = vpack.c.bf16 %v4392, %v4388
    %v4421 = vpack.c.bf16 %v4397, %v4393
    %v4422 = vpack.c.bf16 %v4398, %v4394
    %v4423 = vpack.c.bf16 %v4399, %v4395
    %v4424 = vpack.c.bf16 %v4400, %v4396
    %4425 = vmatprep.subr.bf16.mxu0 %v4402
    %4426 = vmatpush1.bf16.msra.mxu0 %v4401
    %4427 = vmatprep.subr.bf16.mxu0 %v4406
    %4428 = vmatpush1.bf16.msra.mxu0 %v4405
    %4429 = vmatprep.subr.bf16.mxu0 %v4410
    %4430 = vmatpush1.bf16.msra.mxu0 %v4409
    %4431 = vmatprep.subr.bf16.mxu0 %v4414
    %4432 = vmatpush1.bf16.msra.mxu0 %v4413
    %4433 = vmatprep.subr.bf16.mxu0 %v4418
    %4434 = vmatpush1.bf16.msra.mxu0 %v4417
    %4435 = vmatprep.subr.bf16.mxu0 %v4422
    %4436 = vmatpush1.bf16.msra.mxu0 %v4421
    %4437 = vmatprep.subr.bf16.mxu0 0
    %4438 = vmatpush1.bf16.msra.mxu0 0
    %4439 = vmatprep.subr.bf16.mxu0 0
    %4440 = vmatpush1.bf16.msra.mxu0 0
    %4441 = vmatprep.subr.bf16.mxu0 0
    %4442 = vmatpush1.bf16.msra.mxu0 0
    %4443 = vmatprep.subr.bf16.mxu0 0
    %4444 = vmatpush1.bf16.msra.mxu0 0
    %4445 = vmatprep.subr.bf16.mxu0 0
    %4446 = vmatpush1.bf16.msra.mxu0 0
    %4447 = vmatprep.subr.bf16.mxu0 0
    %4448 = vmatpush1.bf16.msra.mxu0 0
    %4449 = vmatprep.subr.bf16.mxu0 0
    %4450 = vmatpush1.bf16.msra.mxu0 0
    %4451 = vmatprep.subr.bf16.mxu0 0
    %4452 = vmatpush1.bf16.msra.mxu0 0
    %4453 = vmatprep.subr.bf16.mxu0 0
    %4454 = vmatpush1.bf16.msra.mxu0 0
    %4455 = vmatprep.subr.bf16.mxu0 0
    %4456 = vmatpush1.bf16.msra.mxu0 0
    %4457 = vmatprep.mubr.bf16.mxu0 0
    %4458 = vmatmul.mubr.bf16.gmra.mrb[0].mxu0 %v1664
    %v4459 = vpop.f32.mrb[0].mxu0
    %v4460 = vadd.f32 0.0, %v4459
    %v4461 = vpop.f32.mrb[0].mxu0
    %v4462 = vadd.f32 0.0, %v4461
    %v4463 = vpop.f32.mrb[0].mxu0
    %v4464 = vadd.f32 0.0, %v4463
    %v4465 = vpop.f32.mrb[0].mxu0
    %v4466 = vadd.f32 0.0, %v4465
    %4467 = vmatprep.mubr.bf16.mxu0 0
    %4468 = vmatmul.mubr.bf16.gmra.mrb[0].mxu0 %v1667
    %v4469 = vpop.f32.mrb[0].mxu0
    %v4470 = vadd.f32 0.0, %v4469
    %v4471 = vpop.f32.mrb[0].mxu0
    %v4472 = vadd.f32 0.0, %v4471
    %v4473 = vpop.f32.mrb[0].mxu0
    %v4474 = vadd.f32 0.0, %v4473
    %v4475 = vpop.f32.mrb[0].mxu0
    %v4476 = vadd.f32 0.0, %v4475
    %4477 = vmatprep.mubr.bf16.mxu0 0
    %4478 = vmatmul.mubr.bf16.gmra.mrb[0].mxu0 %v1670
    %v4479 = vpop.f32.mrb[0].mxu0
    %v4480 = vadd.f32 0.0, %v4479
    %v4481 = vpop.f32.mrb[0].mxu0
    %v4482 = vadd.f32 0.0, %v4481
    %v4483 = vpop.f32.mrb[0].mxu0
    %v4484 = vadd.f32 0.0, %v4483
    %v4485 = vpop.f32.mrb[0].mxu0
    %v4486 = vadd.f32 0.0, %v4485
    %4487 = vmatprep.mubr.bf16.mxu0 0
    %4488 = vmatmul.mubr.bf16.gmra.mrb[0].mxu0 %v1673
    %v4489 = vpop.f32.mrb[0].mxu0
    %v4490 = vadd.f32 0.0, %v4489
    %v4491 = vpop.f32.mrb[0].mxu0
    %v4492 = vadd.f32 0.0, %v4491
    %v4493 = vpop.f32.mrb[0].mxu0
    %v4494 = vadd.f32 0.0, %v4493
    %v4495 = vpop.f32.mrb[0].mxu0
    %v4496 = vadd.f32 0.0, %v4495
    %4497 = vmatprep.mubr.bf16.mxu0 0
    %4498 = vmatmul.mubr.bf16.gmra.mrb[0].mxu0 %v1676
    %v4499 = vpop.f32.mrb[0].mxu0
    %v4500 = vadd.f32 0.0, %v4499
    %v4501 = vpop.f32.mrb[0].mxu0
    %v4502 = vadd.f32 0.0, %v4501
    %v4503 = vpop.f32.mrb[0].mxu0
    %v4504 = vadd.f32 0.0, %v4503
    %v4505 = vpop.f32.mrb[0].mxu0
    %v4506 = vadd.f32 0.0, %v4505
    %4507 = vmatprep.mubr.bf16.mxu0 0
    %4508 = vmatmul.mubr.bf16.gmra.mrb[0].mxu0 %v1679
    %v4509 = vpop.f32.mrb[0].mxu0
    %v4510 = vadd.f32 0.0, %v4509
    %v4511 = vpop.f32.mrb[0].mxu0
    %v4512 = vadd.f32 0.0, %v4511
    %v4513 = vpop.f32.mrb[0].mxu0
    %v4514 = vadd.f32 0.0, %v4513
    %v4515 = vpop.f32.mrb[0].mxu0
    %v4516 = vadd.f32 0.0, %v4515
    %4517 = vdwg.mxu0
    %4518 = vmatprep.subr.bf16.mxu0 %v4404
    %4519 = vmatpush1.bf16.msra.mxu0 %v4403
    %4520 = vmatprep.subr.bf16.mxu0 %v4408
    %4521 = vmatpush1.bf16.msra.mxu0 %v4407
    %4522 = vmatprep.subr.bf16.mxu0 %v4412
    %4523 = vmatpush1.bf16.msra.mxu0 %v4411
    %4524 = vmatprep.subr.bf16.mxu0 %v4416
    %4525 = vmatpush1.bf16.msra.mxu0 %v4415
    %4526 = vmatprep.subr.bf16.mxu0 %v4420
    %4527 = vmatpush1.bf16.msra.mxu0 %v4419
    %4528 = vmatprep.subr.bf16.mxu0 %v4424
    %4529 = vmatpush1.bf16.msra.mxu0 %v4423
    %4530 = vmatprep.subr.bf16.mxu0 0
    %4531 = vmatpush1.bf16.msra.mxu0 0
    %4532 = vmatprep.subr.bf16.mxu0 0
    %4533 = vmatpush1.bf16.msra.mxu0 0
    %4534 = vmatprep.subr.bf16.mxu0 0
    %4535 = vmatpush1.bf16.msra.mxu0 0
    %4536 = vmatprep.subr.bf16.mxu0 0
    %4537 = vmatpush1.bf16.msra.mxu0 0
    %4538 = vmatprep.subr.bf16.mxu0 0
    %4539 = vmatpush1.bf16.msra.mxu0 0
    %4540 = vmatprep.subr.bf16.mxu0 0
    %4541 = vmatpush1.bf16.msra.mxu0 0
    %4542 = vmatprep.subr.bf16.mxu0 0
    %4543 = vmatpush1.bf16.msra.mxu0 0
    %4544 = vmatprep.subr.bf16.mxu0 0
    %4545 = vmatpush1.bf16.msra.mxu0 0
    %4546 = vmatprep.subr.bf16.mxu0 0
    %4547 = vmatpush1.bf16.msra.mxu0 0
    %4548 = vmatprep.subr.bf16.mxu0 0
    %4549 = vmatpush1.bf16.msra.mxu0 0
    %4550 = vmatprep.mubr.bf16.mxu0 0
    %4551 = vmatmul.mubr.bf16.gmra.mrb[0].mxu0 %v1664
    %v4552 = vpop.f32.mrb[0].mxu0
    %v4553 = vadd.f32 0.0, %v4552
    %v4554 = vpop.f32.mrb[0].mxu0
    %v4555 = vadd.f32 0.0, %v4554
    %v4556 = vpop.f32.mrb[0].mxu0
    %v4557 = vadd.f32 0.0, %v4556
    %v4558 = vpop.f32.mrb[0].mxu0
    %v4559 = vadd.f32 0.0, %v4558
    %4560 = vmatprep.mubr.bf16.mxu0 0
    %4561 = vmatmul.mubr.bf16.gmra.mrb[0].mxu0 %v1667
    %v4562 = vpop.f32.mrb[0].mxu0
    %v4563 = vadd.f32 0.0, %v4562
    %v4564 = vpop.f32.mrb[0].mxu0
    %v4565 = vadd.f32 0.0, %v4564
    %v4566 = vpop.f32.mrb[0].mxu0
    %v4567 = vadd.f32 0.0, %v4566
    %v4568 = vpop.f32.mrb[0].mxu0
    %v4569 = vadd.f32 0.0, %v4568
    %4570 = vmatprep.mubr.bf16.mxu0 0
    %4571 = vmatmul.mubr.bf16.gmra.mrb[0].mxu0 %v1670
    %v4572 = vpop.f32.mrb[0].mxu0
    %v4573 = vadd.f32 0.0, %v4572
    %v4574 = vpop.f32.mrb[0].mxu0
    %v4575 = vadd.f32 0.0, %v4574
    %v4576 = vpop.f32.mrb[0].mxu0
    %v4577 = vadd.f32 0.0, %v4576
    %v4578 = vpop.f32.mrb[0].mxu0
    %v4579 = vadd.f32 0.0, %v4578
    %4580 = vmatprep.mubr.bf16.mxu0 0
    %4581 = vmatmul.mubr.bf16.gmra.mrb[0].mxu0 %v1673
    %v4582 = vpop.f32.mrb[0].mxu0
    %v4583 = vadd.f32 0.0, %v4582
    %v4584 = vpop.f32.mrb[0].mxu0
    %v4585 = vadd.f32 0.0, %v4584
    %v4586 = vpop.f32.mrb[0].mxu0
    %v4587 = vadd.f32 0.0, %v4586
    %v4588 = vpop.f32.mrb[0].mxu0
    %v4589 = vadd.f32 0.0, %v4588
    %4590 = vmatprep.mubr.bf16.mxu0 0
    %4591 = vmatmul.mubr.bf16.gmra.mrb[0].mxu0 %v1676
    %v4592 = vpop.f32.mrb[0].mxu0
    %v4593 = vadd.f32 0.0, %v4592
    %v4594 = vpop.f32.mrb[0].mxu0
    %v4595 = vadd.f32 0.0, %v4594
    %v4596 = vpop.f32.mrb[0].mxu0
    %v4597 = vadd.f32 0.0, %v4596
    %v4598 = vpop.f32.mrb[0].mxu0
    %v4599 = vadd.f32 0.0, %v4598
    %4600 = vmatprep.mubr.bf16.mxu0 0
    %4601 = vmatmul.mubr.bf16.gmra.mrb[0].mxu0 %v1679
    %v4602 = vpop.f32.mrb[0].mxu0
    %v4603 = vadd.f32 0.0, %v4602
    %v4604 = vpop.f32.mrb[0].mxu0
    %v4605 = vadd.f32 0.0, %v4604
    %v4606 = vpop.f32.mrb[0].mxu0
    %v4607 = vadd.f32 0.0, %v4606
    %v4608 = vpop.f32.mrb[0].mxu0
    %v4609 = vadd.f32 0.0, %v4608
    %4610 = vdwg.mxu0
    %4611 = vrot.lane.b32.xlu0 %v4460, 1
    %v4612 = vpop.permute.xlu0 %4611
    %4613 = vrot.lane.b32.xlu0 %v4464, 1
    %v4614 = vpop.permute.xlu0 %4613
    %4615 = vrot.lane.b32.xlu0 %v4470, 1
    %v4616 = vpop.permute.xlu0 %4615
    %4617 = vrot.lane.b32.xlu0 %v4474, 1
    %v4618 = vpop.permute.xlu0 %4617
    %4619 = vrot.lane.b32.xlu0 %v4462, 1
    %v4620 = vpop.permute.xlu0 %4619
    %4621 = vrot.lane.b32.xlu0 %v4466, 1
    %v4622 = vpop.permute.xlu0 %4621
    %4623 = vrot.lane.b32.xlu0 %v4472, 1
    %v4624 = vpop.permute.xlu0 %4623
    %4625 = vrot.lane.b32.xlu0 %v4476, 1
    %v4626 = vpop.permute.xlu0 %4625
    %4627 = vrot.lane.b32.xlu0 %v4553, 1
    %v4628 = vpop.permute.xlu0 %4627
    %4629 = vrot.lane.b32.xlu0 %v4557, 1
    %v4630 = vpop.permute.xlu0 %4629
    %4631 = vrot.lane.b32.xlu0 %v4563, 1
    %v4632 = vpop.permute.xlu0 %4631
    %4633 = vrot.lane.b32.xlu0 %v4567, 1
    %v4634 = vpop.permute.xlu0 %4633
    %4635 = vrot.lane.b32.xlu0 %v4555, 1
    %v4636 = vpop.permute.xlu0 %4635
    %4637 = vrot.lane.b32.xlu0 %v4559, 1
    %v4638 = vpop.permute.xlu0 %4637
    %4639 = vrot.lane.b32.xlu0 %v4565, 1
    %v4640 = vpop.permute.xlu0 %4639
    %4641 = vrot.lane.b32.xlu0 %v4569, 1
    %v4642 = vpop.permute.xlu0 %4641
    %v4643 = vsel %vm763, %v4628, %v4636
    %v4644 = vsel %vm763, %v4630, %v4638
    %v4645 = vsel %vm763, %v4632, %v4640
    %v4646 = vsel %vm763, %v4634, %v4642
    %v4647 = vsel %vm763, %v4620, %v4628
    %v4648 = vsel %vm763, %v4622, %v4630
    %v4649 = vsel %vm763, %v4624, %v4632
    %v4650 = vsel %vm763, %v4626, %v4634
    %v4651 = vsel %vm763, %v4612, %v4620
    %v4652 = vsel %vm763, %v4614, %v4622
    %v4653 = vsel %vm763, %v4616, %v4624
    %v4654 = vsel %vm763, %v4618, %v4626
    %v4655 = vsel %vm763, %v4636, %v4612
    %v4656 = vsel %vm763, %v4638, %v4614
    %v4657 = vsel %vm763, %v4640, %v4616
    %v4658 = vsel %vm763, %v4642, %v4618
    %v4659 = vmul.f32 %v4655, %v1920
    %v4660 = vmul.f32 %v4651, %v1924
    %v4661 = vmul.f32 %v4647, %v1928
    %v4662 = vmul.f32 %v4643, %v1932
    %v4663 = vmul.f32 %v4656, %v1920
    %v4664 = vmul.f32 %v4652, %v1924
    %v4665 = vmul.f32 %v4648, %v1928
    %v4666 = vmul.f32 %v4644, %v1932
    %v4667 = vmul.f32 %v4657, %v1920
    %v4668 = vmul.f32 %v4653, %v1924
    %v4669 = vmul.f32 %v4649, %v1928
    %v4670 = vmul.f32 %v4645, %v1932
    %v4671 = vmul.f32 %v4658, %v1920
    %v4672 = vmul.f32 %v4654, %v1924
    %v4673 = vmul.f32 %v4650, %v1928
    %v4674 = vmul.f32 %v4646, %v1932
    %v4675 = vadd.f32 %v4659, %v4480
    %v4676 = vadd.f32 %v4660, %v4482
    %v4677 = vadd.f32 %v4661, %v4573
    %v4678 = vadd.f32 %v4662, %v4575
    %v4679 = vadd.f32 %v4663, %v4484
    %v4680 = vadd.f32 %v4664, %v4486
    %v4681 = vadd.f32 %v4665, %v4577
    %v4682 = vadd.f32 %v4666, %v4579
    %v4683 = vadd.f32 %v4667, %v4490
    %v4684 = vadd.f32 %v4668, %v4492
    %v4685 = vadd.f32 %v4669, %v4583
    %v4686 = vadd.f32 %v4670, %v4585
    %v4687 = vadd.f32 %v4671, %v4494
    %v4688 = vadd.f32 %v4672, %v4496
    %v4689 = vadd.f32 %v4673, %v4587
    %v4690 = vadd.f32 %v4674, %v4589
    %4691 = vrot.lane.b32.xlu0 %v4500, 127
    %v4692 = vpop.permute.xlu0 %4691
    %4693 = vrot.lane.b32.xlu0 %v4504, 127
    %v4694 = vpop.permute.xlu0 %4693
    %4695 = vrot.lane.b32.xlu0 %v4510, 127
    %v4696 = vpop.permute.xlu0 %4695
    %4697 = vrot.lane.b32.xlu0 %v4514, 127
    %v4698 = vpop.permute.xlu0 %4697
    %4699 = vrot.lane.b32.xlu0 %v4502, 127
    %v4700 = vpop.permute.xlu0 %4699
    %4701 = vrot.lane.b32.xlu0 %v4506, 127
    %v4702 = vpop.permute.xlu0 %4701
    %4703 = vrot.lane.b32.xlu0 %v4512, 127
    %v4704 = vpop.permute.xlu0 %4703
    %4705 = vrot.lane.b32.xlu0 %v4516, 127
    %v4706 = vpop.permute.xlu0 %4705
    %4707 = vrot.lane.b32.xlu0 %v4593, 127
    %v4708 = vpop.permute.xlu0 %4707
    %4709 = vrot.lane.b32.xlu0 %v4597, 127
    %v4710 = vpop.permute.xlu0 %4709
    %4711 = vrot.lane.b32.xlu0 %v4603, 127
    %v4712 = vpop.permute.xlu0 %4711
    %4713 = vrot.lane.b32.xlu0 %v4607, 127
    %v4714 = vpop.permute.xlu0 %4713
    %4715 = vrot.lane.b32.xlu0 %v4595, 127
    %v4716 = vpop.permute.xlu0 %4715
    %4717 = vrot.lane.b32.xlu0 %v4599, 127
    %v4718 = vpop.permute.xlu0 %4717
    %4719 = vrot.lane.b32.xlu0 %v4605, 127
    %v4720 = vpop.permute.xlu0 %4719
    %4721 = vrot.lane.b32.xlu0 %v4609, 127
    %v4722 = vpop.permute.xlu0 %4721
    %v4723 = vsel %vm866, %v4708, %v4716
    %v4724 = vsel %vm866, %v4710, %v4718
    %v4725 = vsel %vm866, %v4712, %v4720
    %v4726 = vsel %vm866, %v4714, %v4722
    %v4727 = vsel %vm866, %v4700, %v4708
    %v4728 = vsel %vm866, %v4702, %v4710
    %v4729 = vsel %vm866, %v4704, %v4712
    %v4730 = vsel %vm866, %v4706, %v4714
    %v4731 = vsel %vm866, %v4692, %v4700
    %v4732 = vsel %vm866, %v4694, %v4702
    %v4733 = vsel %vm866, %v4696, %v4704
    %v4734 = vsel %vm866, %v4698, %v4706
    %v4735 = vsel %vm866, %v4716, %v4692
    %v4736 = vsel %vm866, %v4718, %v4694
    %v4737 = vsel %vm866, %v4720, %v4696
    %v4738 = vsel %vm866, %v4722, %v4698
    %v4739 = vmul.f32 %v4731, %v2022
    %v4740 = vmul.f32 %v4727, %v2026
    %v4741 = vmul.f32 %v4723, %v2030
    %v4742 = vmul.f32 %v4735, %v2034
    %v4743 = vmul.f32 %v4732, %v2022
    %v4744 = vmul.f32 %v4728, %v2026
    %v4745 = vmul.f32 %v4724, %v2030
    %v4746 = vmul.f32 %v4736, %v2034
    %v4747 = vmul.f32 %v4733, %v2022
    %v4748 = vmul.f32 %v4729, %v2026
    %v4749 = vmul.f32 %v4725, %v2030
    %v4750 = vmul.f32 %v4737, %v2034
    %v4751 = vmul.f32 %v4734, %v2022
    %v4752 = vmul.f32 %v4730, %v2026
    %v4753 = vmul.f32 %v4726, %v2030
    %v4754 = vmul.f32 %v4738, %v2034
    %v4755 = vadd.f32 %v4675, %v4739
    %v4756 = vadd.f32 %v4676, %v4740
    %v4757 = vadd.f32 %v4677, %v4741
    %v4758 = vadd.f32 %v4678, %v4742
    %v4759 = vadd.f32 %v4679, %v4743
    %v4760 = vadd.f32 %v4680, %v4744
    %v4761 = vadd.f32 %v4681, %v4745
    %v4762 = vadd.f32 %v4682, %v4746
    %v4763 = vadd.f32 %v4683, %v4747
    %v4764 = vadd.f32 %v4684, %v4748
    %v4765 = vadd.f32 %v4685, %v4749
    %v4766 = vadd.f32 %v4686, %v4750
    %v4767 = vadd.f32 %v4687, %v4751
    %v4768 = vadd.f32 %v4688, %v4752
    %v4769 = vadd.f32 %v4689, %v4753
    %v4770 = vadd.f32 %v4690, %v4754
    %v4771 = vmul.f32 %v4098, %v2071
    %v4772 = vmul.f32 %v4098, %v2072
    %v4773 = vmul.f32 %v4098, %v2073
    %v4774 = vmul.f32 %v4098, %v2074
    %v4775 = vmul.f32 %v4098, %v2075
    %v4776 = vmul.f32 %v4098, %v2076
    %v4777 = vmul.f32 %v4098, %v2077
    %v4778 = vmul.f32 %v4098, %v2078
    %v4779 = vmul.f32 %v4098, %v2079
    %v4780 = vmul.f32 %v4098, %v2080
    %v4781 = vmul.f32 %v4098, %v2081
    %v4782 = vmul.f32 %v4098, %v2082
    %v4783 = vmul.f32 %v4098, %v2083
    %v4784 = vmul.f32 %v4098, %v2084
    %v4785 = vmul.f32 %v4098, %v2085
    %v4786 = vmul.f32 %v4098, %v2086
    %v4787 = vadd.f32 %v4755, %v4771
    %v4788 = vadd.f32 %v4756, %v4772
    %v4789 = vadd.f32 %v4757, %v4773
    %v4790 = vadd.f32 %v4758, %v4774
    %v4791 = vadd.f32 %v4759, %v4775
    %v4792 = vadd.f32 %v4760, %v4776
    %v4793 = vadd.f32 %v4761, %v4777
    %v4794 = vadd.f32 %v4762, %v4778
    %v4795 = vadd.f32 %v4763, %v4779
    %v4796 = vadd.f32 %v4764, %v4780
    %v4797 = vadd.f32 %v4765, %v4781
    %v4798 = vadd.f32 %v4766, %v4782
    %v4799 = vadd.f32 %v4767, %v4783
    %v4800 = vadd.f32 %v4768, %v4784
    %v4801 = vadd.f32 %v4769, %v4785
    %v4802 = vadd.f32 %v4770, %v4786
    %v4803 = vadd.f32 %v4787, %v2126
    %v4804 = vadd.f32 %v4788, %v2126
    %v4805 = vadd.f32 %v4789, %v2126
    %v4806 = vadd.f32 %v4790, %v2126
    %v4807 = vadd.f32 %v4791, %v2131
    %v4808 = vadd.f32 %v4792, %v2131
    %v4809 = vadd.f32 %v4793, %v2131
    %v4810 = vadd.f32 %v4794, %v2131
    %v4811 = vadd.f32 %v4795, %v2136
    %v4812 = vadd.f32 %v4796, %v2136
    %v4813 = vadd.f32 %v4797, %v2136
    %v4814 = vadd.f32 %v4798, %v2136
    %v4815 = vadd.f32 %v4799, %v2141
    %v4816 = vadd.f32 %v4800, %v2141
    %v4817 = vadd.f32 %v4801, %v2141
    %v4818 = vadd.f32 %v4802, %v2141
    %v4819 = vmax.f32 %v4803, 0.0
    %v4820 = vmax.f32 %v4804, 0.0
    %v4821 = vmax.f32 %v4805, 0.0
    %v4822 = vmax.f32 %v4806, 0.0
    %v4823 = vmax.f32 %v4807, 0.0
    %v4824 = vmax.f32 %v4808, 0.0
    %v4825 = vmax.f32 %v4809, 0.0
    %v4826 = vmax.f32 %v4810, 0.0
    %v4827 = vmax.f32 %v4811, 0.0
    %v4828 = vmax.f32 %v4812, 0.0
    %v4829 = vmax.f32 %v4813, 0.0
    %v4830 = vmax.f32 %v4814, 0.0
    %v4831 = vmax.f32 %v4815, 0.0
    %v4832 = vmax.f32 %v4816, 0.0
    %v4833 = vmax.f32 %v4817, 0.0
    %v4834 = vmax.f32 %v4818, 0.0
    %v4835 = vpack.c.bf16 %v4823, %v4819
    %v4836 = vpack.c.bf16 %v4824, %v4820
    %v4837 = vpack.c.bf16 %v4825, %v4821
    %v4838 = vpack.c.bf16 %v4826, %v4822
    %v4839 = vpack.c.bf16 %v4831, %v4827
    %v4840 = vpack.c.bf16 %v4832, %v4828
    %v4841 = vpack.c.bf16 %v4833, %v4829
    %v4842 = vpack.c.bf16 %v4834, %v4830
    %v4843 = vmul.f32 %v4098, %v2184
    %4845 = vset.pattern.permute.xlu0 0
    %4846 = vperm.xlu0 %4845, %v4843
    %v4847 = vpop.permute.xlu0 %4846
    %4849 = vmatprep.subr.bf16.mxu0 %v4836
    %4850 = vmatpush1.bf16.msra.mxu0 %v4835
    %4851 = vmatprep.subr.bf16.mxu0 %v4840
    %4852 = vmatpush1.bf16.msra.mxu0 %v4839
    %4853 = vmatprep.subr.bf16.mxu0 0
    %4854 = vmatpush1.bf16.msra.mxu0 0
    %4855 = vmatprep.subr.bf16.mxu0 0
    %4856 = vmatpush1.bf16.msra.mxu0 0
    %4857 = vmatprep.subr.bf16.mxu0 0
    %4858 = vmatpush1.bf16.msra.mxu0 0
    %4859 = vmatprep.subr.bf16.mxu0 0
    %4860 = vmatpush1.bf16.msra.mxu0 0
    %4861 = vmatprep.subr.bf16.mxu0 0
    %4862 = vmatpush1.bf16.msra.mxu0 0
    %4863 = vmatprep.subr.bf16.mxu0 0
    %4864 = vmatpush1.bf16.msra.mxu0 0
    %4865 = vmatprep.subr.bf16.mxu0 0
    %4866 = vmatpush1.bf16.msra.mxu0 0
    %4867 = vmatprep.subr.bf16.mxu0 0
    %4868 = vmatpush1.bf16.msra.mxu0 0
    %4869 = vmatprep.subr.bf16.mxu0 0
    %4870 = vmatpush1.bf16.msra.mxu0 0
    %4871 = vmatprep.subr.bf16.mxu0 0
    %4872 = vmatpush1.bf16.msra.mxu0 0
    %4873 = vmatprep.subr.bf16.mxu0 0
    %4874 = vmatpush1.bf16.msra.mxu0 0
    %4875 = vmatprep.subr.bf16.mxu0 0
    %4876 = vmatpush1.bf16.msra.mxu0 0
    %4877 = vmatprep.subr.bf16.mxu0 0
    %4878 = vmatpush1.bf16.msra.mxu0 0
    %4879 = vmatprep.subr.bf16.mxu0 0
    %4880 = vmatpush1.bf16.msra.mxu0 0
    %4881 = vmatprep.mubr.bf16.mxu0 0
    %4882 = vmatmul.mubr.bf16.gmra.mrb[0].mxu0 %v2192
    %v4883 = vpop.f32.mrb[0].mxu0
    %v4884 = vadd.f32 %v4847, %v4883
    %v4885 = vpop.f32.mrb[0].mxu0
    %v4886 = vadd.f32 %v4847, %v4885
    %v4887 = vpop.f32.mrb[0].mxu0
    %v4888 = vpop.f32.mrb[0].mxu0
    %4889 = vdwg.mxu0
    %4890 = vmatprep.subr.bf16.mxu0 %v4838
    %4891 = vmatpush1.bf16.msra.mxu0 %v4837
    %4892 = vmatprep.subr.bf16.mxu0 %v4842
    %4893 = vmatpush1.bf16.msra.mxu0 %v4841
    %4894 = vmatprep.subr.bf16.mxu0 0
    %4895 = vmatpush1.bf16.msra.mxu0 0
    %4896 = vmatprep.subr.bf16.mxu0 0
    %4897 = vmatpush1.bf16.msra.mxu0 0
    %4898 = vmatprep.subr.bf16.mxu0 0
    %4899 = vmatpush1.bf16.msra.mxu0 0
    %4900 = vmatprep.subr.bf16.mxu0 0
    %4901 = vmatpush1.bf16.msra.mxu0 0
    %4902 = vmatprep.subr.bf16.mxu0 0
    %4903 = vmatpush1.bf16.msra.mxu0 0
    %4904 = vmatprep.subr.bf16.mxu0 0
    %4905 = vmatpush1.bf16.msra.mxu0 0
    %4906 = vmatprep.subr.bf16.mxu0 0
    %4907 = vmatpush1.bf16.msra.mxu0 0
    %4908 = vmatprep.subr.bf16.mxu0 0
    %4909 = vmatpush1.bf16.msra.mxu0 0
    %4910 = vmatprep.subr.bf16.mxu0 0
    %4911 = vmatpush1.bf16.msra.mxu0 0
    %4912 = vmatprep.subr.bf16.mxu0 0
    %4913 = vmatpush1.bf16.msra.mxu0 0
    %4914 = vmatprep.subr.bf16.mxu0 0
    %4915 = vmatpush1.bf16.msra.mxu0 0
    %4916 = vmatprep.subr.bf16.mxu0 0
    %4917 = vmatpush1.bf16.msra.mxu0 0
    %4918 = vmatprep.subr.bf16.mxu0 0
    %4919 = vmatpush1.bf16.msra.mxu0 0
    %4920 = vmatprep.subr.bf16.mxu0 0
    %4921 = vmatpush1.bf16.msra.mxu0 0
    %4922 = vmatprep.mubr.bf16.mxu0 0
    %4923 = vmatmul.mubr.bf16.gmra.mrb[0].mxu0 %v2192
    %v4924 = vpop.f32.mrb[0].mxu0
    %v4925 = vadd.f32 %v4847, %v4924
    %v4926 = vpop.f32.mrb[0].mxu0
    %v4927 = vadd.f32 %v4847, %v4926
    %v4928 = vpop.f32.mrb[0].mxu0
    %v4929 = vpop.f32.mrb[0].mxu0
    %4930 = vdwg.mxu0
    %v4931 = vadd.f32 %v4884, %v2280
    %v4932 = vadd.f32 %v4886, %v2280
    %v4933 = vadd.f32 %v4925, %v2280
    %v4934 = vadd.f32 %v4927, %v2280
    %s4935 = sadd.f32 %s1154, %s1170
    %v4936 = vmul.f32 %v1159, 2.8462753
    %v4937 = vmul.f32 %v1160, 2.8462753
    %v4938 = vmul.f32 %v1161, 2.8462753
    %v4939 = vmul.f32 %v1162, 2.8462753
    %v4940 = vmul.f32 %v2282, -10.757576
    %v4941 = vmul.f32 %v2283, -10.757576
    %v4942 = vmul.f32 %v2284, -10.757576
    %v4943 = vmul.f32 %v2285, -10.757576
    %v4944 = vadd.f32 %v4936, %v4940
    %v4945 = vadd.f32 %v4937, %v4941
    %v4946 = vadd.f32 %v4938, %v4942
    %v4947 = vadd.f32 %v4939, %v4943
    %v4948 = vmul.f32 %v3157, 8.906423
    %v4949 = vmul.f32 %v3158, 8.906423
    %v4950 = vmul.f32 %v3159, 8.906423
    %v4951 = vmul.f32 %v3160, 8.906423
    %v4952 = vadd.f32 %v4944, %v4948
    %v4953 = vadd.f32 %v4945, %v4949
    %v4954 = vadd.f32 %v4946, %v4950
    %v4955 = vadd.f32 %v4947, %v4951
    %v4956 = vmul.f32 %v4040, 0.2784091
    %v4957 = vmul.f32 %v4041, 0.2784091
    %v4958 = vmul.f32 %v4042, 0.2784091
    %v4959 = vmul.f32 %v4043, 0.2784091
    %v4960 = vadd.f32 %v4952, %v4956
    %v4961 = vadd.f32 %v4953, %v4957
    %v4962 = vadd.f32 %v4954, %v4958
    %v4963 = vadd.f32 %v4955, %v4959
    %v4964 = vmul.f32 %v4931, -0.27353132
    %v4965 = vmul.f32 %v4932, -0.27353132
    %v4966 = vmul.f32 %v4933, -0.27353132
    %v4967 = vmul.f32 %v4934, -0.27353132
    %v4968 = vadd.f32 %v4960, %v4964
    %v4969 = vadd.f32 %v4961, %v4965
    %v4970 = vadd.f32 %v4962, %v4966
    %v4971 = vadd.f32 %v4963, %v4967
    %v4972 = vmul.f32 %v1177, %v4968
    %v4973 = vmul.f32 %v1177, %v4969
    %v4974 = vmul.f32 %v1177, %v4970
    %v4975 = vmul.f32 %v1177, %v4971
    %v4980 = vcombine.low %v4972, %v4973
    %v4981 = vcombine.low %v4974, %v4975
    %v4984 = vadd.f32 %v1157, %v4980
    %v4985 = vadd.f32 %v1158, %v4981
    %v4988 = vcombine.high %v4984, %v4984
    %v4989 = vcombine.high %v4985, %v4985
    %v4992 = vpack.c.bf16 %v4984, %v4984
    %v4993 = vpack.c.bf16 %v4988, %v4988
    %v4994 = vpack.c.bf16 %v4985, %v4985
    %v4995 = vpack.c.bf16 %v4989, %v4989
    %v4996 = vstv %s4935
    %v4997 = vmul.f32 %v4996, %v1206
    %v4998 = vmul.f32 %v4996, %v1207
    %v4999 = vmul.f32 %v4996, %v1208
    %v5000 = vmul.f32 %v4996, %v1209
    %5002 = vset.pattern.permute.xlu0 0
    %5003 = vperm.xlu0 %5002, %v4997
    %v5004 = vpop.permute.xlu0 %5003
    %5007 = vset.pattern.permute.xlu0 0
    %5008 = vperm.xlu0 %5007, %v4998
    %v5009 = vpop.permute.xlu0 %5008
    %5012 = vset.pattern.permute.xlu0 0
    %5013 = vperm.xlu0 %5012, %v4999
    %v5014 = vpop.permute.xlu0 %5013
    %5017 = vset.pattern.permute.xlu0 0
    %5018 = vperm.xlu0 %5017, %v5000
    %v5019 = vpop.permute.xlu0 %5018
    %v5022 = vsel %vm109, %v4992, 0
    %v5025 = vsel %vm109, %v4993, 0
    %v5028 = vsel %vm109, %v4994, 0
    %v5031 = vsel %vm109, %v4995, 0
    %5033 = vmatprep.subr.bf16.mxu0 %v5025
    %5034 = vmatpush1.bf16.msra.mxu0 %v5022
    %5035 = vmatprep.subr.bf16.mxu0 0
    %5036 = vmatpush1.bf16.msra.mxu0 0
    %5037 = vmatprep.subr.bf16.mxu0 0
    %5038 = vmatpush1.bf16.msra.mxu0 0
    %5039 = vmatprep.subr.bf16.mxu0 0
    %5040 = vmatpush1.bf16.msra.mxu0 0
    %5041 = vmatprep.subr.bf16.mxu0 0
    %5042 = vmatpush1.bf16.msra.mxu0 0
    %5043 = vmatprep.subr.bf16.mxu0 0
    %5044 = vmatpush1.bf16.msra.mxu0 0
    %5045 = vmatprep.subr.bf16.mxu0 0
    %5046 = vmatpush1.bf16.msra.mxu0 0
    %5047 = vmatprep.subr.bf16.mxu0 0
    %5048 = vmatpush1.bf16.msra.mxu0 0
    %5049 = vmatprep.subr.bf16.mxu0 0
    %5050 = vmatpush1.bf16.msra.mxu0 0
    %5051 = vmatprep.subr.bf16.mxu0 0
    %5052 = vmatpush1.bf16.msra.mxu0 0
    %5053 = vmatprep.subr.bf16.mxu0 0
    %5054 = vmatpush1.bf16.msra.mxu0 0
    %5055 = vmatprep.subr.bf16.mxu0 0
    %5056 = vmatpush1.bf16.msra.mxu0 0
    %5057 = vmatprep.subr.bf16.mxu0 0
    %5058 = vmatpush1.bf16.msra.mxu0 0
    %5059 = vmatprep.subr.bf16.mxu0 0
    %5060 = vmatpush1.bf16.msra.mxu0 0
    %5061 = vmatprep.subr.bf16.mxu0 0
    %5062 = vmatpush1.bf16.msra.mxu0 0
    %5063 = vmatprep.subr.bf16.mxu0 0
    %5064 = vmatpush1.bf16.msra.mxu0 0
    %5065 = vmatprep.mubr.bf16.mxu0 0
    %5066 = vmatmul.mubr.bf16.gmra.mrb[0].mxu0 %v1246
    %v5067 = vpop.f32.mrb[0].mxu0
    %v5068 = vadd.f32 %v5004, %v5067
    %v5069 = vpop.f32.mrb[0].mxu0
    %v5070 = vadd.f32 %v5004, %v5069
    %v5071 = vpop.f32.mrb[0].mxu0
    %v5072 = vadd.f32 %v5009, %v5071
    %v5073 = vpop.f32.mrb[0].mxu0
    %v5074 = vadd.f32 %v5009, %v5073
    %5075 = vmatprep.mubr.bf16.mxu0 0
    %5076 = vmatmul.mubr.bf16.gmra.mrb[0].mxu0 %v1249
    %v5077 = vpop.f32.mrb[0].mxu0
    %v5078 = vadd.f32 %v5014, %v5077
    %v5079 = vpop.f32.mrb[0].mxu0
    %v5080 = vadd.f32 %v5014, %v5079
    %v5081 = vpop.f32.mrb[0].mxu0
    %v5082 = vadd.f32 %v5019, %v5081
    %v5083 = vpop.f32.mrb[0].mxu0
    %v5084 = vadd.f32 %v5019, %v5083
    %5085 = vdwg.mxu0
    %5086 = vmatprep.subr.bf16.mxu0 %v5031
    %5087 = vmatpush1.bf16.msra.mxu0 %v5028
    %5088 = vmatprep.subr.bf16.mxu0 0
    %5089 = vmatpush1.bf16.msra.mxu0 0
    %5090 = vmatprep.subr.bf16.mxu0 0
    %5091 = vmatpush1.bf16.msra.mxu0 0
    %5092 = vmatprep.subr.bf16.mxu0 0
    %5093 = vmatpush1.bf16.msra.mxu0 0
    %5094 = vmatprep.subr.bf16.mxu0 0
    %5095 = vmatpush1.bf16.msra.mxu0 0
    %5096 = vmatprep.subr.bf16.mxu0 0
    %5097 = vmatpush1.bf16.msra.mxu0 0
    %5098 = vmatprep.subr.bf16.mxu0 0
    %5099 = vmatpush1.bf16.msra.mxu0 0
    %5100 = vmatprep.subr.bf16.mxu0 0
    %5101 = vmatpush1.bf16.msra.mxu0 0
    %5102 = vmatprep.subr.bf16.mxu0 0
    %5103 = vmatpush1.bf16.msra.mxu0 0
    %5104 = vmatprep.subr.bf16.mxu0 0
    %5105 = vmatpush1.bf16.msra.mxu0 0
    %5106 = vmatprep.subr.bf16.mxu0 0
    %5107 = vmatpush1.bf16.msra.mxu0 0
    %5108 = vmatprep.subr.bf16.mxu0 0
    %5109 = vmatpush1.bf16.msra.mxu0 0
    %5110 = vmatprep.subr.bf16.mxu0 0
    %5111 = vmatpush1.bf16.msra.mxu0 0
    %5112 = vmatprep.subr.bf16.mxu0 0
    %5113 = vmatpush1.bf16.msra.mxu0 0
    %5114 = vmatprep.subr.bf16.mxu0 0
    %5115 = vmatpush1.bf16.msra.mxu0 0
    %5116 = vmatprep.subr.bf16.mxu0 0
    %5117 = vmatpush1.bf16.msra.mxu0 0
    %5118 = vmatprep.mubr.bf16.mxu0 0
    %5119 = vmatmul.mubr.bf16.gmra.mrb[0].mxu0 %v1246
    %v5120 = vpop.f32.mrb[0].mxu0
    %v5121 = vadd.f32 %v5004, %v5120
    %v5122 = vpop.f32.mrb[0].mxu0
    %v5123 = vadd.f32 %v5004, %v5122
    %v5124 = vpop.f32.mrb[0].mxu0
    %v5125 = vadd.f32 %v5009, %v5124
    %v5126 = vpop.f32.mrb[0].mxu0
    %v5127 = vadd.f32 %v5009, %v5126
    %5128 = vmatprep.mubr.bf16.mxu0 0
    %5129 = vmatmul.mubr.bf16.gmra.mrb[0].mxu0 %v1249
    %v5130 = vpop.f32.mrb[0].mxu0
    %v5131 = vadd.f32 %v5014, %v5130
    %v5132 = vpop.f32.mrb[0].mxu0
    %v5133 = vadd.f32 %v5014, %v5132
    %v5134 = vpop.f32.mrb[0].mxu0
    %v5135 = vadd.f32 %v5019, %v5134
    %v5136 = vpop.f32.mrb[0].mxu0
    %v5137 = vadd.f32 %v5019, %v5136
    %5138 = vdwg.mxu0
    %v5139 = vadd.f32 %v5068, %v1376
    %v5140 = vadd.f32 %v5070, %v1376
    %v5141 = vadd.f32 %v5121, %v1376
    %v5142 = vadd.f32 %v5123, %v1376
    %v5143 = vadd.f32 %v5072, %v1381
    %v5144 = vadd.f32 %v5074, %v1381
    %v5145 = vadd.f32 %v5125, %v1381
    %v5146 = vadd.f32 %v5127, %v1381
    %v5147 = vadd.f32 %v5078, %v1386
    %v5148 = vadd.f32 %v5080, %v1386
    %v5149 = vadd.f32 %v5131, %v1386
    %v5150 = vadd.f32 %v5133, %v1386
    %v5151 = vadd.f32 %v5082, %v1391
    %v5152 = vadd.f32 %v5084, %v1391
    %v5153 = vadd.f32 %v5135, %v1391
    %v5154 = vadd.f32 %v5137, %v1391
    %v5155 = vmax.f32 %v5139, 0.0
    %v5156 = vmax.f32 %v5140, 0.0
    %v5157 = vmax.f32 %v5141, 0.0
    %v5158 = vmax.f32 %v5142, 0.0
    %v5159 = vmax.f32 %v5143, 0.0
    %v5160 = vmax.f32 %v5144, 0.0
    %v5161 = vmax.f32 %v5145, 0.0
    %v5162 = vmax.f32 %v5146, 0.0
    %v5163 = vmax.f32 %v5147, 0.0
    %v5164 = vmax.f32 %v5148, 0.0
    %v5165 = vmax.f32 %v5149, 0.0
    %v5166 = vmax.f32 %v5150, 0.0
    %v5167 = vmax.f32 %v5151, 0.0
    %v5168 = vmax.f32 %v5152, 0.0
    %v5169 = vmax.f32 %v5153, 0.0
    %v5170 = vmax.f32 %v5154, 0.0
    %5171 = vrot.lane.b32.xlu0 %v5155, 16
    %v5172 = vpop.permute.xlu0 %5171
    %5173 = vrot.lane.b32.xlu0 %v5159, 16
    %v5174 = vpop.permute.xlu0 %5173
    %5175 = vrot.lane.b32.xlu0 %v5163, 16
    %v5176 = vpop.permute.xlu0 %5175
    %5177 = vrot.lane.b32.xlu0 %v5167, 16
    %v5178 = vpop.permute.xlu0 %5177
    %5179 = vrot.lane.b32.xlu0 %v5156, 16
    %v5180 = vpop.permute.xlu0 %5179
    %5181 = vrot.lane.b32.xlu0 %v5160, 16
    %v5182 = vpop.permute.xlu0 %5181
    %5183 = vrot.lane.b32.xlu0 %v5164, 16
    %v5184 = vpop.permute.xlu0 %5183
    %5185 = vrot.lane.b32.xlu0 %v5168, 16
    %v5186 = vpop.permute.xlu0 %5185
    %5187 = vrot.lane.b32.xlu0 %v5157, 16
    %v5188 = vpop.permute.xlu0 %5187
    %5189 = vrot.lane.b32.xlu0 %v5161, 16
    %v5190 = vpop.permute.xlu0 %5189
    %5191 = vrot.lane.b32.xlu0 %v5165, 16
    %v5192 = vpop.permute.xlu0 %5191
    %5193 = vrot.lane.b32.xlu0 %v5169, 16
    %v5194 = vpop.permute.xlu0 %5193
    %5195 = vrot.lane.b32.xlu0 %v5158, 16
    %v5196 = vpop.permute.xlu0 %5195
    %5197 = vrot.lane.b32.xlu0 %v5162, 16
    %v5198 = vpop.permute.xlu0 %5197
    %5199 = vrot.lane.b32.xlu0 %v5166, 16
    %v5200 = vpop.permute.xlu0 %5199
    %5201 = vrot.lane.b32.xlu0 %v5170, 16
    %v5202 = vpop.permute.xlu0 %5201
    %v5203 = vsel %vm318, %v5188, %v5196
    %v5204 = vsel %vm318, %v5190, %v5198
    %v5205 = vsel %vm318, %v5192, %v5200
    %v5206 = vsel %vm318, %v5194, %v5202
    %v5207 = vsel %vm318, %v5180, %v5188
    %v5208 = vsel %vm318, %v5182, %v5190
    %v5209 = vsel %vm318, %v5184, %v5192
    %v5210 = vsel %vm318, %v5186, %v5194
    %v5211 = vsel %vm318, %v5172, %v5180
    %v5212 = vsel %vm318, %v5174, %v5182
    %v5213 = vsel %vm318, %v5176, %v5184
    %v5214 = vsel %vm318, %v5178, %v5186
    %v5215 = vsel %vm318, %v5196, %v5172
    %v5216 = vsel %vm318, %v5198, %v5174
    %v5217 = vsel %vm318, %v5200, %v5176
    %v5218 = vsel %vm318, %v5202, %v5178
    %v5219 = vmul.f32 %v5215, %v1478
    %v5220 = vmul.f32 %v5211, %v1482
    %v5221 = vmul.f32 %v5207, %v1486
    %v5222 = vmul.f32 %v5203, %v1490
    %v5223 = vmul.f32 %v5216, %v1478
    %v5224 = vmul.f32 %v5212, %v1482
    %v5225 = vmul.f32 %v5208, %v1486
    %v5226 = vmul.f32 %v5204, %v1490
    %v5227 = vmul.f32 %v5217, %v1478
    %v5228 = vmul.f32 %v5213, %v1482
    %v5229 = vmul.f32 %v5209, %v1486
    %v5230 = vmul.f32 %v5205, %v1490
    %v5231 = vmul.f32 %v5218, %v1478
    %v5232 = vmul.f32 %v5214, %v1482
    %v5233 = vmul.f32 %v5210, %v1486
    %v5234 = vmul.f32 %v5206, %v1490
    %5235 = vrot.lane.b32.xlu0 %v5155, 112
    %v5236 = vpop.permute.xlu0 %5235
    %5237 = vrot.lane.b32.xlu0 %v5159, 112
    %v5238 = vpop.permute.xlu0 %5237
    %5239 = vrot.lane.b32.xlu0 %v5163, 112
    %v5240 = vpop.permute.xlu0 %5239
    %5241 = vrot.lane.b32.xlu0 %v5167, 112
    %v5242 = vpop.permute.xlu0 %5241
    %5243 = vrot.lane.b32.xlu0 %v5156, 112
    %v5244 = vpop.permute.xlu0 %5243
    %5245 = vrot.lane.b32.xlu0 %v5160, 112
    %v5246 = vpop.permute.xlu0 %5245
    %5247 = vrot.lane.b32.xlu0 %v5164, 112
    %v5248 = vpop.permute.xlu0 %5247
    %5249 = vrot.lane.b32.xlu0 %v5168, 112
    %v5250 = vpop.permute.xlu0 %5249
    %5251 = vrot.lane.b32.xlu0 %v5157, 112
    %v5252 = vpop.permute.xlu0 %5251
    %5253 = vrot.lane.b32.xlu0 %v5161, 112
    %v5254 = vpop.permute.xlu0 %5253
    %5255 = vrot.lane.b32.xlu0 %v5165, 112
    %v5256 = vpop.permute.xlu0 %5255
    %5257 = vrot.lane.b32.xlu0 %v5169, 112
    %v5258 = vpop.permute.xlu0 %5257
    %5259 = vrot.lane.b32.xlu0 %v5158, 112
    %v5260 = vpop.permute.xlu0 %5259
    %5261 = vrot.lane.b32.xlu0 %v5162, 112
    %v5262 = vpop.permute.xlu0 %5261
    %5263 = vrot.lane.b32.xlu0 %v5166, 112
    %v5264 = vpop.permute.xlu0 %5263
    %5265 = vrot.lane.b32.xlu0 %v5170, 112
    %v5266 = vpop.permute.xlu0 %5265
    %v5267 = vsel %vm405, %v5252, %v5260
    %v5268 = vsel %vm405, %v5254, %v5262
    %v5269 = vsel %vm405, %v5256, %v5264
    %v5270 = vsel %vm405, %v5258, %v5266
    %v5271 = vsel %vm405, %v5244, %v5252
    %v5272 = vsel %vm405, %v5246, %v5254
    %v5273 = vsel %vm405, %v5248, %v5256
    %v5274 = vsel %vm405, %v5250, %v5258
    %v5275 = vsel %vm405, %v5236, %v5244
    %v5276 = vsel %vm405, %v5238, %v5246
    %v5277 = vsel %vm405, %v5240, %v5248
    %v5278 = vsel %vm405, %v5242, %v5250
    %v5279 = vsel %vm405, %v5260, %v5236
    %v5280 = vsel %vm405, %v5262, %v5238
    %v5281 = vsel %vm405, %v5264, %v5240
    %v5282 = vsel %vm405, %v5266, %v5242
    %v5283 = vmul.f32 %v5275, %v1564
    %v5284 = vmul.f32 %v5271, %v1568
    %v5285 = vmul.f32 %v5267, %v1572
    %v5286 = vmul.f32 %v5279, %v1576
    %v5287 = vmul.f32 %v5276, %v1564
    %v5288 = vmul.f32 %v5272, %v1568
    %v5289 = vmul.f32 %v5268, %v1572
    %v5290 = vmul.f32 %v5280, %v1576
    %v5291 = vmul.f32 %v5277, %v1564
    %v5292 = vmul.f32 %v5273, %v1568
    %v5293 = vmul.f32 %v5269, %v1572
    %v5294 = vmul.f32 %v5281, %v1576
    %v5295 = vmul.f32 %v5278, %v1564
    %v5296 = vmul.f32 %v5274, %v1568
    %v5297 = vmul.f32 %v5270, %v1572
    %v5298 = vmul.f32 %v5282, %v1576
    %v5299 = vpack.c.bf16 %v5223, %v5219
    %v5300 = vpack.c.bf16 %v5224, %v5220
    %v5301 = vpack.c.bf16 %v5225, %v5221
    %v5302 = vpack.c.bf16 %v5226, %v5222
    %v5303 = vpack.c.bf16 %v5231, %v5227
    %v5304 = vpack.c.bf16 %v5232, %v5228
    %v5305 = vpack.c.bf16 %v5233, %v5229
    %v5306 = vpack.c.bf16 %v5234, %v5230
    %v5307 = vpack.c.bf16 %v5159, %v5155
    %v5308 = vpack.c.bf16 %v5160, %v5156
    %v5309 = vpack.c.bf16 %v5161, %v5157
    %v5310 = vpack.c.bf16 %v5162, %v5158
    %v5311 = vpack.c.bf16 %v5167, %v5163
    %v5312 = vpack.c.bf16 %v5168, %v5164
    %v5313 = vpack.c.bf16 %v5169, %v5165
    %v5314 = vpack.c.bf16 %v5170, %v5166
    %v5315 = vpack.c.bf16 %v5287, %v5283
    %v5316 = vpack.c.bf16 %v5288, %v5284
    %v5317 = vpack.c.bf16 %v5289, %v5285
    %v5318 = vpack.c.bf16 %v5290, %v5286
    %v5319 = vpack.c.bf16 %v5295, %v5291
    %v5320 = vpack.c.bf16 %v5296, %v5292
    %v5321 = vpack.c.bf16 %v5297, %v5293
    %v5322 = vpack.c.bf16 %v5298, %v5294
    %5323 = vmatprep.subr.bf16.mxu0 %v5300
    %5324 = vmatpush1.bf16.msra.mxu0 %v5299
    %5325 = vmatprep.subr.bf16.mxu0 %v5304
    %5326 = vmatpush1.bf16.msra.mxu0 %v5303
    %5327 = vmatprep.subr.bf16.mxu0 %v5308
    %5328 = vmatpush1.bf16.msra.mxu0 %v5307
    %5329 = vmatprep.subr.bf16.mxu0 %v5312
    %5330 = vmatpush1.bf16.msra.mxu0 %v5311
    %5331 = vmatprep.subr.bf16.mxu0 %v5316
    %5332 = vmatpush1.bf16.msra.mxu0 %v5315
    %5333 = vmatprep.subr.bf16.mxu0 %v5320
    %5334 = vmatpush1.bf16.msra.mxu0 %v5319
    %5335 = vmatprep.subr.bf16.mxu0 0
    %5336 = vmatpush1.bf16.msra.mxu0 0
    %5337 = vmatprep.subr.bf16.mxu0 0
    %5338 = vmatpush1.bf16.msra.mxu0 0
    %5339 = vmatprep.subr.bf16.mxu0 0
    %5340 = vmatpush1.bf16.msra.mxu0 0
    %5341 = vmatprep.subr.bf16.mxu0 0
    %5342 = vmatpush1.bf16.msra.mxu0 0
    %5343 = vmatprep.subr.bf16.mxu0 0
    %5344 = vmatpush1.bf16.msra.mxu0 0
    %5345 = vmatprep.subr.bf16.mxu0 0
    %5346 = vmatpush1.bf16.msra.mxu0 0
    %5347 = vmatprep.subr.bf16.mxu0 0
    %5348 = vmatpush1.bf16.msra.mxu0 0
    %5349 = vmatprep.subr.bf16.mxu0 0
    %5350 = vmatpush1.bf16.msra.mxu0 0
    %5351 = vmatprep.subr.bf16.mxu0 0
    %5352 = vmatpush1.bf16.msra.mxu0 0
    %5353 = vmatprep.subr.bf16.mxu0 0
    %5354 = vmatpush1.bf16.msra.mxu0 0
    %5355 = vmatprep.mubr.bf16.mxu0 0
    %5356 = vmatmul.mubr.bf16.gmra.mrb[0].mxu0 %v1664
    %v5357 = vpop.f32.mrb[0].mxu0
    %v5358 = vadd.f32 0.0, %v5357
    %v5359 = vpop.f32.mrb[0].mxu0
    %v5360 = vadd.f32 0.0, %v5359
    %v5361 = vpop.f32.mrb[0].mxu0
    %v5362 = vadd.f32 0.0, %v5361
    %v5363 = vpop.f32.mrb[0].mxu0
    %v5364 = vadd.f32 0.0, %v5363
    %5365 = vmatprep.mubr.bf16.mxu0 0
    %5366 = vmatmul.mubr.bf16.gmra.mrb[0].mxu0 %v1667
    %v5367 = vpop.f32.mrb[0].mxu0
    %v5368 = vadd.f32 0.0, %v5367
    %v5369 = vpop.f32.mrb[0].mxu0
    %v5370 = vadd.f32 0.0, %v5369
    %v5371 = vpop.f32.mrb[0].mxu0
    %v5372 = vadd.f32 0.0, %v5371
    %v5373 = vpop.f32.mrb[0].mxu0
    %v5374 = vadd.f32 0.0, %v5373
    %5375 = vmatprep.mubr.bf16.mxu0 0
    %5376 = vmatmul.mubr.bf16.gmra.mrb[0].mxu0 %v1670
    %v5377 = vpop.f32.mrb[0].mxu0
    %v5378 = vadd.f32 0.0, %v5377
    %v5379 = vpop.f32.mrb[0].mxu0
    %v5380 = vadd.f32 0.0, %v5379
    %v5381 = vpop.f32.mrb[0].mxu0
    %v5382 = vadd.f32 0.0, %v5381
    %v5383 = vpop.f32.mrb[0].mxu0
    %v5384 = vadd.f32 0.0, %v5383
    %5385 = vmatprep.mubr.bf16.mxu0 0
    %5386 = vmatmul.mubr.bf16.gmra.mrb[0].mxu0 %v1673
    %v5387 = vpop.f32.mrb[0].mxu0
    %v5388 = vadd.f32 0.0, %v5387
    %v5389 = vpop.f32.mrb[0].mxu0
    %v5390 = vadd.f32 0.0, %v5389
    %v5391 = vpop.f32.mrb[0].mxu0
    %v5392 = vadd.f32 0.0, %v5391
    %v5393 = vpop.f32.mrb[0].mxu0
    %v5394 = vadd.f32 0.0, %v5393
    %5395 = vmatprep.mubr.bf16.mxu0 0
    %5396 = vmatmul.mubr.bf16.gmra.mrb[0].mxu0 %v1676
    %v5397 = vpop.f32.mrb[0].mxu0
    %v5398 = vadd.f32 0.0, %v5397
    %v5399 = vpop.f32.mrb[0].mxu0
    %v5400 = vadd.f32 0.0, %v5399
    %v5401 = vpop.f32.mrb[0].mxu0
    %v5402 = vadd.f32 0.0, %v5401
    %v5403 = vpop.f32.mrb[0].mxu0
    %v5404 = vadd.f32 0.0, %v5403
    %5405 = vmatprep.mubr.bf16.mxu0 0
    %5406 = vmatmul.mubr.bf16.gmra.mrb[0].mxu0 %v1679
    %v5407 = vpop.f32.mrb[0].mxu0
    %v5408 = vadd.f32 0.0, %v5407
    %v5409 = vpop.f32.mrb[0].mxu0
    %v5410 = vadd.f32 0.0, %v5409
    %v5411 = vpop.f32.mrb[0].mxu0
    %v5412 = vadd.f32 0.0, %v5411
    %v5413 = vpop.f32.mrb[0].mxu0
    %v5414 = vadd.f32 0.0, %v5413
    %5415 = vdwg.mxu0
    %5416 = vmatprep.subr.bf16.mxu0 %v5302
    %5417 = vmatpush1.bf16.msra.mxu0 %v5301
    %5418 = vmatprep.subr.bf16.mxu0 %v5306
    %5419 = vmatpush1.bf16.msra.mxu0 %v5305
    %5420 = vmatprep.subr.bf16.mxu0 %v5310
    %5421 = vmatpush1.bf16.msra.mxu0 %v5309
    %5422 = vmatprep.subr.bf16.mxu0 %v5314
    %5423 = vmatpush1.bf16.msra.mxu0 %v5313
    %5424 = vmatprep.subr.bf16.mxu0 %v5318
    %5425 = vmatpush1.bf16.msra.mxu0 %v5317
    %5426 = vmatprep.subr.bf16.mxu0 %v5322
    %5427 = vmatpush1.bf16.msra.mxu0 %v5321
    %5428 = vmatprep.subr.bf16.mxu0 0
    %5429 = vmatpush1.bf16.msra.mxu0 0
    %5430 = vmatprep.subr.bf16.mxu0 0
    %5431 = vmatpush1.bf16.msra.mxu0 0
    %5432 = vmatprep.subr.bf16.mxu0 0
    %5433 = vmatpush1.bf16.msra.mxu0 0
    %5434 = vmatprep.subr.bf16.mxu0 0
    %5435 = vmatpush1.bf16.msra.mxu0 0
    %5436 = vmatprep.subr.bf16.mxu0 0
    %5437 = vmatpush1.bf16.msra.mxu0 0
    %5438 = vmatprep.subr.bf16.mxu0 0
    %5439 = vmatpush1.bf16.msra.mxu0 0
    %5440 = vmatprep.subr.bf16.mxu0 0
    %5441 = vmatpush1.bf16.msra.mxu0 0
    %5442 = vmatprep.subr.bf16.mxu0 0
    %5443 = vmatpush1.bf16.msra.mxu0 0
    %5444 = vmatprep.subr.bf16.mxu0 0
    %5445 = vmatpush1.bf16.msra.mxu0 0
    %5446 = vmatprep.subr.bf16.mxu0 0
    %5447 = vmatpush1.bf16.msra.mxu0 0
    %5448 = vmatprep.mubr.bf16.mxu0 0
    %5449 = vmatmul.mubr.bf16.gmra.mrb[0].mxu0 %v1664
    %v5450 = vpop.f32.mrb[0].mxu0
    %v5451 = vadd.f32 0.0, %v5450
    %v5452 = vpop.f32.mrb[0].mxu0
    %v5453 = vadd.f32 0.0, %v5452
    %v5454 = vpop.f32.mrb[0].mxu0
    %v5455 = vadd.f32 0.0, %v5454
    %v5456 = vpop.f32.mrb[0].mxu0
    %v5457 = vadd.f32 0.0, %v5456
    %5458 = vmatprep.mubr.bf16.mxu0 0
    %5459 = vmatmul.mubr.bf16.gmra.mrb[0].mxu0 %v1667
    %v5460 = vpop.f32.mrb[0].mxu0
    %v5461 = vadd.f32 0.0, %v5460
    %v5462 = vpop.f32.mrb[0].mxu0
    %v5463 = vadd.f32 0.0, %v5462
    %v5464 = vpop.f32.mrb[0].mxu0
    %v5465 = vadd.f32 0.0, %v5464
    %v5466 = vpop.f32.mrb[0].mxu0
    %v5467 = vadd.f32 0.0, %v5466
    %5468 = vmatprep.mubr.bf16.mxu0 0
    %5469 = vmatmul.mubr.bf16.gmra.mrb[0].mxu0 %v1670
    %v5470 = vpop.f32.mrb[0].mxu0
    %v5471 = vadd.f32 0.0, %v5470
    %v5472 = vpop.f32.mrb[0].mxu0
    %v5473 = vadd.f32 0.0, %v5472
    %v5474 = vpop.f32.mrb[0].mxu0
    %v5475 = vadd.f32 0.0, %v5474
    %v5476 = vpop.f32.mrb[0].mxu0
    %v5477 = vadd.f32 0.0, %v5476
    %5478 = vmatprep.mubr.bf16.mxu0 0
    %5479 = vmatmul.mubr.bf16.gmra.mrb[0].mxu0 %v1673
    %v5480 = vpop.f32.mrb[0].mxu0
    %v5481 = vadd.f32 0.0, %v5480
    %v5482 = vpop.f32.mrb[0].mxu0
    %v5483 = vadd.f32 0.0, %v5482
    %v5484 = vpop.f32.mrb[0].mxu0
    %v5485 = vadd.f32 0.0, %v5484
    %v5486 = vpop.f32.mrb[0].mxu0
    %v5487 = vadd.f32 0.0, %v5486
    %5488 = vmatprep.mubr.bf16.mxu0 0
    %5489 = vmatmul.mubr.bf16.gmra.mrb[0].mxu0 %v1676
    %v5490 = vpop.f32.mrb[0].mxu0
    %v5491 = vadd.f32 0.0, %v5490
    %v5492 = vpop.f32.mrb[0].mxu0
    %v5493 = vadd.f32 0.0, %v5492
    %v5494 = vpop.f32.mrb[0].mxu0
    %v5495 = vadd.f32 0.0, %v5494
    %v5496 = vpop.f32.mrb[0].mxu0
    %v5497 = vadd.f32 0.0, %v5496
    %5498 = vmatprep.mubr.bf16.mxu0 0
    %5499 = vmatmul.mubr.bf16.gmra.mrb[0].mxu0 %v1679
    %v5500 = vpop.f32.mrb[0].mxu0
    %v5501 = vadd.f32 0.0, %v5500
    %v5502 = vpop.f32.mrb[0].mxu0
    %v5503 = vadd.f32 0.0, %v5502
    %v5504 = vpop.f32.mrb[0].mxu0
    %v5505 = vadd.f32 0.0, %v5504
    %v5506 = vpop.f32.mrb[0].mxu0
    %v5507 = vadd.f32 0.0, %v5506
    %5508 = vdwg.mxu0
    %5509 = vrot.lane.b32.xlu0 %v5358, 1
    %v5510 = vpop.permute.xlu0 %5509
    %5511 = vrot.lane.b32.xlu0 %v5362, 1
    %v5512 = vpop.permute.xlu0 %5511
    %5513 = vrot.lane.b32.xlu0 %v5368, 1
    %v5514 = vpop.permute.xlu0 %5513
    %5515 = vrot.lane.b32.xlu0 %v5372, 1
    %v5516 = vpop.permute.xlu0 %5515
    %5517 = vrot.lane.b32.xlu0 %v5360, 1
    %v5518 = vpop.permute.xlu0 %5517
    %5519 = vrot.lane.b32.xlu0 %v5364, 1
    %v5520 = vpop.permute.xlu0 %5519
    %5521 = vrot.lane.b32.xlu0 %v5370, 1
    %v5522 = vpop.permute.xlu0 %5521
    %5523 = vrot.lane.b32.xlu0 %v5374, 1
    %v5524 = vpop.permute.xlu0 %5523
    %5525 = vrot.lane.b32.xlu0 %v5451, 1
    %v5526 = vpop.permute.xlu0 %5525
    %5527 = vrot.lane.b32.xlu0 %v5455, 1
    %v5528 = vpop.permute.xlu0 %5527
    %5529 = vrot.lane.b32.xlu0 %v5461, 1
    %v5530 = vpop.permute.xlu0 %5529
    %5531 = vrot.lane.b32.xlu0 %v5465, 1
    %v5532 = vpop.permute.xlu0 %5531
    %5533 = vrot.lane.b32.xlu0 %v5453, 1
    %v5534 = vpop.permute.xlu0 %5533
    %5535 = vrot.lane.b32.xlu0 %v5457, 1
    %v5536 = vpop.permute.xlu0 %5535
    %5537 = vrot.lane.b32.xlu0 %v5463, 1
    %v5538 = vpop.permute.xlu0 %5537
    %5539 = vrot.lane.b32.xlu0 %v5467, 1
    %v5540 = vpop.permute.xlu0 %5539
    %v5541 = vsel %vm763, %v5526, %v5534
    %v5542 = vsel %vm763, %v5528, %v5536
    %v5543 = vsel %vm763, %v5530, %v5538
    %v5544 = vsel %vm763, %v5532, %v5540
    %v5545 = vsel %vm763, %v5518, %v5526
    %v5546 = vsel %vm763, %v5520, %v5528
    %v5547 = vsel %vm763, %v5522, %v5530
    %v5548 = vsel %vm763, %v5524, %v5532
    %v5549 = vsel %vm763, %v5510, %v5518
    %v5550 = vsel %vm763, %v5512, %v5520
    %v5551 = vsel %vm763, %v5514, %v5522
    %v5552 = vsel %vm763, %v5516, %v5524
    %v5553 = vsel %vm763, %v5534, %v5510
    %v5554 = vsel %vm763, %v5536, %v5512
    %v5555 = vsel %vm763, %v5538, %v5514
    %v5556 = vsel %vm763, %v5540, %v5516
    %v5557 = vmul.f32 %v5553, %v1920
    %v5558 = vmul.f32 %v5549, %v1924
    %v5559 = vmul.f32 %v5545, %v1928
    %v5560 = vmul.f32 %v5541, %v1932
    %v5561 = vmul.f32 %v5554, %v1920
    %v5562 = vmul.f32 %v5550, %v1924
    %v5563 = vmul.f32 %v5546, %v1928
    %v5564 = vmul.f32 %v5542, %v1932
    %v5565 = vmul.f32 %v5555, %v1920
    %v5566 = vmul.f32 %v5551, %v1924
    %v5567 = vmul.f32 %v5547, %v1928
    %v5568 = vmul.f32 %v5543, %v1932
    %v5569 = vmul.f32 %v5556, %v1920
    %v5570 = vmul.f32 %v5552, %v1924
    %v5571 = vmul.f32 %v5548, %v1928
    %v5572 = vmul.f32 %v5544, %v1932
    %v5573 = vadd.f32 %v5557, %v5378
    %v5574 = vadd.f32 %v5558, %v5380
    %v5575 = vadd.f32 %v5559, %v5471
    %v5576 = vadd.f32 %v5560, %v5473
    %v5577 = vadd.f32 %v5561, %v5382
    %v5578 = vadd.f32 %v5562, %v5384
    %v5579 = vadd.f32 %v5563, %v5475
    %v5580 = vadd.f32 %v5564, %v5477
    %v5581 = vadd.f32 %v5565, %v5388
    %v5582 = vadd.f32 %v5566, %v5390
    %v5583 = vadd.f32 %v5567, %v5481
    %v5584 = vadd.f32 %v5568, %v5483
    %v5585 = vadd.f32 %v5569, %v5392
    %v5586 = vadd.f32 %v5570, %v5394
    %v5587 = vadd.f32 %v5571, %v5485
    %v5588 = vadd.f32 %v5572, %v5487
    %5589 = vrot.lane.b32.xlu0 %v5398, 127
    %v5590 = vpop.permute.xlu0 %5589
    %5591 = vrot.lane.b32.xlu0 %v5402, 127
    %v5592 = vpop.permute.xlu0 %5591
    %5593 = vrot.lane.b32.xlu0 %v5408, 127
    %v5594 = vpop.permute.xlu0 %5593
    %5595 = vrot.lane.b32.xlu0 %v5412, 127
    %v5596 = vpop.permute.xlu0 %5595
    %5597 = vrot.lane.b32.xlu0 %v5400, 127
    %v5598 = vpop.permute.xlu0 %5597
    %5599 = vrot.lane.b32.xlu0 %v5404, 127
    %v5600 = vpop.permute.xlu0 %5599
    %5601 = vrot.lane.b32.xlu0 %v5410, 127
    %v5602 = vpop.permute.xlu0 %5601
    %5603 = vrot.lane.b32.xlu0 %v5414, 127
    %v5604 = vpop.permute.xlu0 %5603
    %5605 = vrot.lane.b32.xlu0 %v5491, 127
    %v5606 = vpop.permute.xlu0 %5605
    %5607 = vrot.lane.b32.xlu0 %v5495, 127
    %v5608 = vpop.permute.xlu0 %5607
    %5609 = vrot.lane.b32.xlu0 %v5501, 127
    %v5610 = vpop.permute.xlu0 %5609
    %5611 = vrot.lane.b32.xlu0 %v5505, 127
    %v5612 = vpop.permute.xlu0 %5611
    %5613 = vrot.lane.b32.xlu0 %v5493, 127
    %v5614 = vpop.permute.xlu0 %5613
    %5615 = vrot.lane.b32.xlu0 %v5497, 127
    %v5616 = vpop.permute.xlu0 %5615
    %5617 = vrot.lane.b32.xlu0 %v5503, 127
    %v5618 = vpop.permute.xlu0 %5617
    %5619 = vrot.lane.b32.xlu0 %v5507, 127
    %v5620 = vpop.permute.xlu0 %5619
    %v5621 = vsel %vm866, %v5606, %v5614
    %v5622 = vsel %vm866, %v5608, %v5616
    %v5623 = vsel %vm866, %v5610, %v5618
    %v5624 = vsel %vm866, %v5612, %v5620
    %v5625 = vsel %vm866, %v5598, %v5606
    %v5626 = vsel %vm866, %v5600, %v5608
    %v5627 = vsel %vm866, %v5602, %v5610
    %v5628 = vsel %vm866, %v5604, %v5612
    %v5629 = vsel %vm866, %v5590, %v5598
    %v5630 = vsel %vm866, %v5592, %v5600
    %v5631 = vsel %vm866, %v5594, %v5602
    %v5632 = vsel %vm866, %v5596, %v5604
    %v5633 = vsel %vm866, %v5614, %v5590
    %v5634 = vsel %vm866, %v5616, %v5592
    %v5635 = vsel %vm866, %v5618, %v5594
    %v5636 = vsel %vm866, %v5620, %v5596
    %v5637 = vmul.f32 %v5629, %v2022
    %v5638 = vmul.f32 %v5625, %v2026
    %v5639 = vmul.f32 %v5621, %v2030
    %v5640 = vmul.f32 %v5633, %v2034
    %v5641 = vmul.f32 %v5630, %v2022
    %v5642 = vmul.f32 %v5626, %v2026
    %v5643 = vmul.f32 %v5622, %v2030
    %v5644 = vmul.f32 %v5634, %v2034
    %v5645 = vmul.f32 %v5631, %v2022
    %v5646 = vmul.f32 %v5627, %v2026
    %v5647 = vmul.f32 %v5623, %v2030
    %v5648 = vmul.f32 %v5635, %v2034
    %v5649 = vmul.f32 %v5632, %v2022
    %v5650 = vmul.f32 %v5628, %v2026
    %v5651 = vmul.f32 %v5624, %v2030
    %v5652 = vmul.f32 %v5636, %v2034
    %v5653 = vadd.f32 %v5573, %v5637
    %v5654 = vadd.f32 %v5574, %v5638
    %v5655 = vadd.f32 %v5575, %v5639
    %v5656 = vadd.f32 %v5576, %v5640
    %v5657 = vadd.f32 %v5577, %v5641
    %v5658 = vadd.f32 %v5578, %v5642
    %v5659 = vadd.f32 %v5579, %v5643
    %v5660 = vadd.f32 %v5580, %v5644
    %v5661 = vadd.f32 %v5581, %v5645
    %v5662 = vadd.f32 %v5582, %v5646
    %v5663 = vadd.f32 %v5583, %v5647
    %v5664 = vadd.f32 %v5584, %v5648
    %v5665 = vadd.f32 %v5585, %v5649
    %v5666 = vadd.f32 %v5586, %v5650
    %v5667 = vadd.f32 %v5587, %v5651
    %v5668 = vadd.f32 %v5588, %v5652
    %v5669 = vmul.f32 %v4996, %v2071
    %v5670 = vmul.f32 %v4996, %v2072
    %v5671 = vmul.f32 %v4996, %v2073
    %v5672 = vmul.f32 %v4996, %v2074
    %v5673 = vmul.f32 %v4996, %v2075
    %v5674 = vmul.f32 %v4996, %v2076
    %v5675 = vmul.f32 %v4996, %v2077
    %v5676 = vmul.f32 %v4996, %v2078
    %v5677 = vmul.f32 %v4996, %v2079
    %v5678 = vmul.f32 %v4996, %v2080
    %v5679 = vmul.f32 %v4996, %v2081
    %v5680 = vmul.f32 %v4996, %v2082
    %v5681 = vmul.f32 %v4996, %v2083
    %v5682 = vmul.f32 %v4996, %v2084
    %v5683 = vmul.f32 %v4996, %v2085
    %v5684 = vmul.f32 %v4996, %v2086
    %v5685 = vadd.f32 %v5653, %v5669
    %v5686 = vadd.f32 %v5654, %v5670
    %v5687 = vadd.f32 %v5655, %v5671
    %v5688 = vadd.f32 %v5656, %v5672
    %v5689 = vadd.f32 %v5657, %v5673
    %v5690 = vadd.f32 %v5658, %v5674
    %v5691 = vadd.f32 %v5659, %v5675
    %v5692 = vadd.f32 %v5660, %v5676
    %v5693 = vadd.f32 %v5661, %v5677
    %v5694 = vadd.f32 %v5662, %v5678
    %v5695 = vadd.f32 %v5663, %v5679
    %v5696 = vadd.f32 %v5664, %v5680
    %v5697 = vadd.f32 %v5665, %v5681
    %v5698 = vadd.f32 %v5666, %v5682
    %v5699 = vadd.f32 %v5667, %v5683
    %v5700 = vadd.f32 %v5668, %v5684
    %v5701 = vadd.f32 %v5685, %v2126
    %v5702 = vadd.f32 %v5686, %v2126
    %v5703 = vadd.f32 %v5687, %v2126
    %v5704 = vadd.f32 %v5688, %v2126
    %v5705 = vadd.f32 %v5689, %v2131
    %v5706 = vadd.f32 %v5690, %v2131
    %v5707 = vadd.f32 %v5691, %v2131
    %v5708 = vadd.f32 %v5692, %v2131
    %v5709 = vadd.f32 %v5693, %v2136
    %v5710 = vadd.f32 %v5694, %v2136
    %v5711 = vadd.f32 %v5695, %v2136
    %v5712 = vadd.f32 %v5696, %v2136
    %v5713 = vadd.f32 %v5697, %v2141
    %v5714 = vadd.f32 %v5698, %v2141
    %v5715 = vadd.f32 %v5699, %v2141
    %v5716 = vadd.f32 %v5700, %v2141
    %v5717 = vmax.f32 %v5701, 0.0
    %v5718 = vmax.f32 %v5702, 0.0
    %v5719 = vmax.f32 %v5703, 0.0
    %v5720 = vmax.f32 %v5704, 0.0
    %v5721 = vmax.f32 %v5705, 0.0
    %v5722 = vmax.f32 %v5706, 0.0
    %v5723 = vmax.f32 %v5707, 0.0
    %v5724 = vmax.f32 %v5708, 0.0
    %v5725 = vmax.f32 %v5709, 0.0
    %v5726 = vmax.f32 %v5710, 0.0
    %v5727 = vmax.f32 %v5711, 0.0
    %v5728 = vmax.f32 %v5712, 0.0
    %v5729 = vmax.f32 %v5713, 0.0
    %v5730 = vmax.f32 %v5714, 0.0
    %v5731 = vmax.f32 %v5715, 0.0
    %v5732 = vmax.f32 %v5716, 0.0
    %v5733 = vpack.c.bf16 %v5721, %v5717
    %v5734 = vpack.c.bf16 %v5722, %v5718
    %v5735 = vpack.c.bf16 %v5723, %v5719
    %v5736 = vpack.c.bf16 %v5724, %v5720
    %v5737 = vpack.c.bf16 %v5729, %v5725
    %v5738 = vpack.c.bf16 %v5730, %v5726
    %v5739 = vpack.c.bf16 %v5731, %v5727
    %v5740 = vpack.c.bf16 %v5732, %v5728
    %v5741 = vmul.f32 %v4996, %v2184
    %5743 = vset.pattern.permute.xlu0 0
    %5744 = vperm.xlu0 %5743, %v5741
    %v5745 = vpop.permute.xlu0 %5744
    %5747 = vmatprep.subr.bf16.mxu0 %v5734
    %5748 = vmatpush1.bf16.msra.mxu0 %v5733
    %5749 = vmatprep.subr.bf16.mxu0 %v5738
    %5750 = vmatpush1.bf16.msra.mxu0 %v5737
    %5751 = vmatprep.subr.bf16.mxu0 0
    %5752 = vmatpush1.bf16.msra.mxu0 0
    %5753 = vmatprep.subr.bf16.mxu0 0
    %5754 = vmatpush1.bf16.msra.mxu0 0
    %5755 = vmatprep.subr.bf16.mxu0 0
    %5756 = vmatpush1.bf16.msra.mxu0 0
    %5757 = vmatprep.subr.bf16.mxu0 0
    %5758 = vmatpush1.bf16.msra.mxu0 0
    %5759 = vmatprep.subr.bf16.mxu0 0
    %5760 = vmatpush1.bf16.msra.mxu0 0
    %5761 = vmatprep.subr.bf16.mxu0 0
    %5762 = vmatpush1.bf16.msra.mxu0 0
    %5763 = vmatprep.subr.bf16.mxu0 0
    %5764 = vmatpush1.bf16.msra.mxu0 0
    %5765 = vmatprep.subr.bf16.mxu0 0
    %5766 = vmatpush1.bf16.msra.mxu0 0
    %5767 = vmatprep.subr.bf16.mxu0 0
    %5768 = vmatpush1.bf16.msra.mxu0 0
    %5769 = vmatprep.subr.bf16.mxu0 0
    %5770 = vmatpush1.bf16.msra.mxu0 0
    %5771 = vmatprep.subr.bf16.mxu0 0
    %5772 = vmatpush1.bf16.msra.mxu0 0
    %5773 = vmatprep.subr.bf16.mxu0 0
    %5774 = vmatpush1.bf16.msra.mxu0 0
    %5775 = vmatprep.subr.bf16.mxu0 0
    %5776 = vmatpush1.bf16.msra.mxu0 0
    %5777 = vmatprep.subr.bf16.mxu0 0
    %5778 = vmatpush1.bf16.msra.mxu0 0
    %5779 = vmatprep.mubr.bf16.mxu0 0
    %5780 = vmatmul.mubr.bf16.gmra.mrb[0].mxu0 %v2192
    %v5781 = vpop.f32.mrb[0].mxu0
    %v5782 = vadd.f32 %v5745, %v5781
    %v5783 = vpop.f32.mrb[0].mxu0
    %v5784 = vadd.f32 %v5745, %v5783
    %v5785 = vpop.f32.mrb[0].mxu0
    %v5786 = vpop.f32.mrb[0].mxu0
    %5787 = vdwg.mxu0
    %5788 = vmatprep.subr.bf16.mxu0 %v5736
    %5789 = vmatpush1.bf16.msra.mxu0 %v5735
    %5790 = vmatprep.subr.bf16.mxu0 %v5740
    %5791 = vmatpush1.bf16.msra.mxu0 %v5739
    %5792 = vmatprep.subr.bf16.mxu0 0
    %5793 = vmatpush1.bf16.msra.mxu0 0
    %5794 = vmatprep.subr.bf16.mxu0 0
    %5795 = vmatpush1.bf16.msra.mxu0 0
    %5796 = vmatprep.subr.bf16.mxu0 0
    %5797 = vmatpush1.bf16.msra.mxu0 0
    %5798 = vmatprep.subr.bf16.mxu0 0
    %5799 = vmatpush1.bf16.msra.mxu0 0
    %5800 = vmatprep.subr.bf16.mxu0 0
    %5801 = vmatpush1.bf16.msra.mxu0 0
    %5802 = vmatprep.subr.bf16.mxu0 0
    %5803 = vmatpush1.bf16.msra.mxu0 0
    %5804 = vmatprep.subr.bf16.mxu0 0
    %5805 = vmatpush1.bf16.msra.mxu0 0
    %5806 = vmatprep.subr.bf16.mxu0 0
    %5807 = vmatpush1.bf16.msra.mxu0 0
    %5808 = vmatprep.subr.bf16.mxu0 0
    %5809 = vmatpush1.bf16.msra.mxu0 0
    %5810 = vmatprep.subr.bf16.mxu0 0
    %5811 = vmatpush1.bf16.msra.mxu0 0
    %5812 = vmatprep.subr.bf16.mxu0 0
    %5813 = vmatpush1.bf16.msra.mxu0 0
    %5814 = vmatprep.subr.bf16.mxu0 0
    %5815 = vmatpush1.bf16.msra.mxu0 0
    %5816 = vmatprep.subr.bf16.mxu0 0
    %5817 = vmatpush1.bf16.msra.mxu0 0
    %5818 = vmatprep.subr.bf16.mxu0 0
    %5819 = vmatpush1.bf16.msra.mxu0 0
    %5820 = vmatprep.mubr.bf16.mxu0 0
    %5821 = vmatmul.mubr.bf16.gmra.mrb[0].mxu0 %v2192
    %v5822 = vpop.f32.mrb[0].mxu0
    %v5823 = vadd.f32 %v5745, %v5822
    %v5824 = vpop.f32.mrb[0].mxu0
    %v5825 = vadd.f32 %v5745, %v5824
    %v5826 = vpop.f32.mrb[0].mxu0
    %v5827 = vpop.f32.mrb[0].mxu0
    %5828 = vdwg.mxu0
    %v5829 = vadd.f32 %v5782, %v2280
    %v5830 = vadd.f32 %v5784, %v2280
    %v5831 = vadd.f32 %v5823, %v2280
    %v5832 = vadd.f32 %v5825, %v2280
    %v5833 = vmul.f32 %v1159, 0.091145836
    %v5834 = vmul.f32 %v1160, 0.091145836
    %v5835 = vmul.f32 %v1161, 0.091145836
    %v5836 = vmul.f32 %v1162, 0.091145836
    %v5837 = vmul.f32 %v3157, 0.4492363
    %v5838 = vmul.f32 %v3158, 0.4492363
    %v5839 = vmul.f32 %v3159, 0.4492363
    %v5840 = vmul.f32 %v3160, 0.4492363
    %v5841 = vadd.f32 %v5833, %v5837
    %v5842 = vadd.f32 %v5834, %v5838
    %v5843 = vadd.f32 %v5835, %v5839
    %v5844 = vadd.f32 %v5836, %v5840
    %v5845 = vmul.f32 %v4040, 0.6510417
    %v5846 = vmul.f32 %v4041, 0.6510417
    %v5847 = vmul.f32 %v4042, 0.6510417
    %v5848 = vmul.f32 %v4043, 0.6510417
    %v5849 = vadd.f32 %v5841, %v5845
    %v5850 = vadd.f32 %v5842, %v5846
    %v5851 = vadd.f32 %v5843, %v5847
    %v5852 = vadd.f32 %v5844, %v5848
    %v5853 = vmul.f32 %v4931, -0.3223762
    %v5854 = vmul.f32 %v4932, -0.3223762
    %v5855 = vmul.f32 %v4933, -0.3223762
    %v5856 = vmul.f32 %v4934, -0.3223762
    %v5857 = vadd.f32 %v5849, %v5853
    %v5858 = vadd.f32 %v5850, %v5854
    %v5859 = vadd.f32 %v5851, %v5855
    %v5860 = vadd.f32 %v5852, %v5856
    %v5861 = vmul.f32 %v5829, 0.13095239
    %v5862 = vmul.f32 %v5830, 0.13095239
    %v5863 = vmul.f32 %v5831, 0.13095239
    %v5864 = vmul.f32 %v5832, 0.13095239
    %v5865 = vadd.f32 %v5857, %v5861
    %v5866 = vadd.f32 %v5858, %v5862
    %v5867 = vadd.f32 %v5859, %v5863
    %v5868 = vadd.f32 %v5860, %v5864
    %v5869 = vmul.f32 %v1177, %v5865
    %v5870 = vmul.f32 %v1177, %v5866
    %v5871 = vmul.f32 %v1177, %v5867
    %v5872 = vmul.f32 %v1177, %v5868
    %v5877 = vcombine.low %v5869, %v5870
    %v5878 = vcombine.low %v5871, %v5872
    %v5881 = vadd.f32 %v1157, %v5877
    %v5882 = vadd.f32 %v1158, %v5878
    %v5885 = vcombine.high %v5881, %v5881
    %v5886 = vcombine.high %v5882, %v5882
    %v5889 = vpack.c.bf16 %v5881, %v5881
    %v5890 = vpack.c.bf16 %v5885, %v5885
    %v5891 = vpack.c.bf16 %v5882, %v5882
    %v5892 = vpack.c.bf16 %v5886, %v5886
    %v5894 = vsel %vm109, %v5889, 0
    %v5897 = vsel %vm109, %v5890, 0
    %v5900 = vsel %vm109, %v5891, 0
    %v5903 = vsel %vm109, %v5892, 0
    %5905 = vmatprep.subr.bf16.mxu0 %v5897
    %5906 = vmatpush1.bf16.msra.mxu0 %v5894
    %5907 = vmatprep.subr.bf16.mxu0 0
    %5908 = vmatpush1.bf16.msra.mxu0 0
    %5909 = vmatprep.subr.bf16.mxu0 0
    %5910 = vmatpush1.bf16.msra.mxu0 0
    %5911 = vmatprep.subr.bf16.mxu0 0
    %5912 = vmatpush1.bf16.msra.mxu0 0
    %5913 = vmatprep.subr.bf16.mxu0 0
    %5914 = vmatpush1.bf16.msra.mxu0 0
    %5915 = vmatprep.subr.bf16.mxu0 0
    %5916 = vmatpush1.bf16.msra.mxu0 0
    %5917 = vmatprep.subr.bf16.mxu0 0
    %5918 = vmatpush1.bf16.msra.mxu0 0
    %5919 = vmatprep.subr.bf16.mxu0 0
    %5920 = vmatpush1.bf16.msra.mxu0 0
    %5921 = vmatprep.subr.bf16.mxu0 0
    %5922 = vmatpush1.bf16.msra.mxu0 0
    %5923 = vmatprep.subr.bf16.mxu0 0
    %5924 = vmatpush1.bf16.msra.mxu0 0
    %5925 = vmatprep.subr.bf16.mxu0 0
    %5926 = vmatpush1.bf16.msra.mxu0 0
    %5927 = vmatprep.subr.bf16.mxu0 0
    %5928 = vmatpush1.bf16.msra.mxu0 0
    %5929 = vmatprep.subr.bf16.mxu0 0
    %5930 = vmatpush1.bf16.msra.mxu0 0
    %5931 = vmatprep.subr.bf16.mxu0 0
    %5932 = vmatpush1.bf16.msra.mxu0 0
    %5933 = vmatprep.subr.bf16.mxu0 0
    %5934 = vmatpush1.bf16.msra.mxu0 0
    %5935 = vmatprep.subr.bf16.mxu0 0
    %5936 = vmatpush1.bf16.msra.mxu0 0
    %5937 = vmatprep.mubr.bf16.mxu0 0
    %5938 = vmatmul.mubr.bf16.gmra.mrb[0].mxu0 %v1246
    %v5939 = vpop.f32.mrb[0].mxu0
    %v5940 = vadd.f32 %v5004, %v5939
    %v5941 = vpop.f32.mrb[0].mxu0
    %v5942 = vadd.f32 %v5004, %v5941
    %v5943 = vpop.f32.mrb[0].mxu0
    %v5944 = vadd.f32 %v5009, %v5943
    %v5945 = vpop.f32.mrb[0].mxu0
    %v5946 = vadd.f32 %v5009, %v5945
    %5947 = vmatprep.mubr.bf16.mxu0 0
    %5948 = vmatmul.mubr.bf16.gmra.mrb[0].mxu0 %v1249
    %v5949 = vpop.f32.mrb[0].mxu0
    %v5950 = vadd.f32 %v5014, %v5949
    %v5951 = vpop.f32.mrb[0].mxu0
    %v5952 = vadd.f32 %v5014, %v5951
    %v5953 = vpop.f32.mrb[0].mxu0
    %v5954 = vadd.f32 %v5019, %v5953
    %v5955 = vpop.f32.mrb[0].mxu0
    %v5956 = vadd.f32 %v5019, %v5955
    %5957 = vdwg.mxu0
    %5958 = vmatprep.subr.bf16.mxu0 %v5903
    %5959 = vmatpush1.bf16.msra.mxu0 %v5900
    %5960 = vmatprep.subr.bf16.mxu0 0
    %5961 = vmatpush1.bf16.msra.mxu0 0
    %5962 = vmatprep.subr.bf16.mxu0 0
    %5963 = vmatpush1.bf16.msra.mxu0 0
    %5964 = vmatprep.subr.bf16.mxu0 0
    %5965 = vmatpush1.bf16.msra.mxu0 0
    %5966 = vmatprep.subr.bf16.mxu0 0
    %5967 = vmatpush1.bf16.msra.mxu0 0
    %5968 = vmatprep.subr.bf16.mxu0 0
    %5969 = vmatpush1.bf16.msra.mxu0 0
    %5970 = vmatprep.subr.bf16.mxu0 0
    %5971 = vmatpush1.bf16.msra.mxu0 0
    %5972 = vmatprep.subr.bf16.mxu0 0
    %5973 = vmatpush1.bf16.msra.mxu0 0
    %5974 = vmatprep.subr.bf16.mxu0 0
    %5975 = vmatpush1.bf16.msra.mxu0 0
    %5976 = vmatprep.subr.bf16.mxu0 0
    %5977 = vmatpush1.bf16.msra.mxu0 0
    %5978 = vmatprep.subr.bf16.mxu0 0
    %5979 = vmatpush1.bf16.msra.mxu0 0
    %5980 = vmatprep.subr.bf16.mxu0 0
    %5981 = vmatpush1.bf16.msra.mxu0 0
    %5982 = vmatprep.subr.bf16.mxu0 0
    %5983 = vmatpush1.bf16.msra.mxu0 0
    %5984 = vmatprep.subr.bf16.mxu0 0
    %5985 = vmatpush1.bf16.msra.mxu0 0
    %5986 = vmatprep.subr.bf16.mxu0 0
    %5987 = vmatpush1.bf16.msra.mxu0 0
    %5988 = vmatprep.subr.bf16.mxu0 0
    %5989 = vmatpush1.bf16.msra.mxu0 0
    %5990 = vmatprep.mubr.bf16.mxu0 0
    %5991 = vmatmul.mubr.bf16.gmra.mrb[0].mxu0 %v1246
    %v5992 = vpop.f32.mrb[0].mxu0
    %v5993 = vadd.f32 %v5004, %v5992
    %v5994 = vpop.f32.mrb[0].mxu0
    %v5995 = vadd.f32 %v5004, %v5994
    %v5996 = vpop.f32.mrb[0].mxu0
    %v5997 = vadd.f32 %v5009, %v5996
    %v5998 = vpop.f32.mrb[0].mxu0
    %v5999 = vadd.f32 %v5009, %v5998
    %6000 = vmatprep.mubr.bf16.mxu0 0
    %6001 = vmatmul.mubr.bf16.gmra.mrb[0].mxu0 %v1249
    %v6002 = vpop.f32.mrb[0].mxu0
    %v6003 = vadd.f32 %v5014, %v6002
    %v6004 = vpop.f32.mrb[0].mxu0
    %v6005 = vadd.f32 %v5014, %v6004
    %v6006 = vpop.f32.mrb[0].mxu0
    %v6007 = vadd.f32 %v5019, %v6006
    %v6008 = vpop.f32.mrb[0].mxu0
    %v6009 = vadd.f32 %v5019, %v6008
    %6010 = vdwg.mxu0
    %v6011 = vadd.f32 %v5940, %v1376
    %v6012 = vadd.f32 %v5942, %v1376
    %v6013 = vadd.f32 %v5993, %v1376
    %v6014 = vadd.f32 %v5995, %v1376
    %v6015 = vadd.f32 %v5944, %v1381
    %v6016 = vadd.f32 %v5946, %v1381
    %v6017 = vadd.f32 %v5997, %v1381
    %v6018 = vadd.f32 %v5999, %v1381
    %v6019 = vadd.f32 %v5950, %v1386
    %v6020 = vadd.f32 %v5952, %v1386
    %v6021 = vadd.f32 %v6003, %v1386
    %v6022 = vadd.f32 %v6005, %v1386
    %v6023 = vadd.f32 %v5954, %v1391
    %v6024 = vadd.f32 %v5956, %v1391
    %v6025 = vadd.f32 %v6007, %v1391
    %v6026 = vadd.f32 %v6009, %v1391
    %v6027 = vmax.f32 %v6011, 0.0
    %v6028 = vmax.f32 %v6012, 0.0
    %v6029 = vmax.f32 %v6013, 0.0
    %v6030 = vmax.f32 %v6014, 0.0
    %v6031 = vmax.f32 %v6015, 0.0
    %v6032 = vmax.f32 %v6016, 0.0
    %v6033 = vmax.f32 %v6017, 0.0
    %v6034 = vmax.f32 %v6018, 0.0
    %v6035 = vmax.f32 %v6019, 0.0
    %v6036 = vmax.f32 %v6020, 0.0
    %v6037 = vmax.f32 %v6021, 0.0
    %v6038 = vmax.f32 %v6022, 0.0
    %v6039 = vmax.f32 %v6023, 0.0
    %v6040 = vmax.f32 %v6024, 0.0
    %v6041 = vmax.f32 %v6025, 0.0
    %v6042 = vmax.f32 %v6026, 0.0
    %6043 = vrot.lane.b32.xlu0 %v6027, 16
    %v6044 = vpop.permute.xlu0 %6043
    %6045 = vrot.lane.b32.xlu0 %v6031, 16
    %v6046 = vpop.permute.xlu0 %6045
    %6047 = vrot.lane.b32.xlu0 %v6035, 16
    %v6048 = vpop.permute.xlu0 %6047
    %6049 = vrot.lane.b32.xlu0 %v6039, 16
    %v6050 = vpop.permute.xlu0 %6049
    %6051 = vrot.lane.b32.xlu0 %v6028, 16
    %v6052 = vpop.permute.xlu0 %6051
    %6053 = vrot.lane.b32.xlu0 %v6032, 16
    %v6054 = vpop.permute.xlu0 %6053
    %6055 = vrot.lane.b32.xlu0 %v6036, 16
    %v6056 = vpop.permute.xlu0 %6055
    %6057 = vrot.lane.b32.xlu0 %v6040, 16
    %v6058 = vpop.permute.xlu0 %6057
    %6059 = vrot.lane.b32.xlu0 %v6029, 16
    %v6060 = vpop.permute.xlu0 %6059
    %6061 = vrot.lane.b32.xlu0 %v6033, 16
    %v6062 = vpop.permute.xlu0 %6061
    %6063 = vrot.lane.b32.xlu0 %v6037, 16
    %v6064 = vpop.permute.xlu0 %6063
    %6065 = vrot.lane.b32.xlu0 %v6041, 16
    %v6066 = vpop.permute.xlu0 %6065
    %6067 = vrot.lane.b32.xlu0 %v6030, 16
    %v6068 = vpop.permute.xlu0 %6067
    %6069 = vrot.lane.b32.xlu0 %v6034, 16
    %v6070 = vpop.permute.xlu0 %6069
    %6071 = vrot.lane.b32.xlu0 %v6038, 16
    %v6072 = vpop.permute.xlu0 %6071
    %6073 = vrot.lane.b32.xlu0 %v6042, 16
    %v6074 = vpop.permute.xlu0 %6073
    %v6075 = vsel %vm318, %v6060, %v6068
    %v6076 = vsel %vm318, %v6062, %v6070
    %v6077 = vsel %vm318, %v6064, %v6072
    %v6078 = vsel %vm318, %v6066, %v6074
    %v6079 = vsel %vm318, %v6052, %v6060
    %v6080 = vsel %vm318, %v6054, %v6062
    %v6081 = vsel %vm318, %v6056, %v6064
    %v6082 = vsel %vm318, %v6058, %v6066
    %v6083 = vsel %vm318, %v6044, %v6052
    %v6084 = vsel %vm318, %v6046, %v6054
    %v6085 = vsel %vm318, %v6048, %v6056
    %v6086 = vsel %vm318, %v6050, %v6058
    %v6087 = vsel %vm318, %v6068, %v6044
    %v6088 = vsel %vm318, %v6070, %v6046
    %v6089 = vsel %vm318, %v6072, %v6048
    %v6090 = vsel %vm318, %v6074, %v6050
    %v6091 = vmul.f32 %v6087, %v1478
    %v6092 = vmul.f32 %v6083, %v1482
    %v6093 = vmul.f32 %v6079, %v1486
    %v6094 = vmul.f32 %v6075, %v1490
    %v6095 = vmul.f32 %v6088, %v1478
    %v6096 = vmul.f32 %v6084, %v1482
    %v6097 = vmul.f32 %v6080, %v1486
    %v6098 = vmul.f32 %v6076, %v1490
    %v6099 = vmul.f32 %v6089, %v1478
    %v6100 = vmul.f32 %v6085, %v1482
    %v6101 = vmul.f32 %v6081, %v1486
    %v6102 = vmul.f32 %v6077, %v1490
    %v6103 = vmul.f32 %v6090, %v1478
    %v6104 = vmul.f32 %v6086, %v1482
    %v6105 = vmul.f32 %v6082, %v1486
    %v6106 = vmul.f32 %v6078, %v1490
    %6107 = vrot.lane.b32.xlu0 %v6027, 112
    %v6108 = vpop.permute.xlu0 %6107
    %6109 = vrot.lane.b32.xlu0 %v6031, 112
    %v6110 = vpop.permute.xlu0 %6109
    %6111 = vrot.lane.b32.xlu0 %v6035, 112
    %v6112 = vpop.permute.xlu0 %6111
    %6113 = vrot.lane.b32.xlu0 %v6039, 112
    %v6114 = vpop.permute.xlu0 %6113
    %6115 = vrot.lane.b32.xlu0 %v6028, 112
    %v6116 = vpop.permute.xlu0 %6115
    %6117 = vrot.lane.b32.xlu0 %v6032, 112
    %v6118 = vpop.permute.xlu0 %6117
    %6119 = vrot.lane.b32.xlu0 %v6036, 112
    %v6120 = vpop.permute.xlu0 %6119
    %6121 = vrot.lane.b32.xlu0 %v6040, 112
    %v6122 = vpop.permute.xlu0 %6121
    %6123 = vrot.lane.b32.xlu0 %v6029, 112
    %v6124 = vpop.permute.xlu0 %6123
    %6125 = vrot.lane.b32.xlu0 %v6033, 112
    %v6126 = vpop.permute.xlu0 %6125
    %6127 = vrot.lane.b32.xlu0 %v6037, 112
    %v6128 = vpop.permute.xlu0 %6127
    %6129 = vrot.lane.b32.xlu0 %v6041, 112
    %v6130 = vpop.permute.xlu0 %6129
    %6131 = vrot.lane.b32.xlu0 %v6030, 112
    %v6132 = vpop.permute.xlu0 %6131
    %6133 = vrot.lane.b32.xlu0 %v6034, 112
    %v6134 = vpop.permute.xlu0 %6133
    %6135 = vrot.lane.b32.xlu0 %v6038, 112
    %v6136 = vpop.permute.xlu0 %6135
    %6137 = vrot.lane.b32.xlu0 %v6042, 112
    %v6138 = vpop.permute.xlu0 %6137
    %v6139 = vsel %vm405, %v6124, %v6132
    %v6140 = vsel %vm405, %v6126, %v6134
    %v6141 = vsel %vm405, %v6128, %v6136
    %v6142 = vsel %vm405, %v6130, %v6138
    %v6143 = vsel %vm405, %v6116, %v6124
    %v6144 = vsel %vm405, %v6118, %v6126
    %v6145 = vsel %vm405, %v6120, %v6128
    %v6146 = vsel %vm405, %v6122, %v6130
    %v6147 = vsel %vm405, %v6108, %v6116
    %v6148 = vsel %vm405, %v6110, %v6118
    %v6149 = vsel %vm405, %v6112, %v6120
    %v6150 = vsel %vm405, %v6114, %v6122
    %v6151 = vsel %vm405, %v6132, %v6108
    %v6152 = vsel %vm405, %v6134, %v6110
    %v6153 = vsel %vm405, %v6136, %v6112
    %v6154 = vsel %vm405, %v6138, %v6114
    %v6155 = vmul.f32 %v6147, %v1564
    %v6156 = vmul.f32 %v6143, %v1568
    %v6157 = vmul.f32 %v6139, %v1572
    %v6158 = vmul.f32 %v6151, %v1576
    %v6159 = vmul.f32 %v6148, %v1564
    %v6160 = vmul.f32 %v6144, %v1568
    %v6161 = vmul.f32 %v6140, %v1572
    %v6162 = vmul.f32 %v6152, %v1576
    %v6163 = vmul.f32 %v6149, %v1564
    %v6164 = vmul.f32 %v6145, %v1568
    %v6165 = vmul.f32 %v6141, %v1572
    %v6166 = vmul.f32 %v6153, %v1576
    %v6167 = vmul.f32 %v6150, %v1564
    %v6168 = vmul.f32 %v6146, %v1568
    %v6169 = vmul.f32 %v6142, %v1572
    %v6170 = vmul.f32 %v6154, %v1576
    %v6171 = vpack.c.bf16 %v6095, %v6091
    %v6172 = vpack.c.bf16 %v6096, %v6092
    %v6173 = vpack.c.bf16 %v6097, %v6093
    %v6174 = vpack.c.bf16 %v6098, %v6094
    %v6175 = vpack.c.bf16 %v6103, %v6099
    %v6176 = vpack.c.bf16 %v6104, %v6100
    %v6177 = vpack.c.bf16 %v6105, %v6101
    %v6178 = vpack.c.bf16 %v6106, %v6102
    %v6179 = vpack.c.bf16 %v6031, %v6027
    %v6180 = vpack.c.bf16 %v6032, %v6028
    %v6181 = vpack.c.bf16 %v6033, %v6029
    %v6182 = vpack.c.bf16 %v6034, %v6030
    %v6183 = vpack.c.bf16 %v6039, %v6035
    %v6184 = vpack.c.bf16 %v6040, %v6036
    %v6185 = vpack.c.bf16 %v6041, %v6037
    %v6186 = vpack.c.bf16 %v6042, %v6038
    %v6187 = vpack.c.bf16 %v6159, %v6155
    %v6188 = vpack.c.bf16 %v6160, %v6156
    %v6189 = vpack.c.bf16 %v6161, %v6157
    %v6190 = vpack.c.bf16 %v6162, %v6158
    %v6191 = vpack.c.bf16 %v6167, %v6163
    %v6192 = vpack.c.bf16 %v6168, %v6164
    %v6193 = vpack.c.bf16 %v6169, %v6165
    %v6194 = vpack.c.bf16 %v6170, %v6166
    %6195 = vmatprep.subr.bf16.mxu0 %v6172
    %6196 = vmatpush1.bf16.msra.mxu0 %v6171
    %6197 = vmatprep.subr.bf16.mxu0 %v6176
    %6198 = vmatpush1.bf16.msra.mxu0 %v6175
    %6199 = vmatprep.subr.bf16.mxu0 %v6180
    %6200 = vmatpush1.bf16.msra.mxu0 %v6179
    %6201 = vmatprep.subr.bf16.mxu0 %v6184
    %6202 = vmatpush1.bf16.msra.mxu0 %v6183
    %6203 = vmatprep.subr.bf16.mxu0 %v6188
    %6204 = vmatpush1.bf16.msra.mxu0 %v6187
    %6205 = vmatprep.subr.bf16.mxu0 %v6192
    %6206 = vmatpush1.bf16.msra.mxu0 %v6191
    %6207 = vmatprep.subr.bf16.mxu0 0
    %6208 = vmatpush1.bf16.msra.mxu0 0
    %6209 = vmatprep.subr.bf16.mxu0 0
    %6210 = vmatpush1.bf16.msra.mxu0 0
    %6211 = vmatprep.subr.bf16.mxu0 0
    %6212 = vmatpush1.bf16.msra.mxu0 0
    %6213 = vmatprep.subr.bf16.mxu0 0
    %6214 = vmatpush1.bf16.msra.mxu0 0
    %6215 = vmatprep.subr.bf16.mxu0 0
    %6216 = vmatpush1.bf16.msra.mxu0 0
    %6217 = vmatprep.subr.bf16.mxu0 0
    %6218 = vmatpush1.bf16.msra.mxu0 0
    %6219 = vmatprep.subr.bf16.mxu0 0
    %6220 = vmatpush1.bf16.msra.mxu0 0
    %6221 = vmatprep.subr.bf16.mxu0 0
    %6222 = vmatpush1.bf16.msra.mxu0 0
    %6223 = vmatprep.subr.bf16.mxu0 0
    %6224 = vmatpush1.bf16.msra.mxu0 0
    %6225 = vmatprep.subr.bf16.mxu0 0
    %6226 = vmatpush1.bf16.msra.mxu0 0
    %6227 = vmatprep.mubr.bf16.mxu0 0
    %6228 = vmatmul.mubr.bf16.gmra.mrb[0].mxu0 %v1664
    %v6229 = vpop.f32.mrb[0].mxu0
    %v6230 = vadd.f32 0.0, %v6229
    %v6231 = vpop.f32.mrb[0].mxu0
    %v6232 = vadd.f32 0.0, %v6231
    %v6233 = vpop.f32.mrb[0].mxu0
    %v6234 = vadd.f32 0.0, %v6233
    %v6235 = vpop.f32.mrb[0].mxu0
    %v6236 = vadd.f32 0.0, %v6235
    %6237 = vmatprep.mubr.bf16.mxu0 0
    %6238 = vmatmul.mubr.bf16.gmra.mrb[0].mxu0 %v1667
    %v6239 = vpop.f32.mrb[0].mxu0
    %v6240 = vadd.f32 0.0, %v6239
    %v6241 = vpop.f32.mrb[0].mxu0
    %v6242 = vadd.f32 0.0, %v6241
    %v6243 = vpop.f32.mrb[0].mxu0
    %v6244 = vadd.f32 0.0, %v6243
    %v6245 = vpop.f32.mrb[0].mxu0
    %v6246 = vadd.f32 0.0, %v6245
    %6247 = vmatprep.mubr.bf16.mxu0 0
    %6248 = vmatmul.mubr.bf16.gmra.mrb[0].mxu0 %v1670
    %v6249 = vpop.f32.mrb[0].mxu0
    %v6250 = vadd.f32 0.0, %v6249
    %v6251 = vpop.f32.mrb[0].mxu0
    %v6252 = vadd.f32 0.0, %v6251
    %v6253 = vpop.f32.mrb[0].mxu0
    %v6254 = vadd.f32 0.0, %v6253
    %v6255 = vpop.f32.mrb[0].mxu0
    %v6256 = vadd.f32 0.0, %v6255
    %6257 = vmatprep.mubr.bf16.mxu0 0
    %6258 = vmatmul.mubr.bf16.gmra.mrb[0].mxu0 %v1673
    %v6259 = vpop.f32.mrb[0].mxu0
    %v6260 = vadd.f32 0.0, %v6259
    %v6261 = vpop.f32.mrb[0].mxu0
    %v6262 = vadd.f32 0.0, %v6261
    %v6263 = vpop.f32.mrb[0].mxu0
    %v6264 = vadd.f32 0.0, %v6263
    %v6265 = vpop.f32.mrb[0].mxu0
    %v6266 = vadd.f32 0.0, %v6265
    %6267 = vmatprep.mubr.bf16.mxu0 0
    %6268 = vmatmul.mubr.bf16.gmra.mrb[0].mxu0 %v1676
    %v6269 = vpop.f32.mrb[0].mxu0
    %v6270 = vadd.f32 0.0, %v6269
    %v6271 = vpop.f32.mrb[0].mxu0
    %v6272 = vadd.f32 0.0, %v6271
    %v6273 = vpop.f32.mrb[0].mxu0
    %v6274 = vadd.f32 0.0, %v6273
    %v6275 = vpop.f32.mrb[0].mxu0
    %v6276 = vadd.f32 0.0, %v6275
    %6277 = vmatprep.mubr.bf16.mxu0 0
    %6278 = vmatmul.mubr.bf16.gmra.mrb[0].mxu0 %v1679
    %v6279 = vpop.f32.mrb[0].mxu0
    %v6280 = vadd.f32 0.0, %v6279
    %v6281 = vpop.f32.mrb[0].mxu0
    %v6282 = vadd.f32 0.0, %v6281
    %v6283 = vpop.f32.mrb[0].mxu0
    %v6284 = vadd.f32 0.0, %v6283
    %v6285 = vpop.f32.mrb[0].mxu0
    %v6286 = vadd.f32 0.0, %v6285
    %6287 = vdwg.mxu0
    %6288 = vmatprep.subr.bf16.mxu0 %v6174
    %6289 = vmatpush1.bf16.msra.mxu0 %v6173
    %6290 = vmatprep.subr.bf16.mxu0 %v6178
    %6291 = vmatpush1.bf16.msra.mxu0 %v6177
    %6292 = vmatprep.subr.bf16.mxu0 %v6182
    %6293 = vmatpush1.bf16.msra.mxu0 %v6181
    %6294 = vmatprep.subr.bf16.mxu0 %v6186
    %6295 = vmatpush1.bf16.msra.mxu0 %v6185
    %6296 = vmatprep.subr.bf16.mxu0 %v6190
    %6297 = vmatpush1.bf16.msra.mxu0 %v6189
    %6298 = vmatprep.subr.bf16.mxu0 %v6194
    %6299 = vmatpush1.bf16.msra.mxu0 %v6193
    %6300 = vmatprep.subr.bf16.mxu0 0
    %6301 = vmatpush1.bf16.msra.mxu0 0
    %6302 = vmatprep.subr.bf16.mxu0 0
    %6303 = vmatpush1.bf16.msra.mxu0 0
    %6304 = vmatprep.subr.bf16.mxu0 0
    %6305 = vmatpush1.bf16.msra.mxu0 0
    %6306 = vmatprep.subr.bf16.mxu0 0
    %6307 = vmatpush1.bf16.msra.mxu0 0
    %6308 = vmatprep.subr.bf16.mxu0 0
    %6309 = vmatpush1.bf16.msra.mxu0 0
    %6310 = vmatprep.subr.bf16.mxu0 0
    %6311 = vmatpush1.bf16.msra.mxu0 0
    %6312 = vmatprep.subr.bf16.mxu0 0
    %6313 = vmatpush1.bf16.msra.mxu0 0
    %6314 = vmatprep.subr.bf16.mxu0 0
    %6315 = vmatpush1.bf16.msra.mxu0 0
    %6316 = vmatprep.subr.bf16.mxu0 0
    %6317 = vmatpush1.bf16.msra.mxu0 0
    %6318 = vmatprep.subr.bf16.mxu0 0
    %6319 = vmatpush1.bf16.msra.mxu0 0
    %6320 = vmatprep.mubr.bf16.mxu0 0
    %6321 = vmatmul.mubr.bf16.gmra.mrb[0].mxu0 %v1664
    %v6322 = vpop.f32.mrb[0].mxu0
    %v6323 = vadd.f32 0.0, %v6322
    %v6324 = vpop.f32.mrb[0].mxu0
    %v6325 = vadd.f32 0.0, %v6324
    %v6326 = vpop.f32.mrb[0].mxu0
    %v6327 = vadd.f32 0.0, %v6326
    %v6328 = vpop.f32.mrb[0].mxu0
    %v6329 = vadd.f32 0.0, %v6328
    %6330 = vmatprep.mubr.bf16.mxu0 0
    %6331 = vmatmul.mubr.bf16.gmra.mrb[0].mxu0 %v1667
    %v6332 = vpop.f32.mrb[0].mxu0
    %v6333 = vadd.f32 0.0, %v6332
    %v6334 = vpop.f32.mrb[0].mxu0
    %v6335 = vadd.f32 0.0, %v6334
    %v6336 = vpop.f32.mrb[0].mxu0
    %v6337 = vadd.f32 0.0, %v6336
    %v6338 = vpop.f32.mrb[0].mxu0
    %v6339 = vadd.f32 0.0, %v6338
    %6340 = vmatprep.mubr.bf16.mxu0 0
    %6341 = vmatmul.mubr.bf16.gmra.mrb[0].mxu0 %v1670
    %v6342 = vpop.f32.mrb[0].mxu0
    %v6343 = vadd.f32 0.0, %v6342
    %v6344 = vpop.f32.mrb[0].mxu0
    %v6345 = vadd.f32 0.0, %v6344
    %v6346 = vpop.f32.mrb[0].mxu0
    %v6347 = vadd.f32 0.0, %v6346
    %v6348 = vpop.f32.mrb[0].mxu0
    %v6349 = vadd.f32 0.0, %v6348
    %6350 = vmatprep.mubr.bf16.mxu0 0
    %6351 = vmatmul.mubr.bf16.gmra.mrb[0].mxu0 %v1673
    %v6352 = vpop.f32.mrb[0].mxu0
    %v6353 = vadd.f32 0.0, %v6352
    %v6354 = vpop.f32.mrb[0].mxu0
    %v6355 = vadd.f32 0.0, %v6354
    %v6356 = vpop.f32.mrb[0].mxu0
    %v6357 = vadd.f32 0.0, %v6356
    %v6358 = vpop.f32.mrb[0].mxu0
    %v6359 = vadd.f32 0.0, %v6358
    %6360 = vmatprep.mubr.bf16.mxu0 0
    %6361 = vmatmul.mubr.bf16.gmra.mrb[0].mxu0 %v1676
    %v6362 = vpop.f32.mrb[0].mxu0
    %v6363 = vadd.f32 0.0, %v6362
    %v6364 = vpop.f32.mrb[0].mxu0
    %v6365 = vadd.f32 0.0, %v6364
    %v6366 = vpop.f32.mrb[0].mxu0
    %v6367 = vadd.f32 0.0, %v6366
    %v6368 = vpop.f32.mrb[0].mxu0
    %v6369 = vadd.f32 0.0, %v6368
    %6370 = vmatprep.mubr.bf16.mxu0 0
    %6371 = vmatmul.mubr.bf16.gmra.mrb[0].mxu0 %v1679
    %v6372 = vpop.f32.mrb[0].mxu0
    %v6373 = vadd.f32 0.0, %v6372
    %v6374 = vpop.f32.mrb[0].mxu0
    %v6375 = vadd.f32 0.0, %v6374
    %v6376 = vpop.f32.mrb[0].mxu0
    %v6377 = vadd.f32 0.0, %v6376
    %v6378 = vpop.f32.mrb[0].mxu0
    %v6379 = vadd.f32 0.0, %v6378
    %6380 = vdwg.mxu0
    %6381 = vrot.lane.b32.xlu0 %v6230, 1
    %v6382 = vpop.permute.xlu0 %6381
    %6383 = vrot.lane.b32.xlu0 %v6234, 1
    %v6384 = vpop.permute.xlu0 %6383
    %6385 = vrot.lane.b32.xlu0 %v6240, 1
    %v6386 = vpop.permute.xlu0 %6385
    %6387 = vrot.lane.b32.xlu0 %v6244, 1
    %v6388 = vpop.permute.xlu0 %6387
    %6389 = vrot.lane.b32.xlu0 %v6232, 1
    %v6390 = vpop.permute.xlu0 %6389
    %6391 = vrot.lane.b32.xlu0 %v6236, 1
    %v6392 = vpop.permute.xlu0 %6391
    %6393 = vrot.lane.b32.xlu0 %v6242, 1
    %v6394 = vpop.permute.xlu0 %6393
    %6395 = vrot.lane.b32.xlu0 %v6246, 1
    %v6396 = vpop.permute.xlu0 %6395
    %6397 = vrot.lane.b32.xlu0 %v6323, 1
    %v6398 = vpop.permute.xlu0 %6397
    %6399 = vrot.lane.b32.xlu0 %v6327, 1
    %v6400 = vpop.permute.xlu0 %6399
    %6401 = vrot.lane.b32.xlu0 %v6333, 1
    %v6402 = vpop.permute.xlu0 %6401
    %6403 = vrot.lane.b32.xlu0 %v6337, 1
    %v6404 = vpop.permute.xlu0 %6403
    %6405 = vrot.lane.b32.xlu0 %v6325, 1
    %v6406 = vpop.permute.xlu0 %6405
    %6407 = vrot.lane.b32.xlu0 %v6329, 1
    %v6408 = vpop.permute.xlu0 %6407
    %6409 = vrot.lane.b32.xlu0 %v6335, 1
    %v6410 = vpop.permute.xlu0 %6409
    %6411 = vrot.lane.b32.xlu0 %v6339, 1
    %v6412 = vpop.permute.xlu0 %6411
    %v6413 = vsel %vm763, %v6398, %v6406
    %v6414 = vsel %vm763, %v6400, %v6408
    %v6415 = vsel %vm763, %v6402, %v6410
    %v6416 = vsel %vm763, %v6404, %v6412
    %v6417 = vsel %vm763, %v6390, %v6398
    %v6418 = vsel %vm763, %v6392, %v6400
    %v6419 = vsel %vm763, %v6394, %v6402
    %v6420 = vsel %vm763, %v6396, %v6404
    %v6421 = vsel %vm763, %v6382, %v6390
    %v6422 = vsel %vm763, %v6384, %v6392
    %v6423 = vsel %vm763, %v6386, %v6394
    %v6424 = vsel %vm763, %v6388, %v6396
    %v6425 = vsel %vm763, %v6406, %v6382
    %v6426 = vsel %vm763, %v6408, %v6384
    %v6427 = vsel %vm763, %v6410, %v6386
    %v6428 = vsel %vm763, %v6412, %v6388
    %v6429 = vmul.f32 %v6425, %v1920
    %v6430 = vmul.f32 %v6421, %v1924
    %v6431 = vmul.f32 %v6417, %v1928
    %v6432 = vmul.f32 %v6413, %v1932
    %v6433 = vmul.f32 %v6426, %v1920
    %v6434 = vmul.f32 %v6422, %v1924
    %v6435 = vmul.f32 %v6418, %v1928
    %v6436 = vmul.f32 %v6414, %v1932
    %v6437 = vmul.f32 %v6427, %v1920
    %v6438 = vmul.f32 %v6423, %v1924
    %v6439 = vmul.f32 %v6419, %v1928
    %v6440 = vmul.f32 %v6415, %v1932
    %v6441 = vmul.f32 %v6428, %v1920
    %v6442 = vmul.f32 %v6424, %v1924
    %v6443 = vmul.f32 %v6420, %v1928
    %v6444 = vmul.f32 %v6416, %v1932
    %v6445 = vadd.f32 %v6429, %v6250
    %v6446 = vadd.f32 %v6430, %v6252
    %v6447 = vadd.f32 %v6431, %v6343
    %v6448 = vadd.f32 %v6432, %v6345
    %v6449 = vadd.f32 %v6433, %v6254
    %v6450 = vadd.f32 %v6434, %v6256
    %v6451 = vadd.f32 %v6435, %v6347
    %v6452 = vadd.f32 %v6436, %v6349
    %v6453 = vadd.f32 %v6437, %v6260
    %v6454 = vadd.f32 %v6438, %v6262
    %v6455 = vadd.f32 %v6439, %v6353
    %v6456 = vadd.f32 %v6440, %v6355
    %v6457 = vadd.f32 %v6441, %v6264
    %v6458 = vadd.f32 %v6442, %v6266
    %v6459 = vadd.f32 %v6443, %v6357
    %v6460 = vadd.f32 %v6444, %v6359
    %6461 = vrot.lane.b32.xlu0 %v6270, 127
    %v6462 = vpop.permute.xlu0 %6461
    %6463 = vrot.lane.b32.xlu0 %v6274, 127
    %v6464 = vpop.permute.xlu0 %6463
    %6465 = vrot.lane.b32.xlu0 %v6280, 127
    %v6466 = vpop.permute.xlu0 %6465
    %6467 = vrot.lane.b32.xlu0 %v6284, 127
    %v6468 = vpop.permute.xlu0 %6467
    %6469 = vrot.lane.b32.xlu0 %v6272, 127
    %v6470 = vpop.permute.xlu0 %6469
    %6471 = vrot.lane.b32.xlu0 %v6276, 127
    %v6472 = vpop.permute.xlu0 %6471
    %6473 = vrot.lane.b32.xlu0 %v6282, 127
    %v6474 = vpop.permute.xlu0 %6473
    %6475 = vrot.lane.b32.xlu0 %v6286, 127
    %v6476 = vpop.permute.xlu0 %6475
    %6477 = vrot.lane.b32.xlu0 %v6363, 127
    %v6478 = vpop.permute.xlu0 %6477
    %6479 = vrot.lane.b32.xlu0 %v6367, 127
    %v6480 = vpop.permute.xlu0 %6479
    %6481 = vrot.lane.b32.xlu0 %v6373, 127
    %v6482 = vpop.permute.xlu0 %6481
    %6483 = vrot.lane.b32.xlu0 %v6377, 127
    %v6484 = vpop.permute.xlu0 %6483
    %6485 = vrot.lane.b32.xlu0 %v6365, 127
    %v6486 = vpop.permute.xlu0 %6485
    %6487 = vrot.lane.b32.xlu0 %v6369, 127
    %v6488 = vpop.permute.xlu0 %6487
    %6489 = vrot.lane.b32.xlu0 %v6375, 127
    %v6490 = vpop.permute.xlu0 %6489
    %6491 = vrot.lane.b32.xlu0 %v6379, 127
    %v6492 = vpop.permute.xlu0 %6491
    %v6493 = vsel %vm866, %v6478, %v6486
    %v6494 = vsel %vm866, %v6480, %v6488
    %v6495 = vsel %vm866, %v6482, %v6490
    %v6496 = vsel %vm866, %v6484, %v6492
    %v6497 = vsel %vm866, %v6470, %v6478
    %v6498 = vsel %vm866, %v6472, %v6480
    %v6499 = vsel %vm866, %v6474, %v6482
    %v6500 = vsel %vm866, %v6476, %v6484
    %v6501 = vsel %vm866, %v6462, %v6470
    %v6502 = vsel %vm866, %v6464, %v6472
    %v6503 = vsel %vm866, %v6466, %v6474
    %v6504 = vsel %vm866, %v6468, %v6476
    %v6505 = vsel %vm866, %v6486, %v6462
    %v6506 = vsel %vm866, %v6488, %v6464
    %v6507 = vsel %vm866, %v6490, %v6466
    %v6508 = vsel %vm866, %v6492, %v6468
    %v6509 = vmul.f32 %v6501, %v2022
    %v6510 = vmul.f32 %v6497, %v2026
    %v6511 = vmul.f32 %v6493, %v2030
    %v6512 = vmul.f32 %v6505, %v2034
    %v6513 = vmul.f32 %v6502, %v2022
    %v6514 = vmul.f32 %v6498, %v2026
    %v6515 = vmul.f32 %v6494, %v2030
    %v6516 = vmul.f32 %v6506, %v2034
    %v6517 = vmul.f32 %v6503, %v2022
    %v6518 = vmul.f32 %v6499, %v2026
    %v6519 = vmul.f32 %v6495, %v2030
    %v6520 = vmul.f32 %v6507, %v2034
    %v6521 = vmul.f32 %v6504, %v2022
    %v6522 = vmul.f32 %v6500, %v2026
    %v6523 = vmul.f32 %v6496, %v2030
    %v6524 = vmul.f32 %v6508, %v2034
    %v6525 = vadd.f32 %v6445, %v6509
    %v6526 = vadd.f32 %v6446, %v6510
    %v6527 = vadd.f32 %v6447, %v6511
    %v6528 = vadd.f32 %v6448, %v6512
    %v6529 = vadd.f32 %v6449, %v6513
    %v6530 = vadd.f32 %v6450, %v6514
    %v6531 = vadd.f32 %v6451, %v6515
    %v6532 = vadd.f32 %v6452, %v6516
    %v6533 = vadd.f32 %v6453, %v6517
    %v6534 = vadd.f32 %v6454, %v6518
    %v6535 = vadd.f32 %v6455, %v6519
    %v6536 = vadd.f32 %v6456, %v6520
    %v6537 = vadd.f32 %v6457, %v6521
    %v6538 = vadd.f32 %v6458, %v6522
    %v6539 = vadd.f32 %v6459, %v6523
    %v6540 = vadd.f32 %v6460, %v6524
    %v6541 = vadd.f32 %v6525, %v5669
    %v6542 = vadd.f32 %v6526, %v5670
    %v6543 = vadd.f32 %v6527, %v5671
    %v6544 = vadd.f32 %v6528, %v5672
    %v6545 = vadd.f32 %v6529, %v5673
    %v6546 = vadd.f32 %v6530, %v5674
    %v6547 = vadd.f32 %v6531, %v5675
    %v6548 = vadd.f32 %v6532, %v5676
    %v6549 = vadd.f32 %v6533, %v5677
    %v6550 = vadd.f32 %v6534, %v5678
    %v6551 = vadd.f32 %v6535, %v5679
    %v6552 = vadd.f32 %v6536, %v5680
    %v6553 = vadd.f32 %v6537, %v5681
    %v6554 = vadd.f32 %v6538, %v5682
    %v6555 = vadd.f32 %v6539, %v5683
    %v6556 = vadd.f32 %v6540, %v5684
    %v6557 = vadd.f32 %v6541, %v2126
    %v6558 = vadd.f32 %v6542, %v2126
    %v6559 = vadd.f32 %v6543, %v2126
    %v6560 = vadd.f32 %v6544, %v2126
    %v6561 = vadd.f32 %v6545, %v2131
    %v6562 = vadd.f32 %v6546, %v2131
    %v6563 = vadd.f32 %v6547, %v2131
    %v6564 = vadd.f32 %v6548, %v2131
    %v6565 = vadd.f32 %v6549, %v2136
    %v6566 = vadd.f32 %v6550, %v2136
    %v6567 = vadd.f32 %v6551, %v2136
    %v6568 = vadd.f32 %v6552, %v2136
    %v6569 = vadd.f32 %v6553, %v2141
    %v6570 = vadd.f32 %v6554, %v2141
    %v6571 = vadd.f32 %v6555, %v2141
    %v6572 = vadd.f32 %v6556, %v2141
    %v6573 = vmax.f32 %v6557, 0.0
    %v6574 = vmax.f32 %v6558, 0.0
    %v6575 = vmax.f32 %v6559, 0.0
    %v6576 = vmax.f32 %v6560, 0.0
    %v6577 = vmax.f32 %v6561, 0.0
    %v6578 = vmax.f32 %v6562, 0.0
    %v6579 = vmax.f32 %v6563, 0.0
    %v6580 = vmax.f32 %v6564, 0.0
    %v6581 = vmax.f32 %v6565, 0.0
    %v6582 = vmax.f32 %v6566, 0.0
    %v6583 = vmax.f32 %v6567, 0.0
    %v6584 = vmax.f32 %v6568, 0.0
    %v6585 = vmax.f32 %v6569, 0.0
    %v6586 = vmax.f32 %v6570, 0.0
    %v6587 = vmax.f32 %v6571, 0.0
    %v6588 = vmax.f32 %v6572, 0.0
    %v6589 = vpack.c.bf16 %v6577, %v6573
    %v6590 = vpack.c.bf16 %v6578, %v6574
    %v6591 = vpack.c.bf16 %v6579, %v6575
    %v6592 = vpack.c.bf16 %v6580, %v6576
    %v6593 = vpack.c.bf16 %v6585, %v6581
    %v6594 = vpack.c.bf16 %v6586, %v6582
    %v6595 = vpack.c.bf16 %v6587, %v6583
    %v6596 = vpack.c.bf16 %v6588, %v6584
    %6597 = vmatprep.subr.bf16.mxu0 %v6590
    %6598 = vmatpush1.bf16.msra.mxu0 %v6589
    %6599 = vmatprep.subr.bf16.mxu0 %v6594
    %6600 = vmatpush1.bf16.msra.mxu0 %v6593
    %6601 = vmatprep.subr.bf16.mxu0 0
    %6602 = vmatpush1.bf16.msra.mxu0 0
    %6603 = vmatprep.subr.bf16.mxu0 0
    %6604 = vmatpush1.bf16.msra.mxu0 0
    %6605 = vmatprep.subr.bf16.mxu0 0
    %6606 = vmatpush1.bf16.msra.mxu0 0
    %6607 = vmatprep.subr.bf16.mxu0 0
    %6608 = vmatpush1.bf16.msra.mxu0 0
    %6609 = vmatprep.subr.bf16.mxu0 0
    %6610 = vmatpush1.bf16.msra.mxu0 0
    %6611 = vmatprep.subr.bf16.mxu0 0
    %6612 = vmatpush1.bf16.msra.mxu0 0
    %6613 = vmatprep.subr.bf16.mxu0 0
    %6614 = vmatpush1.bf16.msra.mxu0 0
    %6615 = vmatprep.subr.bf16.mxu0 0
    %6616 = vmatpush1.bf16.msra.mxu0 0
    %6617 = vmatprep.subr.bf16.mxu0 0
    %6618 = vmatpush1.bf16.msra.mxu0 0
    %6619 = vmatprep.subr.bf16.mxu0 0
    %6620 = vmatpush1.bf16.msra.mxu0 0
    %6621 = vmatprep.subr.bf16.mxu0 0
    %6622 = vmatpush1.bf16.msra.mxu0 0
    %6623 = vmatprep.subr.bf16.mxu0 0
    %6624 = vmatpush1.bf16.msra.mxu0 0
    %6625 = vmatprep.subr.bf16.mxu0 0
    %6626 = vmatpush1.bf16.msra.mxu0 0
    %6627 = vmatprep.subr.bf16.mxu0 0
    %6628 = vmatpush1.bf16.msra.mxu0 0
    %6629 = vmatprep.mubr.bf16.mxu0 0
    %6630 = vmatmul.mubr.bf16.gmra.mrb[0].mxu0 %v2192
    %v6631 = vpop.f32.mrb[0].mxu0
    %v6632 = vadd.f32 %v5745, %v6631
    %v6633 = vpop.f32.mrb[0].mxu0
    %v6634 = vadd.f32 %v5745, %v6633
    %v6635 = vpop.f32.mrb[0].mxu0
    %v6636 = vpop.f32.mrb[0].mxu0
    %6637 = vdwg.mxu0
    %6638 = vmatprep.subr.bf16.mxu0 %v6592
    %6639 = vmatpush1.bf16.msra.mxu0 %v6591
    %6640 = vmatprep.subr.bf16.mxu0 %v6596
    %6641 = vmatpush1.bf16.msra.mxu0 %v6595
    %6642 = vmatprep.subr.bf16.mxu0 0
    %6643 = vmatpush1.bf16.msra.mxu0 0
    %6644 = vmatprep.subr.bf16.mxu0 0
    %6645 = vmatpush1.bf16.msra.mxu0 0
    %6646 = vmatprep.subr.bf16.mxu0 0
    %6647 = vmatpush1.bf16.msra.mxu0 0
    %6648 = vmatprep.subr.bf16.mxu0 0
    %6649 = vmatpush1.bf16.msra.mxu0 0
    %6650 = vmatprep.subr.bf16.mxu0 0
    %6651 = vmatpush1.bf16.msra.mxu0 0
    %6652 = vmatprep.subr.bf16.mxu0 0
    %6653 = vmatpush1.bf16.msra.mxu0 0
    %6654 = vmatprep.subr.bf16.mxu0 0
    %6655 = vmatpush1.bf16.msra.mxu0 0
    %6656 = vmatprep.subr.bf16.mxu0 0
    %6657 = vmatpush1.bf16.msra.mxu0 0
    %6658 = vmatprep.subr.bf16.mxu0 0
    %6659 = vmatpush1.bf16.msra.mxu0 0
    %6660 = vmatprep.subr.bf16.mxu0 0
    %6661 = vmatpush1.bf16.msra.mxu0 0
    %6662 = vmatprep.subr.bf16.mxu0 0
    %6663 = vmatpush1.bf16.msra.mxu0 0
    %6664 = vmatprep.subr.bf16.mxu0 0
    %6665 = vmatpush1.bf16.msra.mxu0 0
    %6666 = vmatprep.subr.bf16.mxu0 0
    %6667 = vmatpush1.bf16.msra.mxu0 0
    %6668 = vmatprep.subr.bf16.mxu0 0
    %6669 = vmatpush1.bf16.msra.mxu0 0
    %6670 = vmatprep.mubr.bf16.mxu0 0
    %6671 = vmatmul.mubr.bf16.gmra.mrb[0].mxu0 %v2192
    %v6672 = vpop.f32.mrb[0].mxu0
    %v6673 = vadd.f32 %v5745, %v6672
    %v6674 = vpop.f32.mrb[0].mxu0
    %v6675 = vadd.f32 %v5745, %v6674
    %v6676 = vpop.f32.mrb[0].mxu0
    %v6677 = vpop.f32.mrb[0].mxu0
    %6678 = vdwg.mxu0
    %v6679 = vadd.f32 %v6632, %v2280
    %v6680 = vadd.f32 %v6634, %v2280
    %v6681 = vadd.f32 %v6673, %v2280
    %v6682 = vadd.f32 %v6675, %v2280
    %v6683 = vmul.f32 %v1159, 0.0012326388
    %v6684 = vmul.f32 %v1160, 0.0012326388
    %v6685 = vmul.f32 %v1161, 0.0012326388
    %v6686 = vmul.f32 %v1162, 0.0012326388
    %v6687 = vmul.f32 %v3157, -0.0042527704
    %v6688 = vmul.f32 %v3158, -0.0042527704
    %v6689 = vmul.f32 %v3159, -0.0042527704
    %v6690 = vmul.f32 %v3160, -0.0042527704
    %v6691 = vadd.f32 %v6683, %v6687
    %v6692 = vadd.f32 %v6684, %v6688
    %v6693 = vadd.f32 %v6685, %v6689
    %v6694 = vadd.f32 %v6686, %v6690
    %v6695 = vmul.f32 %v4040, 0.036979165
    %v6696 = vmul.f32 %v4041, 0.036979165
    %v6697 = vmul.f32 %v4042, 0.036979165
    %v6698 = vmul.f32 %v4043, 0.036979165
    %v6699 = vadd.f32 %v6691, %v6695
    %v6700 = vadd.f32 %v6692, %v6696
    %v6701 = vadd.f32 %v6693, %v6697
    %v6702 = vadd.f32 %v6694, %v6698
    %v6703 = vmul.f32 %v4931, -0.0508638
    %v6704 = vmul.f32 %v4932, -0.0508638
    %v6705 = vmul.f32 %v4933, -0.0508638
    %v6706 = vmul.f32 %v4934, -0.0508638
    %v6707 = vadd.f32 %v6699, %v6703
    %v6708 = vadd.f32 %v6700, %v6704
    %v6709 = vadd.f32 %v6701, %v6705
    %v6710 = vadd.f32 %v6702, %v6706
    %v6711 = vmul.f32 %v5829, 0.041904762
    %v6712 = vmul.f32 %v5830, 0.041904762
    %v6713 = vmul.f32 %v5831, 0.041904762
    %v6714 = vmul.f32 %v5832, 0.041904762
    %v6715 = vadd.f32 %v6707, %v6711
    %v6716 = vadd.f32 %v6708, %v6712
    %v6717 = vadd.f32 %v6709, %v6713
    %v6718 = vadd.f32 %v6710, %v6714
    %v6719 = vmul.f32 %v6679, -0.025
    %v6720 = vmul.f32 %v6680, -0.025
    %v6721 = vmul.f32 %v6681, -0.025
    %v6722 = vmul.f32 %v6682, -0.025
    %v6723 = vadd.f32 %v6715, %v6719
    %v6724 = vadd.f32 %v6716, %v6720
    %v6725 = vadd.f32 %v6717, %v6721
    %v6726 = vadd.f32 %v6718, %v6722
    %v6727 = vmul.f32 %v1177, %v6723
    %v6728 = vmul.f32 %v1177, %v6724
    %v6729 = vmul.f32 %v1177, %v6725
    %v6730 = vmul.f32 %v1177, %v6726
    %v6731 = vand.u32 2147483647, %v1157
    %v6732 = vand.u32 2147483647, %v1158
    %v6733 = vand.u32 2147483647, %v5881
    %v6734 = vand.u32 2147483647, %v5882
    %v6735 = vmax.f32 %v6731, %v6733
    %v6736 = vmax.f32 %v6732, %v6734
    %v6737 = vmul.f32 %v6735, 0.001
    %v6738 = vmul.f32 %v6736, 0.001
    %v6739 = vadd.f32 %v6737, 0.001
    %v6740 = vadd.f32 %v6738, 0.001
    %v6743 = vcombine.high %v6739, %v6739
    %v6744 = vcombine.high %v6740, %v6740
    %v6747 = vrcp.pop %v6739
    %v6748 = vmul.f32 %v6727, %v6747
    %v6749 = vrcp.pop %v6743
    %v6750 = vmul.f32 %v6728, %v6749
    %v6751 = vrcp.pop %v6740
    %v6752 = vmul.f32 %v6729, %v6751
    %v6753 = vrcp.pop %v6744
    %v6754 = vmul.f32 %v6730, %v6753
    %v6755 = vmul.f32 %v6748, %v6748
    %v6756 = vmul.f32 %v6750, %v6750
    %v6757 = vmul.f32 %v6752, %v6752
    %v6758 = vmul.f32 %v6754, %v6754
    %vm6759 = vcmask 1043456
    %v6760 = vsel %vm6759, %v6755, 0.0
    %v6761 = vsel %vm6759, %v6756, 0.0
    %v6762 = vadd.f32 %v6760, %v6761
    %v6763 = vsel %vm6759, %v6757, 0.0
    %v6764 = vadd.f32 %v6762, %v6763
    %v6765 = vsel %vm6759, %v6758, 0.0
    %v6766 = vadd.f32 %v6764, %v6765
    %6767 = vadd.xlane.f32.xlu0 %v6766
    %v6768 = vpop.xlane.xlu0 %6767
    %v6769 = vrot.slane %v6768, 4
    %v6770 = vadd.f32 %v6768, %v6769
    %v6771 = vrot.slane %v6770, 2
    %v6772 = vadd.f32 %v6770, %v6771
    %v6773 = vrot.slane %v6772, 1
    %v6774 = vadd.f32 %v6772, %v6773
    %s6775 = vtos %v6774
    %v6776 = vrcp.pop 2048.0
    %s6777 = vtos %v6776
    %s6778 = smul.f32 %s6775, %s6777
    %s6779 = smax.f32 %s6778, 1e-20
    %p6780 = scmp.le.f32.partialorder %s6779, 1.0
    %v6781 = vstv %s6779
    %v6782 = vlog2.pop %v6781
    %v6783 = vmul.f32 %v6782, 0.6931472
    %v6784 = vmul.f32 %v6783, -0.1
    %v6785 = vmul.f32 %v6784, 1.442695
    %v6786 = vpow.pop %v6785
    %v6787 = vmul.f32 %v6786, 0.9
    %v6788 = vmax.f32 %v6787, 0.2
    %v6789 = vmin.f32 %v6788, 10.0
    %s6790 = vtos %v6789
    %s6791 = smax.f32 %s6790, 1.0
    %s6792 = scalar_select %p6780, %s6791, %s6790
    %s6793 = scalar_select %p6780, 1, 0
    %v6794 = vstv %s6793
    %vm6795 = vcmp.eq.s32.totalorder %v6794, 1
    %v6796 = vsel %vm6795, %v5881, %v1157
    %v6797 = vsel %vm6795, %v5882, %v1158
    %v6798 = vsel %vm6795, %v6679, %v1159
    %v6799 = vsel %vm6795, %v6680, %v1160
    %v6800 = vsel %vm6795, %v6681, %v1161
    %v6801 = vsel %vm6795, %v6682, %v1162
    %s6802 = scalar_select %p6780, %s4935, %s1154
    %s6803 = smul.f32 %s1170, %s6792
    %s6804 = sadd.s32 %s1156, 1
  $region62: #{ode_block_forward.1} parent=0 // loop_footer
    _
  $region63: #{ode_block_forward.1} parent=0 // loop_footer_branch
    %1153 = sbr.rel target = $region59
  $region64: #{ode_block_forward.1} parent=0 // loop_exit
    _
  %6805 = vst [vmem:[%s14] sm:$0xff] %v1157
  %6806 = vst [vmem:[%s14 + $0x8] sm:$0xff] %v1158
  // Predicated region
  $region65: #{ode_block_forward.1} parent=0 // pred_check
    _
  $region66: #{ode_block_forward.1} parent=0 // pred_check_branch
    %6808 = sbr.rel (0) target = $region68
  $region67: #{ode_block_forward.1} parent=0 // pred_region
    _
  $region68: #{ode_block_forward.1} parent=0 // pred_fallthru
    _
  // Predicated region
  $region69: #{ode_block_forward.1} parent=0 // pred_check
    _
  $region70: #{ode_block_forward.1} parent=0 // pred_check_branch
    %6810 = sbr.rel (0) target = $region72
  $region71: #{ode_block_forward.1} parent=0 // pred_region
    _
  $region72: #{ode_block_forward.1} parent=0 // pred_fallthru
    _

</llo_original>
